<compile_context>
chip_gen: v5e
topology: v5e:2x2
jax: 0.10.0
libtpu: 0.0.40
codegen_flags: <defaults>
</compile_context>

<pallas_src>
import jax
import jax.numpy as jnp
from jax import lax
from jax.experimental import pallas as pl
from jax.experimental.pallas import tpu as pltpu


def _res_block_kernel(x_ref, w1_ref, s1_ref, b1_ref, w2_ref, s2_ref, b2_ref,
                      o_ref, p_ref, h1p_ref):
    # x_ref   : (NB, H+2, Wp, Cp)      zero-padded bf16 input block
    # w1_ref  : (9*Cp, Cp)             conv_1 weights, im2col order (kh,kw,ci), bf16
    # w2_ref  : (9*Cp, Cp)             conv_2 weights, bf16
    # s*/b*   : (1, Cp)                folded BN (+ conv bias) scale / bias, f32
    # o_ref   : (NB, H, W, Cp)         output block, f32
    # p_ref   : VMEM (NB*H*W, 9*Cp)    bf16 im2col staging, reused by both convs
    # h1p_ref : VMEM (NB, H+2, Wp, Cp) bf16 padded intermediate h1
    NB, H, W, Cp = o_ref.shape
    M = NB * H * W
    Wp = h1p_ref.shape[2]

    # Hoisted scale/bias reads (applied once per conv, outside the tap loops).
    s1 = s1_ref[...]
    b1 = b1_ref[...]
    s2 = s2_ref[...]
    b2 = b2_ref[...]

    # ---- conv_1 (3x3, stride 1, pad 1): im2col + one K=9*Cp MXU dot ----
    for kh in range(3):
        for kw in range(3):
            t = kh * 3 + kw
            p_ref[:, t * Cp:(t + 1) * Cp] = (
                x_ref[:, kh:kh + H, kw:kw + W, :].reshape(M, Cp))
    acc1 = jnp.dot(p_ref[...], w1_ref[...],
                   preferred_element_type=jnp.float32)          # (M, Cp) f32
    h1 = jnp.maximum(acc1 * s1 + b1, 0.0).astype(jnp.bfloat16)

    # Stage h1 into the padded VMEM scratch so conv_2 also sees padding=1.
    # Halo-ring zero strips are re-stored every step (safe with "parallel";
    # do NOT gate them on pl.program_id == 0).
    h1p_ref[:, 0:1, :, :] = jnp.zeros((NB, 1, Wp, Cp), jnp.bfloat16)
    h1p_ref[:, H + 1:H + 2, :, :] = jnp.zeros((NB, 1, Wp, Cp), jnp.bfloat16)
    h1p_ref[:, :, 0:1, :] = jnp.zeros((NB, H + 2, 1, Cp), jnp.bfloat16)
    h1p_ref[:, :, W + 1:W + 2, :] = jnp.zeros((NB, H + 2, 1, Cp), jnp.bfloat16)
    h1p_ref[:, 1:H + 1, 1:W + 1, :] = h1.reshape(NB, H, W, Cp)

    # ---- conv_2 (3x3, stride 1, pad 1): im2col + one K=9*Cp MXU dot ----
    for kh in range(3):
        for kw in range(3):
            t = kh * 3 + kw
            p_ref[:, t * Cp:(t + 1) * Cp] = (
                h1p_ref[:, kh:kh + H, kw:kw + W, :].reshape(M, Cp))
    acc2 = jnp.dot(p_ref[...], w2_ref[...],
                   preferred_element_type=jnp.float32)
    x2 = acc2 * s2 + b2

    # ---- residual add (identity shortcut: Cin == Cout) + final ReLU ----
    resid = x_ref[:, 1:H + 1, 1:W + 1, :].reshape(M, Cp).astype(jnp.float32)
    out = jnp.maximum(x2 + resid, 0.0)
    o_ref[...] = out.reshape(NB, H, W, Cp).astype(o_ref.dtype)


def _pick_block_batch(n, max_nb=8):
    """Largest NB (divisor of n, <= max_nb) that keeps >=2 grid steps.

    >=2 grid steps lets v7x's two TensorCores both get work; within that,
    larger NB amortizes the fixed per-grid-step overhead.  max_nb keeps the
    per-step VMEM working set (~1.2 MB per batch element here) small.
    """
    best = 1
    for nb in range(1, min(n, max_nb) + 1):
        if n % nb == 0 and n // nb >= 2:
            best = nb
    return best


def res_block_forward(x_nhwc, w1, s1, b1, w2, s2, b2, *, block_batch=None):
    """Identity-shortcut res_block forward.

    x_nhwc: (N,H,W,C) f32; w1/w2: (3,3,C,C) HWIO f32; s*/b*: (C,) folded BN.
    """
    N, H, W, C = x_nhwc.shape
    Cout = w1.shape[-1]
    assert C == Cout, "identity shortcut requires Cin == Cout (stride=1 path)"

    lane = 128
    Cp = ((max(C, lane) + lane - 1) // lane) * lane
    pad_c = Cp - C
    # Sublane-friendly padded row extent: W+2 rounded up to a multiple of 8.
    Wp = ((W + 2 + 7) // 8) * 8

    NB = block_batch if block_batch is not None else _pick_block_batch(N)
    assert N % NB == 0, "block batch must divide the batch size"

    # Lane-dense, bf16 input delivery (zero-padded channels stay exactly zero).
    xb = x_nhwc.astype(jnp.bfloat16)
    xp = jnp.pad(xb, ((0, 0), (1, 1), (1, Wp - W - 1), (0, pad_c)))

    # Weights: pad channels, cast to bf16, reshape to im2col matrices.
    # Row index = (kh*3 + kw)*Cp + ci, matching the kernel's patch layout.
    def prep_w(w):
        wp = jnp.pad(w, ((0, 0), (0, 0), (0, pad_c), (0, pad_c)))
        return wp.astype(jnp.bfloat16).reshape(9 * Cp, Cp)

    w1m, w2m = prep_w(w1), prep_w(w2)

    def pad_vec(v):
        return jnp.pad(v.reshape(1, -1), ((0, 0), (0, pad_c))).astype(jnp.float32)

    s1p, b1p, s2p, b2p = pad_vec(s1), pad_vec(b1), pad_vec(s2), pad_vec(b2)

    # NOTE(v7x): at large channel counts the constant weight blocks could be
    # single-buffered (pipeline_mode=pl.Buffered(1)) to reclaim VMEM under the
    # 64 MiB/TC ceiling; at Cp=128 each is only ~288 KB so the portable
    # default is kept.
    out = pl.pallas_call(
        _res_block_kernel,
        out_shape=jax.ShapeDtypeStruct((N, H, W, Cp), jnp.float32),
        grid_spec=pltpu.PrefetchScalarGridSpec(
            num_scalar_prefetch=0,
            grid=(N // NB,),
            in_specs=[
                pl.BlockSpec((NB, H + 2, Wp, Cp), lambda b: (b, 0, 0, 0)),
                pl.BlockSpec((9 * Cp, Cp), lambda b: (0, 0)),
                pl.BlockSpec((1, Cp), lambda b: (0, 0)),
                pl.BlockSpec((1, Cp), lambda b: (0, 0)),
                pl.BlockSpec((9 * Cp, Cp), lambda b: (0, 0)),
                pl.BlockSpec((1, Cp), lambda b: (0, 0)),
                pl.BlockSpec((1, Cp), lambda b: (0, 0)),
            ],
            out_specs=pl.BlockSpec((NB, H, W, Cp), lambda b: (b, 0, 0, 0)),
            scratch_shapes=[
                pltpu.VMEM((NB * H * W, 9 * Cp), jnp.bfloat16),   # im2col
                pltpu.VMEM((NB, H + 2, Wp, Cp), jnp.bfloat16),    # padded h1
            ],
        ),
        compiler_params=pltpu.CompilerParams(
            dimension_semantics=("parallel",)),
    )(xp, w1m, s1p, b1p, w2m, s2p, b2p)

    return out[..., :C]


def _fold_bn(gamma, beta, mean, var, conv_bias, eps=1e-5):
    """Fold BN (inference) + preceding conv bias into per-channel scale/bias."""
    scale = gamma / jnp.sqrt(var + eps)
    bias = scale * (conv_bias - mean) + beta
    return scale, bias


def _ref_forward(x_nhwc, w1, s1, b1, w2, s2, b2):
    """Pure-JAX reference matching the kernel's bf16-operand / f32-acc math."""
    dn = ("NHWC", "HWIO", "NHWC")
    xb = x_nhwc.astype(jnp.bfloat16)
    y1 = lax.conv_general_dilated(
        xb, w1.astype(jnp.bfloat16), (1, 1), "SAME",
        dimension_numbers=dn, preferred_element_type=jnp.float32)
    y1 = jnp.maximum(y1 * s1 + b1, 0.0)
    y2 = lax.conv_general_dilated(
        y1.astype(jnp.bfloat16), w2.astype(jnp.bfloat16), (1, 1), "SAME",
        dimension_numbers=dn, preferred_element_type=jnp.float32)
    y2 = y2 * s2 + b2
    return jnp.maximum(y2 + xb.astype(jnp.float32), 0.0)


if __name__ == "__main__":
    # res_block(input=4, output=4, stride=1) -- identity-shaped residual path
    N, C, H, W = 2, 4, 16, 16

    key = jax.random.PRNGKey(0)
    keys = jax.random.split(key, 12)

    # PyTorch-convention tensors: x is NCHW, conv weights are OIHW.
    x_nchw = jax.random.normal(keys[0], (N, C, H, W), jnp.float32)
    w1_oihw = jax.random.normal(keys[1], (C, C, 3, 3), jnp.float32) * 0.1
    b1_conv = jax.random.normal(keys[2], (C,), jnp.float32) * 0.1
    w2_oihw = jax.random.normal(keys[3], (C, C, 3, 3), jnp.float32) * 0.1
    b2_conv = jax.random.normal(keys[4], (C,), jnp.float32) * 0.1

    # BatchNorm2d parameters / running stats (deterministic).
    g1 = 1.0 + 0.1 * jax.random.normal(keys[5], (C,), jnp.float32)
    be1 = 0.1 * jax.random.normal(keys[6], (C,), jnp.float32)
    m1 = 0.1 * jax.random.normal(keys[7], (C,), jnp.float32)
    v1 = 0.5 + jax.random.uniform(keys[8], (C,), jnp.float32)
    g2 = 1.0 + 0.1 * jax.random.normal(keys[9], (C,), jnp.float32)
    be2 = 0.1 * jax.random.normal(keys[10], (C,), jnp.float32)
    m2 = 0.1 * jax.random.normal(keys[11], (C,), jnp.float32)
    v2 = 0.5 + jax.random.uniform(jax.random.PRNGKey(123), (C,), jnp.float32)

    # Layout conversion for the TPU kernel.
    x_nhwc = jnp.transpose(x_nchw, (0, 2, 3, 1))       # NCHW -> NHWC
    w1 = jnp.transpose(w1_oihw, (2, 3, 1, 0))          # OIHW -> HWIO
    w2 = jnp.transpose(w2_oihw, (2, 3, 1, 0))

    s1, bb1 = _fold_bn(g1, be1, m1, v1, b1_conv)
    s2, bb2 = _fold_bn(g2, be2, m2, v2, b2_conv)

    out = res_block_forward(x_nhwc, w1, s1, bb1, w2, s2, bb2)
    out = jax.block_until_ready(out)

    ref = _ref_forward(x_nhwc, w1, s1, bb1, w2, s2, bb2)
    assert out.shape == (N, H, W, C)
    assert jnp.allclose(out, ref, atol=2e-3, rtol=2e-3), "mismatch vs reference"

    print("KERNEL_OK")
</pallas_src>

<mosaic_0001>
module attributes {stable_mosaic.version = 11 : i64} {
  func.func @_res_block_kernel(%arg0: i32, %arg1: memref<1x18x24x128xbf16, #tpu.memory_space<vmem>>, %arg2: memref<1152x128xbf16, #tpu.memory_space<vmem>>, %arg3: memref<1x128xf32, #tpu.memory_space<vmem>>, %arg4: memref<1x128xf32, #tpu.memory_space<vmem>>, %arg5: memref<1152x128xbf16, #tpu.memory_space<vmem>>, %arg6: memref<1x128xf32, #tpu.memory_space<vmem>>, %arg7: memref<1x128xf32, #tpu.memory_space<vmem>>, %arg8: memref<1x16x16x128xf32, #tpu.memory_space<vmem>>, %arg9: memref<256x1152xbf16, #tpu.memory_space<vmem>>, %arg10: memref<1x18x24x128xbf16, #tpu.memory_space<vmem>>) attributes {dimension_semantics = [#tpu.dimension_semantics<parallel>], iteration_bounds = array<i64: 2>, scalar_prefetch = 0 : i64, scratch_operands = 2 : i64, tpu.core_type = #tpu.core_type<tc>, window_params = [{transform_indices = @transform_0, window_bounds = array<i64: 1, 18, 24, 128>}, {pipeline_mode = #tpu.pipeline_mode<synchronous>, transform_indices = @transform_1, window_bounds = array<i64: 1152, 128>}, {pipeline_mode = #tpu.pipeline_mode<synchronous>, transform_indices = @transform_2, window_bounds = array<i64: 1, 128>}, {pipeline_mode = #tpu.pipeline_mode<synchronous>, transform_indices = @transform_3, window_bounds = array<i64: 1, 128>}, {pipeline_mode = #tpu.pipeline_mode<synchronous>, transform_indices = @transform_4, window_bounds = array<i64: 1152, 128>}, {pipeline_mode = #tpu.pipeline_mode<synchronous>, transform_indices = @transform_5, window_bounds = array<i64: 1, 128>}, {pipeline_mode = #tpu.pipeline_mode<synchronous>, transform_indices = @transform_6, window_bounds = array<i64: 1, 128>}, {transform_indices = @transform_7, window_bounds = array<i64: 1, 16, 16, 128>}]} {
    %c0 = arith.constant 0 : index
    %c0_0 = arith.constant 0 : index
    %0 = vector.load %arg3[%c0, %c0_0] : memref<1x128xf32, #tpu.memory_space<vmem>>, vector<1x128xf32>
    %c0_1 = arith.constant 0 : index
    %c0_2 = arith.constant 0 : index
    %1 = vector.load %arg4[%c0_1, %c0_2] : memref<1x128xf32, #tpu.memory_space<vmem>>, vector<1x128xf32>
    %c0_3 = arith.constant 0 : index
    %c0_4 = arith.constant 0 : index
    %2 = vector.load %arg6[%c0_3, %c0_4] : memref<1x128xf32, #tpu.memory_space<vmem>>, vector<1x128xf32>
    %c0_5 = arith.constant 0 : index
    %c0_6 = arith.constant 0 : index
    %3 = vector.load %arg7[%c0_5, %c0_6] : memref<1x128xf32, #tpu.memory_space<vmem>>, vector<1x128xf32>
    %c0_7 = arith.constant 0 : index
    %c0_8 = arith.constant 0 : index
    %c0_9 = arith.constant 0 : index
    %c0_10 = arith.constant 0 : index
    %4 = vector.load %arg1[%c0_7, %c0_8, %c0_9, %c0_10] : memref<1x18x24x128xbf16, #tpu.memory_space<vmem>>, vector<1x16x16x128xbf16>
    %5 = vector.shape_cast %4 : vector<1x16x16x128xbf16> to vector<256x128xbf16>
    %c0_11 = arith.constant 0 : index
    %c0_12 = arith.constant 0 : index
    %6 = vector.load %arg9[%c0_11, %c0_12] : memref<256x1152xbf16, #tpu.memory_space<vmem>>, vector<256x128xbf16>
    tpu.vector_store %arg9[%c0_11, %c0_12], %5 {strides = array<i32>} : memref<256x1152xbf16, #tpu.memory_space<vmem>>, vector<256x128xbf16>,
    %c0_13 = arith.constant 0 : index
    %c0_14 = arith.constant 0 : index
    %c1 = arith.constant 1 : index
    %c0_15 = arith.constant 0 : index
    %7 = vector.load %arg1[%c0_13, %c0_14, %c1, %c0_15] : memref<1x18x24x128xbf16, #tpu.memory_space<vmem>>, vector<1x16x16x128xbf16>
    %8 = vector.shape_cast %7 : vector<1x16x16x128xbf16> to vector<256x128xbf16>
    %c0_16 = arith.constant 0 : index
    %c128 = arith.constant 128 : index
    %9 = vector.load %arg9[%c0_16, %c128] : memref<256x1152xbf16, #tpu.memory_space<vmem>>, vector<256x128xbf16>
    tpu.vector_store %arg9[%c0_16, %c128], %8 {strides = array<i32>} : memref<256x1152xbf16, #tpu.memory_space<vmem>>, vector<256x128xbf16>,
    %c0_17 = arith.constant 0 : index
    %c0_18 = arith.constant 0 : index
    %c2 = arith.constant 2 : index
    %c0_19 = arith.constant 0 : index
    %10 = vector.load %arg1[%c0_17, %c0_18, %c2, %c0_19] : memref<1x18x24x128xbf16, #tpu.memory_space<vmem>>, vector<1x16x16x128xbf16>
    %11 = vector.shape_cast %10 : vector<1x16x16x128xbf16> to vector<256x128xbf16>
    %c0_20 = arith.constant 0 : index
    %c256 = arith.constant 256 : index
    %12 = vector.load %arg9[%c0_20, %c256] : memref<256x1152xbf16, #tpu.memory_space<vmem>>, vector<256x128xbf16>
    tpu.vector_store %arg9[%c0_20, %c256], %11 {strides = array<i32>} : memref<256x1152xbf16, #tpu.memory_space<vmem>>, vector<256x128xbf16>,
    %c0_21 = arith.constant 0 : index
    %c1_22 = arith.constant 1 : index
    %c0_23 = arith.constant 0 : index
    %c0_24 = arith.constant 0 : index
    %13 = vector.load %arg1[%c0_21, %c1_22, %c0_23, %c0_24] : memref<1x18x24x128xbf16, #tpu.memory_space<vmem>>, vector<1x16x16x128xbf16>
    %14 = vector.shape_cast %13 : vector<1x16x16x128xbf16> to vector<256x128xbf16>
    %c0_25 = arith.constant 0 : index
    %c384 = arith.constant 384 : index
    %15 = vector.load %arg9[%c0_25, %c384] : memref<256x1152xbf16, #tpu.memory_space<vmem>>, vector<256x128xbf16>
    tpu.vector_store %arg9[%c0_25, %c384], %14 {strides = array<i32>} : memref<256x1152xbf16, #tpu.memory_space<vmem>>, vector<256x128xbf16>,
    %c0_26 = arith.constant 0 : index
    %c1_27 = arith.constant 1 : index
    %c1_28 = arith.constant 1 : index
    %c0_29 = arith.constant 0 : index
    %16 = vector.load %arg1[%c0_26, %c1_27, %c1_28, %c0_29] : memref<1x18x24x128xbf16, #tpu.memory_space<vmem>>, vector<1x16x16x128xbf16>
    %17 = vector.shape_cast %16 : vector<1x16x16x128xbf16> to vector<256x128xbf16>
    %c0_30 = arith.constant 0 : index
    %c512 = arith.constant 512 : index
    %18 = vector.load %arg9[%c0_30, %c512] : memref<256x1152xbf16, #tpu.memory_space<vmem>>, vector<256x128xbf16>
    tpu.vector_store %arg9[%c0_30, %c512], %17 {strides = array<i32>} : memref<256x1152xbf16, #tpu.memory_space<vmem>>, vector<256x128xbf16>,
    %c0_31 = arith.constant 0 : index
    %c1_32 = arith.constant 1 : index
    %c2_33 = arith.constant 2 : index
    %c0_34 = arith.constant 0 : index
    %19 = vector.load %arg1[%c0_31, %c1_32, %c2_33, %c0_34] : memref<1x18x24x128xbf16, #tpu.memory_space<vmem>>, vector<1x16x16x128xbf16>
    %20 = vector.shape_cast %19 : vector<1x16x16x128xbf16> to vector<256x128xbf16>
    %c0_35 = arith.constant 0 : index
    %c640 = arith.constant 640 : index
    %21 = vector.load %arg9[%c0_35, %c640] : memref<256x1152xbf16, #tpu.memory_space<vmem>>, vector<256x128xbf16>
    tpu.vector_store %arg9[%c0_35, %c640], %20 {strides = array<i32>} : memref<256x1152xbf16, #tpu.memory_space<vmem>>, vector<256x128xbf16>,
    %c0_36 = arith.constant 0 : index
    %c2_37 = arith.constant 2 : index
    %c0_38 = arith.constant 0 : index
    %c0_39 = arith.constant 0 : index
    %22 = vector.load %arg1[%c0_36, %c2_37, %c0_38, %c0_39] : memref<1x18x24x128xbf16, #tpu.memory_space<vmem>>, vector<1x16x16x128xbf16>
    %23 = vector.shape_cast %22 : vector<1x16x16x128xbf16> to vector<256x128xbf16>
    %c0_40 = arith.constant 0 : index
    %c768 = arith.constant 768 : index
    %24 = vector.load %arg9[%c0_40, %c768] : memref<256x1152xbf16, #tpu.memory_space<vmem>>, vector<256x128xbf16>
    tpu.vector_store %arg9[%c0_40, %c768], %23 {strides = array<i32>} : memref<256x1152xbf16, #tpu.memory_space<vmem>>, vector<256x128xbf16>,
    %c0_41 = arith.constant 0 : index
    %c2_42 = arith.constant 2 : index
    %c1_43 = arith.constant 1 : index
    %c0_44 = arith.constant 0 : index
    %25 = vector.load %arg1[%c0_41, %c2_42, %c1_43, %c0_44] : memref<1x18x24x128xbf16, #tpu.memory_space<vmem>>, vector<1x16x16x128xbf16>
    %26 = vector.shape_cast %25 : vector<1x16x16x128xbf16> to vector<256x128xbf16>
    %c0_45 = arith.constant 0 : index
    %c896 = arith.constant 896 : index
    %27 = vector.load %arg9[%c0_45, %c896] : memref<256x1152xbf16, #tpu.memory_space<vmem>>, vector<256x128xbf16>
    tpu.vector_store %arg9[%c0_45, %c896], %26 {strides = array<i32>} : memref<256x1152xbf16, #tpu.memory_space<vmem>>, vector<256x128xbf16>,
    %c0_46 = arith.constant 0 : index
    %c2_47 = arith.constant 2 : index
    %c2_48 = arith.constant 2 : index
    %c0_49 = arith.constant 0 : index
    %28 = vector.load %arg1[%c0_46, %c2_47, %c2_48, %c0_49] : memref<1x18x24x128xbf16, #tpu.memory_space<vmem>>, vector<1x16x16x128xbf16>
    %29 = vector.shape_cast %28 : vector<1x16x16x128xbf16> to vector<256x128xbf16>
    %c0_50 = arith.constant 0 : index
    %c1024 = arith.constant 1024 : index
    %30 = vector.load %arg9[%c0_50, %c1024] : memref<256x1152xbf16, #tpu.memory_space<vmem>>, vector<256x128xbf16>
    tpu.vector_store %arg9[%c0_50, %c1024], %29 {strides = array<i32>} : memref<256x1152xbf16, #tpu.memory_space<vmem>>, vector<256x128xbf16>,
    %c0_51 = arith.constant 0 : index
    %c0_52 = arith.constant 0 : index
    %31 = vector.load %arg9[%c0_51, %c0_52] : memref<256x1152xbf16, #tpu.memory_space<vmem>>, vector<256x1152xbf16>
    %c0_53 = arith.constant 0 : index
    %c0_54 = arith.constant 0 : index
    %32 = vector.load %arg2[%c0_53, %c0_54] : memref<1152x128xbf16, #tpu.memory_space<vmem>>, vector<1152x128xbf16>
    %cst = arith.constant dense<0.000000e+00> : vector<256x128xf32>
    %33 = tpu.matmul %31, %32, %cst {dimension_numbers = #tpu.dot_dimension_numbers<[1], [0], [0], [1], [0, 0, 1, 1], [], []>} : vector<256x1152xbf16>, vector<1152x128xbf16>, vector<256x128xf32> -> vector<256x128xf32>
    %34 = vector.broadcast %0 : vector<1x128xf32> to vector<256x128xf32>
    %35 = arith.mulf %33, %34 : vector<256x128xf32>
    %36 = vector.broadcast %1 : vector<1x128xf32> to vector<256x128xf32>
    %37 = arith.addf %35, %36 : vector<256x128xf32>
    %cst_55 = arith.constant 0.000000e+00 : f32
    %38 = vector.broadcast %cst_55 : f32 to vector<256x128xf32>
    %39 = arith.maximumf %37, %38 : vector<256x128xf32>
    %40 = arith.truncf %39 : vector<256x128xf32> to vector<256x128xbf16>
    %cst_56 = arith.constant 0.000000e+00 : bf16
    %41 = vector.broadcast %cst_56 : bf16 to vector<1x1x24x128xbf16>
    %c0_57 = arith.constant 0 : index
    %c0_58 = arith.constant 0 : index
    %c0_59 = arith.constant 0 : index
    %c0_60 = arith.constant 0 : index
    %42 = vector.load %arg10[%c0_57, %c0_58, %c0_59, %c0_60] : memref<1x18x24x128xbf16, #tpu.memory_space<vmem>>, vector<1x1x24x128xbf16>
    tpu.vector_store %arg10[%c0_57, %c0_58, %c0_59, %c0_60], %41 {strides = array<i32>} : memref<1x18x24x128xbf16, #tpu.memory_space<vmem>>, vector<1x1x24x128xbf16>,
    %cst_61 = arith.constant 0.000000e+00 : bf16
    %43 = vector.broadcast %cst_61 : bf16 to vector<1x1x24x128xbf16>
    %c0_62 = arith.constant 0 : index
    %c17 = arith.constant 17 : index
    %c0_63 = arith.constant 0 : index
    %c0_64 = arith.constant 0 : index
    %44 = vector.load %arg10[%c0_62, %c17, %c0_63, %c0_64] : memref<1x18x24x128xbf16, #tpu.memory_space<vmem>>, vector<1x1x24x128xbf16>
    tpu.vector_store %arg10[%c0_62, %c17, %c0_63, %c0_64], %43 {strides = array<i32>} : memref<1x18x24x128xbf16, #tpu.memory_space<vmem>>, vector<1x1x24x128xbf16>,
    %cst_65 = arith.constant 0.000000e+00 : bf16
    %45 = vector.broadcast %cst_65 : bf16 to vector<1x18x1x128xbf16>
    %c0_66 = arith.constant 0 : index
    %c0_67 = arith.constant 0 : index
    %c0_68 = arith.constant 0 : index
    %c0_69 = arith.constant 0 : index
    %46 = vector.load %arg10[%c0_66, %c0_67, %c0_68, %c0_69] : memref<1x18x24x128xbf16, #tpu.memory_space<vmem>>, vector<1x18x1x128xbf16>
    tpu.vector_store %arg10[%c0_66, %c0_67, %c0_68, %c0_69], %45 {strides = array<i32>} : memref<1x18x24x128xbf16, #tpu.memory_space<vmem>>, vector<1x18x1x128xbf16>,
    %cst_70 = arith.constant 0.000000e+00 : bf16
    %47 = vector.broadcast %cst_70 : bf16 to vector<1x18x1x128xbf16>
    %c0_71 = arith.constant 0 : index
    %c0_72 = arith.constant 0 : index
    %c17_73 = arith.constant 17 : index
    %c0_74 = arith.constant 0 : index
    %48 = vector.load %arg10[%c0_71, %c0_72, %c17_73, %c0_74] : memref<1x18x24x128xbf16, #tpu.memory_space<vmem>>, vector<1x18x1x128xbf16>
    tpu.vector_store %arg10[%c0_71, %c0_72, %c17_73, %c0_74], %47 {strides = array<i32>} : memref<1x18x24x128xbf16, #tpu.memory_space<vmem>>, vector<1x18x1x128xbf16>,
    %49 = vector.shape_cast %40 : vector<256x128xbf16> to vector<1x16x16x128xbf16>
    %c0_75 = arith.constant 0 : index
    %c1_76 = arith.constant 1 : index
    %c1_77 = arith.constant 1 : index
    %c0_78 = arith.constant 0 : index
    %50 = vector.load %arg10[%c0_75, %c1_76, %c1_77, %c0_78] : memref<1x18x24x128xbf16, #tpu.memory_space<vmem>>, vector<1x16x16x128xbf16>
    tpu.vector_store %arg10[%c0_75, %c1_76, %c1_77, %c0_78], %49 {strides = array<i32>} : memref<1x18x24x128xbf16, #tpu.memory_space<vmem>>, vector<1x16x16x128xbf16>,
    %c0_79 = arith.constant 0 : index
    %c0_80 = arith.constant 0 : index
    %c0_81 = arith.constant 0 : index
    %c0_82 = arith.constant 0 : index
    %51 = vector.load %arg10[%c0_79, %c0_80, %c0_81, %c0_82] : memref<1x18x24x128xbf16, #tpu.memory_space<vmem>>, vector<1x16x16x128xbf16>
    %52 = vector.shape_cast %51 : vector<1x16x16x128xbf16> to vector<256x128xbf16>
    %c0_83 = arith.constant 0 : index
    %c0_84 = arith.constant 0 : index
    %53 = vector.load %arg9[%c0_83, %c0_84] : memref<256x1152xbf16, #tpu.memory_space<vmem>>, vector<256x128xbf16>
    tpu.vector_store %arg9[%c0_83, %c0_84], %52 {strides = array<i32>} : memref<256x1152xbf16, #tpu.memory_space<vmem>>, vector<256x128xbf16>,
    %c0_85 = arith.constant 0 : index
    %c0_86 = arith.constant 0 : index
    %c1_87 = arith.constant 1 : index
    %c0_88 = arith.constant 0 : index
    %54 = vector.load %arg10[%c0_85, %c0_86, %c1_87, %c0_88] : memref<1x18x24x128xbf16, #tpu.memory_space<vmem>>, vector<1x16x16x128xbf16>
    %55 = vector.shape_cast %54 : vector<1x16x16x128xbf16> to vector<256x128xbf16>
    %c0_89 = arith.constant 0 : index
    %c128_90 = arith.constant 128 : index
    %56 = vector.load %arg9[%c0_89, %c128_90] : memref<256x1152xbf16, #tpu.memory_space<vmem>>, vector<256x128xbf16>
    tpu.vector_store %arg9[%c0_89, %c128_90], %55 {strides = array<i32>} : memref<256x1152xbf16, #tpu.memory_space<vmem>>, vector<256x128xbf16>,
    %c0_91 = arith.constant 0 : index
    %c0_92 = arith.constant 0 : index
    %c2_93 = arith.constant 2 : index
    %c0_94 = arith.constant 0 : index
    %57 = vector.load %arg10[%c0_91, %c0_92, %c2_93, %c0_94] : memref<1x18x24x128xbf16, #tpu.memory_space<vmem>>, vector<1x16x16x128xbf16>
    %58 = vector.shape_cast %57 : vector<1x16x16x128xbf16> to vector<256x128xbf16>
    %c0_95 = arith.constant 0 : index
    %c256_96 = arith.constant 256 : index
    %59 = vector.load %arg9[%c0_95, %c256_96] : memref<256x1152xbf16, #tpu.memory_space<vmem>>, vector<256x128xbf16>
    tpu.vector_store %arg9[%c0_95, %c256_96], %58 {strides = array<i32>} : memref<256x1152xbf16, #tpu.memory_space<vmem>>, vector<256x128xbf16>,
    %c0_97 = arith.constant 0 : index
    %c1_98 = arith.constant 1 : index
    %c0_99 = arith.constant 0 : index
    %c0_100 = arith.constant 0 : index
    %60 = vector.load %arg10[%c0_97, %c1_98, %c0_99, %c0_100] : memref<1x18x24x128xbf16, #tpu.memory_space<vmem>>, vector<1x16x16x128xbf16>
    %61 = vector.shape_cast %60 : vector<1x16x16x128xbf16> to vector<256x128xbf16>
    %c0_101 = arith.constant 0 : index
    %c384_102 = arith.constant 384 : index
    %62 = vector.load %arg9[%c0_101, %c384_102] : memref<256x1152xbf16, #tpu.memory_space<vmem>>, vector<256x128xbf16>
    tpu.vector_store %arg9[%c0_101, %c384_102], %61 {strides = array<i32>} : memref<256x1152xbf16, #tpu.memory_space<vmem>>, vector<256x128xbf16>,
    %c0_103 = arith.constant 0 : index
    %c1_104 = arith.constant 1 : index
    %c1_105 = arith.constant 1 : index
    %c0_106 = arith.constant 0 : index
    %63 = vector.load %arg10[%c0_103, %c1_104, %c1_105, %c0_106] : memref<1x18x24x128xbf16, #tpu.memory_space<vmem>>, vector<1x16x16x128xbf16>
    %64 = vector.shape_cast %63 : vector<1x16x16x128xbf16> to vector<256x128xbf16>
    %c0_107 = arith.constant 0 : index
    %c512_108 = arith.constant 512 : index
    %65 = vector.load %arg9[%c0_107, %c512_108] : memref<256x1152xbf16, #tpu.memory_space<vmem>>, vector<256x128xbf16>
    tpu.vector_store %arg9[%c0_107, %c512_108], %64 {strides = array<i32>} : memref<256x1152xbf16, #tpu.memory_space<vmem>>, vector<256x128xbf16>,
    %c0_109 = arith.constant 0 : index
    %c1_110 = arith.constant 1 : index
    %c2_111 = arith.constant 2 : index
    %c0_112 = arith.constant 0 : index
    %66 = vector.load %arg10[%c0_109, %c1_110, %c2_111, %c0_112] : memref<1x18x24x128xbf16, #tpu.memory_space<vmem>>, vector<1x16x16x128xbf16>
    %67 = vector.shape_cast %66 : vector<1x16x16x128xbf16> to vector<256x128xbf16>
    %c0_113 = arith.constant 0 : index
    %c640_114 = arith.constant 640 : index
    %68 = vector.load %arg9[%c0_113, %c640_114] : memref<256x1152xbf16, #tpu.memory_space<vmem>>, vector<256x128xbf16>
    tpu.vector_store %arg9[%c0_113, %c640_114], %67 {strides = array<i32>} : memref<256x1152xbf16, #tpu.memory_space<vmem>>, vector<256x128xbf16>,
    %c0_115 = arith.constant 0 : index
    %c2_116 = arith.constant 2 : index
    %c0_117 = arith.constant 0 : index
    %c0_118 = arith.constant 0 : index
    %69 = vector.load %arg10[%c0_115, %c2_116, %c0_117, %c0_118] : memref<1x18x24x128xbf16, #tpu.memory_space<vmem>>, vector<1x16x16x128xbf16>
    %70 = vector.shape_cast %69 : vector<1x16x16x128xbf16> to vector<256x128xbf16>
    %c0_119 = arith.constant 0 : index
    %c768_120 = arith.constant 768 : index
    %71 = vector.load %arg9[%c0_119, %c768_120] : memref<256x1152xbf16, #tpu.memory_space<vmem>>, vector<256x128xbf16>
    tpu.vector_store %arg9[%c0_119, %c768_120], %70 {strides = array<i32>} : memref<256x1152xbf16, #tpu.memory_space<vmem>>, vector<256x128xbf16>,
    %c0_121 = arith.constant 0 : index
    %c2_122 = arith.constant 2 : index
    %c1_123 = arith.constant 1 : index
    %c0_124 = arith.constant 0 : index
    %72 = vector.load %arg10[%c0_121, %c2_122, %c1_123, %c0_124] : memref<1x18x24x128xbf16, #tpu.memory_space<vmem>>, vector<1x16x16x128xbf16>
    %73 = vector.shape_cast %72 : vector<1x16x16x128xbf16> to vector<256x128xbf16>
    %c0_125 = arith.constant 0 : index
    %c896_126 = arith.constant 896 : index
    %74 = vector.load %arg9[%c0_125, %c896_126] : memref<256x1152xbf16, #tpu.memory_space<vmem>>, vector<256x128xbf16>
    tpu.vector_store %arg9[%c0_125, %c896_126], %73 {strides = array<i32>} : memref<256x1152xbf16, #tpu.memory_space<vmem>>, vector<256x128xbf16>,
    %c0_127 = arith.constant 0 : index
    %c2_128 = arith.constant 2 : index
    %c2_129 = arith.constant 2 : index
    %c0_130 = arith.constant 0 : index
    %75 = vector.load %arg10[%c0_127, %c2_128, %c2_129, %c0_130] : memref<1x18x24x128xbf16, #tpu.memory_space<vmem>>, vector<1x16x16x128xbf16>
    %76 = vector.shape_cast %75 : vector<1x16x16x128xbf16> to vector<256x128xbf16>
    %c0_131 = arith.constant 0 : index
    %c1024_132 = arith.constant 1024 : index
    %77 = vector.load %arg9[%c0_131, %c1024_132] : memref<256x1152xbf16, #tpu.memory_space<vmem>>, vector<256x128xbf16>
    tpu.vector_store %arg9[%c0_131, %c1024_132], %76 {strides = array<i32>} : memref<256x1152xbf16, #tpu.memory_space<vmem>>, vector<256x128xbf16>,
    %c0_133 = arith.constant 0 : index
    %c0_134 = arith.constant 0 : index
    %78 = vector.load %arg9[%c0_133, %c0_134] : memref<256x1152xbf16, #tpu.memory_space<vmem>>, vector<256x1152xbf16>
    %c0_135 = arith.constant 0 : index
    %c0_136 = arith.constant 0 : index
    %79 = vector.load %arg5[%c0_135, %c0_136] : memref<1152x128xbf16, #tpu.memory_space<vmem>>, vector<1152x128xbf16>
    %cst_137 = arith.constant dense<0.000000e+00> : vector<256x128xf32>
    %80 = tpu.matmul %78, %79, %cst_137 {dimension_numbers = #tpu.dot_dimension_numbers<[1], [0], [0], [1], [0, 0, 1, 1], [], []>} : vector<256x1152xbf16>, vector<1152x128xbf16>, vector<256x128xf32> -> vector<256x128xf32>
    %81 = vector.broadcast %2 : vector<1x128xf32> to vector<256x128xf32>
    %82 = arith.mulf %80, %81 : vector<256x128xf32>
    %83 = vector.broadcast %3 : vector<1x128xf32> to vector<256x128xf32>
    %84 = arith.addf %82, %83 : vector<256x128xf32>
    %c0_138 = arith.constant 0 : index
    %c1_139 = arith.constant 1 : index
    %c1_140 = arith.constant 1 : index
    %c0_141 = arith.constant 0 : index
    %85 = vector.load %arg1[%c0_138, %c1_139, %c1_140, %c0_141] : memref<1x18x24x128xbf16, #tpu.memory_space<vmem>>, vector<1x16x16x128xbf16>
    %86 = vector.shape_cast %85 : vector<1x16x16x128xbf16> to vector<256x128xbf16>
    %87 = arith.extf %86 : vector<256x128xbf16> to vector<256x128xf32>
    %88 = arith.addf %84, %87 : vector<256x128xf32>
    %cst_142 = arith.constant 0.000000e+00 : f32
    %89 = vector.broadcast %cst_142 : f32 to vector<256x128xf32>
    %90 = arith.maximumf %88, %89 : vector<256x128xf32>
    %91 = vector.shape_cast %90 : vector<256x128xf32> to vector<1x16x16x128xf32>
    %c0_143 = arith.constant 0 : index
    %c0_144 = arith.constant 0 : index
    %c0_145 = arith.constant 0 : index
    %c0_146 = arith.constant 0 : index
    %92 = vector.load %arg8[%c0_143, %c0_144, %c0_145, %c0_146] : memref<1x16x16x128xf32, #tpu.memory_space<vmem>>, vector<1x16x16x128xf32>
    tpu.vector_store %arg8[%c0_143, %c0_144, %c0_145, %c0_146], %91 {strides = array<i32>} : memref<1x16x16x128xf32, #tpu.memory_space<vmem>>, vector<1x16x16x128xf32>,
    return
  }
  func.func @transform_0(%arg0: i32) -> (i32, i32, i32, i32) {
    %c0_i32 = arith.constant 0 : i32
    %c0_i32_0 = arith.constant 0 : i32
    %c0_i32_1 = arith.constant 0 : i32
    %c0_i32_2 = arith.constant 0 : i32
    return %arg0, %c0_i32, %c0_i32_0, %c0_i32_1 : i32, i32, i32, i32
  }
  func.func @transform_1(%arg0: i32) -> (i32, i32) {
    %c0_i32 = arith.constant 0 : i32
    %c0_i32_0 = arith.constant 0 : i32
    %c0_i32_1 = arith.constant 0 : i32
    return %c0_i32, %c0_i32_0 : i32, i32
  }
  func.func @transform_2(%arg0: i32) -> (i32, i32) {
    %c0_i32 = arith.constant 0 : i32
    %c0_i32_0 = arith.constant 0 : i32
    %c0_i32_1 = arith.constant 0 : i32
    return %c0_i32, %c0_i32_0 : i32, i32
  }
  func.func @transform_3(%arg0: i32) -> (i32, i32) {
    %c0_i32 = arith.constant 0 : i32
    %c0_i32_0 = arith.constant 0 : i32
    %c0_i32_1 = arith.constant 0 : i32
    return %c0_i32, %c0_i32_0 : i32, i32
  }
  func.func @transform_4(%arg0: i32) -> (i32, i32) {
    %c0_i32 = arith.constant 0 : i32
    %c0_i32_0 = arith.constant 0 : i32
    %c0_i32_1 = arith.constant 0 : i32
    return %c0_i32, %c0_i32_0 : i32, i32
  }
  func.func @transform_5(%arg0: i32) -> (i32, i32) {
    %c0_i32 = arith.constant 0 : i32
    %c0_i32_0 = arith.constant 0 : i32
    %c0_i32_1 = arith.constant 0 : i32
    return %c0_i32, %c0_i32_0 : i32, i32
  }
  func.func @transform_6(%arg0: i32) -> (i32, i32) {
    %c0_i32 = arith.constant 0 : i32
    %c0_i32_0 = arith.constant 0 : i32
    %c0_i32_1 = arith.constant 0 : i32
    return %c0_i32, %c0_i32_0 : i32, i32
  }
  func.func @transform_7(%arg0: i32) -> (i32, i32, i32, i32) {
    %c0_i32 = arith.constant 0 : i32
    %c0_i32_0 = arith.constant 0 : i32
    %c0_i32_1 = arith.constant 0 : i32
    %c0_i32_2 = arith.constant 0 : i32
    return %arg0, %c0_i32, %c0_i32_0, %c0_i32_1 : i32, i32, i32, i32
  }
}

</mosaic_0001>

<llo_original>
// kernel: tpu_custom_call.1
$region0: #{tpu_custom_call.1}
  #allocation0 [shape = 'u32[]', space=smem, size = 0x4, offset = 0x4, fixed_abs, tag = 'smem constant byte address 0x4 - core index']
  #allocation1 [shape = 'u32[72,128]{1,0:T(1,128)}', space=vmem, size = 0x9000, scoped, tag = 'internal scratch']
  #allocation2 [shape = 'bf16[256,1152]{1,0:T(8,128)(2,1)}', space=vmem, size = 0x90000, scoped, tag = 'scratch operand']
  #allocation3 [shape = 'bf16[1,18,24,128]{3,2,1,0:T(8,128)(2,1)}', space=vmem, size = 0x1b000, scoped, tag = 'scratch operand']
  %s0 = inlined_call_operand.hbm [shape: bf16[2,18,24,128], index: 0, kind: input, shape index: {}]
  %s1 = inlined_call_operand.hbm [shape: bf16[1152,128], index: 1, kind: input, shape index: {}]
  %s2 = inlined_call_operand.vmem [shape: f32[1,128], index: 2, kind: input, shape index: {}]
  %s3 = inlined_call_operand.vmem [shape: f32[1,128], index: 3, kind: input, shape index: {}]
  %s4 = inlined_call_operand.hbm [shape: bf16[1152,128], index: 4, kind: input, shape index: {}]
  %s5 = inlined_call_operand.vmem [shape: f32[1,128], index: 5, kind: input, shape index: {}]
  %s6 = inlined_call_operand.vmem [shape: f32[1,128], index: 6, kind: input, shape index: {}]
  %s7 = inlined_call_operand.hbm [shape: f32[2,16,16,128], index: 7, kind: output, shape index: {}]
  %s8 = sld [smem:[#allocation0]]
  $region73: #{tpu_custom_call.1} parent=0
    _
  %s10 = ssub.s32 1, %s8
  %s11 = scalar_select 0, %s10, %s8
  $region1: #{tpu_custom_call.1} parent=0
    #allocation4 [shape = 'u8[221184]{0}', space=vmem, size = 0x36000, scoped, tag = 'input window, operand 0']
    #allocation5 [shape = 's32[2]{0}', space=sflag, size = 0x8, scoped, tag = 'scoped memory for tpu_custom_call.1']
    #allocation6 [shape = 's32[2]{0}', space=sflag, size = 0x8, scoped, tag = 'scoped memory for tpu_custom_call.1']
    #allocation7 [shape = 'u8[294912]{0}', space=vmem, size = 0x48000, scoped, tag = 'input window, operand 1, single buffered']
    #allocation8 [shape = 's32[1]{0}', space=sflag, size = 0x4, scoped, tag = 'scoped memory for tpu_custom_call.1']
    #allocation9 [shape = 'u8[294912]{0}', space=vmem, size = 0x48000, scoped, tag = 'input window, operand 4, single buffered']
    #allocation10 [shape = 'u8[262144]{0}', space=vmem, size = 0x40000, scoped, tag = 'output window, operand 0']
    %12 = vsyncpa [#allocation5], 0
    %s13 = scalar_lea.sflag [#allocation5], 1
    %14 = vsyncpa %s13, 0
    %15 = vsyncpa [#allocation8], 0
    %16 = vsyncpa [#allocation6], 0
    %s17 = scalar_lea.sflag [#allocation6], 1
    %18 = vsyncpa %s17, 0
    loop: start=0, step=1, limit=4
    $region2: #{tpu_custom_call.1} parent=1 // loop_pre_header
      _
    $region3: #{tpu_custom_call.1} parent=1 // loop_header
      %s20 = sphi 0, %s24
      %p21 = scmp.ge.s32.totalorder %s20, 4
      %s30 = sphi 0, %s32
      %s33 = sphi 0, %s30
      %s34 = sphi 0, %s33
      %s50 = sphi 0, %s34
      %s54 = sphi 0, %s54
      %s56 = sphi 0, %s54
      %s57 = sphi 0, %s56
      %s71 = sphi 0, %s57
      %s75 = sphi 0, %s75
      %s77 = sphi 0, %s75
      %s78 = sphi 0, %s77
      %s92 = sphi 0, %s78
      %s96 = sphi 0, %s96
      %s98 = sphi 0, %s96
      %s99 = sphi 0, %s98
      %s113 = sphi 0, %s99
      %s117 = sphi 0, %s117
      %s119 = sphi 0, %s117
      %s120 = sphi 0, %s119
      %s134 = sphi 0, %s120
      %s138 = sphi 0, %s138
      %s140 = sphi 0, %s138
      %s141 = sphi 0, %s140
      %s155 = sphi 0, %s141
      %s159 = sphi 0, %s159
      %s161 = sphi 0, %s159
      %s162 = sphi 0, %s161
      %s176 = sphi 0, %s162
      %s182 = sphi 0, %s184
      %s185 = sphi 0, %s182
      %s186 = sphi 0, %s185
      %s202 = sphi 0, %s186
    $region4: #{tpu_custom_call.1} parent=1 // loop_header_branch
      %23 = sbr.rel (%p21) target = $region8
    $region5: #{tpu_custom_call.1} parent=1 // loop_body
      %s25 = ssub.s32 %s20, 1
      %s26 = ssub.s32 %s20, 2
      %s27 = sadd.s32 %s20, 1
      %s28 = ssub.s32 %s20, %s27
      %p29 = scmp.eq.s32.totalorder %s28, 0
      %s31 = sadd.s32 %s30, 1
      %s32 = scalar_select %p29, %s30, %s31
      %p35 = pneg %p29
      %p36 = scmp.eq.s32.totalorder %s20, 1
      %p37 = por %p35, %p36
      %p38 = scmp.ne.s32.totalorder %s30, %s33
      %p39 = scmp.eq.s32.totalorder %s20, 0
      %p40 = por %p38, %p39
      %p41 = scmp.ne.s32.totalorder %s30, %s33
      %p42 = scmp.eq.s32.totalorder %s25, 1
      %p43 = por %p41, %p42
      %p44 = scmp.ne.s32.totalorder %s33, %s34
      %p45 = scmp.eq.s32.totalorder %s25, 0
      %p46 = por %p44, %p45
      %p47 = scmp.ne.s32.totalorder %s33, %s34
      %p48 = scmp.eq.s32.totalorder %s26, 1
      %p49 = por %p47, %p48
      %p51 = scmp.ne.s32.totalorder %s34, %s50
      %p52 = scmp.eq.s32.totalorder %s26, 0
      %p53 = por %p51, %p52
      %s55 = sadd.s32 %s54, 1
      %p58 = scmp.eq.s32.totalorder %s20, 1
      %p59 = scmp.ne.s32.totalorder %s54, %s56
      %p60 = scmp.eq.s32.totalorder %s20, 0
      %p61 = por %p59, %p60
      %p62 = scmp.ne.s32.totalorder %s54, %s56
      %p63 = scmp.eq.s32.totalorder %s25, 1
      %p64 = por %p62, %p63
      %p65 = scmp.ne.s32.totalorder %s56, %s57
      %p66 = scmp.eq.s32.totalorder %s25, 0
      %p67 = por %p65, %p66
      %p68 = scmp.ne.s32.totalorder %s56, %s57
      %p69 = scmp.eq.s32.totalorder %s26, 1
      %p70 = por %p68, %p69
      %p72 = scmp.ne.s32.totalorder %s57, %s71
      %p73 = scmp.eq.s32.totalorder %s26, 0
      %p74 = por %p72, %p73
      %s76 = sadd.s32 %s75, 1
      %p79 = scmp.eq.s32.totalorder %s20, 1
      %p80 = scmp.ne.s32.totalorder %s75, %s77
      %p81 = scmp.eq.s32.totalorder %s20, 0
      %p82 = por %p80, %p81
      %p83 = scmp.ne.s32.totalorder %s75, %s77
      %p84 = scmp.eq.s32.totalorder %s25, 1
      %p85 = por %p83, %p84
      %p86 = scmp.ne.s32.totalorder %s77, %s78
      %p87 = scmp.eq.s32.totalorder %s25, 0
      %p88 = por %p86, %p87
      %p89 = scmp.ne.s32.totalorder %s77, %s78
      %p90 = scmp.eq.s32.totalorder %s26, 1
      %p91 = por %p89, %p90
      %p93 = scmp.ne.s32.totalorder %s78, %s92
      %p94 = scmp.eq.s32.totalorder %s26, 0
      %p95 = por %p93, %p94
      %s97 = sadd.s32 %s96, 1
      %p100 = scmp.eq.s32.totalorder %s20, 1
      %p101 = scmp.ne.s32.totalorder %s96, %s98
      %p102 = scmp.eq.s32.totalorder %s20, 0
      %p103 = por %p101, %p102
      %p104 = scmp.ne.s32.totalorder %s96, %s98
      %p105 = scmp.eq.s32.totalorder %s25, 1
      %p106 = por %p104, %p105
      %p107 = scmp.ne.s32.totalorder %s98, %s99
      %p108 = scmp.eq.s32.totalorder %s25, 0
      %p109 = por %p107, %p108
      %p110 = scmp.ne.s32.totalorder %s98, %s99
      %p111 = scmp.eq.s32.totalorder %s26, 1
      %p112 = por %p110, %p111
      %p114 = scmp.ne.s32.totalorder %s99, %s113
      %p115 = scmp.eq.s32.totalorder %s26, 0
      %p116 = por %p114, %p115
      %s118 = sadd.s32 %s117, 1
      %p121 = scmp.eq.s32.totalorder %s20, 1
      %p122 = scmp.ne.s32.totalorder %s117, %s119
      %p123 = scmp.eq.s32.totalorder %s20, 0
      %p124 = por %p122, %p123
      %p125 = scmp.ne.s32.totalorder %s117, %s119
      %p126 = scmp.eq.s32.totalorder %s25, 1
      %p127 = por %p125, %p126
      %p128 = scmp.ne.s32.totalorder %s119, %s120
      %p129 = scmp.eq.s32.totalorder %s25, 0
      %p130 = por %p128, %p129
      %p131 = scmp.ne.s32.totalorder %s119, %s120
      %p132 = scmp.eq.s32.totalorder %s26, 1
      %p133 = por %p131, %p132
      %p135 = scmp.ne.s32.totalorder %s120, %s134
      %p136 = scmp.eq.s32.totalorder %s26, 0
      %p137 = por %p135, %p136
      %s139 = sadd.s32 %s138, 1
      %p142 = scmp.eq.s32.totalorder %s20, 1
      %p143 = scmp.ne.s32.totalorder %s138, %s140
      %p144 = scmp.eq.s32.totalorder %s20, 0
      %p145 = por %p143, %p144
      %p146 = scmp.ne.s32.totalorder %s138, %s140
      %p147 = scmp.eq.s32.totalorder %s25, 1
      %p148 = por %p146, %p147
      %p149 = scmp.ne.s32.totalorder %s140, %s141
      %p150 = scmp.eq.s32.totalorder %s25, 0
      %p151 = por %p149, %p150
      %p152 = scmp.ne.s32.totalorder %s140, %s141
      %p153 = scmp.eq.s32.totalorder %s26, 1
      %p154 = por %p152, %p153
      %p156 = scmp.ne.s32.totalorder %s141, %s155
      %p157 = scmp.eq.s32.totalorder %s26, 0
      %p158 = por %p156, %p157
      %s160 = sadd.s32 %s159, 1
      %p163 = scmp.eq.s32.totalorder %s20, 1
      %p164 = scmp.ne.s32.totalorder %s159, %s161
      %p165 = scmp.eq.s32.totalorder %s20, 0
      %p166 = por %p164, %p165
      %p167 = scmp.ne.s32.totalorder %s159, %s161
      %p168 = scmp.eq.s32.totalorder %s25, 1
      %p169 = por %p167, %p168
      %p170 = scmp.ne.s32.totalorder %s161, %s162
      %p171 = scmp.eq.s32.totalorder %s25, 0
      %p172 = por %p170, %p171
      %p173 = scmp.ne.s32.totalorder %s161, %s162
      %p174 = scmp.eq.s32.totalorder %s26, 1
      %p175 = por %p173, %p174
      %p177 = scmp.ne.s32.totalorder %s162, %s176
      %p178 = scmp.eq.s32.totalorder %s26, 0
      %p179 = por %p177, %p178
      %s180 = ssub.s32 %s20, %s27
      %p181 = scmp.eq.s32.totalorder %s180, 0
      %s183 = sadd.s32 %s182, 1
      %s184 = scalar_select %p181, %s182, %s183
      %p187 = pneg %p181
      %p188 = scmp.eq.s32.totalorder %s20, 1
      %p189 = por %p187, %p188
      %p190 = scmp.ne.s32.totalorder %s182, %s185
      %p191 = scmp.eq.s32.totalorder %s20, 0
      %p192 = por %p190, %p191
      %p193 = scmp.ne.s32.totalorder %s182, %s185
      %p194 = scmp.eq.s32.totalorder %s25, 1
      %p195 = por %p193, %p194
      %p196 = scmp.ne.s32.totalorder %s185, %s186
      %p197 = scmp.eq.s32.totalorder %s25, 0
      %p198 = por %p196, %p197
      %p199 = scmp.ne.s32.totalorder %s185, %s186
      %p200 = scmp.eq.s32.totalorder %s26, 1
      %p201 = por %p199, %p200
      %p203 = scmp.ne.s32.totalorder %s186, %s202
      %p204 = scmp.eq.s32.totalorder %s26, 0
      %p205 = por %p203, %p204
      %p206 = scmp.le.s32.totalorder 1, %s20
      %p207 = scmp.lt.s32.totalorder %s20, 3
      %p208 = pnand %p206, %p207
      %p209 = pneg %p208
      // Predicated region
      $region9: #{tpu_custom_call.1} parent=5 // pred_check
        _
      $region10: #{tpu_custom_call.1} parent=5 // pred_check_branch
        %211 = sbr.rel (%p208) target = $region12
      $region11: #{tpu_custom_call.1} parent=5 // pred_region
        %s212 = ssub.s32 %s20, 1
        // Predicated region
        $region13: #{tpu_custom_call.1} parent=11 // pred_check
          %p213 = pneg %p67
        $region14: #{tpu_custom_call.1} parent=11 // pred_check_branch
          %215 = sbr.rel (%p213) target = $region16
        $region15: #{tpu_custom_call.1} parent=11 // pred_region
          %217 = vsyncadd [#allocation8], 0
          %s218 = sshll.u32 %s1, 4
          %s219 = int_to_ptr.hbm [resolvable:$true] %s218
          %s220 = sshll.u32 [#allocation7], 4
          %s221 = int_to_ptr.vmem [resolvable:$true] %s220
          %226 = dma.hbm_to_vmem [thread:$0]  %s219, 9216, %s221, [#allocation8], 64, 64, 4
        $region16: #{tpu_custom_call.1} parent=11 // pred_fallthru
          _
        // Predicated region
        $region17: #{tpu_custom_call.1} parent=11 // pred_check
          %p227 = pneg %p88
        $region18: #{tpu_custom_call.1} parent=11 // pred_check_branch
          %229 = sbr.rel (%p227) target = $region20
        $region19: #{tpu_custom_call.1} parent=11 // pred_region
          _
        $region20: #{tpu_custom_call.1} parent=11 // pred_fallthru
          _
        // Predicated region
        $region21: #{tpu_custom_call.1} parent=11 // pred_check
          %p230 = pneg %p109
        $region22: #{tpu_custom_call.1} parent=11 // pred_check_branch
          %232 = sbr.rel (%p230) target = $region24
        $region23: #{tpu_custom_call.1} parent=11 // pred_region
          _
        $region24: #{tpu_custom_call.1} parent=11 // pred_fallthru
          _
        // Predicated region
        $region25: #{tpu_custom_call.1} parent=11 // pred_check
          %p233 = pneg %p130
        $region26: #{tpu_custom_call.1} parent=11 // pred_check_branch
          %235 = sbr.rel (%p233) target = $region28
        $region27: #{tpu_custom_call.1} parent=11 // pred_region
          %237 = vsyncadd [#allocation8], 0
          %s238 = sshll.u32 %s4, 4
          %s239 = int_to_ptr.hbm [resolvable:$true] %s238
          %s240 = sshll.u32 [#allocation9], 4
          %s241 = int_to_ptr.vmem [resolvable:$true] %s240
          %246 = dma.hbm_to_vmem [thread:$0]  %s239, 9216, %s241, [#allocation8], 64, 64, 4
        $region28: #{tpu_custom_call.1} parent=11 // pred_fallthru
          _
        // Predicated region
        $region29: #{tpu_custom_call.1} parent=11 // pred_check
          %p247 = pneg %p151
        $region30: #{tpu_custom_call.1} parent=11 // pred_check_branch
          %249 = sbr.rel (%p247) target = $region32
        $region31: #{tpu_custom_call.1} parent=11 // pred_region
          _
        $region32: #{tpu_custom_call.1} parent=11 // pred_fallthru
          _
        // Predicated region
        $region33: #{tpu_custom_call.1} parent=11 // pred_check
          %p250 = pneg %p172
        $region34: #{tpu_custom_call.1} parent=11 // pred_check_branch
          %252 = sbr.rel (%p250) target = $region36
        $region35: #{tpu_custom_call.1} parent=11 // pred_region
          _
        $region36: #{tpu_custom_call.1} parent=11 // pred_fallthru
          _
      $region12: #{tpu_custom_call.1} parent=5 // pred_fallthru
        _
      %p253 = scmp.lt.s32.totalorder %s20, 2
      // Predicated region
      $region37: #{tpu_custom_call.1} parent=5 // pred_check
        %p254 = pneg %p253
      $region38: #{tpu_custom_call.1} parent=5 // pred_check_branch
        %256 = sbr.rel (%p254) target = $region40
      $region39: #{tpu_custom_call.1} parent=5 // pred_region
        // Predicated region
        $region41: #{tpu_custom_call.1} parent=39 // pred_check
          %p257 = pneg %p40
        $region42: #{tpu_custom_call.1} parent=39 // pred_check_branch
          %259 = sbr.rel (%p257) target = $region44
        $region43: #{tpu_custom_call.1} parent=39 // pred_region
          %s260 = sand.u32 %s30, 1
          %s261 = scalar_lea.sflag [#allocation5], %s260
          %s262 = sand.u32 %s30, 1
          %s263 = smul.addr %s262, 216
          %s264 = scalar_lea.vmem [#allocation4], %s263
          %266 = vsyncadd %s261, 0
          %s267 = smul.addr %s20, 54
          %s268 = smul.addr %s267, 4
          %s269 = scalar_lea.hbm %s0, %s268
          %s270 = sshll.u32 %s269, 4
          %s271 = int_to_ptr.hbm [resolvable:$true] %s270
          %s272 = sshll.u32 %s264, 4
          %s273 = int_to_ptr.vmem [resolvable:$true] %s272
          %278 = dma.hbm_to_vmem [thread:$0]  %s271, 3456, %s273, %s261, 64, 64, 4
        $region44: #{tpu_custom_call.1} parent=39 // pred_fallthru
          _
      $region40: #{tpu_custom_call.1} parent=5 // pred_fallthru
        _
      %p279 = scmp.le.s32.totalorder 1, %s20
      %p280 = scmp.lt.s32.totalorder %s20, 3
      %p281 = pnand %p279, %p280
      %p282 = pneg %p281
      // Predicated region
      $region45: #{tpu_custom_call.1} parent=5 // pred_check
        _
      $region46: #{tpu_custom_call.1} parent=5 // pred_check_branch
        %284 = sbr.rel (%p281) target = $region48
      $region47: #{tpu_custom_call.1} parent=5 // pred_region
        %s285 = ssub.s32 %s20, 1
        %s286 = sand.u32 %s33, 1
        %s287 = scalar_lea.sflag [#allocation5], %s286
        %s288 = sand.u32 %s33, 1
        %s289 = smul.addr %s288, 216
        %s290 = scalar_lea.vmem [#allocation4], %s289
        // Predicated region
        $region49: #{tpu_custom_call.1} parent=47 // pred_check
          %p291 = pneg %p46
        $region50: #{tpu_custom_call.1} parent=47 // pred_check_branch
          %293 = sbr.rel (%p291) target = $region52
        $region51: #{tpu_custom_call.1} parent=47 // pred_region
          %295 = dma.done %s287, 3456
        $region52: #{tpu_custom_call.1} parent=47 // pred_fallthru
          _
        // Predicated region
        $region53: #{tpu_custom_call.1} parent=47 // pred_check
          %p296 = pneg %p67
        $region54: #{tpu_custom_call.1} parent=47 // pred_check_branch
          %298 = sbr.rel (%p296) target = $region56
        $region55: #{tpu_custom_call.1} parent=47 // pred_region
          %300 = dma.done [#allocation8], 9216
        $region56: #{tpu_custom_call.1} parent=47 // pred_fallthru
          _
        // Predicated region
        $region57: #{tpu_custom_call.1} parent=47 // pred_check
          %p301 = pneg %p130
        $region58: #{tpu_custom_call.1} parent=47 // pred_check_branch
          %303 = sbr.rel (%p301) target = $region60
        $region59: #{tpu_custom_call.1} parent=47 // pred_region
          %305 = dma.done [#allocation8], 9216
        $region60: #{tpu_custom_call.1} parent=47 // pred_fallthru
          _
        %s306 = sand.u32 %s33, 1
        %s307 = scalar_lea.sflag [#allocation5], %s306
        %s308 = sand.u32 %s33, 1
        %s309 = smul.addr %s308, 216
        %s310 = scalar_lea.vmem [#allocation4], %s309
        %p311 = pneg %p46
        %p312 = pneg %p43
        %p313 = pneg %p67
        %p314 = pneg %p64
        %p315 = pneg %p88
        %p316 = pneg %p85
        %p317 = pneg %p109
        %p318 = pneg %p106
        %p319 = pneg %p130
        %p320 = pneg %p127
        %p321 = pneg %p151
        %p322 = pneg %p148
        %p323 = pneg %p172
        %p324 = pneg %p169
        %p325 = pneg %p198
        %p326 = pneg %p195
        %s327 = sand.u32 %s185, 1
        %s328 = scalar_lea.sflag [#allocation6], %s327
        %s329 = sand.u32 %s185, 1
        %s330 = smul.addr %s329, 256
        %s331 = scalar_lea.vmem [#allocation10], %s330
        %v333 = vld [vmem:[%s2] sm:$0x1]
        %v334 = vld [vmem:[%s3] sm:$0x1]
        %v335 = vld [vmem:[%s5] sm:$0x1]
        %v336 = vld [vmem:[%s6] sm:$0x1]
        %v337 = vld [vmem:[%s290] sm:$0xf]
        %v338 = vld [vmem:[%s290 + $0x4] sm:$0xf]
        %v339 = vld [vmem:[%s290 + $0xc] sm:$0xf]
        %v340 = vld [vmem:[%s290 + $0x10] sm:$0xf]
        %v341 = vld [vmem:[%s290 + $0x18] sm:$0xf]
        %v342 = vld [vmem:[%s290 + $0x1c] sm:$0xf]
        %v343 = vld [vmem:[%s290 + $0x24] sm:$0xf]
        %v344 = vld [vmem:[%s290 + $0x28] sm:$0xf]
        %v345 = vld [vmem:[%s290 + $0x30] sm:$0xf]
        %v346 = vld [vmem:[%s290 + $0x34] sm:$0xf]
        %v347 = vld [vmem:[%s290 + $0x3c] sm:$0xf]
        %v348 = vld [vmem:[%s290 + $0x40] sm:$0xf]
        %v349 = vld [vmem:[%s290 + $0x48] sm:$0xf]
        %v350 = vld [vmem:[%s290 + $0x4c] sm:$0xf]
        %v351 = vld [vmem:[%s290 + $0x54] sm:$0xf]
        %v352 = vld [vmem:[%s290 + $0x58] sm:$0xf]
        %v353 = vld [vmem:[%s290 + $0x60] sm:$0xf]
        %v354 = vld [vmem:[%s290 + $0x64] sm:$0xf]
        %v355 = vld [vmem:[%s290 + $0x6c] sm:$0xf]
        %v356 = vld [vmem:[%s290 + $0x70] sm:$0xf]
        %v357 = vld [vmem:[%s290 + $0x78] sm:$0xf]
        %v358 = vld [vmem:[%s290 + $0x7c] sm:$0xf]
        %v359 = vld [vmem:[%s290 + $0x84] sm:$0xf]
        %v360 = vld [vmem:[%s290 + $0x88] sm:$0xf]
        %v361 = vld [vmem:[%s290 + $0x90] sm:$0xf]
        %v362 = vld [vmem:[%s290 + $0x94] sm:$0xf]
        %v363 = vld [vmem:[%s290 + $0x9c] sm:$0xf]
        %v364 = vld [vmem:[%s290 + $0xa0] sm:$0xf]
        %v365 = vld [vmem:[%s290 + $0xa8] sm:$0xf]
        %v366 = vld [vmem:[%s290 + $0xac] sm:$0xf]
        %v367 = vld [vmem:[%s290 + $0xb4] sm:$0xf]
        %v368 = vld [vmem:[%s290 + $0xb8] sm:$0xf]
        %369 = vst [vmem:[#allocation2] sm:$0xf] %v337
        %370 = vst [vmem:[#allocation2 + $0x24] sm:$0xf] %v338
        %371 = vst [vmem:[#allocation2 + $0x48] sm:$0xf] %v339
        %372 = vst [vmem:[#allocation2 + $0x6c] sm:$0xf] %v340
        %373 = vst [vmem:[#allocation2 + $0x90] sm:$0xf] %v341
        %374 = vst [vmem:[#allocation2 + $0xb4] sm:$0xf] %v342
        %375 = vst [vmem:[#allocation2 + $0xd8] sm:$0xf] %v343
        %376 = vst [vmem:[#allocation2 + $0xfc] sm:$0xf] %v344
        %377 = vst [vmem:[#allocation2 + $0x120] sm:$0xf] %v345
        %378 = vst [vmem:[#allocation2 + $0x144] sm:$0xf] %v346
        %379 = vst [vmem:[#allocation2 + $0x168] sm:$0xf] %v347
        %380 = vst [vmem:[#allocation2 + $0x18c] sm:$0xf] %v348
        %381 = vst [vmem:[#allocation2 + $0x1b0] sm:$0xf] %v349
        %382 = vst [vmem:[#allocation2 + $0x1d4] sm:$0xf] %v350
        %383 = vst [vmem:[#allocation2 + $0x1f8] sm:$0xf] %v351
        %384 = vst [vmem:[#allocation2 + $0x21c] sm:$0xf] %v352
        %385 = vst [vmem:[#allocation2 + $0x240] sm:$0xf] %v353
        %386 = vst [vmem:[#allocation2 + $0x264] sm:$0xf] %v354
        %387 = vst [vmem:[#allocation2 + $0x288] sm:$0xf] %v355
        %388 = vst [vmem:[#allocation2 + $0x2ac] sm:$0xf] %v356
        %389 = vst [vmem:[#allocation2 + $0x2d0] sm:$0xf] %v357
        %390 = vst [vmem:[#allocation2 + $0x2f4] sm:$0xf] %v358
        %391 = vst [vmem:[#allocation2 + $0x318] sm:$0xf] %v359
        %392 = vst [vmem:[#allocation2 + $0x33c] sm:$0xf] %v360
        %393 = vst [vmem:[#allocation2 + $0x360] sm:$0xf] %v361
        %394 = vst [vmem:[#allocation2 + $0x384] sm:$0xf] %v362
        %395 = vst [vmem:[#allocation2 + $0x3a8] sm:$0xf] %v363
        %396 = vst [vmem:[#allocation2 + $0x3cc] sm:$0xf] %v364
        %397 = vst [vmem:[#allocation2 + $0x3f0] sm:$0xf] %v365
        %398 = vst [vmem:[#allocation2 + $0x414] sm:$0xf] %v366
        %399 = vst [vmem:[#allocation2 + $0x438] sm:$0xf] %v367
        %400 = vst [vmem:[#allocation2 + $0x45c] sm:$0xf] %v368
        %v401 = vld [vmem:[%s290] sm:$0xf]
        %v402 = vld [vmem:[%s290 + $0x4] sm:$0xf]
        %v403 = vld [vmem:[%s290 + $0x8] sm:$0x1]
        %v404 = vld [vmem:[%s290 + $0xc] sm:$0xf]
        %v405 = vld [vmem:[%s290 + $0x10] sm:$0xf]
        %v406 = vld [vmem:[%s290 + $0x14] sm:$0x1]
        %v407 = vld [vmem:[%s290 + $0x18] sm:$0xf]
        %v408 = vld [vmem:[%s290 + $0x1c] sm:$0xf]
        %v409 = vld [vmem:[%s290 + $0x20] sm:$0x1]
        %v410 = vld [vmem:[%s290 + $0x24] sm:$0xf]
        %v411 = vld [vmem:[%s290 + $0x28] sm:$0xf]
        %v412 = vld [vmem:[%s290 + $0x2c] sm:$0x1]
        %v413 = vld [vmem:[%s290 + $0x30] sm:$0xf]
        %v414 = vld [vmem:[%s290 + $0x34] sm:$0xf]
        %v415 = vld [vmem:[%s290 + $0x38] sm:$0x1]
        %v416 = vld [vmem:[%s290 + $0x3c] sm:$0xf]
        %v417 = vld [vmem:[%s290 + $0x40] sm:$0xf]
        %v418 = vld [vmem:[%s290 + $0x44] sm:$0x1]
        %v419 = vld [vmem:[%s290 + $0x48] sm:$0xf]
        %v420 = vld [vmem:[%s290 + $0x4c] sm:$0xf]
        %v421 = vld [vmem:[%s290 + $0x50] sm:$0x1]
        %v422 = vld [vmem:[%s290 + $0x54] sm:$0xf]
        %v423 = vld [vmem:[%s290 + $0x58] sm:$0xf]
        %v424 = vld [vmem:[%s290 + $0x5c] sm:$0x1]
        %v425 = vld [vmem:[%s290 + $0x60] sm:$0xf]
        %v426 = vld [vmem:[%s290 + $0x64] sm:$0xf]
        %v427 = vld [vmem:[%s290 + $0x68] sm:$0x1]
        %v428 = vld [vmem:[%s290 + $0x6c] sm:$0xf]
        %v429 = vld [vmem:[%s290 + $0x70] sm:$0xf]
        %v430 = vld [vmem:[%s290 + $0x74] sm:$0x1]
        %v431 = vld [vmem:[%s290 + $0x78] sm:$0xf]
        %v432 = vld [vmem:[%s290 + $0x7c] sm:$0xf]
        %v433 = vld [vmem:[%s290 + $0x80] sm:$0x1]
        %v434 = vld [vmem:[%s290 + $0x84] sm:$0xf]
        %v435 = vld [vmem:[%s290 + $0x88] sm:$0xf]
        %v436 = vld [vmem:[%s290 + $0x8c] sm:$0x1]
        %v437 = vld [vmem:[%s290 + $0x90] sm:$0xf]
        %v438 = vld [vmem:[%s290 + $0x94] sm:$0xf]
        %v439 = vld [vmem:[%s290 + $0x98] sm:$0x1]
        %v440 = vld [vmem:[%s290 + $0x9c] sm:$0xf]
        %v441 = vld [vmem:[%s290 + $0xa0] sm:$0xf]
        %v442 = vld [vmem:[%s290 + $0xa4] sm:$0x1]
        %v443 = vld [vmem:[%s290 + $0xa8] sm:$0xf]
        %v444 = vld [vmem:[%s290 + $0xac] sm:$0xf]
        %v445 = vld [vmem:[%s290 + $0xb0] sm:$0x1]
        %v446 = vld [vmem:[%s290 + $0xb4] sm:$0xf]
        %v447 = vld [vmem:[%s290 + $0xb8] sm:$0xf]
        %v448 = vld [vmem:[%s290 + $0xbc] sm:$0x1]
        %vm449 = vsmask.f32 3328
        %vm450 = vsmask.f32 7440
        %vm451 = vmor %vm449, %vm450
        %v453 = vshrl.u32 %v401, 16
        %v455 = vrot.slane %v453, 4
        %v456 = vshll.u32 %v401, 16
        %v458 = vrot.slane %v456, 5
        %v459 = vor.u32 %v455, %v458
        %v460 = vrot.slane %v459, 4
        %v462 = vshll.u32 %v402, 16
        %v464 = vrot.slane %v462, 5
        %v465 = vsel %vm451, %v460, %v464
        %v466 = vshrl.u32 %v402, 16
        %v468 = vrot.slane %v466, 4
        %v469 = vor.u32 %v468, %v464
        %v470 = vrot.slane %v469, 4
        %v472 = vshll.u32 %v403, 16
        %v474 = vrot.slane %v472, 5
        %v475 = vsel %vm451, %v470, %v474
        %v477 = vshrl.u32 %v404, 16
        %v479 = vrot.slane %v477, 4
        %v480 = vshll.u32 %v404, 16
        %v482 = vrot.slane %v480, 5
        %v483 = vor.u32 %v479, %v482
        %v484 = vrot.slane %v483, 4
        %v486 = vshll.u32 %v405, 16
        %v488 = vrot.slane %v486, 5
        %v489 = vsel %vm451, %v484, %v488
        %v490 = vshrl.u32 %v405, 16
        %v492 = vrot.slane %v490, 4
        %v493 = vor.u32 %v492, %v488
        %v494 = vrot.slane %v493, 4
        %v496 = vshll.u32 %v406, 16
        %v498 = vrot.slane %v496, 5
        %v499 = vsel %vm451, %v494, %v498
        %v501 = vshrl.u32 %v407, 16
        %v503 = vrot.slane %v501, 4
        %v504 = vshll.u32 %v407, 16
        %v506 = vrot.slane %v504, 5
        %v507 = vor.u32 %v503, %v506
        %v508 = vrot.slane %v507, 4
        %v510 = vshll.u32 %v408, 16
        %v512 = vrot.slane %v510, 5
        %v513 = vsel %vm451, %v508, %v512
        %v514 = vshrl.u32 %v408, 16
        %v516 = vrot.slane %v514, 4
        %v517 = vor.u32 %v516, %v512
        %v518 = vrot.slane %v517, 4
        %v520 = vshll.u32 %v409, 16
        %v522 = vrot.slane %v520, 5
        %v523 = vsel %vm451, %v518, %v522
        %v525 = vshrl.u32 %v410, 16
        %v527 = vrot.slane %v525, 4
        %v528 = vshll.u32 %v410, 16
        %v530 = vrot.slane %v528, 5
        %v531 = vor.u32 %v527, %v530
        %v532 = vrot.slane %v531, 4
        %v534 = vshll.u32 %v411, 16
        %v536 = vrot.slane %v534, 5
        %v537 = vsel %vm451, %v532, %v536
        %v538 = vshrl.u32 %v411, 16
        %v540 = vrot.slane %v538, 4
        %v541 = vor.u32 %v540, %v536
        %v542 = vrot.slane %v541, 4
        %v544 = vshll.u32 %v412, 16
        %v546 = vrot.slane %v544, 5
        %v547 = vsel %vm451, %v542, %v546
        %v549 = vshrl.u32 %v413, 16
        %v551 = vrot.slane %v549, 4
        %v552 = vshll.u32 %v413, 16
        %v554 = vrot.slane %v552, 5
        %v555 = vor.u32 %v551, %v554
        %v556 = vrot.slane %v555, 4
        %v558 = vshll.u32 %v414, 16
        %v560 = vrot.slane %v558, 5
        %v561 = vsel %vm451, %v556, %v560
        %v562 = vshrl.u32 %v414, 16
        %v564 = vrot.slane %v562, 4
        %v565 = vor.u32 %v564, %v560
        %v566 = vrot.slane %v565, 4
        %v568 = vshll.u32 %v415, 16
        %v570 = vrot.slane %v568, 5
        %v571 = vsel %vm451, %v566, %v570
        %v573 = vshrl.u32 %v416, 16
        %v575 = vrot.slane %v573, 4
        %v576 = vshll.u32 %v416, 16
        %v578 = vrot.slane %v576, 5
        %v579 = vor.u32 %v575, %v578
        %v580 = vrot.slane %v579, 4
        %v582 = vshll.u32 %v417, 16
        %v584 = vrot.slane %v582, 5
        %v585 = vsel %vm451, %v580, %v584
        %v586 = vshrl.u32 %v417, 16
        %v588 = vrot.slane %v586, 4
        %v589 = vor.u32 %v588, %v584
        %v590 = vrot.slane %v589, 4
        %v592 = vshll.u32 %v418, 16
        %v594 = vrot.slane %v592, 5
        %v595 = vsel %vm451, %v590, %v594
        %v597 = vshrl.u32 %v419, 16
        %v599 = vrot.slane %v597, 4
        %v600 = vshll.u32 %v419, 16
        %v602 = vrot.slane %v600, 5
        %v603 = vor.u32 %v599, %v602
        %v604 = vrot.slane %v603, 4
        %v606 = vshll.u32 %v420, 16
        %v608 = vrot.slane %v606, 5
        %v609 = vsel %vm451, %v604, %v608
        %v610 = vshrl.u32 %v420, 16
        %v612 = vrot.slane %v610, 4
        %v613 = vor.u32 %v612, %v608
        %v614 = vrot.slane %v613, 4
        %v616 = vshll.u32 %v421, 16
        %v618 = vrot.slane %v616, 5
        %v619 = vsel %vm451, %v614, %v618
        %v621 = vshrl.u32 %v422, 16
        %v623 = vrot.slane %v621, 4
        %v624 = vshll.u32 %v422, 16
        %v626 = vrot.slane %v624, 5
        %v627 = vor.u32 %v623, %v626
        %v628 = vrot.slane %v627, 4
        %v630 = vshll.u32 %v423, 16
        %v632 = vrot.slane %v630, 5
        %v633 = vsel %vm451, %v628, %v632
        %v634 = vshrl.u32 %v423, 16
        %v636 = vrot.slane %v634, 4
        %v637 = vor.u32 %v636, %v632
        %v638 = vrot.slane %v637, 4
        %v640 = vshll.u32 %v424, 16
        %v642 = vrot.slane %v640, 5
        %v643 = vsel %vm451, %v638, %v642
        %v645 = vshrl.u32 %v425, 16
        %v647 = vrot.slane %v645, 4
        %v648 = vshll.u32 %v425, 16
        %v650 = vrot.slane %v648, 5
        %v651 = vor.u32 %v647, %v650
        %v652 = vrot.slane %v651, 4
        %v654 = vshll.u32 %v426, 16
        %v656 = vrot.slane %v654, 5
        %v657 = vsel %vm451, %v652, %v656
        %v658 = vshrl.u32 %v426, 16
        %v660 = vrot.slane %v658, 4
        %v661 = vor.u32 %v660, %v656
        %v662 = vrot.slane %v661, 4
        %v664 = vshll.u32 %v427, 16
        %v666 = vrot.slane %v664, 5
        %v667 = vsel %vm451, %v662, %v666
        %v669 = vshrl.u32 %v428, 16
        %v671 = vrot.slane %v669, 4
        %v672 = vshll.u32 %v428, 16
        %v674 = vrot.slane %v672, 5
        %v675 = vor.u32 %v671, %v674
        %v676 = vrot.slane %v675, 4
        %v678 = vshll.u32 %v429, 16
        %v680 = vrot.slane %v678, 5
        %v681 = vsel %vm451, %v676, %v680
        %v682 = vshrl.u32 %v429, 16
        %v684 = vrot.slane %v682, 4
        %v685 = vor.u32 %v684, %v680
        %v686 = vrot.slane %v685, 4
        %v688 = vshll.u32 %v430, 16
        %v690 = vrot.slane %v688, 5
        %v691 = vsel %vm451, %v686, %v690
        %v693 = vshrl.u32 %v431, 16
        %v695 = vrot.slane %v693, 4
        %v696 = vshll.u32 %v431, 16
        %v698 = vrot.slane %v696, 5
        %v699 = vor.u32 %v695, %v698
        %v700 = vrot.slane %v699, 4
        %v702 = vshll.u32 %v432, 16
        %v704 = vrot.slane %v702, 5
        %v705 = vsel %vm451, %v700, %v704
        %v706 = vshrl.u32 %v432, 16
        %v708 = vrot.slane %v706, 4
        %v709 = vor.u32 %v708, %v704
        %v710 = vrot.slane %v709, 4
        %v712 = vshll.u32 %v433, 16
        %v714 = vrot.slane %v712, 5
        %v715 = vsel %vm451, %v710, %v714
        %v717 = vshrl.u32 %v434, 16
        %v719 = vrot.slane %v717, 4
        %v720 = vshll.u32 %v434, 16
        %v722 = vrot.slane %v720, 5
        %v723 = vor.u32 %v719, %v722
        %v724 = vrot.slane %v723, 4
        %v726 = vshll.u32 %v435, 16
        %v728 = vrot.slane %v726, 5
        %v729 = vsel %vm451, %v724, %v728
        %v730 = vshrl.u32 %v435, 16
        %v732 = vrot.slane %v730, 4
        %v733 = vor.u32 %v732, %v728
        %v734 = vrot.slane %v733, 4
        %v736 = vshll.u32 %v436, 16
        %v738 = vrot.slane %v736, 5
        %v739 = vsel %vm451, %v734, %v738
        %v741 = vshrl.u32 %v437, 16
        %v743 = vrot.slane %v741, 4
        %v744 = vshll.u32 %v437, 16
        %v746 = vrot.slane %v744, 5
        %v747 = vor.u32 %v743, %v746
        %v748 = vrot.slane %v747, 4
        %v750 = vshll.u32 %v438, 16
        %v752 = vrot.slane %v750, 5
        %v753 = vsel %vm451, %v748, %v752
        %v754 = vshrl.u32 %v438, 16
        %v756 = vrot.slane %v754, 4
        %v757 = vor.u32 %v756, %v752
        %v758 = vrot.slane %v757, 4
        %v760 = vshll.u32 %v439, 16
        %v762 = vrot.slane %v760, 5
        %v763 = vsel %vm451, %v758, %v762
        %v765 = vshrl.u32 %v440, 16
        %v767 = vrot.slane %v765, 4
        %v768 = vshll.u32 %v440, 16
        %v770 = vrot.slane %v768, 5
        %v771 = vor.u32 %v767, %v770
        %v772 = vrot.slane %v771, 4
        %v774 = vshll.u32 %v441, 16
        %v776 = vrot.slane %v774, 5
        %v777 = vsel %vm451, %v772, %v776
        %v778 = vshrl.u32 %v441, 16
        %v780 = vrot.slane %v778, 4
        %v781 = vor.u32 %v780, %v776
        %v782 = vrot.slane %v781, 4
        %v784 = vshll.u32 %v442, 16
        %v786 = vrot.slane %v784, 5
        %v787 = vsel %vm451, %v782, %v786
        %v789 = vshrl.u32 %v443, 16
        %v791 = vrot.slane %v789, 4
        %v792 = vshll.u32 %v443, 16
        %v794 = vrot.slane %v792, 5
        %v795 = vor.u32 %v791, %v794
        %v796 = vrot.slane %v795, 4
        %v798 = vshll.u32 %v444, 16
        %v800 = vrot.slane %v798, 5
        %v801 = vsel %vm451, %v796, %v800
        %v802 = vshrl.u32 %v444, 16
        %v804 = vrot.slane %v802, 4
        %v805 = vor.u32 %v804, %v800
        %v806 = vrot.slane %v805, 4
        %v808 = vshll.u32 %v445, 16
        %v810 = vrot.slane %v808, 5
        %v811 = vsel %vm451, %v806, %v810
        %v813 = vshrl.u32 %v446, 16
        %v815 = vrot.slane %v813, 4
        %v816 = vshll.u32 %v446, 16
        %v818 = vrot.slane %v816, 5
        %v819 = vor.u32 %v815, %v818
        %v820 = vrot.slane %v819, 4
        %v822 = vshll.u32 %v447, 16
        %v824 = vrot.slane %v822, 5
        %v825 = vsel %vm451, %v820, %v824
        %v826 = vshrl.u32 %v447, 16
        %v828 = vrot.slane %v826, 4
        %v829 = vor.u32 %v828, %v824
        %v830 = vrot.slane %v829, 4
        %v832 = vshll.u32 %v448, 16
        %v834 = vrot.slane %v832, 5
        %v835 = vsel %vm451, %v830, %v834
        %868 = vst [vmem:[#allocation2 + $0x4] sm:$0xf] %v465
        %869 = vst [vmem:[#allocation2 + $0x28] sm:$0xf] %v475
        %870 = vst [vmem:[#allocation2 + $0x4c] sm:$0xf] %v489
        %871 = vst [vmem:[#allocation2 + $0x70] sm:$0xf] %v499
        %872 = vst [vmem:[#allocation2 + $0x94] sm:$0xf] %v513
        %873 = vst [vmem:[#allocation2 + $0xb8] sm:$0xf] %v523
        %874 = vst [vmem:[#allocation2 + $0xdc] sm:$0xf] %v537
        %875 = vst [vmem:[#allocation2 + $0x100] sm:$0xf] %v547
        %876 = vst [vmem:[#allocation2 + $0x124] sm:$0xf] %v561
        %877 = vst [vmem:[#allocation2 + $0x148] sm:$0xf] %v571
        %878 = vst [vmem:[#allocation2 + $0x16c] sm:$0xf] %v585
        %879 = vst [vmem:[#allocation2 + $0x190] sm:$0xf] %v595
        %880 = vst [vmem:[#allocation2 + $0x1b4] sm:$0xf] %v609
        %881 = vst [vmem:[#allocation2 + $0x1d8] sm:$0xf] %v619
        %882 = vst [vmem:[#allocation2 + $0x1fc] sm:$0xf] %v633
        %883 = vst [vmem:[#allocation2 + $0x220] sm:$0xf] %v643
        %884 = vst [vmem:[#allocation2 + $0x244] sm:$0xf] %v657
        %885 = vst [vmem:[#allocation2 + $0x268] sm:$0xf] %v667
        %886 = vst [vmem:[#allocation2 + $0x28c] sm:$0xf] %v681
        %887 = vst [vmem:[#allocation2 + $0x2b0] sm:$0xf] %v691
        %888 = vst [vmem:[#allocation2 + $0x2d4] sm:$0xf] %v705
        %889 = vst [vmem:[#allocation2 + $0x2f8] sm:$0xf] %v715
        %890 = vst [vmem:[#allocation2 + $0x31c] sm:$0xf] %v729
        %891 = vst [vmem:[#allocation2 + $0x340] sm:$0xf] %v739
        %892 = vst [vmem:[#allocation2 + $0x364] sm:$0xf] %v753
        %893 = vst [vmem:[#allocation2 + $0x388] sm:$0xf] %v763
        %894 = vst [vmem:[#allocation2 + $0x3ac] sm:$0xf] %v777
        %895 = vst [vmem:[#allocation2 + $0x3d0] sm:$0xf] %v787
        %896 = vst [vmem:[#allocation2 + $0x3f4] sm:$0xf] %v801
        %897 = vst [vmem:[#allocation2 + $0x418] sm:$0xf] %v811
        %898 = vst [vmem:[#allocation2 + $0x43c] sm:$0xf] %v825
        %899 = vst [vmem:[#allocation2 + $0x460] sm:$0xf] %v835
        %v900 = vld [vmem:[%s290] sm:$0xe]
        %v901 = vld [vmem:[%s290 + $0x4] sm:$0xf]
        %v902 = vld [vmem:[%s290 + $0x8] sm:$0x1]
        %v903 = vld [vmem:[%s290 + $0xc] sm:$0xe]
        %v904 = vld [vmem:[%s290 + $0x10] sm:$0xf]
        %v905 = vld [vmem:[%s290 + $0x14] sm:$0x1]
        %v906 = vld [vmem:[%s290 + $0x18] sm:$0xe]
        %v907 = vld [vmem:[%s290 + $0x1c] sm:$0xf]
        %v908 = vld [vmem:[%s290 + $0x20] sm:$0x1]
        %v909 = vld [vmem:[%s290 + $0x24] sm:$0xe]
        %v910 = vld [vmem:[%s290 + $0x28] sm:$0xf]
        %v911 = vld [vmem:[%s290 + $0x2c] sm:$0x1]
        %v912 = vld [vmem:[%s290 + $0x30] sm:$0xe]
        %v913 = vld [vmem:[%s290 + $0x34] sm:$0xf]
        %v914 = vld [vmem:[%s290 + $0x38] sm:$0x1]
        %v915 = vld [vmem:[%s290 + $0x3c] sm:$0xe]
        %v916 = vld [vmem:[%s290 + $0x40] sm:$0xf]
        %v917 = vld [vmem:[%s290 + $0x44] sm:$0x1]
        %v918 = vld [vmem:[%s290 + $0x48] sm:$0xe]
        %v919 = vld [vmem:[%s290 + $0x4c] sm:$0xf]
        %v920 = vld [vmem:[%s290 + $0x50] sm:$0x1]
        %v921 = vld [vmem:[%s290 + $0x54] sm:$0xe]
        %v922 = vld [vmem:[%s290 + $0x58] sm:$0xf]
        %v923 = vld [vmem:[%s290 + $0x5c] sm:$0x1]
        %v924 = vld [vmem:[%s290 + $0x60] sm:$0xe]
        %v925 = vld [vmem:[%s290 + $0x64] sm:$0xf]
        %v926 = vld [vmem:[%s290 + $0x68] sm:$0x1]
        %v927 = vld [vmem:[%s290 + $0x6c] sm:$0xe]
        %v928 = vld [vmem:[%s290 + $0x70] sm:$0xf]
        %v929 = vld [vmem:[%s290 + $0x74] sm:$0x1]
        %v930 = vld [vmem:[%s290 + $0x78] sm:$0xe]
        %v931 = vld [vmem:[%s290 + $0x7c] sm:$0xf]
        %v932 = vld [vmem:[%s290 + $0x80] sm:$0x1]
        %v933 = vld [vmem:[%s290 + $0x84] sm:$0xe]
        %v934 = vld [vmem:[%s290 + $0x88] sm:$0xf]
        %v935 = vld [vmem:[%s290 + $0x8c] sm:$0x1]
        %v936 = vld [vmem:[%s290 + $0x90] sm:$0xe]
        %v937 = vld [vmem:[%s290 + $0x94] sm:$0xf]
        %v938 = vld [vmem:[%s290 + $0x98] sm:$0x1]
        %v939 = vld [vmem:[%s290 + $0x9c] sm:$0xe]
        %v940 = vld [vmem:[%s290 + $0xa0] sm:$0xf]
        %v941 = vld [vmem:[%s290 + $0xa4] sm:$0x1]
        %v942 = vld [vmem:[%s290 + $0xa8] sm:$0xe]
        %v943 = vld [vmem:[%s290 + $0xac] sm:$0xf]
        %v944 = vld [vmem:[%s290 + $0xb0] sm:$0x1]
        %v945 = vld [vmem:[%s290 + $0xb4] sm:$0xe]
        %v946 = vld [vmem:[%s290 + $0xb8] sm:$0xf]
        %v947 = vld [vmem:[%s290 + $0xbc] sm:$0x1]
        %vm996 = vcmask 1042432
        %vm997 = vcmask 1046532
        %vm998 = vmor %vm996, %vm997
        %v999 = vrot.slane %v900, 5
        %v1000 = vrot.slane %v999, 4
        %v1001 = vrot.slane %v901, 5
        %v1002 = vsel %vm998, %v1000, %v1001
        %v1003 = vrot.slane %v1001, 4
        %v1004 = vrot.slane %v902, 5
        %v1005 = vsel %vm998, %v1003, %v1004
        %v1006 = vrot.slane %v903, 5
        %v1007 = vrot.slane %v1006, 4
        %v1008 = vrot.slane %v904, 5
        %v1009 = vsel %vm998, %v1007, %v1008
        %v1010 = vrot.slane %v1008, 4
        %v1011 = vrot.slane %v905, 5
        %v1012 = vsel %vm998, %v1010, %v1011
        %v1013 = vrot.slane %v906, 5
        %v1014 = vrot.slane %v1013, 4
        %v1015 = vrot.slane %v907, 5
        %v1016 = vsel %vm998, %v1014, %v1015
        %v1017 = vrot.slane %v1015, 4
        %v1018 = vrot.slane %v908, 5
        %v1019 = vsel %vm998, %v1017, %v1018
        %v1020 = vrot.slane %v909, 5
        %v1021 = vrot.slane %v1020, 4
        %v1022 = vrot.slane %v910, 5
        %v1023 = vsel %vm998, %v1021, %v1022
        %v1024 = vrot.slane %v1022, 4
        %v1025 = vrot.slane %v911, 5
        %v1026 = vsel %vm998, %v1024, %v1025
        %v1027 = vrot.slane %v912, 5
        %v1028 = vrot.slane %v1027, 4
        %v1029 = vrot.slane %v913, 5
        %v1030 = vsel %vm998, %v1028, %v1029
        %v1031 = vrot.slane %v1029, 4
        %v1032 = vrot.slane %v914, 5
        %v1033 = vsel %vm998, %v1031, %v1032
        %v1034 = vrot.slane %v915, 5
        %v1035 = vrot.slane %v1034, 4
        %v1036 = vrot.slane %v916, 5
        %v1037 = vsel %vm998, %v1035, %v1036
        %v1038 = vrot.slane %v1036, 4
        %v1039 = vrot.slane %v917, 5
        %v1040 = vsel %vm998, %v1038, %v1039
        %v1041 = vrot.slane %v918, 5
        %v1042 = vrot.slane %v1041, 4
        %v1043 = vrot.slane %v919, 5
        %v1044 = vsel %vm998, %v1042, %v1043
        %v1045 = vrot.slane %v1043, 4
        %v1046 = vrot.slane %v920, 5
        %v1047 = vsel %vm998, %v1045, %v1046
        %v1048 = vrot.slane %v921, 5
        %v1049 = vrot.slane %v1048, 4
        %v1050 = vrot.slane %v922, 5
        %v1051 = vsel %vm998, %v1049, %v1050
        %v1052 = vrot.slane %v1050, 4
        %v1053 = vrot.slane %v923, 5
        %v1054 = vsel %vm998, %v1052, %v1053
        %v1055 = vrot.slane %v924, 5
        %v1056 = vrot.slane %v1055, 4
        %v1057 = vrot.slane %v925, 5
        %v1058 = vsel %vm998, %v1056, %v1057
        %v1059 = vrot.slane %v1057, 4
        %v1060 = vrot.slane %v926, 5
        %v1061 = vsel %vm998, %v1059, %v1060
        %v1062 = vrot.slane %v927, 5
        %v1063 = vrot.slane %v1062, 4
        %v1064 = vrot.slane %v928, 5
        %v1065 = vsel %vm998, %v1063, %v1064
        %v1066 = vrot.slane %v1064, 4
        %v1067 = vrot.slane %v929, 5
        %v1068 = vsel %vm998, %v1066, %v1067
        %v1069 = vrot.slane %v930, 5
        %v1070 = vrot.slane %v1069, 4
        %v1071 = vrot.slane %v931, 5
        %v1072 = vsel %vm998, %v1070, %v1071
        %v1073 = vrot.slane %v1071, 4
        %v1074 = vrot.slane %v932, 5
        %v1075 = vsel %vm998, %v1073, %v1074
        %v1076 = vrot.slane %v933, 5
        %v1077 = vrot.slane %v1076, 4
        %v1078 = vrot.slane %v934, 5
        %v1079 = vsel %vm998, %v1077, %v1078
        %v1080 = vrot.slane %v1078, 4
        %v1081 = vrot.slane %v935, 5
        %v1082 = vsel %vm998, %v1080, %v1081
        %v1083 = vrot.slane %v936, 5
        %v1084 = vrot.slane %v1083, 4
        %v1085 = vrot.slane %v937, 5
        %v1086 = vsel %vm998, %v1084, %v1085
        %v1087 = vrot.slane %v1085, 4
        %v1088 = vrot.slane %v938, 5
        %v1089 = vsel %vm998, %v1087, %v1088
        %v1090 = vrot.slane %v939, 5
        %v1091 = vrot.slane %v1090, 4
        %v1092 = vrot.slane %v940, 5
        %v1093 = vsel %vm998, %v1091, %v1092
        %v1094 = vrot.slane %v1092, 4
        %v1095 = vrot.slane %v941, 5
        %v1096 = vsel %vm998, %v1094, %v1095
        %v1097 = vrot.slane %v942, 5
        %v1098 = vrot.slane %v1097, 4
        %v1099 = vrot.slane %v943, 5
        %v1100 = vsel %vm998, %v1098, %v1099
        %v1101 = vrot.slane %v1099, 4
        %v1102 = vrot.slane %v944, 5
        %v1103 = vsel %vm998, %v1101, %v1102
        %v1104 = vrot.slane %v945, 5
        %v1105 = vrot.slane %v1104, 4
        %v1106 = vrot.slane %v946, 5
        %v1107 = vsel %vm998, %v1105, %v1106
        %v1108 = vrot.slane %v1106, 4
        %v1109 = vrot.slane %v947, 5
        %v1110 = vsel %vm998, %v1108, %v1109
        %1143 = vst [vmem:[#allocation2 + $0x8] sm:$0xf] %v1002
        %1144 = vst [vmem:[#allocation2 + $0x2c] sm:$0xf] %v1005
        %1145 = vst [vmem:[#allocation2 + $0x50] sm:$0xf] %v1009
        %1146 = vst [vmem:[#allocation2 + $0x74] sm:$0xf] %v1012
        %1147 = vst [vmem:[#allocation2 + $0x98] sm:$0xf] %v1016
        %1148 = vst [vmem:[#allocation2 + $0xbc] sm:$0xf] %v1019
        %1149 = vst [vmem:[#allocation2 + $0xe0] sm:$0xf] %v1023
        %1150 = vst [vmem:[#allocation2 + $0x104] sm:$0xf] %v1026
        %1151 = vst [vmem:[#allocation2 + $0x128] sm:$0xf] %v1030
        %1152 = vst [vmem:[#allocation2 + $0x14c] sm:$0xf] %v1033
        %1153 = vst [vmem:[#allocation2 + $0x170] sm:$0xf] %v1037
        %1154 = vst [vmem:[#allocation2 + $0x194] sm:$0xf] %v1040
        %1155 = vst [vmem:[#allocation2 + $0x1b8] sm:$0xf] %v1044
        %1156 = vst [vmem:[#allocation2 + $0x1dc] sm:$0xf] %v1047
        %1157 = vst [vmem:[#allocation2 + $0x200] sm:$0xf] %v1051
        %1158 = vst [vmem:[#allocation2 + $0x224] sm:$0xf] %v1054
        %1159 = vst [vmem:[#allocation2 + $0x248] sm:$0xf] %v1058
        %1160 = vst [vmem:[#allocation2 + $0x26c] sm:$0xf] %v1061
        %1161 = vst [vmem:[#allocation2 + $0x290] sm:$0xf] %v1065
        %1162 = vst [vmem:[#allocation2 + $0x2b4] sm:$0xf] %v1068
        %1163 = vst [vmem:[#allocation2 + $0x2d8] sm:$0xf] %v1072
        %1164 = vst [vmem:[#allocation2 + $0x2fc] sm:$0xf] %v1075
        %1165 = vst [vmem:[#allocation2 + $0x320] sm:$0xf] %v1079
        %1166 = vst [vmem:[#allocation2 + $0x344] sm:$0xf] %v1082
        %1167 = vst [vmem:[#allocation2 + $0x368] sm:$0xf] %v1086
        %1168 = vst [vmem:[#allocation2 + $0x38c] sm:$0xf] %v1089
        %1169 = vst [vmem:[#allocation2 + $0x3b0] sm:$0xf] %v1093
        %1170 = vst [vmem:[#allocation2 + $0x3d4] sm:$0xf] %v1096
        %1171 = vst [vmem:[#allocation2 + $0x3f8] sm:$0xf] %v1100
        %1172 = vst [vmem:[#allocation2 + $0x41c] sm:$0xf] %v1103
        %1173 = vst [vmem:[#allocation2 + $0x440] sm:$0xf] %v1107
        %1174 = vst [vmem:[#allocation2 + $0x464] sm:$0xf] %v1110
        %s1175 = scalar_lea.vmem %s290, 12 [#allocation4]
        %v1176 = vld [vmem:[%s1175] sm:$0xf]
        %v1177 = vld [vmem:[%s1175 + $0x4] sm:$0xf]
        %v1178 = vld [vmem:[%s1175 + $0xc] sm:$0xf]
        %v1179 = vld [vmem:[%s1175 + $0x10] sm:$0xf]
        %v1180 = vld [vmem:[%s1175 + $0x18] sm:$0xf]
        %v1181 = vld [vmem:[%s1175 + $0x1c] sm:$0xf]
        %v1182 = vld [vmem:[%s1175 + $0x24] sm:$0xf]
        %v1183 = vld [vmem:[%s1175 + $0x28] sm:$0xf]
        %v1184 = vld [vmem:[%s1175 + $0x30] sm:$0xf]
        %v1185 = vld [vmem:[%s1175 + $0x34] sm:$0xf]
        %v1186 = vld [vmem:[%s1175 + $0x3c] sm:$0xf]
        %v1187 = vld [vmem:[%s1175 + $0x40] sm:$0xf]
        %v1188 = vld [vmem:[%s1175 + $0x48] sm:$0xf]
        %v1189 = vld [vmem:[%s1175 + $0x4c] sm:$0xf]
        %v1190 = vld [vmem:[%s1175 + $0x54] sm:$0xf]
        %v1191 = vld [vmem:[%s1175 + $0x58] sm:$0xf]
        %v1192 = vld [vmem:[%s1175 + $0x60] sm:$0xf]
        %v1193 = vld [vmem:[%s1175 + $0x64] sm:$0xf]
        %v1194 = vld [vmem:[%s1175 + $0x6c] sm:$0xf]
        %v1195 = vld [vmem:[%s1175 + $0x70] sm:$0xf]
        %v1196 = vld [vmem:[%s1175 + $0x78] sm:$0xf]
        %v1197 = vld [vmem:[%s1175 + $0x7c] sm:$0xf]
        %v1198 = vld [vmem:[%s1175 + $0x84] sm:$0xf]
        %v1199 = vld [vmem:[%s1175 + $0x88] sm:$0xf]
        %v1200 = vld [vmem:[%s1175 + $0x90] sm:$0xf]
        %v1201 = vld [vmem:[%s1175 + $0x94] sm:$0xf]
        %v1202 = vld [vmem:[%s1175 + $0x9c] sm:$0xf]
        %v1203 = vld [vmem:[%s1175 + $0xa0] sm:$0xf]
        %v1204 = vld [vmem:[%s1175 + $0xa8] sm:$0xf]
        %v1205 = vld [vmem:[%s1175 + $0xac] sm:$0xf]
        %v1206 = vld [vmem:[%s1175 + $0xb4] sm:$0xf]
        %v1207 = vld [vmem:[%s1175 + $0xb8] sm:$0xf]
        %1208 = vst [vmem:[#allocation2 + $0xc] sm:$0xf] %v1176
        %1209 = vst [vmem:[#allocation2 + $0x30] sm:$0xf] %v1177
        %1210 = vst [vmem:[#allocation2 + $0x54] sm:$0xf] %v1178
        %1211 = vst [vmem:[#allocation2 + $0x78] sm:$0xf] %v1179
        %1212 = vst [vmem:[#allocation2 + $0x9c] sm:$0xf] %v1180
        %1213 = vst [vmem:[#allocation2 + $0xc0] sm:$0xf] %v1181
        %1214 = vst [vmem:[#allocation2 + $0xe4] sm:$0xf] %v1182
        %1215 = vst [vmem:[#allocation2 + $0x108] sm:$0xf] %v1183
        %1216 = vst [vmem:[#allocation2 + $0x12c] sm:$0xf] %v1184
        %1217 = vst [vmem:[#allocation2 + $0x150] sm:$0xf] %v1185
        %1218 = vst [vmem:[#allocation2 + $0x174] sm:$0xf] %v1186
        %1219 = vst [vmem:[#allocation2 + $0x198] sm:$0xf] %v1187
        %1220 = vst [vmem:[#allocation2 + $0x1bc] sm:$0xf] %v1188
        %1221 = vst [vmem:[#allocation2 + $0x1e0] sm:$0xf] %v1189
        %1222 = vst [vmem:[#allocation2 + $0x204] sm:$0xf] %v1190
        %1223 = vst [vmem:[#allocation2 + $0x228] sm:$0xf] %v1191
        %1224 = vst [vmem:[#allocation2 + $0x24c] sm:$0xf] %v1192
        %1225 = vst [vmem:[#allocation2 + $0x270] sm:$0xf] %v1193
        %1226 = vst [vmem:[#allocation2 + $0x294] sm:$0xf] %v1194
        %1227 = vst [vmem:[#allocation2 + $0x2b8] sm:$0xf] %v1195
        %1228 = vst [vmem:[#allocation2 + $0x2dc] sm:$0xf] %v1196
        %1229 = vst [vmem:[#allocation2 + $0x300] sm:$0xf] %v1197
        %1230 = vst [vmem:[#allocation2 + $0x324] sm:$0xf] %v1198
        %1231 = vst [vmem:[#allocation2 + $0x348] sm:$0xf] %v1199
        %1232 = vst [vmem:[#allocation2 + $0x36c] sm:$0xf] %v1200
        %1233 = vst [vmem:[#allocation2 + $0x390] sm:$0xf] %v1201
        %1234 = vst [vmem:[#allocation2 + $0x3b4] sm:$0xf] %v1202
        %1235 = vst [vmem:[#allocation2 + $0x3d8] sm:$0xf] %v1203
        %1236 = vst [vmem:[#allocation2 + $0x3fc] sm:$0xf] %v1204
        %1237 = vst [vmem:[#allocation2 + $0x420] sm:$0xf] %v1205
        %1238 = vst [vmem:[#allocation2 + $0x444] sm:$0xf] %v1206
        %1239 = vst [vmem:[#allocation2 + $0x468] sm:$0xf] %v1207
        %v1240 = vld [vmem:[%s1175] sm:$0xf]
        %v1241 = vld [vmem:[%s1175 + $0x4] sm:$0xf]
        %v1242 = vld [vmem:[%s1175 + $0x8] sm:$0x1]
        %v1243 = vld [vmem:[%s1175 + $0xc] sm:$0xf]
        %v1244 = vld [vmem:[%s1175 + $0x10] sm:$0xf]
        %v1245 = vld [vmem:[%s1175 + $0x14] sm:$0x1]
        %v1246 = vld [vmem:[%s1175 + $0x18] sm:$0xf]
        %v1247 = vld [vmem:[%s1175 + $0x1c] sm:$0xf]
        %v1248 = vld [vmem:[%s1175 + $0x20] sm:$0x1]
        %v1249 = vld [vmem:[%s1175 + $0x24] sm:$0xf]
        %v1250 = vld [vmem:[%s1175 + $0x28] sm:$0xf]
        %v1251 = vld [vmem:[%s1175 + $0x2c] sm:$0x1]
        %v1252 = vld [vmem:[%s1175 + $0x30] sm:$0xf]
        %v1253 = vld [vmem:[%s1175 + $0x34] sm:$0xf]
        %v1254 = vld [vmem:[%s1175 + $0x38] sm:$0x1]
        %v1255 = vld [vmem:[%s1175 + $0x3c] sm:$0xf]
        %v1256 = vld [vmem:[%s1175 + $0x40] sm:$0xf]
        %v1257 = vld [vmem:[%s1175 + $0x44] sm:$0x1]
        %v1258 = vld [vmem:[%s1175 + $0x48] sm:$0xf]
        %v1259 = vld [vmem:[%s1175 + $0x4c] sm:$0xf]
        %v1260 = vld [vmem:[%s1175 + $0x50] sm:$0x1]
        %v1261 = vld [vmem:[%s1175 + $0x54] sm:$0xf]
        %v1262 = vld [vmem:[%s1175 + $0x58] sm:$0xf]
        %v1263 = vld [vmem:[%s1175 + $0x5c] sm:$0x1]
        %v1264 = vld [vmem:[%s1175 + $0x60] sm:$0xf]
        %v1265 = vld [vmem:[%s1175 + $0x64] sm:$0xf]
        %v1266 = vld [vmem:[%s1175 + $0x68] sm:$0x1]
        %v1267 = vld [vmem:[%s1175 + $0x6c] sm:$0xf]
        %v1268 = vld [vmem:[%s1175 + $0x70] sm:$0xf]
        %v1269 = vld [vmem:[%s1175 + $0x74] sm:$0x1]
        %v1270 = vld [vmem:[%s1175 + $0x78] sm:$0xf]
        %v1271 = vld [vmem:[%s1175 + $0x7c] sm:$0xf]
        %v1272 = vld [vmem:[%s1175 + $0x80] sm:$0x1]
        %v1273 = vld [vmem:[%s1175 + $0x84] sm:$0xf]
        %v1274 = vld [vmem:[%s1175 + $0x88] sm:$0xf]
        %v1275 = vld [vmem:[%s1175 + $0x8c] sm:$0x1]
        %v1276 = vld [vmem:[%s1175 + $0x90] sm:$0xf]
        %v1277 = vld [vmem:[%s1175 + $0x94] sm:$0xf]
        %v1278 = vld [vmem:[%s1175 + $0x98] sm:$0x1]
        %v1279 = vld [vmem:[%s1175 + $0x9c] sm:$0xf]
        %v1280 = vld [vmem:[%s1175 + $0xa0] sm:$0xf]
        %v1281 = vld [vmem:[%s1175 + $0xa4] sm:$0x1]
        %v1282 = vld [vmem:[%s1175 + $0xa8] sm:$0xf]
        %v1283 = vld [vmem:[%s1175 + $0xac] sm:$0xf]
        %v1284 = vld [vmem:[%s1175 + $0xb0] sm:$0x1]
        %v1285 = vld [vmem:[%s1175 + $0xb4] sm:$0xf]
        %v1286 = vld [vmem:[%s1175 + $0xb8] sm:$0xf]
        %v1287 = vld [vmem:[%s1175 + $0xbc] sm:$0x1]
        %v1289 = vshrl.u32 %v1240, 16
        %v1291 = vrot.slane %v1289, 4
        %v1292 = vshll.u32 %v1240, 16
        %v1294 = vrot.slane %v1292, 5
        %v1295 = vor.u32 %v1291, %v1294
        %v1296 = vrot.slane %v1295, 4
        %v1298 = vshll.u32 %v1241, 16
        %v1300 = vrot.slane %v1298, 5
        %v1301 = vsel %vm451, %v1296, %v1300
        %v1302 = vshrl.u32 %v1241, 16
        %v1304 = vrot.slane %v1302, 4
        %v1305 = vor.u32 %v1304, %v1300
        %v1306 = vrot.slane %v1305, 4
        %v1308 = vshll.u32 %v1242, 16
        %v1310 = vrot.slane %v1308, 5
        %v1311 = vsel %vm451, %v1306, %v1310
        %v1313 = vshrl.u32 %v1243, 16
        %v1315 = vrot.slane %v1313, 4
        %v1316 = vshll.u32 %v1243, 16
        %v1318 = vrot.slane %v1316, 5
        %v1319 = vor.u32 %v1315, %v1318
        %v1320 = vrot.slane %v1319, 4
        %v1322 = vshll.u32 %v1244, 16
        %v1324 = vrot.slane %v1322, 5
        %v1325 = vsel %vm451, %v1320, %v1324
        %v1326 = vshrl.u32 %v1244, 16
        %v1328 = vrot.slane %v1326, 4
        %v1329 = vor.u32 %v1328, %v1324
        %v1330 = vrot.slane %v1329, 4
        %v1332 = vshll.u32 %v1245, 16
        %v1334 = vrot.slane %v1332, 5
        %v1335 = vsel %vm451, %v1330, %v1334
        %v1337 = vshrl.u32 %v1246, 16
        %v1339 = vrot.slane %v1337, 4
        %v1340 = vshll.u32 %v1246, 16
        %v1342 = vrot.slane %v1340, 5
        %v1343 = vor.u32 %v1339, %v1342
        %v1344 = vrot.slane %v1343, 4
        %v1346 = vshll.u32 %v1247, 16
        %v1348 = vrot.slane %v1346, 5
        %v1349 = vsel %vm451, %v1344, %v1348
        %v1350 = vshrl.u32 %v1247, 16
        %v1352 = vrot.slane %v1350, 4
        %v1353 = vor.u32 %v1352, %v1348
        %v1354 = vrot.slane %v1353, 4
        %v1356 = vshll.u32 %v1248, 16
        %v1358 = vrot.slane %v1356, 5
        %v1359 = vsel %vm451, %v1354, %v1358
        %v1361 = vshrl.u32 %v1249, 16
        %v1363 = vrot.slane %v1361, 4
        %v1364 = vshll.u32 %v1249, 16
        %v1366 = vrot.slane %v1364, 5
        %v1367 = vor.u32 %v1363, %v1366
        %v1368 = vrot.slane %v1367, 4
        %v1370 = vshll.u32 %v1250, 16
        %v1372 = vrot.slane %v1370, 5
        %v1373 = vsel %vm451, %v1368, %v1372
        %v1374 = vshrl.u32 %v1250, 16
        %v1376 = vrot.slane %v1374, 4
        %v1377 = vor.u32 %v1376, %v1372
        %v1378 = vrot.slane %v1377, 4
        %v1380 = vshll.u32 %v1251, 16
        %v1382 = vrot.slane %v1380, 5
        %v1383 = vsel %vm451, %v1378, %v1382
        %v1385 = vshrl.u32 %v1252, 16
        %v1387 = vrot.slane %v1385, 4
        %v1388 = vshll.u32 %v1252, 16
        %v1390 = vrot.slane %v1388, 5
        %v1391 = vor.u32 %v1387, %v1390
        %v1392 = vrot.slane %v1391, 4
        %v1394 = vshll.u32 %v1253, 16
        %v1396 = vrot.slane %v1394, 5
        %v1397 = vsel %vm451, %v1392, %v1396
        %v1398 = vshrl.u32 %v1253, 16
        %v1400 = vrot.slane %v1398, 4
        %v1401 = vor.u32 %v1400, %v1396
        %v1402 = vrot.slane %v1401, 4
        %v1404 = vshll.u32 %v1254, 16
        %v1406 = vrot.slane %v1404, 5
        %v1407 = vsel %vm451, %v1402, %v1406
        %v1409 = vshrl.u32 %v1255, 16
        %v1411 = vrot.slane %v1409, 4
        %v1412 = vshll.u32 %v1255, 16
        %v1414 = vrot.slane %v1412, 5
        %v1415 = vor.u32 %v1411, %v1414
        %v1416 = vrot.slane %v1415, 4
        %v1418 = vshll.u32 %v1256, 16
        %v1420 = vrot.slane %v1418, 5
        %v1421 = vsel %vm451, %v1416, %v1420
        %v1422 = vshrl.u32 %v1256, 16
        %v1424 = vrot.slane %v1422, 4
        %v1425 = vor.u32 %v1424, %v1420
        %v1426 = vrot.slane %v1425, 4
        %v1428 = vshll.u32 %v1257, 16
        %v1430 = vrot.slane %v1428, 5
        %v1431 = vsel %vm451, %v1426, %v1430
        %v1433 = vshrl.u32 %v1258, 16
        %v1435 = vrot.slane %v1433, 4
        %v1436 = vshll.u32 %v1258, 16
        %v1438 = vrot.slane %v1436, 5
        %v1439 = vor.u32 %v1435, %v1438
        %v1440 = vrot.slane %v1439, 4
        %v1442 = vshll.u32 %v1259, 16
        %v1444 = vrot.slane %v1442, 5
        %v1445 = vsel %vm451, %v1440, %v1444
        %v1446 = vshrl.u32 %v1259, 16
        %v1448 = vrot.slane %v1446, 4
        %v1449 = vor.u32 %v1448, %v1444
        %v1450 = vrot.slane %v1449, 4
        %v1452 = vshll.u32 %v1260, 16
        %v1454 = vrot.slane %v1452, 5
        %v1455 = vsel %vm451, %v1450, %v1454
        %v1457 = vshrl.u32 %v1261, 16
        %v1459 = vrot.slane %v1457, 4
        %v1460 = vshll.u32 %v1261, 16
        %v1462 = vrot.slane %v1460, 5
        %v1463 = vor.u32 %v1459, %v1462
        %v1464 = vrot.slane %v1463, 4
        %v1466 = vshll.u32 %v1262, 16
        %v1468 = vrot.slane %v1466, 5
        %v1469 = vsel %vm451, %v1464, %v1468
        %v1470 = vshrl.u32 %v1262, 16
        %v1472 = vrot.slane %v1470, 4
        %v1473 = vor.u32 %v1472, %v1468
        %v1474 = vrot.slane %v1473, 4
        %v1476 = vshll.u32 %v1263, 16
        %v1478 = vrot.slane %v1476, 5
        %v1479 = vsel %vm451, %v1474, %v1478
        %v1481 = vshrl.u32 %v1264, 16
        %v1483 = vrot.slane %v1481, 4
        %v1484 = vshll.u32 %v1264, 16
        %v1486 = vrot.slane %v1484, 5
        %v1487 = vor.u32 %v1483, %v1486
        %v1488 = vrot.slane %v1487, 4
        %v1490 = vshll.u32 %v1265, 16
        %v1492 = vrot.slane %v1490, 5
        %v1493 = vsel %vm451, %v1488, %v1492
        %v1494 = vshrl.u32 %v1265, 16
        %v1496 = vrot.slane %v1494, 4
        %v1497 = vor.u32 %v1496, %v1492
        %v1498 = vrot.slane %v1497, 4
        %v1500 = vshll.u32 %v1266, 16
        %v1502 = vrot.slane %v1500, 5
        %v1503 = vsel %vm451, %v1498, %v1502
        %v1505 = vshrl.u32 %v1267, 16
        %v1507 = vrot.slane %v1505, 4
        %v1508 = vshll.u32 %v1267, 16
        %v1510 = vrot.slane %v1508, 5
        %v1511 = vor.u32 %v1507, %v1510
        %v1512 = vrot.slane %v1511, 4
        %v1514 = vshll.u32 %v1268, 16
        %v1516 = vrot.slane %v1514, 5
        %v1517 = vsel %vm451, %v1512, %v1516
        %v1518 = vshrl.u32 %v1268, 16
        %v1520 = vrot.slane %v1518, 4
        %v1521 = vor.u32 %v1520, %v1516
        %v1522 = vrot.slane %v1521, 4
        %v1524 = vshll.u32 %v1269, 16
        %v1526 = vrot.slane %v1524, 5
        %v1527 = vsel %vm451, %v1522, %v1526
        %v1529 = vshrl.u32 %v1270, 16
        %v1531 = vrot.slane %v1529, 4
        %v1532 = vshll.u32 %v1270, 16
        %v1534 = vrot.slane %v1532, 5
        %v1535 = vor.u32 %v1531, %v1534
        %v1536 = vrot.slane %v1535, 4
        %v1538 = vshll.u32 %v1271, 16
        %v1540 = vrot.slane %v1538, 5
        %v1541 = vsel %vm451, %v1536, %v1540
        %v1542 = vshrl.u32 %v1271, 16
        %v1544 = vrot.slane %v1542, 4
        %v1545 = vor.u32 %v1544, %v1540
        %v1546 = vrot.slane %v1545, 4
        %v1548 = vshll.u32 %v1272, 16
        %v1550 = vrot.slane %v1548, 5
        %v1551 = vsel %vm451, %v1546, %v1550
        %v1553 = vshrl.u32 %v1273, 16
        %v1555 = vrot.slane %v1553, 4
        %v1556 = vshll.u32 %v1273, 16
        %v1558 = vrot.slane %v1556, 5
        %v1559 = vor.u32 %v1555, %v1558
        %v1560 = vrot.slane %v1559, 4
        %v1562 = vshll.u32 %v1274, 16
        %v1564 = vrot.slane %v1562, 5
        %v1565 = vsel %vm451, %v1560, %v1564
        %v1566 = vshrl.u32 %v1274, 16
        %v1568 = vrot.slane %v1566, 4
        %v1569 = vor.u32 %v1568, %v1564
        %v1570 = vrot.slane %v1569, 4
        %v1572 = vshll.u32 %v1275, 16
        %v1574 = vrot.slane %v1572, 5
        %v1575 = vsel %vm451, %v1570, %v1574
        %v1577 = vshrl.u32 %v1276, 16
        %v1579 = vrot.slane %v1577, 4
        %v1580 = vshll.u32 %v1276, 16
        %v1582 = vrot.slane %v1580, 5
        %v1583 = vor.u32 %v1579, %v1582
        %v1584 = vrot.slane %v1583, 4
        %v1586 = vshll.u32 %v1277, 16
        %v1588 = vrot.slane %v1586, 5
        %v1589 = vsel %vm451, %v1584, %v1588
        %v1590 = vshrl.u32 %v1277, 16
        %v1592 = vrot.slane %v1590, 4
        %v1593 = vor.u32 %v1592, %v1588
        %v1594 = vrot.slane %v1593, 4
        %v1596 = vshll.u32 %v1278, 16
        %v1598 = vrot.slane %v1596, 5
        %v1599 = vsel %vm451, %v1594, %v1598
        %v1601 = vshrl.u32 %v1279, 16
        %v1603 = vrot.slane %v1601, 4
        %v1604 = vshll.u32 %v1279, 16
        %v1606 = vrot.slane %v1604, 5
        %v1607 = vor.u32 %v1603, %v1606
        %v1608 = vrot.slane %v1607, 4
        %v1610 = vshll.u32 %v1280, 16
        %v1612 = vrot.slane %v1610, 5
        %v1613 = vsel %vm451, %v1608, %v1612
        %v1614 = vshrl.u32 %v1280, 16
        %v1616 = vrot.slane %v1614, 4
        %v1617 = vor.u32 %v1616, %v1612
        %v1618 = vrot.slane %v1617, 4
        %v1620 = vshll.u32 %v1281, 16
        %v1622 = vrot.slane %v1620, 5
        %v1623 = vsel %vm451, %v1618, %v1622
        %v1625 = vshrl.u32 %v1282, 16
        %v1627 = vrot.slane %v1625, 4
        %v1628 = vshll.u32 %v1282, 16
        %v1630 = vrot.slane %v1628, 5
        %v1631 = vor.u32 %v1627, %v1630
        %v1632 = vrot.slane %v1631, 4
        %v1634 = vshll.u32 %v1283, 16
        %v1636 = vrot.slane %v1634, 5
        %v1637 = vsel %vm451, %v1632, %v1636
        %v1638 = vshrl.u32 %v1283, 16
        %v1640 = vrot.slane %v1638, 4
        %v1641 = vor.u32 %v1640, %v1636
        %v1642 = vrot.slane %v1641, 4
        %v1644 = vshll.u32 %v1284, 16
        %v1646 = vrot.slane %v1644, 5
        %v1647 = vsel %vm451, %v1642, %v1646
        %v1649 = vshrl.u32 %v1285, 16
        %v1651 = vrot.slane %v1649, 4
        %v1652 = vshll.u32 %v1285, 16
        %v1654 = vrot.slane %v1652, 5
        %v1655 = vor.u32 %v1651, %v1654
        %v1656 = vrot.slane %v1655, 4
        %v1658 = vshll.u32 %v1286, 16
        %v1660 = vrot.slane %v1658, 5
        %v1661 = vsel %vm451, %v1656, %v1660
        %v1662 = vshrl.u32 %v1286, 16
        %v1664 = vrot.slane %v1662, 4
        %v1665 = vor.u32 %v1664, %v1660
        %v1666 = vrot.slane %v1665, 4
        %v1668 = vshll.u32 %v1287, 16
        %v1670 = vrot.slane %v1668, 5
        %v1671 = vsel %vm451, %v1666, %v1670
        %1704 = vst [vmem:[#allocation2 + $0x10] sm:$0xf] %v1301
        %1705 = vst [vmem:[#allocation2 + $0x34] sm:$0xf] %v1311
        %1706 = vst [vmem:[#allocation2 + $0x58] sm:$0xf] %v1325
        %1707 = vst [vmem:[#allocation2 + $0x7c] sm:$0xf] %v1335
        %1708 = vst [vmem:[#allocation2 + $0xa0] sm:$0xf] %v1349
        %1709 = vst [vmem:[#allocation2 + $0xc4] sm:$0xf] %v1359
        %1710 = vst [vmem:[#allocation2 + $0xe8] sm:$0xf] %v1373
        %1711 = vst [vmem:[#allocation2 + $0x10c] sm:$0xf] %v1383
        %1712 = vst [vmem:[#allocation2 + $0x130] sm:$0xf] %v1397
        %1713 = vst [vmem:[#allocation2 + $0x154] sm:$0xf] %v1407
        %1714 = vst [vmem:[#allocation2 + $0x178] sm:$0xf] %v1421
        %1715 = vst [vmem:[#allocation2 + $0x19c] sm:$0xf] %v1431
        %1716 = vst [vmem:[#allocation2 + $0x1c0] sm:$0xf] %v1445
        %1717 = vst [vmem:[#allocation2 + $0x1e4] sm:$0xf] %v1455
        %1718 = vst [vmem:[#allocation2 + $0x208] sm:$0xf] %v1469
        %1719 = vst [vmem:[#allocation2 + $0x22c] sm:$0xf] %v1479
        %1720 = vst [vmem:[#allocation2 + $0x250] sm:$0xf] %v1493
        %1721 = vst [vmem:[#allocation2 + $0x274] sm:$0xf] %v1503
        %1722 = vst [vmem:[#allocation2 + $0x298] sm:$0xf] %v1517
        %1723 = vst [vmem:[#allocation2 + $0x2bc] sm:$0xf] %v1527
        %1724 = vst [vmem:[#allocation2 + $0x2e0] sm:$0xf] %v1541
        %1725 = vst [vmem:[#allocation2 + $0x304] sm:$0xf] %v1551
        %1726 = vst [vmem:[#allocation2 + $0x328] sm:$0xf] %v1565
        %1727 = vst [vmem:[#allocation2 + $0x34c] sm:$0xf] %v1575
        %1728 = vst [vmem:[#allocation2 + $0x370] sm:$0xf] %v1589
        %1729 = vst [vmem:[#allocation2 + $0x394] sm:$0xf] %v1599
        %1730 = vst [vmem:[#allocation2 + $0x3b8] sm:$0xf] %v1613
        %1731 = vst [vmem:[#allocation2 + $0x3dc] sm:$0xf] %v1623
        %1732 = vst [vmem:[#allocation2 + $0x400] sm:$0xf] %v1637
        %1733 = vst [vmem:[#allocation2 + $0x424] sm:$0xf] %v1647
        %1734 = vst [vmem:[#allocation2 + $0x448] sm:$0xf] %v1661
        %1735 = vst [vmem:[#allocation2 + $0x46c] sm:$0xf] %v1671
        %v1736 = vld [vmem:[%s1175] sm:$0xe]
        %v1737 = vld [vmem:[%s1175 + $0x4] sm:$0xf]
        %v1738 = vld [vmem:[%s1175 + $0x8] sm:$0x1]
        %v1739 = vld [vmem:[%s1175 + $0xc] sm:$0xe]
        %v1740 = vld [vmem:[%s1175 + $0x10] sm:$0xf]
        %v1741 = vld [vmem:[%s1175 + $0x14] sm:$0x1]
        %v1742 = vld [vmem:[%s1175 + $0x18] sm:$0xe]
        %v1743 = vld [vmem:[%s1175 + $0x1c] sm:$0xf]
        %v1744 = vld [vmem:[%s1175 + $0x20] sm:$0x1]
        %v1745 = vld [vmem:[%s1175 + $0x24] sm:$0xe]
        %v1746 = vld [vmem:[%s1175 + $0x28] sm:$0xf]
        %v1747 = vld [vmem:[%s1175 + $0x2c] sm:$0x1]
        %v1748 = vld [vmem:[%s1175 + $0x30] sm:$0xe]
        %v1749 = vld [vmem:[%s1175 + $0x34] sm:$0xf]
        %v1750 = vld [vmem:[%s1175 + $0x38] sm:$0x1]
        %v1751 = vld [vmem:[%s1175 + $0x3c] sm:$0xe]
        %v1752 = vld [vmem:[%s1175 + $0x40] sm:$0xf]
        %v1753 = vld [vmem:[%s1175 + $0x44] sm:$0x1]
        %v1754 = vld [vmem:[%s1175 + $0x48] sm:$0xe]
        %v1755 = vld [vmem:[%s1175 + $0x4c] sm:$0xf]
        %v1756 = vld [vmem:[%s1175 + $0x50] sm:$0x1]
        %v1757 = vld [vmem:[%s1175 + $0x54] sm:$0xe]
        %v1758 = vld [vmem:[%s1175 + $0x58] sm:$0xf]
        %v1759 = vld [vmem:[%s1175 + $0x5c] sm:$0x1]
        %v1760 = vld [vmem:[%s1175 + $0x60] sm:$0xe]
        %v1761 = vld [vmem:[%s1175 + $0x64] sm:$0xf]
        %v1762 = vld [vmem:[%s1175 + $0x68] sm:$0x1]
        %v1763 = vld [vmem:[%s1175 + $0x6c] sm:$0xe]
        %v1764 = vld [vmem:[%s1175 + $0x70] sm:$0xf]
        %v1765 = vld [vmem:[%s1175 + $0x74] sm:$0x1]
        %v1766 = vld [vmem:[%s1175 + $0x78] sm:$0xe]
        %v1767 = vld [vmem:[%s1175 + $0x7c] sm:$0xf]
        %v1768 = vld [vmem:[%s1175 + $0x80] sm:$0x1]
        %v1769 = vld [vmem:[%s1175 + $0x84] sm:$0xe]
        %v1770 = vld [vmem:[%s1175 + $0x88] sm:$0xf]
        %v1771 = vld [vmem:[%s1175 + $0x8c] sm:$0x1]
        %v1772 = vld [vmem:[%s1175 + $0x90] sm:$0xe]
        %v1773 = vld [vmem:[%s1175 + $0x94] sm:$0xf]
        %v1774 = vld [vmem:[%s1175 + $0x98] sm:$0x1]
        %v1775 = vld [vmem:[%s1175 + $0x9c] sm:$0xe]
        %v1776 = vld [vmem:[%s1175 + $0xa0] sm:$0xf]
        %v1777 = vld [vmem:[%s1175 + $0xa4] sm:$0x1]
        %v1778 = vld [vmem:[%s1175 + $0xa8] sm:$0xe]
        %v1779 = vld [vmem:[%s1175 + $0xac] sm:$0xf]
        %v1780 = vld [vmem:[%s1175 + $0xb0] sm:$0x1]
        %v1781 = vld [vmem:[%s1175 + $0xb4] sm:$0xe]
        %v1782 = vld [vmem:[%s1175 + $0xb8] sm:$0xf]
        %v1783 = vld [vmem:[%s1175 + $0xbc] sm:$0x1]
        %v1832 = vrot.slane %v1736, 5
        %v1833 = vrot.slane %v1832, 4
        %v1834 = vrot.slane %v1737, 5
        %v1835 = vsel %vm998, %v1833, %v1834
        %v1836 = vrot.slane %v1834, 4
        %v1837 = vrot.slane %v1738, 5
        %v1838 = vsel %vm998, %v1836, %v1837
        %v1839 = vrot.slane %v1739, 5
        %v1840 = vrot.slane %v1839, 4
        %v1841 = vrot.slane %v1740, 5
        %v1842 = vsel %vm998, %v1840, %v1841
        %v1843 = vrot.slane %v1841, 4
        %v1844 = vrot.slane %v1741, 5
        %v1845 = vsel %vm998, %v1843, %v1844
        %v1846 = vrot.slane %v1742, 5
        %v1847 = vrot.slane %v1846, 4
        %v1848 = vrot.slane %v1743, 5
        %v1849 = vsel %vm998, %v1847, %v1848
        %v1850 = vrot.slane %v1848, 4
        %v1851 = vrot.slane %v1744, 5
        %v1852 = vsel %vm998, %v1850, %v1851
        %v1853 = vrot.slane %v1745, 5
        %v1854 = vrot.slane %v1853, 4
        %v1855 = vrot.slane %v1746, 5
        %v1856 = vsel %vm998, %v1854, %v1855
        %v1857 = vrot.slane %v1855, 4
        %v1858 = vrot.slane %v1747, 5
        %v1859 = vsel %vm998, %v1857, %v1858
        %v1860 = vrot.slane %v1748, 5
        %v1861 = vrot.slane %v1860, 4
        %v1862 = vrot.slane %v1749, 5
        %v1863 = vsel %vm998, %v1861, %v1862
        %v1864 = vrot.slane %v1862, 4
        %v1865 = vrot.slane %v1750, 5
        %v1866 = vsel %vm998, %v1864, %v1865
        %v1867 = vrot.slane %v1751, 5
        %v1868 = vrot.slane %v1867, 4
        %v1869 = vrot.slane %v1752, 5
        %v1870 = vsel %vm998, %v1868, %v1869
        %v1871 = vrot.slane %v1869, 4
        %v1872 = vrot.slane %v1753, 5
        %v1873 = vsel %vm998, %v1871, %v1872
        %v1874 = vrot.slane %v1754, 5
        %v1875 = vrot.slane %v1874, 4
        %v1876 = vrot.slane %v1755, 5
        %v1877 = vsel %vm998, %v1875, %v1876
        %v1878 = vrot.slane %v1876, 4
        %v1879 = vrot.slane %v1756, 5
        %v1880 = vsel %vm998, %v1878, %v1879
        %v1881 = vrot.slane %v1757, 5
        %v1882 = vrot.slane %v1881, 4
        %v1883 = vrot.slane %v1758, 5
        %v1884 = vsel %vm998, %v1882, %v1883
        %v1885 = vrot.slane %v1883, 4
        %v1886 = vrot.slane %v1759, 5
        %v1887 = vsel %vm998, %v1885, %v1886
        %v1888 = vrot.slane %v1760, 5
        %v1889 = vrot.slane %v1888, 4
        %v1890 = vrot.slane %v1761, 5
        %v1891 = vsel %vm998, %v1889, %v1890
        %v1892 = vrot.slane %v1890, 4
        %v1893 = vrot.slane %v1762, 5
        %v1894 = vsel %vm998, %v1892, %v1893
        %v1895 = vrot.slane %v1763, 5
        %v1896 = vrot.slane %v1895, 4
        %v1897 = vrot.slane %v1764, 5
        %v1898 = vsel %vm998, %v1896, %v1897
        %v1899 = vrot.slane %v1897, 4
        %v1900 = vrot.slane %v1765, 5
        %v1901 = vsel %vm998, %v1899, %v1900
        %v1902 = vrot.slane %v1766, 5
        %v1903 = vrot.slane %v1902, 4
        %v1904 = vrot.slane %v1767, 5
        %v1905 = vsel %vm998, %v1903, %v1904
        %v1906 = vrot.slane %v1904, 4
        %v1907 = vrot.slane %v1768, 5
        %v1908 = vsel %vm998, %v1906, %v1907
        %v1909 = vrot.slane %v1769, 5
        %v1910 = vrot.slane %v1909, 4
        %v1911 = vrot.slane %v1770, 5
        %v1912 = vsel %vm998, %v1910, %v1911
        %v1913 = vrot.slane %v1911, 4
        %v1914 = vrot.slane %v1771, 5
        %v1915 = vsel %vm998, %v1913, %v1914
        %v1916 = vrot.slane %v1772, 5
        %v1917 = vrot.slane %v1916, 4
        %v1918 = vrot.slane %v1773, 5
        %v1919 = vsel %vm998, %v1917, %v1918
        %v1920 = vrot.slane %v1918, 4
        %v1921 = vrot.slane %v1774, 5
        %v1922 = vsel %vm998, %v1920, %v1921
        %v1923 = vrot.slane %v1775, 5
        %v1924 = vrot.slane %v1923, 4
        %v1925 = vrot.slane %v1776, 5
        %v1926 = vsel %vm998, %v1924, %v1925
        %v1927 = vrot.slane %v1925, 4
        %v1928 = vrot.slane %v1777, 5
        %v1929 = vsel %vm998, %v1927, %v1928
        %v1930 = vrot.slane %v1778, 5
        %v1931 = vrot.slane %v1930, 4
        %v1932 = vrot.slane %v1779, 5
        %v1933 = vsel %vm998, %v1931, %v1932
        %v1934 = vrot.slane %v1932, 4
        %v1935 = vrot.slane %v1780, 5
        %v1936 = vsel %vm998, %v1934, %v1935
        %v1937 = vrot.slane %v1781, 5
        %v1938 = vrot.slane %v1937, 4
        %v1939 = vrot.slane %v1782, 5
        %v1940 = vsel %vm998, %v1938, %v1939
        %v1941 = vrot.slane %v1939, 4
        %v1942 = vrot.slane %v1783, 5
        %v1943 = vsel %vm998, %v1941, %v1942
        %1976 = vst [vmem:[#allocation2 + $0x14] sm:$0xf] %v1835
        %1977 = vst [vmem:[#allocation2 + $0x38] sm:$0xf] %v1838
        %1978 = vst [vmem:[#allocation2 + $0x5c] sm:$0xf] %v1842
        %1979 = vst [vmem:[#allocation2 + $0x80] sm:$0xf] %v1845
        %1980 = vst [vmem:[#allocation2 + $0xa4] sm:$0xf] %v1849
        %1981 = vst [vmem:[#allocation2 + $0xc8] sm:$0xf] %v1852
        %1982 = vst [vmem:[#allocation2 + $0xec] sm:$0xf] %v1856
        %1983 = vst [vmem:[#allocation2 + $0x110] sm:$0xf] %v1859
        %1984 = vst [vmem:[#allocation2 + $0x134] sm:$0xf] %v1863
        %1985 = vst [vmem:[#allocation2 + $0x158] sm:$0xf] %v1866
        %1986 = vst [vmem:[#allocation2 + $0x17c] sm:$0xf] %v1870
        %1987 = vst [vmem:[#allocation2 + $0x1a0] sm:$0xf] %v1873
        %1988 = vst [vmem:[#allocation2 + $0x1c4] sm:$0xf] %v1877
        %1989 = vst [vmem:[#allocation2 + $0x1e8] sm:$0xf] %v1880
        %1990 = vst [vmem:[#allocation2 + $0x20c] sm:$0xf] %v1884
        %1991 = vst [vmem:[#allocation2 + $0x230] sm:$0xf] %v1887
        %1992 = vst [vmem:[#allocation2 + $0x254] sm:$0xf] %v1891
        %1993 = vst [vmem:[#allocation2 + $0x278] sm:$0xf] %v1894
        %1994 = vst [vmem:[#allocation2 + $0x29c] sm:$0xf] %v1898
        %1995 = vst [vmem:[#allocation2 + $0x2c0] sm:$0xf] %v1901
        %1996 = vst [vmem:[#allocation2 + $0x2e4] sm:$0xf] %v1905
        %1997 = vst [vmem:[#allocation2 + $0x308] sm:$0xf] %v1908
        %1998 = vst [vmem:[#allocation2 + $0x32c] sm:$0xf] %v1912
        %1999 = vst [vmem:[#allocation2 + $0x350] sm:$0xf] %v1915
        %2000 = vst [vmem:[#allocation2 + $0x374] sm:$0xf] %v1919
        %2001 = vst [vmem:[#allocation2 + $0x398] sm:$0xf] %v1922
        %2002 = vst [vmem:[#allocation2 + $0x3bc] sm:$0xf] %v1926
        %2003 = vst [vmem:[#allocation2 + $0x3e0] sm:$0xf] %v1929
        %2004 = vst [vmem:[#allocation2 + $0x404] sm:$0xf] %v1933
        %2005 = vst [vmem:[#allocation2 + $0x428] sm:$0xf] %v1936
        %2006 = vst [vmem:[#allocation2 + $0x44c] sm:$0xf] %v1940
        %2007 = vst [vmem:[#allocation2 + $0x470] sm:$0xf] %v1943
        %s2008 = scalar_lea.vmem %s290, 24 [#allocation4]
        %v2009 = vld [vmem:[%s2008] sm:$0xf]
        %v2010 = vld [vmem:[%s2008 + $0x4] sm:$0xf]
        %v2011 = vld [vmem:[%s2008 + $0xc] sm:$0xf]
        %v2012 = vld [vmem:[%s2008 + $0x10] sm:$0xf]
        %v2013 = vld [vmem:[%s2008 + $0x18] sm:$0xf]
        %v2014 = vld [vmem:[%s2008 + $0x1c] sm:$0xf]
        %v2015 = vld [vmem:[%s2008 + $0x24] sm:$0xf]
        %v2016 = vld [vmem:[%s2008 + $0x28] sm:$0xf]
        %v2017 = vld [vmem:[%s2008 + $0x30] sm:$0xf]
        %v2018 = vld [vmem:[%s2008 + $0x34] sm:$0xf]
        %v2019 = vld [vmem:[%s2008 + $0x3c] sm:$0xf]
        %v2020 = vld [vmem:[%s2008 + $0x40] sm:$0xf]
        %v2021 = vld [vmem:[%s2008 + $0x48] sm:$0xf]
        %v2022 = vld [vmem:[%s2008 + $0x4c] sm:$0xf]
        %v2023 = vld [vmem:[%s2008 + $0x54] sm:$0xf]
        %v2024 = vld [vmem:[%s2008 + $0x58] sm:$0xf]
        %v2025 = vld [vmem:[%s2008 + $0x60] sm:$0xf]
        %v2026 = vld [vmem:[%s2008 + $0x64] sm:$0xf]
        %v2027 = vld [vmem:[%s2008 + $0x6c] sm:$0xf]
        %v2028 = vld [vmem:[%s2008 + $0x70] sm:$0xf]
        %v2029 = vld [vmem:[%s2008 + $0x78] sm:$0xf]
        %v2030 = vld [vmem:[%s2008 + $0x7c] sm:$0xf]
        %v2031 = vld [vmem:[%s2008 + $0x84] sm:$0xf]
        %v2032 = vld [vmem:[%s2008 + $0x88] sm:$0xf]
        %v2033 = vld [vmem:[%s2008 + $0x90] sm:$0xf]
        %v2034 = vld [vmem:[%s2008 + $0x94] sm:$0xf]
        %v2035 = vld [vmem:[%s2008 + $0x9c] sm:$0xf]
        %v2036 = vld [vmem:[%s2008 + $0xa0] sm:$0xf]
        %v2037 = vld [vmem:[%s2008 + $0xa8] sm:$0xf]
        %v2038 = vld [vmem:[%s2008 + $0xac] sm:$0xf]
        %v2039 = vld [vmem:[%s2008 + $0xb4] sm:$0xf]
        %v2040 = vld [vmem:[%s2008 + $0xb8] sm:$0xf]
        %2041 = vst [vmem:[#allocation2 + $0x18] sm:$0xf] %v2009
        %2042 = vst [vmem:[#allocation2 + $0x3c] sm:$0xf] %v2010
        %2043 = vst [vmem:[#allocation2 + $0x60] sm:$0xf] %v2011
        %2044 = vst [vmem:[#allocation2 + $0x84] sm:$0xf] %v2012
        %2045 = vst [vmem:[#allocation2 + $0xa8] sm:$0xf] %v2013
        %2046 = vst [vmem:[#allocation2 + $0xcc] sm:$0xf] %v2014
        %2047 = vst [vmem:[#allocation2 + $0xf0] sm:$0xf] %v2015
        %2048 = vst [vmem:[#allocation2 + $0x114] sm:$0xf] %v2016
        %2049 = vst [vmem:[#allocation2 + $0x138] sm:$0xf] %v2017
        %2050 = vst [vmem:[#allocation2 + $0x15c] sm:$0xf] %v2018
        %2051 = vst [vmem:[#allocation2 + $0x180] sm:$0xf] %v2019
        %2052 = vst [vmem:[#allocation2 + $0x1a4] sm:$0xf] %v2020
        %2053 = vst [vmem:[#allocation2 + $0x1c8] sm:$0xf] %v2021
        %2054 = vst [vmem:[#allocation2 + $0x1ec] sm:$0xf] %v2022
        %2055 = vst [vmem:[#allocation2 + $0x210] sm:$0xf] %v2023
        %2056 = vst [vmem:[#allocation2 + $0x234] sm:$0xf] %v2024
        %2057 = vst [vmem:[#allocation2 + $0x258] sm:$0xf] %v2025
        %2058 = vst [vmem:[#allocation2 + $0x27c] sm:$0xf] %v2026
        %2059 = vst [vmem:[#allocation2 + $0x2a0] sm:$0xf] %v2027
        %2060 = vst [vmem:[#allocation2 + $0x2c4] sm:$0xf] %v2028
        %2061 = vst [vmem:[#allocation2 + $0x2e8] sm:$0xf] %v2029
        %2062 = vst [vmem:[#allocation2 + $0x30c] sm:$0xf] %v2030
        %2063 = vst [vmem:[#allocation2 + $0x330] sm:$0xf] %v2031
        %2064 = vst [vmem:[#allocation2 + $0x354] sm:$0xf] %v2032
        %2065 = vst [vmem:[#allocation2 + $0x378] sm:$0xf] %v2033
        %2066 = vst [vmem:[#allocation2 + $0x39c] sm:$0xf] %v2034
        %2067 = vst [vmem:[#allocation2 + $0x3c0] sm:$0xf] %v2035
        %2068 = vst [vmem:[#allocation2 + $0x3e4] sm:$0xf] %v2036
        %2069 = vst [vmem:[#allocation2 + $0x408] sm:$0xf] %v2037
        %2070 = vst [vmem:[#allocation2 + $0x42c] sm:$0xf] %v2038
        %2071 = vst [vmem:[#allocation2 + $0x450] sm:$0xf] %v2039
        %2072 = vst [vmem:[#allocation2 + $0x474] sm:$0xf] %v2040
        %v2073 = vld [vmem:[%s2008] sm:$0xf]
        %v2074 = vld [vmem:[%s2008 + $0x4] sm:$0xf]
        %v2075 = vld [vmem:[%s2008 + $0x8] sm:$0x1]
        %v2076 = vld [vmem:[%s2008 + $0xc] sm:$0xf]
        %v2077 = vld [vmem:[%s2008 + $0x10] sm:$0xf]
        %v2078 = vld [vmem:[%s2008 + $0x14] sm:$0x1]
        %v2079 = vld [vmem:[%s2008 + $0x18] sm:$0xf]
        %v2080 = vld [vmem:[%s2008 + $0x1c] sm:$0xf]
        %v2081 = vld [vmem:[%s2008 + $0x20] sm:$0x1]
        %v2082 = vld [vmem:[%s2008 + $0x24] sm:$0xf]
        %v2083 = vld [vmem:[%s2008 + $0x28] sm:$0xf]
        %v2084 = vld [vmem:[%s2008 + $0x2c] sm:$0x1]
        %v2085 = vld [vmem:[%s2008 + $0x30] sm:$0xf]
        %v2086 = vld [vmem:[%s2008 + $0x34] sm:$0xf]
        %v2087 = vld [vmem:[%s2008 + $0x38] sm:$0x1]
        %v2088 = vld [vmem:[%s2008 + $0x3c] sm:$0xf]
        %v2089 = vld [vmem:[%s2008 + $0x40] sm:$0xf]
        %v2090 = vld [vmem:[%s2008 + $0x44] sm:$0x1]
        %v2091 = vld [vmem:[%s2008 + $0x48] sm:$0xf]
        %v2092 = vld [vmem:[%s2008 + $0x4c] sm:$0xf]
        %v2093 = vld [vmem:[%s2008 + $0x50] sm:$0x1]
        %v2094 = vld [vmem:[%s2008 + $0x54] sm:$0xf]
        %v2095 = vld [vmem:[%s2008 + $0x58] sm:$0xf]
        %v2096 = vld [vmem:[%s2008 + $0x5c] sm:$0x1]
        %v2097 = vld [vmem:[%s2008 + $0x60] sm:$0xf]
        %v2098 = vld [vmem:[%s2008 + $0x64] sm:$0xf]
        %v2099 = vld [vmem:[%s2008 + $0x68] sm:$0x1]
        %v2100 = vld [vmem:[%s2008 + $0x6c] sm:$0xf]
        %v2101 = vld [vmem:[%s2008 + $0x70] sm:$0xf]
        %v2102 = vld [vmem:[%s2008 + $0x74] sm:$0x1]
        %v2103 = vld [vmem:[%s2008 + $0x78] sm:$0xf]
        %v2104 = vld [vmem:[%s2008 + $0x7c] sm:$0xf]
        %v2105 = vld [vmem:[%s2008 + $0x80] sm:$0x1]
        %v2106 = vld [vmem:[%s2008 + $0x84] sm:$0xf]
        %v2107 = vld [vmem:[%s2008 + $0x88] sm:$0xf]
        %v2108 = vld [vmem:[%s2008 + $0x8c] sm:$0x1]
        %v2109 = vld [vmem:[%s2008 + $0x90] sm:$0xf]
        %v2110 = vld [vmem:[%s2008 + $0x94] sm:$0xf]
        %v2111 = vld [vmem:[%s2008 + $0x98] sm:$0x1]
        %v2112 = vld [vmem:[%s2008 + $0x9c] sm:$0xf]
        %v2113 = vld [vmem:[%s2008 + $0xa0] sm:$0xf]
        %v2114 = vld [vmem:[%s2008 + $0xa4] sm:$0x1]
        %v2115 = vld [vmem:[%s2008 + $0xa8] sm:$0xf]
        %v2116 = vld [vmem:[%s2008 + $0xac] sm:$0xf]
        %v2117 = vld [vmem:[%s2008 + $0xb0] sm:$0x1]
        %v2118 = vld [vmem:[%s2008 + $0xb4] sm:$0xf]
        %v2119 = vld [vmem:[%s2008 + $0xb8] sm:$0xf]
        %v2120 = vld [vmem:[%s2008 + $0xbc] sm:$0x1]
        %v2122 = vshrl.u32 %v2073, 16
        %v2124 = vrot.slane %v2122, 4
        %v2125 = vshll.u32 %v2073, 16
        %v2127 = vrot.slane %v2125, 5
        %v2128 = vor.u32 %v2124, %v2127
        %v2129 = vrot.slane %v2128, 4
        %v2131 = vshll.u32 %v2074, 16
        %v2133 = vrot.slane %v2131, 5
        %v2134 = vsel %vm451, %v2129, %v2133
        %v2135 = vshrl.u32 %v2074, 16
        %v2137 = vrot.slane %v2135, 4
        %v2138 = vor.u32 %v2137, %v2133
        %v2139 = vrot.slane %v2138, 4
        %v2141 = vshll.u32 %v2075, 16
        %v2143 = vrot.slane %v2141, 5
        %v2144 = vsel %vm451, %v2139, %v2143
        %v2146 = vshrl.u32 %v2076, 16
        %v2148 = vrot.slane %v2146, 4
        %v2149 = vshll.u32 %v2076, 16
        %v2151 = vrot.slane %v2149, 5
        %v2152 = vor.u32 %v2148, %v2151
        %v2153 = vrot.slane %v2152, 4
        %v2155 = vshll.u32 %v2077, 16
        %v2157 = vrot.slane %v2155, 5
        %v2158 = vsel %vm451, %v2153, %v2157
        %v2159 = vshrl.u32 %v2077, 16
        %v2161 = vrot.slane %v2159, 4
        %v2162 = vor.u32 %v2161, %v2157
        %v2163 = vrot.slane %v2162, 4
        %v2165 = vshll.u32 %v2078, 16
        %v2167 = vrot.slane %v2165, 5
        %v2168 = vsel %vm451, %v2163, %v2167
        %v2170 = vshrl.u32 %v2079, 16
        %v2172 = vrot.slane %v2170, 4
        %v2173 = vshll.u32 %v2079, 16
        %v2175 = vrot.slane %v2173, 5
        %v2176 = vor.u32 %v2172, %v2175
        %v2177 = vrot.slane %v2176, 4
        %v2179 = vshll.u32 %v2080, 16
        %v2181 = vrot.slane %v2179, 5
        %v2182 = vsel %vm451, %v2177, %v2181
        %v2183 = vshrl.u32 %v2080, 16
        %v2185 = vrot.slane %v2183, 4
        %v2186 = vor.u32 %v2185, %v2181
        %v2187 = vrot.slane %v2186, 4
        %v2189 = vshll.u32 %v2081, 16
        %v2191 = vrot.slane %v2189, 5
        %v2192 = vsel %vm451, %v2187, %v2191
        %v2194 = vshrl.u32 %v2082, 16
        %v2196 = vrot.slane %v2194, 4
        %v2197 = vshll.u32 %v2082, 16
        %v2199 = vrot.slane %v2197, 5
        %v2200 = vor.u32 %v2196, %v2199
        %v2201 = vrot.slane %v2200, 4
        %v2203 = vshll.u32 %v2083, 16
        %v2205 = vrot.slane %v2203, 5
        %v2206 = vsel %vm451, %v2201, %v2205
        %v2207 = vshrl.u32 %v2083, 16
        %v2209 = vrot.slane %v2207, 4
        %v2210 = vor.u32 %v2209, %v2205
        %v2211 = vrot.slane %v2210, 4
        %v2213 = vshll.u32 %v2084, 16
        %v2215 = vrot.slane %v2213, 5
        %v2216 = vsel %vm451, %v2211, %v2215
        %v2218 = vshrl.u32 %v2085, 16
        %v2220 = vrot.slane %v2218, 4
        %v2221 = vshll.u32 %v2085, 16
        %v2223 = vrot.slane %v2221, 5
        %v2224 = vor.u32 %v2220, %v2223
        %v2225 = vrot.slane %v2224, 4
        %v2227 = vshll.u32 %v2086, 16
        %v2229 = vrot.slane %v2227, 5
        %v2230 = vsel %vm451, %v2225, %v2229
        %v2231 = vshrl.u32 %v2086, 16
        %v2233 = vrot.slane %v2231, 4
        %v2234 = vor.u32 %v2233, %v2229
        %v2235 = vrot.slane %v2234, 4
        %v2237 = vshll.u32 %v2087, 16
        %v2239 = vrot.slane %v2237, 5
        %v2240 = vsel %vm451, %v2235, %v2239
        %v2242 = vshrl.u32 %v2088, 16
        %v2244 = vrot.slane %v2242, 4
        %v2245 = vshll.u32 %v2088, 16
        %v2247 = vrot.slane %v2245, 5
        %v2248 = vor.u32 %v2244, %v2247
        %v2249 = vrot.slane %v2248, 4
        %v2251 = vshll.u32 %v2089, 16
        %v2253 = vrot.slane %v2251, 5
        %v2254 = vsel %vm451, %v2249, %v2253
        %v2255 = vshrl.u32 %v2089, 16
        %v2257 = vrot.slane %v2255, 4
        %v2258 = vor.u32 %v2257, %v2253
        %v2259 = vrot.slane %v2258, 4
        %v2261 = vshll.u32 %v2090, 16
        %v2263 = vrot.slane %v2261, 5
        %v2264 = vsel %vm451, %v2259, %v2263
        %v2266 = vshrl.u32 %v2091, 16
        %v2268 = vrot.slane %v2266, 4
        %v2269 = vshll.u32 %v2091, 16
        %v2271 = vrot.slane %v2269, 5
        %v2272 = vor.u32 %v2268, %v2271
        %v2273 = vrot.slane %v2272, 4
        %v2275 = vshll.u32 %v2092, 16
        %v2277 = vrot.slane %v2275, 5
        %v2278 = vsel %vm451, %v2273, %v2277
        %v2279 = vshrl.u32 %v2092, 16
        %v2281 = vrot.slane %v2279, 4
        %v2282 = vor.u32 %v2281, %v2277
        %v2283 = vrot.slane %v2282, 4
        %v2285 = vshll.u32 %v2093, 16
        %v2287 = vrot.slane %v2285, 5
        %v2288 = vsel %vm451, %v2283, %v2287
        %v2290 = vshrl.u32 %v2094, 16
        %v2292 = vrot.slane %v2290, 4
        %v2293 = vshll.u32 %v2094, 16
        %v2295 = vrot.slane %v2293, 5
        %v2296 = vor.u32 %v2292, %v2295
        %v2297 = vrot.slane %v2296, 4
        %v2299 = vshll.u32 %v2095, 16
        %v2301 = vrot.slane %v2299, 5
        %v2302 = vsel %vm451, %v2297, %v2301
        %v2303 = vshrl.u32 %v2095, 16
        %v2305 = vrot.slane %v2303, 4
        %v2306 = vor.u32 %v2305, %v2301
        %v2307 = vrot.slane %v2306, 4
        %v2309 = vshll.u32 %v2096, 16
        %v2311 = vrot.slane %v2309, 5
        %v2312 = vsel %vm451, %v2307, %v2311
        %v2314 = vshrl.u32 %v2097, 16
        %v2316 = vrot.slane %v2314, 4
        %v2317 = vshll.u32 %v2097, 16
        %v2319 = vrot.slane %v2317, 5
        %v2320 = vor.u32 %v2316, %v2319
        %v2321 = vrot.slane %v2320, 4
        %v2323 = vshll.u32 %v2098, 16
        %v2325 = vrot.slane %v2323, 5
        %v2326 = vsel %vm451, %v2321, %v2325
        %v2327 = vshrl.u32 %v2098, 16
        %v2329 = vrot.slane %v2327, 4
        %v2330 = vor.u32 %v2329, %v2325
        %v2331 = vrot.slane %v2330, 4
        %v2333 = vshll.u32 %v2099, 16
        %v2335 = vrot.slane %v2333, 5
        %v2336 = vsel %vm451, %v2331, %v2335
        %v2338 = vshrl.u32 %v2100, 16
        %v2340 = vrot.slane %v2338, 4
        %v2341 = vshll.u32 %v2100, 16
        %v2343 = vrot.slane %v2341, 5
        %v2344 = vor.u32 %v2340, %v2343
        %v2345 = vrot.slane %v2344, 4
        %v2347 = vshll.u32 %v2101, 16
        %v2349 = vrot.slane %v2347, 5
        %v2350 = vsel %vm451, %v2345, %v2349
        %v2351 = vshrl.u32 %v2101, 16
        %v2353 = vrot.slane %v2351, 4
        %v2354 = vor.u32 %v2353, %v2349
        %v2355 = vrot.slane %v2354, 4
        %v2357 = vshll.u32 %v2102, 16
        %v2359 = vrot.slane %v2357, 5
        %v2360 = vsel %vm451, %v2355, %v2359
        %v2362 = vshrl.u32 %v2103, 16
        %v2364 = vrot.slane %v2362, 4
        %v2365 = vshll.u32 %v2103, 16
        %v2367 = vrot.slane %v2365, 5
        %v2368 = vor.u32 %v2364, %v2367
        %v2369 = vrot.slane %v2368, 4
        %v2371 = vshll.u32 %v2104, 16
        %v2373 = vrot.slane %v2371, 5
        %v2374 = vsel %vm451, %v2369, %v2373
        %v2375 = vshrl.u32 %v2104, 16
        %v2377 = vrot.slane %v2375, 4
        %v2378 = vor.u32 %v2377, %v2373
        %v2379 = vrot.slane %v2378, 4
        %v2381 = vshll.u32 %v2105, 16
        %v2383 = vrot.slane %v2381, 5
        %v2384 = vsel %vm451, %v2379, %v2383
        %v2386 = vshrl.u32 %v2106, 16
        %v2388 = vrot.slane %v2386, 4
        %v2389 = vshll.u32 %v2106, 16
        %v2391 = vrot.slane %v2389, 5
        %v2392 = vor.u32 %v2388, %v2391
        %v2393 = vrot.slane %v2392, 4
        %v2395 = vshll.u32 %v2107, 16
        %v2397 = vrot.slane %v2395, 5
        %v2398 = vsel %vm451, %v2393, %v2397
        %v2399 = vshrl.u32 %v2107, 16
        %v2401 = vrot.slane %v2399, 4
        %v2402 = vor.u32 %v2401, %v2397
        %v2403 = vrot.slane %v2402, 4
        %v2405 = vshll.u32 %v2108, 16
        %v2407 = vrot.slane %v2405, 5
        %v2408 = vsel %vm451, %v2403, %v2407
        %v2410 = vshrl.u32 %v2109, 16
        %v2412 = vrot.slane %v2410, 4
        %v2413 = vshll.u32 %v2109, 16
        %v2415 = vrot.slane %v2413, 5
        %v2416 = vor.u32 %v2412, %v2415
        %v2417 = vrot.slane %v2416, 4
        %v2419 = vshll.u32 %v2110, 16
        %v2421 = vrot.slane %v2419, 5
        %v2422 = vsel %vm451, %v2417, %v2421
        %v2423 = vshrl.u32 %v2110, 16
        %v2425 = vrot.slane %v2423, 4
        %v2426 = vor.u32 %v2425, %v2421
        %v2427 = vrot.slane %v2426, 4
        %v2429 = vshll.u32 %v2111, 16
        %v2431 = vrot.slane %v2429, 5
        %v2432 = vsel %vm451, %v2427, %v2431
        %v2434 = vshrl.u32 %v2112, 16
        %v2436 = vrot.slane %v2434, 4
        %v2437 = vshll.u32 %v2112, 16
        %v2439 = vrot.slane %v2437, 5
        %v2440 = vor.u32 %v2436, %v2439
        %v2441 = vrot.slane %v2440, 4
        %v2443 = vshll.u32 %v2113, 16
        %v2445 = vrot.slane %v2443, 5
        %v2446 = vsel %vm451, %v2441, %v2445
        %v2447 = vshrl.u32 %v2113, 16
        %v2449 = vrot.slane %v2447, 4
        %v2450 = vor.u32 %v2449, %v2445
        %v2451 = vrot.slane %v2450, 4
        %v2453 = vshll.u32 %v2114, 16
        %v2455 = vrot.slane %v2453, 5
        %v2456 = vsel %vm451, %v2451, %v2455
        %v2458 = vshrl.u32 %v2115, 16
        %v2460 = vrot.slane %v2458, 4
        %v2461 = vshll.u32 %v2115, 16
        %v2463 = vrot.slane %v2461, 5
        %v2464 = vor.u32 %v2460, %v2463
        %v2465 = vrot.slane %v2464, 4
        %v2467 = vshll.u32 %v2116, 16
        %v2469 = vrot.slane %v2467, 5
        %v2470 = vsel %vm451, %v2465, %v2469
        %v2471 = vshrl.u32 %v2116, 16
        %v2473 = vrot.slane %v2471, 4
        %v2474 = vor.u32 %v2473, %v2469
        %v2475 = vrot.slane %v2474, 4
        %v2477 = vshll.u32 %v2117, 16
        %v2479 = vrot.slane %v2477, 5
        %v2480 = vsel %vm451, %v2475, %v2479
        %v2482 = vshrl.u32 %v2118, 16
        %v2484 = vrot.slane %v2482, 4
        %v2485 = vshll.u32 %v2118, 16
        %v2487 = vrot.slane %v2485, 5
        %v2488 = vor.u32 %v2484, %v2487
        %v2489 = vrot.slane %v2488, 4
        %v2491 = vshll.u32 %v2119, 16
        %v2493 = vrot.slane %v2491, 5
        %v2494 = vsel %vm451, %v2489, %v2493
        %v2495 = vshrl.u32 %v2119, 16
        %v2497 = vrot.slane %v2495, 4
        %v2498 = vor.u32 %v2497, %v2493
        %v2499 = vrot.slane %v2498, 4
        %v2501 = vshll.u32 %v2120, 16
        %v2503 = vrot.slane %v2501, 5
        %v2504 = vsel %vm451, %v2499, %v2503
        %2537 = vst [vmem:[#allocation2 + $0x1c] sm:$0xf] %v2134
        %2538 = vst [vmem:[#allocation2 + $0x40] sm:$0xf] %v2144
        %2539 = vst [vmem:[#allocation2 + $0x64] sm:$0xf] %v2158
        %2540 = vst [vmem:[#allocation2 + $0x88] sm:$0xf] %v2168
        %2541 = vst [vmem:[#allocation2 + $0xac] sm:$0xf] %v2182
        %2542 = vst [vmem:[#allocation2 + $0xd0] sm:$0xf] %v2192
        %2543 = vst [vmem:[#allocation2 + $0xf4] sm:$0xf] %v2206
        %2544 = vst [vmem:[#allocation2 + $0x118] sm:$0xf] %v2216
        %2545 = vst [vmem:[#allocation2 + $0x13c] sm:$0xf] %v2230
        %2546 = vst [vmem:[#allocation2 + $0x160] sm:$0xf] %v2240
        %2547 = vst [vmem:[#allocation2 + $0x184] sm:$0xf] %v2254
        %2548 = vst [vmem:[#allocation2 + $0x1a8] sm:$0xf] %v2264
        %2549 = vst [vmem:[#allocation2 + $0x1cc] sm:$0xf] %v2278
        %2550 = vst [vmem:[#allocation2 + $0x1f0] sm:$0xf] %v2288
        %2551 = vst [vmem:[#allocation2 + $0x214] sm:$0xf] %v2302
        %2552 = vst [vmem:[#allocation2 + $0x238] sm:$0xf] %v2312
        %2553 = vst [vmem:[#allocation2 + $0x25c] sm:$0xf] %v2326
        %2554 = vst [vmem:[#allocation2 + $0x280] sm:$0xf] %v2336
        %2555 = vst [vmem:[#allocation2 + $0x2a4] sm:$0xf] %v2350
        %2556 = vst [vmem:[#allocation2 + $0x2c8] sm:$0xf] %v2360
        %2557 = vst [vmem:[#allocation2 + $0x2ec] sm:$0xf] %v2374
        %2558 = vst [vmem:[#allocation2 + $0x310] sm:$0xf] %v2384
        %2559 = vst [vmem:[#allocation2 + $0x334] sm:$0xf] %v2398
        %2560 = vst [vmem:[#allocation2 + $0x358] sm:$0xf] %v2408
        %2561 = vst [vmem:[#allocation2 + $0x37c] sm:$0xf] %v2422
        %2562 = vst [vmem:[#allocation2 + $0x3a0] sm:$0xf] %v2432
        %2563 = vst [vmem:[#allocation2 + $0x3c4] sm:$0xf] %v2446
        %2564 = vst [vmem:[#allocation2 + $0x3e8] sm:$0xf] %v2456
        %2565 = vst [vmem:[#allocation2 + $0x40c] sm:$0xf] %v2470
        %2566 = vst [vmem:[#allocation2 + $0x430] sm:$0xf] %v2480
        %2567 = vst [vmem:[#allocation2 + $0x454] sm:$0xf] %v2494
        %2568 = vst [vmem:[#allocation2 + $0x478] sm:$0xf] %v2504
        %v2569 = vld [vmem:[%s2008] sm:$0xe]
        %v2570 = vld [vmem:[%s2008 + $0x4] sm:$0xf]
        %v2571 = vld [vmem:[%s2008 + $0x8] sm:$0x1]
        %v2572 = vld [vmem:[%s2008 + $0xc] sm:$0xe]
        %v2573 = vld [vmem:[%s2008 + $0x10] sm:$0xf]
        %v2574 = vld [vmem:[%s2008 + $0x14] sm:$0x1]
        %v2575 = vld [vmem:[%s2008 + $0x18] sm:$0xe]
        %v2576 = vld [vmem:[%s2008 + $0x1c] sm:$0xf]
        %v2577 = vld [vmem:[%s2008 + $0x20] sm:$0x1]
        %v2578 = vld [vmem:[%s2008 + $0x24] sm:$0xe]
        %v2579 = vld [vmem:[%s2008 + $0x28] sm:$0xf]
        %v2580 = vld [vmem:[%s2008 + $0x2c] sm:$0x1]
        %v2581 = vld [vmem:[%s2008 + $0x30] sm:$0xe]
        %v2582 = vld [vmem:[%s2008 + $0x34] sm:$0xf]
        %v2583 = vld [vmem:[%s2008 + $0x38] sm:$0x1]
        %v2584 = vld [vmem:[%s2008 + $0x3c] sm:$0xe]
        %v2585 = vld [vmem:[%s2008 + $0x40] sm:$0xf]
        %v2586 = vld [vmem:[%s2008 + $0x44] sm:$0x1]
        %v2587 = vld [vmem:[%s2008 + $0x48] sm:$0xe]
        %v2588 = vld [vmem:[%s2008 + $0x4c] sm:$0xf]
        %v2589 = vld [vmem:[%s2008 + $0x50] sm:$0x1]
        %v2590 = vld [vmem:[%s2008 + $0x54] sm:$0xe]
        %v2591 = vld [vmem:[%s2008 + $0x58] sm:$0xf]
        %v2592 = vld [vmem:[%s2008 + $0x5c] sm:$0x1]
        %v2593 = vld [vmem:[%s2008 + $0x60] sm:$0xe]
        %v2594 = vld [vmem:[%s2008 + $0x64] sm:$0xf]
        %v2595 = vld [vmem:[%s2008 + $0x68] sm:$0x1]
        %v2596 = vld [vmem:[%s2008 + $0x6c] sm:$0xe]
        %v2597 = vld [vmem:[%s2008 + $0x70] sm:$0xf]
        %v2598 = vld [vmem:[%s2008 + $0x74] sm:$0x1]
        %v2599 = vld [vmem:[%s2008 + $0x78] sm:$0xe]
        %v2600 = vld [vmem:[%s2008 + $0x7c] sm:$0xf]
        %v2601 = vld [vmem:[%s2008 + $0x80] sm:$0x1]
        %v2602 = vld [vmem:[%s2008 + $0x84] sm:$0xe]
        %v2603 = vld [vmem:[%s2008 + $0x88] sm:$0xf]
        %v2604 = vld [vmem:[%s2008 + $0x8c] sm:$0x1]
        %v2605 = vld [vmem:[%s2008 + $0x90] sm:$0xe]
        %v2606 = vld [vmem:[%s2008 + $0x94] sm:$0xf]
        %v2607 = vld [vmem:[%s2008 + $0x98] sm:$0x1]
        %v2608 = vld [vmem:[%s2008 + $0x9c] sm:$0xe]
        %v2609 = vld [vmem:[%s2008 + $0xa0] sm:$0xf]
        %v2610 = vld [vmem:[%s2008 + $0xa4] sm:$0x1]
        %v2611 = vld [vmem:[%s2008 + $0xa8] sm:$0xe]
        %v2612 = vld [vmem:[%s2008 + $0xac] sm:$0xf]
        %v2613 = vld [vmem:[%s2008 + $0xb0] sm:$0x1]
        %v2614 = vld [vmem:[%s2008 + $0xb4] sm:$0xe]
        %v2615 = vld [vmem:[%s2008 + $0xb8] sm:$0xf]
        %v2616 = vld [vmem:[%s2008 + $0xbc] sm:$0x1]
        %v2665 = vrot.slane %v2569, 5
        %v2666 = vrot.slane %v2665, 4
        %v2667 = vrot.slane %v2570, 5
        %v2668 = vsel %vm998, %v2666, %v2667
        %v2669 = vrot.slane %v2667, 4
        %v2670 = vrot.slane %v2571, 5
        %v2671 = vsel %vm998, %v2669, %v2670
        %v2672 = vrot.slane %v2572, 5
        %v2673 = vrot.slane %v2672, 4
        %v2674 = vrot.slane %v2573, 5
        %v2675 = vsel %vm998, %v2673, %v2674
        %v2676 = vrot.slane %v2674, 4
        %v2677 = vrot.slane %v2574, 5
        %v2678 = vsel %vm998, %v2676, %v2677
        %v2679 = vrot.slane %v2575, 5
        %v2680 = vrot.slane %v2679, 4
        %v2681 = vrot.slane %v2576, 5
        %v2682 = vsel %vm998, %v2680, %v2681
        %v2683 = vrot.slane %v2681, 4
        %v2684 = vrot.slane %v2577, 5
        %v2685 = vsel %vm998, %v2683, %v2684
        %v2686 = vrot.slane %v2578, 5
        %v2687 = vrot.slane %v2686, 4
        %v2688 = vrot.slane %v2579, 5
        %v2689 = vsel %vm998, %v2687, %v2688
        %v2690 = vrot.slane %v2688, 4
        %v2691 = vrot.slane %v2580, 5
        %v2692 = vsel %vm998, %v2690, %v2691
        %v2693 = vrot.slane %v2581, 5
        %v2694 = vrot.slane %v2693, 4
        %v2695 = vrot.slane %v2582, 5
        %v2696 = vsel %vm998, %v2694, %v2695
        %v2697 = vrot.slane %v2695, 4
        %v2698 = vrot.slane %v2583, 5
        %v2699 = vsel %vm998, %v2697, %v2698
        %v2700 = vrot.slane %v2584, 5
        %v2701 = vrot.slane %v2700, 4
        %v2702 = vrot.slane %v2585, 5
        %v2703 = vsel %vm998, %v2701, %v2702
        %v2704 = vrot.slane %v2702, 4
        %v2705 = vrot.slane %v2586, 5
        %v2706 = vsel %vm998, %v2704, %v2705
        %v2707 = vrot.slane %v2587, 5
        %v2708 = vrot.slane %v2707, 4
        %v2709 = vrot.slane %v2588, 5
        %v2710 = vsel %vm998, %v2708, %v2709
        %v2711 = vrot.slane %v2709, 4
        %v2712 = vrot.slane %v2589, 5
        %v2713 = vsel %vm998, %v2711, %v2712
        %v2714 = vrot.slane %v2590, 5
        %v2715 = vrot.slane %v2714, 4
        %v2716 = vrot.slane %v2591, 5
        %v2717 = vsel %vm998, %v2715, %v2716
        %v2718 = vrot.slane %v2716, 4
        %v2719 = vrot.slane %v2592, 5
        %v2720 = vsel %vm998, %v2718, %v2719
        %v2721 = vrot.slane %v2593, 5
        %v2722 = vrot.slane %v2721, 4
        %v2723 = vrot.slane %v2594, 5
        %v2724 = vsel %vm998, %v2722, %v2723
        %v2725 = vrot.slane %v2723, 4
        %v2726 = vrot.slane %v2595, 5
        %v2727 = vsel %vm998, %v2725, %v2726
        %v2728 = vrot.slane %v2596, 5
        %v2729 = vrot.slane %v2728, 4
        %v2730 = vrot.slane %v2597, 5
        %v2731 = vsel %vm998, %v2729, %v2730
        %v2732 = vrot.slane %v2730, 4
        %v2733 = vrot.slane %v2598, 5
        %v2734 = vsel %vm998, %v2732, %v2733
        %v2735 = vrot.slane %v2599, 5
        %v2736 = vrot.slane %v2735, 4
        %v2737 = vrot.slane %v2600, 5
        %v2738 = vsel %vm998, %v2736, %v2737
        %v2739 = vrot.slane %v2737, 4
        %v2740 = vrot.slane %v2601, 5
        %v2741 = vsel %vm998, %v2739, %v2740
        %v2742 = vrot.slane %v2602, 5
        %v2743 = vrot.slane %v2742, 4
        %v2744 = vrot.slane %v2603, 5
        %v2745 = vsel %vm998, %v2743, %v2744
        %v2746 = vrot.slane %v2744, 4
        %v2747 = vrot.slane %v2604, 5
        %v2748 = vsel %vm998, %v2746, %v2747
        %v2749 = vrot.slane %v2605, 5
        %v2750 = vrot.slane %v2749, 4
        %v2751 = vrot.slane %v2606, 5
        %v2752 = vsel %vm998, %v2750, %v2751
        %v2753 = vrot.slane %v2751, 4
        %v2754 = vrot.slane %v2607, 5
        %v2755 = vsel %vm998, %v2753, %v2754
        %v2756 = vrot.slane %v2608, 5
        %v2757 = vrot.slane %v2756, 4
        %v2758 = vrot.slane %v2609, 5
        %v2759 = vsel %vm998, %v2757, %v2758
        %v2760 = vrot.slane %v2758, 4
        %v2761 = vrot.slane %v2610, 5
        %v2762 = vsel %vm998, %v2760, %v2761
        %v2763 = vrot.slane %v2611, 5
        %v2764 = vrot.slane %v2763, 4
        %v2765 = vrot.slane %v2612, 5
        %v2766 = vsel %vm998, %v2764, %v2765
        %v2767 = vrot.slane %v2765, 4
        %v2768 = vrot.slane %v2613, 5
        %v2769 = vsel %vm998, %v2767, %v2768
        %v2770 = vrot.slane %v2614, 5
        %v2771 = vrot.slane %v2770, 4
        %v2772 = vrot.slane %v2615, 5
        %v2773 = vsel %vm998, %v2771, %v2772
        %v2774 = vrot.slane %v2772, 4
        %v2775 = vrot.slane %v2616, 5
        %v2776 = vsel %vm998, %v2774, %v2775
        %2809 = vst [vmem:[#allocation2 + $0x20] sm:$0xf] %v2668
        %2810 = vst [vmem:[#allocation2 + $0x44] sm:$0xf] %v2671
        %2811 = vst [vmem:[#allocation2 + $0x68] sm:$0xf] %v2675
        %2812 = vst [vmem:[#allocation2 + $0x8c] sm:$0xf] %v2678
        %2813 = vst [vmem:[#allocation2 + $0xb0] sm:$0xf] %v2682
        %2814 = vst [vmem:[#allocation2 + $0xd4] sm:$0xf] %v2685
        %2815 = vst [vmem:[#allocation2 + $0xf8] sm:$0xf] %v2689
        %2816 = vst [vmem:[#allocation2 + $0x11c] sm:$0xf] %v2692
        %2817 = vst [vmem:[#allocation2 + $0x140] sm:$0xf] %v2696
        %2818 = vst [vmem:[#allocation2 + $0x164] sm:$0xf] %v2699
        %2819 = vst [vmem:[#allocation2 + $0x188] sm:$0xf] %v2703
        %2820 = vst [vmem:[#allocation2 + $0x1ac] sm:$0xf] %v2706
        %2821 = vst [vmem:[#allocation2 + $0x1d0] sm:$0xf] %v2710
        %2822 = vst [vmem:[#allocation2 + $0x1f4] sm:$0xf] %v2713
        %2823 = vst [vmem:[#allocation2 + $0x218] sm:$0xf] %v2717
        %2824 = vst [vmem:[#allocation2 + $0x23c] sm:$0xf] %v2720
        %2825 = vst [vmem:[#allocation2 + $0x260] sm:$0xf] %v2724
        %2826 = vst [vmem:[#allocation2 + $0x284] sm:$0xf] %v2727
        %2827 = vst [vmem:[#allocation2 + $0x2a8] sm:$0xf] %v2731
        %2828 = vst [vmem:[#allocation2 + $0x2cc] sm:$0xf] %v2734
        %2829 = vst [vmem:[#allocation2 + $0x2f0] sm:$0xf] %v2738
        %2830 = vst [vmem:[#allocation2 + $0x314] sm:$0xf] %v2741
        %2831 = vst [vmem:[#allocation2 + $0x338] sm:$0xf] %v2745
        %2832 = vst [vmem:[#allocation2 + $0x35c] sm:$0xf] %v2748
        %2833 = vst [vmem:[#allocation2 + $0x380] sm:$0xf] %v2752
        %2834 = vst [vmem:[#allocation2 + $0x3a4] sm:$0xf] %v2755
        %2835 = vst [vmem:[#allocation2 + $0x3c8] sm:$0xf] %v2759
        %2836 = vst [vmem:[#allocation2 + $0x3ec] sm:$0xf] %v2762
        %2837 = vst [vmem:[#allocation2 + $0x410] sm:$0xf] %v2766
        %2838 = vst [vmem:[#allocation2 + $0x434] sm:$0xf] %v2769
        %2839 = vst [vmem:[#allocation2 + $0x458] sm:$0xf] %v2773
        %2840 = vst [vmem:[#allocation2 + $0x47c] sm:$0xf] %v2776
        %v2841 = vld [vmem:[#allocation2] sm:$0xff]
        %v2842 = vld [vmem:[#allocation2 + $0x8] sm:$0xff]
        %v2843 = vld [vmem:[#allocation2 + $0x10] sm:$0xff]
        %v2844 = vld [vmem:[#allocation2 + $0x18] sm:$0xff]
        %v2845 = vld [vmem:[#allocation2 + $0x20] sm:$0xf]
        %v2846 = vld [vmem:[#allocation2 + $0x24] sm:$0xff]
        %v2847 = vld [vmem:[#allocation2 + $0x2c] sm:$0xff]
        %v2848 = vld [vmem:[#allocation2 + $0x34] sm:$0xff]
        %v2849 = vld [vmem:[#allocation2 + $0x3c] sm:$0xff]
        %v2850 = vld [vmem:[#allocation2 + $0x44] sm:$0xf]
        %v2851 = vld [vmem:[#allocation2 + $0x48] sm:$0xff]
        %v2852 = vld [vmem:[#allocation2 + $0x50] sm:$0xff]
        %v2853 = vld [vmem:[#allocation2 + $0x58] sm:$0xff]
        %v2854 = vld [vmem:[#allocation2 + $0x60] sm:$0xff]
        %v2855 = vld [vmem:[#allocation2 + $0x68] sm:$0xf]
        %v2856 = vld [vmem:[#allocation2 + $0x6c] sm:$0xff]
        %v2857 = vld [vmem:[#allocation2 + $0x74] sm:$0xff]
        %v2858 = vld [vmem:[#allocation2 + $0x7c] sm:$0xff]
        %v2859 = vld [vmem:[#allocation2 + $0x84] sm:$0xff]
        %v2860 = vld [vmem:[#allocation2 + $0x8c] sm:$0xf]
        %v2861 = vld [vmem:[#allocation2 + $0x90] sm:$0xff]
        %v2862 = vld [vmem:[#allocation2 + $0x98] sm:$0xff]
        %v2863 = vld [vmem:[#allocation2 + $0xa0] sm:$0xff]
        %v2864 = vld [vmem:[#allocation2 + $0xa8] sm:$0xff]
        %v2865 = vld [vmem:[#allocation2 + $0xb0] sm:$0xf]
        %v2866 = vld [vmem:[#allocation2 + $0xb4] sm:$0xff]
        %v2867 = vld [vmem:[#allocation2 + $0xbc] sm:$0xff]
        %v2868 = vld [vmem:[#allocation2 + $0xc4] sm:$0xff]
        %v2869 = vld [vmem:[#allocation2 + $0xcc] sm:$0xff]
        %v2870 = vld [vmem:[#allocation2 + $0xd4] sm:$0xf]
        %v2871 = vld [vmem:[#allocation2 + $0xd8] sm:$0xff]
        %v2872 = vld [vmem:[#allocation2 + $0xe0] sm:$0xff]
        %v2873 = vld [vmem:[#allocation2 + $0xe8] sm:$0xff]
        %v2874 = vld [vmem:[#allocation2 + $0xf0] sm:$0xff]
        %v2875 = vld [vmem:[#allocation2 + $0xf8] sm:$0xf]
        %v2876 = vld [vmem:[#allocation2 + $0xfc] sm:$0xff]
        %v2877 = vld [vmem:[#allocation2 + $0x104] sm:$0xff]
        %v2878 = vld [vmem:[#allocation2 + $0x10c] sm:$0xff]
        %v2879 = vld [vmem:[#allocation2 + $0x114] sm:$0xff]
        %v2880 = vld [vmem:[#allocation2 + $0x11c] sm:$0xf]
        %v2881 = vld [vmem:[#allocation2 + $0x120] sm:$0xff]
        %v2882 = vld [vmem:[#allocation2 + $0x128] sm:$0xff]
        %v2883 = vld [vmem:[#allocation2 + $0x130] sm:$0xff]
        %v2884 = vld [vmem:[#allocation2 + $0x138] sm:$0xff]
        %v2885 = vld [vmem:[#allocation2 + $0x140] sm:$0xf]
        %v2886 = vld [vmem:[#allocation2 + $0x144] sm:$0xff]
        %v2887 = vld [vmem:[#allocation2 + $0x14c] sm:$0xff]
        %v2888 = vld [vmem:[#allocation2 + $0x154] sm:$0xff]
        %v2889 = vld [vmem:[#allocation2 + $0x15c] sm:$0xff]
        %v2890 = vld [vmem:[#allocation2 + $0x164] sm:$0xf]
        %v2891 = vld [vmem:[#allocation2 + $0x168] sm:$0xff]
        %v2892 = vld [vmem:[#allocation2 + $0x170] sm:$0xff]
        %v2893 = vld [vmem:[#allocation2 + $0x178] sm:$0xff]
        %v2894 = vld [vmem:[#allocation2 + $0x180] sm:$0xff]
        %v2895 = vld [vmem:[#allocation2 + $0x188] sm:$0xf]
        %v2896 = vld [vmem:[#allocation2 + $0x18c] sm:$0xff]
        %v2897 = vld [vmem:[#allocation2 + $0x194] sm:$0xff]
        %v2898 = vld [vmem:[#allocation2 + $0x19c] sm:$0xff]
        %v2899 = vld [vmem:[#allocation2 + $0x1a4] sm:$0xff]
        %v2900 = vld [vmem:[#allocation2 + $0x1ac] sm:$0xf]
        %v2901 = vld [vmem:[#allocation2 + $0x1b0] sm:$0xff]
        %v2902 = vld [vmem:[#allocation2 + $0x1b8] sm:$0xff]
        %v2903 = vld [vmem:[#allocation2 + $0x1c0] sm:$0xff]
        %v2904 = vld [vmem:[#allocation2 + $0x1c8] sm:$0xff]
        %v2905 = vld [vmem:[#allocation2 + $0x1d0] sm:$0xf]
        %v2906 = vld [vmem:[#allocation2 + $0x1d4] sm:$0xff]
        %v2907 = vld [vmem:[#allocation2 + $0x1dc] sm:$0xff]
        %v2908 = vld [vmem:[#allocation2 + $0x1e4] sm:$0xff]
        %v2909 = vld [vmem:[#allocation2 + $0x1ec] sm:$0xff]
        %v2910 = vld [vmem:[#allocation2 + $0x1f4] sm:$0xf]
        %v2911 = vld [vmem:[#allocation2 + $0x1f8] sm:$0xff]
        %v2912 = vld [vmem:[#allocation2 + $0x200] sm:$0xff]
        %v2913 = vld [vmem:[#allocation2 + $0x208] sm:$0xff]
        %v2914 = vld [vmem:[#allocation2 + $0x210] sm:$0xff]
        %v2915 = vld [vmem:[#allocation2 + $0x218] sm:$0xf]
        %v2916 = vld [vmem:[#allocation2 + $0x21c] sm:$0xff]
        %v2917 = vld [vmem:[#allocation2 + $0x224] sm:$0xff]
        %v2918 = vld [vmem:[#allocation2 + $0x22c] sm:$0xff]
        %v2919 = vld [vmem:[#allocation2 + $0x234] sm:$0xff]
        %v2920 = vld [vmem:[#allocation2 + $0x23c] sm:$0xf]
        %v2921 = vld [vmem:[#allocation2 + $0x240] sm:$0xff]
        %v2922 = vld [vmem:[#allocation2 + $0x248] sm:$0xff]
        %v2923 = vld [vmem:[#allocation2 + $0x250] sm:$0xff]
        %v2924 = vld [vmem:[#allocation2 + $0x258] sm:$0xff]
        %v2925 = vld [vmem:[#allocation2 + $0x260] sm:$0xf]
        %v2926 = vld [vmem:[#allocation2 + $0x264] sm:$0xff]
        %v2927 = vld [vmem:[#allocation2 + $0x26c] sm:$0xff]
        %v2928 = vld [vmem:[#allocation2 + $0x274] sm:$0xff]
        %v2929 = vld [vmem:[#allocation2 + $0x27c] sm:$0xff]
        %v2930 = vld [vmem:[#allocation2 + $0x284] sm:$0xf]
        %v2931 = vld [vmem:[#allocation2 + $0x288] sm:$0xff]
        %v2932 = vld [vmem:[#allocation2 + $0x290] sm:$0xff]
        %v2933 = vld [vmem:[#allocation2 + $0x298] sm:$0xff]
        %v2934 = vld [vmem:[#allocation2 + $0x2a0] sm:$0xff]
        %v2935 = vld [vmem:[#allocation2 + $0x2a8] sm:$0xf]
        %v2936 = vld [vmem:[#allocation2 + $0x2ac] sm:$0xff]
        %v2937 = vld [vmem:[#allocation2 + $0x2b4] sm:$0xff]
        %v2938 = vld [vmem:[#allocation2 + $0x2bc] sm:$0xff]
        %v2939 = vld [vmem:[#allocation2 + $0x2c4] sm:$0xff]
        %v2940 = vld [vmem:[#allocation2 + $0x2cc] sm:$0xf]
        %v2941 = vld [vmem:[#allocation2 + $0x2d0] sm:$0xff]
        %v2942 = vld [vmem:[#allocation2 + $0x2d8] sm:$0xff]
        %v2943 = vld [vmem:[#allocation2 + $0x2e0] sm:$0xff]
        %v2944 = vld [vmem:[#allocation2 + $0x2e8] sm:$0xff]
        %v2945 = vld [vmem:[#allocation2 + $0x2f0] sm:$0xf]
        %v2946 = vld [vmem:[#allocation2 + $0x2f4] sm:$0xff]
        %v2947 = vld [vmem:[#allocation2 + $0x2fc] sm:$0xff]
        %v2948 = vld [vmem:[#allocation2 + $0x304] sm:$0xff]
        %v2949 = vld [vmem:[#allocation2 + $0x30c] sm:$0xff]
        %v2950 = vld [vmem:[#allocation2 + $0x314] sm:$0xf]
        %v2951 = vld [vmem:[#allocation2 + $0x318] sm:$0xff]
        %v2952 = vld [vmem:[#allocation2 + $0x320] sm:$0xff]
        %v2953 = vld [vmem:[#allocation2 + $0x328] sm:$0xff]
        %v2954 = vld [vmem:[#allocation2 + $0x330] sm:$0xff]
        %v2955 = vld [vmem:[#allocation2 + $0x338] sm:$0xf]
        %v2956 = vld [vmem:[#allocation2 + $0x33c] sm:$0xff]
        %v2957 = vld [vmem:[#allocation2 + $0x344] sm:$0xff]
        %v2958 = vld [vmem:[#allocation2 + $0x34c] sm:$0xff]
        %v2959 = vld [vmem:[#allocation2 + $0x354] sm:$0xff]
        %v2960 = vld [vmem:[#allocation2 + $0x35c] sm:$0xf]
        %v2961 = vld [vmem:[#allocation2 + $0x360] sm:$0xff]
        %v2962 = vld [vmem:[#allocation2 + $0x368] sm:$0xff]
        %v2963 = vld [vmem:[#allocation2 + $0x370] sm:$0xff]
        %v2964 = vld [vmem:[#allocation2 + $0x378] sm:$0xff]
        %v2965 = vld [vmem:[#allocation2 + $0x380] sm:$0xf]
        %v2966 = vld [vmem:[#allocation2 + $0x384] sm:$0xff]
        %v2967 = vld [vmem:[#allocation2 + $0x38c] sm:$0xff]
        %v2968 = vld [vmem:[#allocation2 + $0x394] sm:$0xff]
        %v2969 = vld [vmem:[#allocation2 + $0x39c] sm:$0xff]
        %v2970 = vld [vmem:[#allocation2 + $0x3a4] sm:$0xf]
        %v2971 = vld [vmem:[#allocation2 + $0x3a8] sm:$0xff]
        %v2972 = vld [vmem:[#allocation2 + $0x3b0] sm:$0xff]
        %v2973 = vld [vmem:[#allocation2 + $0x3b8] sm:$0xff]
        %v2974 = vld [vmem:[#allocation2 + $0x3c0] sm:$0xff]
        %v2975 = vld [vmem:[#allocation2 + $0x3c8] sm:$0xf]
        %v2976 = vld [vmem:[#allocation2 + $0x3cc] sm:$0xff]
        %v2977 = vld [vmem:[#allocation2 + $0x3d4] sm:$0xff]
        %v2978 = vld [vmem:[#allocation2 + $0x3dc] sm:$0xff]
        %v2979 = vld [vmem:[#allocation2 + $0x3e4] sm:$0xff]
        %v2980 = vld [vmem:[#allocation2 + $0x3ec] sm:$0xf]
        %v2981 = vld [vmem:[#allocation2 + $0x3f0] sm:$0xff]
        %v2982 = vld [vmem:[#allocation2 + $0x3f8] sm:$0xff]
        %v2983 = vld [vmem:[#allocation2 + $0x400] sm:$0xff]
        %v2984 = vld [vmem:[#allocation2 + $0x408] sm:$0xff]
        %v2985 = vld [vmem:[#allocation2 + $0x410] sm:$0xf]
        %v2986 = vld [vmem:[#allocation2 + $0x414] sm:$0xff]
        %v2987 = vld [vmem:[#allocation2 + $0x41c] sm:$0xff]
        %v2988 = vld [vmem:[#allocation2 + $0x424] sm:$0xff]
        %v2989 = vld [vmem:[#allocation2 + $0x42c] sm:$0xff]
        %v2990 = vld [vmem:[#allocation2 + $0x434] sm:$0xf]
        %v2991 = vld [vmem:[#allocation2 + $0x438] sm:$0xff]
        %v2992 = vld [vmem:[#allocation2 + $0x440] sm:$0xff]
        %v2993 = vld [vmem:[#allocation2 + $0x448] sm:$0xff]
        %v2994 = vld [vmem:[#allocation2 + $0x450] sm:$0xff]
        %v2995 = vld [vmem:[#allocation2 + $0x458] sm:$0xf]
        %v2996 = vld [vmem:[#allocation2 + $0x45c] sm:$0xff]
        %v2997 = vld [vmem:[#allocation2 + $0x464] sm:$0xff]
        %v2998 = vld [vmem:[#allocation2 + $0x46c] sm:$0xff]
        %v2999 = vld [vmem:[#allocation2 + $0x474] sm:$0xff]
        %v3000 = vld [vmem:[#allocation2 + $0x47c] sm:$0xf]
        %v3001 = vld [vmem:[#allocation7] sm:$0xf]
        %v3002 = vld [vmem:[#allocation7 + $0x4] sm:$0xf]
        %v3003 = vld [vmem:[#allocation7 + $0x8] sm:$0xf]
        %v3004 = vld [vmem:[#allocation7 + $0xc] sm:$0xf]
        %v3005 = vld [vmem:[#allocation7 + $0x10] sm:$0xf]
        %v3006 = vld [vmem:[#allocation7 + $0x14] sm:$0xf]
        %v3007 = vld [vmem:[#allocation7 + $0x18] sm:$0xf]
        %v3008 = vld [vmem:[#allocation7 + $0x1c] sm:$0xf]
        %v3009 = vld [vmem:[#allocation7 + $0x20] sm:$0xf]
        %v3010 = vld [vmem:[#allocation7 + $0x24] sm:$0xf]
        %v3011 = vld [vmem:[#allocation7 + $0x28] sm:$0xf]
        %v3012 = vld [vmem:[#allocation7 + $0x2c] sm:$0xf]
        %v3013 = vld [vmem:[#allocation7 + $0x30] sm:$0xf]
        %v3014 = vld [vmem:[#allocation7 + $0x34] sm:$0xf]
        %v3015 = vld [vmem:[#allocation7 + $0x38] sm:$0xf]
        %v3016 = vld [vmem:[#allocation7 + $0x3c] sm:$0xf]
        %v3017 = vld [vmem:[#allocation7 + $0x40] sm:$0xf]
        %v3018 = vld [vmem:[#allocation7 + $0x44] sm:$0xf]
        %v3019 = vld [vmem:[#allocation7 + $0x48] sm:$0xf]
        %v3020 = vld [vmem:[#allocation7 + $0x4c] sm:$0xf]
        %v3021 = vld [vmem:[#allocation7 + $0x50] sm:$0xf]
        %v3022 = vld [vmem:[#allocation7 + $0x54] sm:$0xf]
        %v3023 = vld [vmem:[#allocation7 + $0x58] sm:$0xf]
        %v3024 = vld [vmem:[#allocation7 + $0x5c] sm:$0xf]
        %v3025 = vld [vmem:[#allocation7 + $0x60] sm:$0xf]
        %v3026 = vld [vmem:[#allocation7 + $0x64] sm:$0xf]
        %v3027 = vld [vmem:[#allocation7 + $0x68] sm:$0xf]
        %v3028 = vld [vmem:[#allocation7 + $0x6c] sm:$0xf]
        %v3029 = vld [vmem:[#allocation7 + $0x70] sm:$0xf]
        %v3030 = vld [vmem:[#allocation7 + $0x74] sm:$0xf]
        %v3031 = vld [vmem:[#allocation7 + $0x78] sm:$0xf]
        %v3032 = vld [vmem:[#allocation7 + $0x7c] sm:$0xf]
        %v3033 = vld [vmem:[#allocation7 + $0x80] sm:$0xf]
        %v3034 = vld [vmem:[#allocation7 + $0x84] sm:$0xf]
        %v3035 = vld [vmem:[#allocation7 + $0x88] sm:$0xf]
        %v3036 = vld [vmem:[#allocation7 + $0x8c] sm:$0xf]
        %v3037 = vld [vmem:[#allocation7 + $0x90] sm:$0xf]
        %v3038 = vld [vmem:[#allocation7 + $0x94] sm:$0xf]
        %v3039 = vld [vmem:[#allocation7 + $0x98] sm:$0xf]
        %v3040 = vld [vmem:[#allocation7 + $0x9c] sm:$0xf]
        %v3041 = vld [vmem:[#allocation7 + $0xa0] sm:$0xf]
        %v3042 = vld [vmem:[#allocation7 + $0xa4] sm:$0xf]
        %v3043 = vld [vmem:[#allocation7 + $0xa8] sm:$0xf]
        %v3044 = vld [vmem:[#allocation7 + $0xac] sm:$0xf]
        %v3045 = vld [vmem:[#allocation7 + $0xb0] sm:$0xf]
        %v3046 = vld [vmem:[#allocation7 + $0xb4] sm:$0xf]
        %v3047 = vld [vmem:[#allocation7 + $0xb8] sm:$0xf]
        %v3048 = vld [vmem:[#allocation7 + $0xbc] sm:$0xf]
        %v3049 = vld [vmem:[#allocation7 + $0xc0] sm:$0xf]
        %v3050 = vld [vmem:[#allocation7 + $0xc4] sm:$0xf]
        %v3051 = vld [vmem:[#allocation7 + $0xc8] sm:$0xf]
        %v3052 = vld [vmem:[#allocation7 + $0xcc] sm:$0xf]
        %v3053 = vld [vmem:[#allocation7 + $0xd0] sm:$0xf]
        %v3054 = vld [vmem:[#allocation7 + $0xd4] sm:$0xf]
        %v3055 = vld [vmem:[#allocation7 + $0xd8] sm:$0xf]
        %v3056 = vld [vmem:[#allocation7 + $0xdc] sm:$0xf]
        %v3057 = vld [vmem:[#allocation7 + $0xe0] sm:$0xf]
        %v3058 = vld [vmem:[#allocation7 + $0xe4] sm:$0xf]
        %v3059 = vld [vmem:[#allocation7 + $0xe8] sm:$0xf]
        %v3060 = vld [vmem:[#allocation7 + $0xec] sm:$0xf]
        %v3061 = vld [vmem:[#allocation7 + $0xf0] sm:$0xf]
        %v3062 = vld [vmem:[#allocation7 + $0xf4] sm:$0xf]
        %v3063 = vld [vmem:[#allocation7 + $0xf8] sm:$0xf]
        %v3064 = vld [vmem:[#allocation7 + $0xfc] sm:$0xf]
        %v3065 = vld [vmem:[#allocation7 + $0x100] sm:$0xf]
        %v3066 = vld [vmem:[#allocation7 + $0x104] sm:$0xf]
        %v3067 = vld [vmem:[#allocation7 + $0x108] sm:$0xf]
        %v3068 = vld [vmem:[#allocation7 + $0x10c] sm:$0xf]
        %v3069 = vld [vmem:[#allocation7 + $0x110] sm:$0xf]
        %v3070 = vld [vmem:[#allocation7 + $0x114] sm:$0xf]
        %v3071 = vld [vmem:[#allocation7 + $0x118] sm:$0xf]
        %v3072 = vld [vmem:[#allocation7 + $0x11c] sm:$0xf]
        %v3073 = vld [vmem:[#allocation7 + $0x120] sm:$0xf]
        %v3074 = vld [vmem:[#allocation7 + $0x124] sm:$0xf]
        %v3075 = vld [vmem:[#allocation7 + $0x128] sm:$0xf]
        %v3076 = vld [vmem:[#allocation7 + $0x12c] sm:$0xf]
        %v3077 = vld [vmem:[#allocation7 + $0x130] sm:$0xf]
        %v3078 = vld [vmem:[#allocation7 + $0x134] sm:$0xf]
        %v3079 = vld [vmem:[#allocation7 + $0x138] sm:$0xf]
        %v3080 = vld [vmem:[#allocation7 + $0x13c] sm:$0xf]
        %v3081 = vld [vmem:[#allocation7 + $0x140] sm:$0xf]
        %v3082 = vld [vmem:[#allocation7 + $0x144] sm:$0xf]
        %v3083 = vld [vmem:[#allocation7 + $0x148] sm:$0xf]
        %v3084 = vld [vmem:[#allocation7 + $0x14c] sm:$0xf]
        %v3085 = vld [vmem:[#allocation7 + $0x150] sm:$0xf]
        %v3086 = vld [vmem:[#allocation7 + $0x154] sm:$0xf]
        %v3087 = vld [vmem:[#allocation7 + $0x158] sm:$0xf]
        %v3088 = vld [vmem:[#allocation7 + $0x15c] sm:$0xf]
        %v3089 = vld [vmem:[#allocation7 + $0x160] sm:$0xf]
        %v3090 = vld [vmem:[#allocation7 + $0x164] sm:$0xf]
        %v3091 = vld [vmem:[#allocation7 + $0x168] sm:$0xf]
        %v3092 = vld [vmem:[#allocation7 + $0x16c] sm:$0xf]
        %v3093 = vld [vmem:[#allocation7 + $0x170] sm:$0xf]
        %v3094 = vld [vmem:[#allocation7 + $0x174] sm:$0xf]
        %v3095 = vld [vmem:[#allocation7 + $0x178] sm:$0xf]
        %v3096 = vld [vmem:[#allocation7 + $0x17c] sm:$0xf]
        %v3097 = vld [vmem:[#allocation7 + $0x180] sm:$0xf]
        %v3098 = vld [vmem:[#allocation7 + $0x184] sm:$0xf]
        %v3099 = vld [vmem:[#allocation7 + $0x188] sm:$0xf]
        %v3100 = vld [vmem:[#allocation7 + $0x18c] sm:$0xf]
        %v3101 = vld [vmem:[#allocation7 + $0x190] sm:$0xf]
        %v3102 = vld [vmem:[#allocation7 + $0x194] sm:$0xf]
        %v3103 = vld [vmem:[#allocation7 + $0x198] sm:$0xf]
        %v3104 = vld [vmem:[#allocation7 + $0x19c] sm:$0xf]
        %v3105 = vld [vmem:[#allocation7 + $0x1a0] sm:$0xf]
        %v3106 = vld [vmem:[#allocation7 + $0x1a4] sm:$0xf]
        %v3107 = vld [vmem:[#allocation7 + $0x1a8] sm:$0xf]
        %v3108 = vld [vmem:[#allocation7 + $0x1ac] sm:$0xf]
        %v3109 = vld [vmem:[#allocation7 + $0x1b0] sm:$0xf]
        %v3110 = vld [vmem:[#allocation7 + $0x1b4] sm:$0xf]
        %v3111 = vld [vmem:[#allocation7 + $0x1b8] sm:$0xf]
        %v3112 = vld [vmem:[#allocation7 + $0x1bc] sm:$0xf]
        %v3113 = vld [vmem:[#allocation7 + $0x1c0] sm:$0xf]
        %v3114 = vld [vmem:[#allocation7 + $0x1c4] sm:$0xf]
        %v3115 = vld [vmem:[#allocation7 + $0x1c8] sm:$0xf]
        %v3116 = vld [vmem:[#allocation7 + $0x1cc] sm:$0xf]
        %v3117 = vld [vmem:[#allocation7 + $0x1d0] sm:$0xf]
        %v3118 = vld [vmem:[#allocation7 + $0x1d4] sm:$0xf]
        %v3119 = vld [vmem:[#allocation7 + $0x1d8] sm:$0xf]
        %v3120 = vld [vmem:[#allocation7 + $0x1dc] sm:$0xf]
        %v3121 = vld [vmem:[#allocation7 + $0x1e0] sm:$0xf]
        %v3122 = vld [vmem:[#allocation7 + $0x1e4] sm:$0xf]
        %v3123 = vld [vmem:[#allocation7 + $0x1e8] sm:$0xf]
        %v3124 = vld [vmem:[#allocation7 + $0x1ec] sm:$0xf]
        %v3125 = vld [vmem:[#allocation7 + $0x1f0] sm:$0xf]
        %v3126 = vld [vmem:[#allocation7 + $0x1f4] sm:$0xf]
        %v3127 = vld [vmem:[#allocation7 + $0x1f8] sm:$0xf]
        %v3128 = vld [vmem:[#allocation7 + $0x1fc] sm:$0xf]
        %v3129 = vld [vmem:[#allocation7 + $0x200] sm:$0xf]
        %v3130 = vld [vmem:[#allocation7 + $0x204] sm:$0xf]
        %v3131 = vld [vmem:[#allocation7 + $0x208] sm:$0xf]
        %v3132 = vld [vmem:[#allocation7 + $0x20c] sm:$0xf]
        %v3133 = vld [vmem:[#allocation7 + $0x210] sm:$0xf]
        %v3134 = vld [vmem:[#allocation7 + $0x214] sm:$0xf]
        %v3135 = vld [vmem:[#allocation7 + $0x218] sm:$0xf]
        %v3136 = vld [vmem:[#allocation7 + $0x21c] sm:$0xf]
        %v3137 = vld [vmem:[#allocation7 + $0x220] sm:$0xf]
        %v3138 = vld [vmem:[#allocation7 + $0x224] sm:$0xf]
        %v3139 = vld [vmem:[#allocation7 + $0x228] sm:$0xf]
        %v3140 = vld [vmem:[#allocation7 + $0x22c] sm:$0xf]
        %v3141 = vld [vmem:[#allocation7 + $0x230] sm:$0xf]
        %v3142 = vld [vmem:[#allocation7 + $0x234] sm:$0xf]
        %v3143 = vld [vmem:[#allocation7 + $0x238] sm:$0xf]
        %v3144 = vld [vmem:[#allocation7 + $0x23c] sm:$0xf]
        %v3305 = vunpack.c.l.b16 %v2841
        %v3306 = vunpack.c.h.b16 %v2841
        %v3307 = vunpack.c.l.b16 %v2842
        %v3308 = vunpack.c.h.b16 %v2842
        %v3309 = vunpack.c.l.b16 %v2843
        %v3310 = vunpack.c.h.b16 %v2843
        %v3311 = vunpack.c.l.b16 %v2844
        %v3312 = vunpack.c.h.b16 %v2844
        %v3313 = vunpack.c.l.b16 %v2845
        %v3314 = vunpack.c.l.b16 %v2846
        %v3315 = vunpack.c.h.b16 %v2846
        %v3316 = vunpack.c.l.b16 %v2847
        %v3317 = vunpack.c.h.b16 %v2847
        %v3318 = vunpack.c.l.b16 %v2848
        %v3319 = vunpack.c.h.b16 %v2848
        %v3320 = vunpack.c.l.b16 %v2849
        %v3321 = vunpack.c.h.b16 %v2849
        %v3322 = vunpack.c.l.b16 %v2850
        %v3323 = vunpack.c.l.b16 %v2851
        %v3324 = vunpack.c.h.b16 %v2851
        %v3325 = vunpack.c.l.b16 %v2852
        %v3326 = vunpack.c.h.b16 %v2852
        %v3327 = vunpack.c.l.b16 %v2853
        %v3328 = vunpack.c.h.b16 %v2853
        %v3329 = vunpack.c.l.b16 %v2854
        %v3330 = vunpack.c.h.b16 %v2854
        %v3331 = vunpack.c.l.b16 %v2855
        %v3332 = vunpack.c.l.b16 %v2856
        %v3333 = vunpack.c.h.b16 %v2856
        %v3334 = vunpack.c.l.b16 %v2857
        %v3335 = vunpack.c.h.b16 %v2857
        %v3336 = vunpack.c.l.b16 %v2858
        %v3337 = vunpack.c.h.b16 %v2858
        %v3338 = vunpack.c.l.b16 %v2859
        %v3339 = vunpack.c.h.b16 %v2859
        %v3340 = vunpack.c.l.b16 %v2860
        %v3341 = vunpack.c.l.b16 %v2861
        %v3342 = vunpack.c.h.b16 %v2861
        %v3343 = vunpack.c.l.b16 %v2862
        %v3344 = vunpack.c.h.b16 %v2862
        %v3345 = vunpack.c.l.b16 %v2863
        %v3346 = vunpack.c.h.b16 %v2863
        %v3347 = vunpack.c.l.b16 %v2864
        %v3348 = vunpack.c.h.b16 %v2864
        %v3349 = vunpack.c.l.b16 %v2865
        %v3350 = vunpack.c.l.b16 %v2866
        %v3351 = vunpack.c.h.b16 %v2866
        %v3352 = vunpack.c.l.b16 %v2867
        %v3353 = vunpack.c.h.b16 %v2867
        %v3354 = vunpack.c.l.b16 %v2868
        %v3355 = vunpack.c.h.b16 %v2868
        %v3356 = vunpack.c.l.b16 %v2869
        %v3357 = vunpack.c.h.b16 %v2869
        %v3358 = vunpack.c.l.b16 %v2870
        %v3359 = vunpack.c.l.b16 %v2871
        %v3360 = vunpack.c.h.b16 %v2871
        %v3361 = vunpack.c.l.b16 %v2872
        %v3362 = vunpack.c.h.b16 %v2872
        %v3363 = vunpack.c.l.b16 %v2873
        %v3364 = vunpack.c.h.b16 %v2873
        %v3365 = vunpack.c.l.b16 %v2874
        %v3366 = vunpack.c.h.b16 %v2874
        %v3367 = vunpack.c.l.b16 %v2875
        %v3368 = vunpack.c.l.b16 %v2876
        %v3369 = vunpack.c.h.b16 %v2876
        %v3370 = vunpack.c.l.b16 %v2877
        %v3371 = vunpack.c.h.b16 %v2877
        %v3372 = vunpack.c.l.b16 %v2878
        %v3373 = vunpack.c.h.b16 %v2878
        %v3374 = vunpack.c.l.b16 %v2879
        %v3375 = vunpack.c.h.b16 %v2879
        %v3376 = vunpack.c.l.b16 %v2880
        %v3377 = vunpack.c.l.b16 %v2881
        %v3378 = vunpack.c.h.b16 %v2881
        %v3379 = vunpack.c.l.b16 %v2882
        %v3380 = vunpack.c.h.b16 %v2882
        %v3381 = vunpack.c.l.b16 %v2883
        %v3382 = vunpack.c.h.b16 %v2883
        %v3383 = vunpack.c.l.b16 %v2884
        %v3384 = vunpack.c.h.b16 %v2884
        %v3385 = vunpack.c.l.b16 %v2885
        %v3386 = vunpack.c.l.b16 %v2886
        %v3387 = vunpack.c.h.b16 %v2886
        %v3388 = vunpack.c.l.b16 %v2887
        %v3389 = vunpack.c.h.b16 %v2887
        %v3390 = vunpack.c.l.b16 %v2888
        %v3391 = vunpack.c.h.b16 %v2888
        %v3392 = vunpack.c.l.b16 %v2889
        %v3393 = vunpack.c.h.b16 %v2889
        %v3394 = vunpack.c.l.b16 %v2890
        %v3395 = vunpack.c.l.b16 %v2891
        %v3396 = vunpack.c.h.b16 %v2891
        %v3397 = vunpack.c.l.b16 %v2892
        %v3398 = vunpack.c.h.b16 %v2892
        %v3399 = vunpack.c.l.b16 %v2893
        %v3400 = vunpack.c.h.b16 %v2893
        %v3401 = vunpack.c.l.b16 %v2894
        %v3402 = vunpack.c.h.b16 %v2894
        %v3403 = vunpack.c.l.b16 %v2895
        %v3404 = vunpack.c.l.b16 %v2896
        %v3405 = vunpack.c.h.b16 %v2896
        %v3406 = vunpack.c.l.b16 %v2897
        %v3407 = vunpack.c.h.b16 %v2897
        %v3408 = vunpack.c.l.b16 %v2898
        %v3409 = vunpack.c.h.b16 %v2898
        %v3410 = vunpack.c.l.b16 %v2899
        %v3411 = vunpack.c.h.b16 %v2899
        %v3412 = vunpack.c.l.b16 %v2900
        %v3413 = vunpack.c.l.b16 %v2901
        %v3414 = vunpack.c.h.b16 %v2901
        %v3415 = vunpack.c.l.b16 %v2902
        %v3416 = vunpack.c.h.b16 %v2902
        %v3417 = vunpack.c.l.b16 %v2903
        %v3418 = vunpack.c.h.b16 %v2903
        %v3419 = vunpack.c.l.b16 %v2904
        %v3420 = vunpack.c.h.b16 %v2904
        %v3421 = vunpack.c.l.b16 %v2905
        %v3422 = vunpack.c.l.b16 %v2906
        %v3423 = vunpack.c.h.b16 %v2906
        %v3424 = vunpack.c.l.b16 %v2907
        %v3425 = vunpack.c.h.b16 %v2907
        %v3426 = vunpack.c.l.b16 %v2908
        %v3427 = vunpack.c.h.b16 %v2908
        %v3428 = vunpack.c.l.b16 %v2909
        %v3429 = vunpack.c.h.b16 %v2909
        %v3430 = vunpack.c.l.b16 %v2910
        %v3431 = vunpack.c.l.b16 %v2911
        %v3432 = vunpack.c.h.b16 %v2911
        %v3433 = vunpack.c.l.b16 %v2912
        %v3434 = vunpack.c.h.b16 %v2912
        %v3435 = vunpack.c.l.b16 %v2913
        %v3436 = vunpack.c.h.b16 %v2913
        %v3437 = vunpack.c.l.b16 %v2914
        %v3438 = vunpack.c.h.b16 %v2914
        %v3439 = vunpack.c.l.b16 %v2915
        %v3440 = vunpack.c.l.b16 %v2916
        %v3441 = vunpack.c.h.b16 %v2916
        %v3442 = vunpack.c.l.b16 %v2917
        %v3443 = vunpack.c.h.b16 %v2917
        %v3444 = vunpack.c.l.b16 %v2918
        %v3445 = vunpack.c.h.b16 %v2918
        %v3446 = vunpack.c.l.b16 %v2919
        %v3447 = vunpack.c.h.b16 %v2919
        %v3448 = vunpack.c.l.b16 %v2920
        %v3449 = vunpack.c.l.b16 %v2921
        %v3450 = vunpack.c.h.b16 %v2921
        %v3451 = vunpack.c.l.b16 %v2922
        %v3452 = vunpack.c.h.b16 %v2922
        %v3453 = vunpack.c.l.b16 %v2923
        %v3454 = vunpack.c.h.b16 %v2923
        %v3455 = vunpack.c.l.b16 %v2924
        %v3456 = vunpack.c.h.b16 %v2924
        %v3457 = vunpack.c.l.b16 %v2925
        %v3458 = vunpack.c.l.b16 %v2926
        %v3459 = vunpack.c.h.b16 %v2926
        %v3460 = vunpack.c.l.b16 %v2927
        %v3461 = vunpack.c.h.b16 %v2927
        %v3462 = vunpack.c.l.b16 %v2928
        %v3463 = vunpack.c.h.b16 %v2928
        %v3464 = vunpack.c.l.b16 %v2929
        %v3465 = vunpack.c.h.b16 %v2929
        %v3466 = vunpack.c.l.b16 %v2930
        %v3467 = vunpack.c.l.b16 %v2931
        %v3468 = vunpack.c.h.b16 %v2931
        %v3469 = vunpack.c.l.b16 %v2932
        %v3470 = vunpack.c.h.b16 %v2932
        %v3471 = vunpack.c.l.b16 %v2933
        %v3472 = vunpack.c.h.b16 %v2933
        %v3473 = vunpack.c.l.b16 %v2934
        %v3474 = vunpack.c.h.b16 %v2934
        %v3475 = vunpack.c.l.b16 %v2935
        %v3476 = vunpack.c.l.b16 %v2936
        %v3477 = vunpack.c.h.b16 %v2936
        %v3478 = vunpack.c.l.b16 %v2937
        %v3479 = vunpack.c.h.b16 %v2937
        %v3480 = vunpack.c.l.b16 %v2938
        %v3481 = vunpack.c.h.b16 %v2938
        %v3482 = vunpack.c.l.b16 %v2939
        %v3483 = vunpack.c.h.b16 %v2939
        %v3484 = vunpack.c.l.b16 %v2940
        %v3485 = vunpack.c.l.b16 %v2941
        %v3486 = vunpack.c.h.b16 %v2941
        %v3487 = vunpack.c.l.b16 %v2942
        %v3488 = vunpack.c.h.b16 %v2942
        %v3489 = vunpack.c.l.b16 %v2943
        %v3490 = vunpack.c.h.b16 %v2943
        %v3491 = vunpack.c.l.b16 %v2944
        %v3492 = vunpack.c.h.b16 %v2944
        %v3493 = vunpack.c.l.b16 %v2945
        %v3494 = vunpack.c.l.b16 %v2946
        %v3495 = vunpack.c.h.b16 %v2946
        %v3496 = vunpack.c.l.b16 %v2947
        %v3497 = vunpack.c.h.b16 %v2947
        %v3498 = vunpack.c.l.b16 %v2948
        %v3499 = vunpack.c.h.b16 %v2948
        %v3500 = vunpack.c.l.b16 %v2949
        %v3501 = vunpack.c.h.b16 %v2949
        %v3502 = vunpack.c.l.b16 %v2950
        %v3503 = vunpack.c.l.b16 %v2951
        %v3504 = vunpack.c.h.b16 %v2951
        %v3505 = vunpack.c.l.b16 %v2952
        %v3506 = vunpack.c.h.b16 %v2952
        %v3507 = vunpack.c.l.b16 %v2953
        %v3508 = vunpack.c.h.b16 %v2953
        %v3509 = vunpack.c.l.b16 %v2954
        %v3510 = vunpack.c.h.b16 %v2954
        %v3511 = vunpack.c.l.b16 %v2955
        %v3512 = vunpack.c.l.b16 %v2956
        %v3513 = vunpack.c.h.b16 %v2956
        %v3514 = vunpack.c.l.b16 %v2957
        %v3515 = vunpack.c.h.b16 %v2957
        %v3516 = vunpack.c.l.b16 %v2958
        %v3517 = vunpack.c.h.b16 %v2958
        %v3518 = vunpack.c.l.b16 %v2959
        %v3519 = vunpack.c.h.b16 %v2959
        %v3520 = vunpack.c.l.b16 %v2960
        %v3521 = vunpack.c.l.b16 %v2961
        %v3522 = vunpack.c.h.b16 %v2961
        %v3523 = vunpack.c.l.b16 %v2962
        %v3524 = vunpack.c.h.b16 %v2962
        %v3525 = vunpack.c.l.b16 %v2963
        %v3526 = vunpack.c.h.b16 %v2963
        %v3527 = vunpack.c.l.b16 %v2964
        %v3528 = vunpack.c.h.b16 %v2964
        %v3529 = vunpack.c.l.b16 %v2965
        %v3530 = vunpack.c.l.b16 %v2966
        %v3531 = vunpack.c.h.b16 %v2966
        %v3532 = vunpack.c.l.b16 %v2967
        %v3533 = vunpack.c.h.b16 %v2967
        %v3534 = vunpack.c.l.b16 %v2968
        %v3535 = vunpack.c.h.b16 %v2968
        %v3536 = vunpack.c.l.b16 %v2969
        %v3537 = vunpack.c.h.b16 %v2969
        %v3538 = vunpack.c.l.b16 %v2970
        %v3539 = vunpack.c.l.b16 %v2971
        %v3540 = vunpack.c.h.b16 %v2971
        %v3541 = vunpack.c.l.b16 %v2972
        %v3542 = vunpack.c.h.b16 %v2972
        %v3543 = vunpack.c.l.b16 %v2973
        %v3544 = vunpack.c.h.b16 %v2973
        %v3545 = vunpack.c.l.b16 %v2974
        %v3546 = vunpack.c.h.b16 %v2974
        %v3547 = vunpack.c.l.b16 %v2975
        %v3548 = vunpack.c.l.b16 %v2976
        %v3549 = vunpack.c.h.b16 %v2976
        %v3550 = vunpack.c.l.b16 %v2977
        %v3551 = vunpack.c.h.b16 %v2977
        %v3552 = vunpack.c.l.b16 %v2978
        %v3553 = vunpack.c.h.b16 %v2978
        %v3554 = vunpack.c.l.b16 %v2979
        %v3555 = vunpack.c.h.b16 %v2979
        %v3556 = vunpack.c.l.b16 %v2980
        %v3557 = vunpack.c.l.b16 %v2981
        %v3558 = vunpack.c.h.b16 %v2981
        %v3559 = vunpack.c.l.b16 %v2982
        %v3560 = vunpack.c.h.b16 %v2982
        %v3561 = vunpack.c.l.b16 %v2983
        %v3562 = vunpack.c.h.b16 %v2983
        %v3563 = vunpack.c.l.b16 %v2984
        %v3564 = vunpack.c.h.b16 %v2984
        %v3565 = vunpack.c.l.b16 %v2985
        %v3566 = vunpack.c.l.b16 %v2986
        %v3567 = vunpack.c.h.b16 %v2986
        %v3568 = vunpack.c.l.b16 %v2987
        %v3569 = vunpack.c.h.b16 %v2987
        %v3570 = vunpack.c.l.b16 %v2988
        %v3571 = vunpack.c.h.b16 %v2988
        %v3572 = vunpack.c.l.b16 %v2989
        %v3573 = vunpack.c.h.b16 %v2989
        %v3574 = vunpack.c.l.b16 %v2990
        %v3575 = vunpack.c.l.b16 %v2991
        %v3576 = vunpack.c.h.b16 %v2991
        %v3577 = vunpack.c.l.b16 %v2992
        %v3578 = vunpack.c.h.b16 %v2992
        %v3579 = vunpack.c.l.b16 %v2993
        %v3580 = vunpack.c.h.b16 %v2993
        %v3581 = vunpack.c.l.b16 %v2994
        %v3582 = vunpack.c.h.b16 %v2994
        %v3583 = vunpack.c.l.b16 %v2995
        %v3584 = vunpack.c.l.b16 %v2996
        %v3585 = vunpack.c.h.b16 %v2996
        %v3586 = vunpack.c.l.b16 %v2997
        %v3587 = vunpack.c.h.b16 %v2997
        %v3588 = vunpack.c.l.b16 %v2998
        %v3589 = vunpack.c.h.b16 %v2998
        %v3590 = vunpack.c.l.b16 %v2999
        %v3591 = vunpack.c.h.b16 %v2999
        %v3592 = vunpack.c.l.b16 %v3000
        %v3593 = vpack.c.b16 %v3314, %v3305
        %v3594 = vpack.c.b16 %v3315, %v3306
        %v3595 = vpack.c.b16 %v3316, %v3307
        %v3596 = vpack.c.b16 %v3317, %v3308
        %v3597 = vpack.c.b16 %v3318, %v3309
        %v3598 = vpack.c.b16 %v3319, %v3310
        %v3599 = vpack.c.b16 %v3320, %v3311
        %v3600 = vpack.c.b16 %v3321, %v3312
        %v3601 = vpack.c.b16 %v3322, %v3313
        %v3602 = vpack.c.b16 %v3332, %v3323
        %v3603 = vpack.c.b16 %v3333, %v3324
        %v3604 = vpack.c.b16 %v3334, %v3325
        %v3605 = vpack.c.b16 %v3335, %v3326
        %v3606 = vpack.c.b16 %v3336, %v3327
        %v3607 = vpack.c.b16 %v3337, %v3328
        %v3608 = vpack.c.b16 %v3338, %v3329
        %v3609 = vpack.c.b16 %v3339, %v3330
        %v3610 = vpack.c.b16 %v3340, %v3331
        %v3611 = vpack.c.b16 %v3350, %v3341
        %v3612 = vpack.c.b16 %v3351, %v3342
        %v3613 = vpack.c.b16 %v3352, %v3343
        %v3614 = vpack.c.b16 %v3353, %v3344
        %v3615 = vpack.c.b16 %v3354, %v3345
        %v3616 = vpack.c.b16 %v3355, %v3346
        %v3617 = vpack.c.b16 %v3356, %v3347
        %v3618 = vpack.c.b16 %v3357, %v3348
        %v3619 = vpack.c.b16 %v3358, %v3349
        %v3620 = vpack.c.b16 %v3368, %v3359
        %v3621 = vpack.c.b16 %v3369, %v3360
        %v3622 = vpack.c.b16 %v3370, %v3361
        %v3623 = vpack.c.b16 %v3371, %v3362
        %v3624 = vpack.c.b16 %v3372, %v3363
        %v3625 = vpack.c.b16 %v3373, %v3364
        %v3626 = vpack.c.b16 %v3374, %v3365
        %v3627 = vpack.c.b16 %v3375, %v3366
        %v3628 = vpack.c.b16 %v3376, %v3367
        %v3629 = vpack.c.b16 %v3386, %v3377
        %v3630 = vpack.c.b16 %v3387, %v3378
        %v3631 = vpack.c.b16 %v3388, %v3379
        %v3632 = vpack.c.b16 %v3389, %v3380
        %v3633 = vpack.c.b16 %v3390, %v3381
        %v3634 = vpack.c.b16 %v3391, %v3382
        %v3635 = vpack.c.b16 %v3392, %v3383
        %v3636 = vpack.c.b16 %v3393, %v3384
        %v3637 = vpack.c.b16 %v3394, %v3385
        %v3638 = vpack.c.b16 %v3404, %v3395
        %v3639 = vpack.c.b16 %v3405, %v3396
        %v3640 = vpack.c.b16 %v3406, %v3397
        %v3641 = vpack.c.b16 %v3407, %v3398
        %v3642 = vpack.c.b16 %v3408, %v3399
        %v3643 = vpack.c.b16 %v3409, %v3400
        %v3644 = vpack.c.b16 %v3410, %v3401
        %v3645 = vpack.c.b16 %v3411, %v3402
        %v3646 = vpack.c.b16 %v3412, %v3403
        %v3647 = vpack.c.b16 %v3422, %v3413
        %v3648 = vpack.c.b16 %v3423, %v3414
        %v3649 = vpack.c.b16 %v3424, %v3415
        %v3650 = vpack.c.b16 %v3425, %v3416
        %v3651 = vpack.c.b16 %v3426, %v3417
        %v3652 = vpack.c.b16 %v3427, %v3418
        %v3653 = vpack.c.b16 %v3428, %v3419
        %v3654 = vpack.c.b16 %v3429, %v3420
        %v3655 = vpack.c.b16 %v3430, %v3421
        %v3656 = vpack.c.b16 %v3440, %v3431
        %v3657 = vpack.c.b16 %v3441, %v3432
        %v3658 = vpack.c.b16 %v3442, %v3433
        %v3659 = vpack.c.b16 %v3443, %v3434
        %v3660 = vpack.c.b16 %v3444, %v3435
        %v3661 = vpack.c.b16 %v3445, %v3436
        %v3662 = vpack.c.b16 %v3446, %v3437
        %v3663 = vpack.c.b16 %v3447, %v3438
        %v3664 = vpack.c.b16 %v3448, %v3439
        %v3665 = vpack.c.b16 %v3458, %v3449
        %v3666 = vpack.c.b16 %v3459, %v3450
        %v3667 = vpack.c.b16 %v3460, %v3451
        %v3668 = vpack.c.b16 %v3461, %v3452
        %v3669 = vpack.c.b16 %v3462, %v3453
        %v3670 = vpack.c.b16 %v3463, %v3454
        %v3671 = vpack.c.b16 %v3464, %v3455
        %v3672 = vpack.c.b16 %v3465, %v3456
        %v3673 = vpack.c.b16 %v3466, %v3457
        %v3674 = vpack.c.b16 %v3476, %v3467
        %v3675 = vpack.c.b16 %v3477, %v3468
        %v3676 = vpack.c.b16 %v3478, %v3469
        %v3677 = vpack.c.b16 %v3479, %v3470
        %v3678 = vpack.c.b16 %v3480, %v3471
        %v3679 = vpack.c.b16 %v3481, %v3472
        %v3680 = vpack.c.b16 %v3482, %v3473
        %v3681 = vpack.c.b16 %v3483, %v3474
        %v3682 = vpack.c.b16 %v3484, %v3475
        %v3683 = vpack.c.b16 %v3494, %v3485
        %v3684 = vpack.c.b16 %v3495, %v3486
        %v3685 = vpack.c.b16 %v3496, %v3487
        %v3686 = vpack.c.b16 %v3497, %v3488
        %v3687 = vpack.c.b16 %v3498, %v3489
        %v3688 = vpack.c.b16 %v3499, %v3490
        %v3689 = vpack.c.b16 %v3500, %v3491
        %v3690 = vpack.c.b16 %v3501, %v3492
        %v3691 = vpack.c.b16 %v3502, %v3493
        %v3692 = vpack.c.b16 %v3512, %v3503
        %v3693 = vpack.c.b16 %v3513, %v3504
        %v3694 = vpack.c.b16 %v3514, %v3505
        %v3695 = vpack.c.b16 %v3515, %v3506
        %v3696 = vpack.c.b16 %v3516, %v3507
        %v3697 = vpack.c.b16 %v3517, %v3508
        %v3698 = vpack.c.b16 %v3518, %v3509
        %v3699 = vpack.c.b16 %v3519, %v3510
        %v3700 = vpack.c.b16 %v3520, %v3511
        %v3701 = vpack.c.b16 %v3530, %v3521
        %v3702 = vpack.c.b16 %v3531, %v3522
        %v3703 = vpack.c.b16 %v3532, %v3523
        %v3704 = vpack.c.b16 %v3533, %v3524
        %v3705 = vpack.c.b16 %v3534, %v3525
        %v3706 = vpack.c.b16 %v3535, %v3526
        %v3707 = vpack.c.b16 %v3536, %v3527
        %v3708 = vpack.c.b16 %v3537, %v3528
        %v3709 = vpack.c.b16 %v3538, %v3529
        %v3710 = vpack.c.b16 %v3548, %v3539
        %v3711 = vpack.c.b16 %v3549, %v3540
        %v3712 = vpack.c.b16 %v3550, %v3541
        %v3713 = vpack.c.b16 %v3551, %v3542
        %v3714 = vpack.c.b16 %v3552, %v3543
        %v3715 = vpack.c.b16 %v3553, %v3544
        %v3716 = vpack.c.b16 %v3554, %v3545
        %v3717 = vpack.c.b16 %v3555, %v3546
        %v3718 = vpack.c.b16 %v3556, %v3547
        %v3719 = vpack.c.b16 %v3566, %v3557
        %v3720 = vpack.c.b16 %v3567, %v3558
        %v3721 = vpack.c.b16 %v3568, %v3559
        %v3722 = vpack.c.b16 %v3569, %v3560
        %v3723 = vpack.c.b16 %v3570, %v3561
        %v3724 = vpack.c.b16 %v3571, %v3562
        %v3725 = vpack.c.b16 %v3572, %v3563
        %v3726 = vpack.c.b16 %v3573, %v3564
        %v3727 = vpack.c.b16 %v3574, %v3565
        %v3728 = vpack.c.b16 %v3584, %v3575
        %v3729 = vpack.c.b16 %v3585, %v3576
        %v3730 = vpack.c.b16 %v3586, %v3577
        %v3731 = vpack.c.b16 %v3587, %v3578
        %v3732 = vpack.c.b16 %v3588, %v3579
        %v3733 = vpack.c.b16 %v3589, %v3580
        %v3734 = vpack.c.b16 %v3590, %v3581
        %v3735 = vpack.c.b16 %v3591, %v3582
        %v3736 = vpack.c.b16 %v3592, %v3583
        %v4025 = vunpack.c.l.b16 %v3001
        %v4026 = vunpack.c.l.b16 %v3002
        %v4027 = vunpack.c.l.b16 %v3003
        %v4028 = vunpack.c.l.b16 %v3004
        %v4029 = vunpack.c.l.b16 %v3005
        %v4030 = vunpack.c.l.b16 %v3006
        %v4031 = vunpack.c.l.b16 %v3007
        %v4032 = vunpack.c.l.b16 %v3008
        %v4033 = vunpack.c.l.b16 %v3009
        %v4034 = vunpack.c.l.b16 %v3010
        %v4035 = vunpack.c.l.b16 %v3011
        %v4036 = vunpack.c.l.b16 %v3012
        %v4037 = vunpack.c.l.b16 %v3013
        %v4038 = vunpack.c.l.b16 %v3014
        %v4039 = vunpack.c.l.b16 %v3015
        %v4040 = vunpack.c.l.b16 %v3016
        %v4041 = vunpack.c.l.b16 %v3017
        %v4042 = vunpack.c.l.b16 %v3018
        %v4043 = vunpack.c.l.b16 %v3019
        %v4044 = vunpack.c.l.b16 %v3020
        %v4045 = vunpack.c.l.b16 %v3021
        %v4046 = vunpack.c.l.b16 %v3022
        %v4047 = vunpack.c.l.b16 %v3023
        %v4048 = vunpack.c.l.b16 %v3024
        %v4049 = vunpack.c.l.b16 %v3025
        %v4050 = vunpack.c.l.b16 %v3026
        %v4051 = vunpack.c.l.b16 %v3027
        %v4052 = vunpack.c.l.b16 %v3028
        %v4053 = vunpack.c.l.b16 %v3029
        %v4054 = vunpack.c.l.b16 %v3030
        %v4055 = vunpack.c.l.b16 %v3031
        %v4056 = vunpack.c.l.b16 %v3032
        %v4057 = vunpack.c.l.b16 %v3033
        %v4058 = vunpack.c.l.b16 %v3034
        %v4059 = vunpack.c.l.b16 %v3035
        %v4060 = vunpack.c.l.b16 %v3036
        %v4061 = vunpack.c.l.b16 %v3037
        %v4062 = vunpack.c.l.b16 %v3038
        %v4063 = vunpack.c.l.b16 %v3039
        %v4064 = vunpack.c.l.b16 %v3040
        %v4065 = vunpack.c.l.b16 %v3041
        %v4066 = vunpack.c.l.b16 %v3042
        %v4067 = vunpack.c.l.b16 %v3043
        %v4068 = vunpack.c.l.b16 %v3044
        %v4069 = vunpack.c.l.b16 %v3045
        %v4070 = vunpack.c.l.b16 %v3046
        %v4071 = vunpack.c.l.b16 %v3047
        %v4072 = vunpack.c.l.b16 %v3048
        %v4073 = vunpack.c.l.b16 %v3049
        %v4074 = vunpack.c.l.b16 %v3050
        %v4075 = vunpack.c.l.b16 %v3051
        %v4076 = vunpack.c.l.b16 %v3052
        %v4077 = vunpack.c.l.b16 %v3053
        %v4078 = vunpack.c.l.b16 %v3054
        %v4079 = vunpack.c.l.b16 %v3055
        %v4080 = vunpack.c.l.b16 %v3056
        %v4081 = vunpack.c.l.b16 %v3057
        %v4082 = vunpack.c.l.b16 %v3058
        %v4083 = vunpack.c.l.b16 %v3059
        %v4084 = vunpack.c.l.b16 %v3060
        %v4085 = vunpack.c.l.b16 %v3061
        %v4086 = vunpack.c.l.b16 %v3062
        %v4087 = vunpack.c.l.b16 %v3063
        %v4088 = vunpack.c.l.b16 %v3064
        %v4089 = vunpack.c.l.b16 %v3065
        %v4090 = vunpack.c.l.b16 %v3066
        %v4091 = vunpack.c.l.b16 %v3067
        %v4092 = vunpack.c.l.b16 %v3068
        %v4093 = vunpack.c.l.b16 %v3069
        %v4094 = vunpack.c.l.b16 %v3070
        %v4095 = vunpack.c.l.b16 %v3071
        %v4096 = vunpack.c.l.b16 %v3072
        %v4097 = vunpack.c.l.b16 %v3073
        %v4098 = vunpack.c.l.b16 %v3074
        %v4099 = vunpack.c.l.b16 %v3075
        %v4100 = vunpack.c.l.b16 %v3076
        %v4101 = vunpack.c.l.b16 %v3077
        %v4102 = vunpack.c.l.b16 %v3078
        %v4103 = vunpack.c.l.b16 %v3079
        %v4104 = vunpack.c.l.b16 %v3080
        %v4105 = vunpack.c.l.b16 %v3081
        %v4106 = vunpack.c.l.b16 %v3082
        %v4107 = vunpack.c.l.b16 %v3083
        %v4108 = vunpack.c.l.b16 %v3084
        %v4109 = vunpack.c.l.b16 %v3085
        %v4110 = vunpack.c.l.b16 %v3086
        %v4111 = vunpack.c.l.b16 %v3087
        %v4112 = vunpack.c.l.b16 %v3088
        %v4113 = vunpack.c.l.b16 %v3089
        %v4114 = vunpack.c.l.b16 %v3090
        %v4115 = vunpack.c.l.b16 %v3091
        %v4116 = vunpack.c.l.b16 %v3092
        %v4117 = vunpack.c.l.b16 %v3093
        %v4118 = vunpack.c.l.b16 %v3094
        %v4119 = vunpack.c.l.b16 %v3095
        %v4120 = vunpack.c.l.b16 %v3096
        %v4121 = vunpack.c.l.b16 %v3097
        %v4122 = vunpack.c.l.b16 %v3098
        %v4123 = vunpack.c.l.b16 %v3099
        %v4124 = vunpack.c.l.b16 %v3100
        %v4125 = vunpack.c.l.b16 %v3101
        %v4126 = vunpack.c.l.b16 %v3102
        %v4127 = vunpack.c.l.b16 %v3103
        %v4128 = vunpack.c.l.b16 %v3104
        %v4129 = vunpack.c.l.b16 %v3105
        %v4130 = vunpack.c.l.b16 %v3106
        %v4131 = vunpack.c.l.b16 %v3107
        %v4132 = vunpack.c.l.b16 %v3108
        %v4133 = vunpack.c.l.b16 %v3109
        %v4134 = vunpack.c.l.b16 %v3110
        %v4135 = vunpack.c.l.b16 %v3111
        %v4136 = vunpack.c.l.b16 %v3112
        %v4137 = vunpack.c.l.b16 %v3113
        %v4138 = vunpack.c.l.b16 %v3114
        %v4139 = vunpack.c.l.b16 %v3115
        %v4140 = vunpack.c.l.b16 %v3116
        %v4141 = vunpack.c.l.b16 %v3117
        %v4142 = vunpack.c.l.b16 %v3118
        %v4143 = vunpack.c.l.b16 %v3119
        %v4144 = vunpack.c.l.b16 %v3120
        %v4145 = vunpack.c.l.b16 %v3121
        %v4146 = vunpack.c.l.b16 %v3122
        %v4147 = vunpack.c.l.b16 %v3123
        %v4148 = vunpack.c.l.b16 %v3124
        %v4149 = vunpack.c.l.b16 %v3125
        %v4150 = vunpack.c.l.b16 %v3126
        %v4151 = vunpack.c.l.b16 %v3127
        %v4152 = vunpack.c.l.b16 %v3128
        %v4153 = vunpack.c.l.b16 %v3129
        %v4154 = vunpack.c.l.b16 %v3130
        %v4155 = vunpack.c.l.b16 %v3131
        %v4156 = vunpack.c.l.b16 %v3132
        %v4157 = vunpack.c.l.b16 %v3133
        %v4158 = vunpack.c.l.b16 %v3134
        %v4159 = vunpack.c.l.b16 %v3135
        %v4160 = vunpack.c.l.b16 %v3136
        %v4161 = vunpack.c.l.b16 %v3137
        %v4162 = vunpack.c.l.b16 %v3138
        %v4163 = vunpack.c.l.b16 %v3139
        %v4164 = vunpack.c.l.b16 %v3140
        %v4165 = vunpack.c.l.b16 %v3141
        %v4166 = vunpack.c.l.b16 %v3142
        %v4167 = vunpack.c.l.b16 %v3143
        %v4168 = vunpack.c.l.b16 %v3144
        %v4169 = vpack.c.b16 %v4026, %v4025
        %v4170 = vpack.c.b16 %v4028, %v4027
        %v4171 = vpack.c.b16 %v4030, %v4029
        %v4172 = vpack.c.b16 %v4032, %v4031
        %v4173 = vpack.c.b16 %v4034, %v4033
        %v4174 = vpack.c.b16 %v4036, %v4035
        %v4175 = vpack.c.b16 %v4038, %v4037
        %v4176 = vpack.c.b16 %v4040, %v4039
        %v4177 = vpack.c.b16 %v4042, %v4041
        %v4178 = vpack.c.b16 %v4044, %v4043
        %v4179 = vpack.c.b16 %v4046, %v4045
        %v4180 = vpack.c.b16 %v4048, %v4047
        %v4181 = vpack.c.b16 %v4050, %v4049
        %v4182 = vpack.c.b16 %v4052, %v4051
        %v4183 = vpack.c.b16 %v4054, %v4053
        %v4184 = vpack.c.b16 %v4056, %v4055
        %v4185 = vpack.c.b16 %v4058, %v4057
        %v4186 = vpack.c.b16 %v4060, %v4059
        %v4187 = vpack.c.b16 %v4062, %v4061
        %v4188 = vpack.c.b16 %v4064, %v4063
        %v4189 = vpack.c.b16 %v4066, %v4065
        %v4190 = vpack.c.b16 %v4068, %v4067
        %v4191 = vpack.c.b16 %v4070, %v4069
        %v4192 = vpack.c.b16 %v4072, %v4071
        %v4193 = vpack.c.b16 %v4074, %v4073
        %v4194 = vpack.c.b16 %v4076, %v4075
        %v4195 = vpack.c.b16 %v4078, %v4077
        %v4196 = vpack.c.b16 %v4080, %v4079
        %v4197 = vpack.c.b16 %v4082, %v4081
        %v4198 = vpack.c.b16 %v4084, %v4083
        %v4199 = vpack.c.b16 %v4086, %v4085
        %v4200 = vpack.c.b16 %v4088, %v4087
        %v4201 = vpack.c.b16 %v4090, %v4089
        %v4202 = vpack.c.b16 %v4092, %v4091
        %v4203 = vpack.c.b16 %v4094, %v4093
        %v4204 = vpack.c.b16 %v4096, %v4095
        %v4205 = vpack.c.b16 %v4098, %v4097
        %v4206 = vpack.c.b16 %v4100, %v4099
        %v4207 = vpack.c.b16 %v4102, %v4101
        %v4208 = vpack.c.b16 %v4104, %v4103
        %v4209 = vpack.c.b16 %v4106, %v4105
        %v4210 = vpack.c.b16 %v4108, %v4107
        %v4211 = vpack.c.b16 %v4110, %v4109
        %v4212 = vpack.c.b16 %v4112, %v4111
        %v4213 = vpack.c.b16 %v4114, %v4113
        %v4214 = vpack.c.b16 %v4116, %v4115
        %v4215 = vpack.c.b16 %v4118, %v4117
        %v4216 = vpack.c.b16 %v4120, %v4119
        %v4217 = vpack.c.b16 %v4122, %v4121
        %v4218 = vpack.c.b16 %v4124, %v4123
        %v4219 = vpack.c.b16 %v4126, %v4125
        %v4220 = vpack.c.b16 %v4128, %v4127
        %v4221 = vpack.c.b16 %v4130, %v4129
        %v4222 = vpack.c.b16 %v4132, %v4131
        %v4223 = vpack.c.b16 %v4134, %v4133
        %v4224 = vpack.c.b16 %v4136, %v4135
        %v4225 = vpack.c.b16 %v4138, %v4137
        %v4226 = vpack.c.b16 %v4140, %v4139
        %v4227 = vpack.c.b16 %v4142, %v4141
        %v4228 = vpack.c.b16 %v4144, %v4143
        %v4229 = vpack.c.b16 %v4146, %v4145
        %v4230 = vpack.c.b16 %v4148, %v4147
        %v4231 = vpack.c.b16 %v4150, %v4149
        %v4232 = vpack.c.b16 %v4152, %v4151
        %v4233 = vpack.c.b16 %v4154, %v4153
        %v4234 = vpack.c.b16 %v4156, %v4155
        %v4235 = vpack.c.b16 %v4158, %v4157
        %v4236 = vpack.c.b16 %v4160, %v4159
        %v4237 = vpack.c.b16 %v4162, %v4161
        %v4238 = vpack.c.b16 %v4164, %v4163
        %v4239 = vpack.c.b16 %v4166, %v4165
        %v4240 = vpack.c.b16 %v4168, %v4167
        %4313 = vmatpush.bf16.msra.mxu0 %v4176
        %4314 = vmatpush.bf16.msra.mxu0 %v4175
        %4315 = vmatpush.bf16.msra.mxu0 %v4174
        %4316 = vmatpush.bf16.msra.mxu0 %v4173
        %4317 = vmatpush.bf16.msra.mxu0 %v4172
        %4318 = vmatpush.bf16.msra.mxu0 %v4171
        %4319 = vmatpush.bf16.msra.mxu0 %v4170
        %4320 = vmatpush.bf16.msra.mxu0 %v4169
        %4321 = vmatmul.bf16.gmra.mxu0 %v3593
        %v4322 = vpop.f32.mrf.mxu0
        %v4323 = vadd.f32 0.0, %v4322
        %v4324 = vpop.f32.mrf.mxu0
        %v4325 = vadd.f32 0.0, %v4324
        %4326 = vmatmul.bf16.gmra.mxu0 %v3602
        %v4327 = vpop.f32.mrf.mxu0
        %v4328 = vadd.f32 0.0, %v4327
        %v4329 = vpop.f32.mrf.mxu0
        %v4330 = vadd.f32 0.0, %v4329
        %4331 = vmatmul.bf16.gmra.mxu0 %v3611
        %v4332 = vpop.f32.mrf.mxu0
        %v4333 = vadd.f32 0.0, %v4332
        %v4334 = vpop.f32.mrf.mxu0
        %v4335 = vadd.f32 0.0, %v4334
        %4336 = vmatmul.bf16.gmra.mxu0 %v3620
        %v4337 = vpop.f32.mrf.mxu0
        %v4338 = vadd.f32 0.0, %v4337
        %v4339 = vpop.f32.mrf.mxu0
        %v4340 = vadd.f32 0.0, %v4339
        %4341 = vmatmul.bf16.gmra.mxu0 %v3629
        %v4342 = vpop.f32.mrf.mxu0
        %v4343 = vadd.f32 0.0, %v4342
        %v4344 = vpop.f32.mrf.mxu0
        %v4345 = vadd.f32 0.0, %v4344
        %4346 = vmatmul.bf16.gmra.mxu0 %v3638
        %v4347 = vpop.f32.mrf.mxu0
        %v4348 = vadd.f32 0.0, %v4347
        %v4349 = vpop.f32.mrf.mxu0
        %v4350 = vadd.f32 0.0, %v4349
        %4351 = vmatmul.bf16.gmra.mxu0 %v3647
        %v4352 = vpop.f32.mrf.mxu0
        %v4353 = vadd.f32 0.0, %v4352
        %v4354 = vpop.f32.mrf.mxu0
        %v4355 = vadd.f32 0.0, %v4354
        %4356 = vmatmul.bf16.gmra.mxu0 %v3656
        %v4357 = vpop.f32.mrf.mxu0
        %v4358 = vadd.f32 0.0, %v4357
        %v4359 = vpop.f32.mrf.mxu0
        %v4360 = vadd.f32 0.0, %v4359
        %4361 = vmatmul.bf16.gmra.mxu0 %v3665
        %v4362 = vpop.f32.mrf.mxu0
        %v4363 = vadd.f32 0.0, %v4362
        %v4364 = vpop.f32.mrf.mxu0
        %v4365 = vadd.f32 0.0, %v4364
        %4366 = vmatmul.bf16.gmra.mxu0 %v3674
        %v4367 = vpop.f32.mrf.mxu0
        %v4368 = vadd.f32 0.0, %v4367
        %v4369 = vpop.f32.mrf.mxu0
        %v4370 = vadd.f32 0.0, %v4369
        %4371 = vmatmul.bf16.gmra.mxu0 %v3683
        %v4372 = vpop.f32.mrf.mxu0
        %v4373 = vadd.f32 0.0, %v4372
        %v4374 = vpop.f32.mrf.mxu0
        %v4375 = vadd.f32 0.0, %v4374
        %4376 = vmatmul.bf16.gmra.mxu0 %v3692
        %v4377 = vpop.f32.mrf.mxu0
        %v4378 = vadd.f32 0.0, %v4377
        %v4379 = vpop.f32.mrf.mxu0
        %v4380 = vadd.f32 0.0, %v4379
        %4381 = vmatmul.bf16.gmra.mxu0 %v3701
        %v4382 = vpop.f32.mrf.mxu0
        %v4383 = vadd.f32 0.0, %v4382
        %v4384 = vpop.f32.mrf.mxu0
        %v4385 = vadd.f32 0.0, %v4384
        %4386 = vmatmul.bf16.gmra.mxu0 %v3710
        %v4387 = vpop.f32.mrf.mxu0
        %v4388 = vadd.f32 0.0, %v4387
        %v4389 = vpop.f32.mrf.mxu0
        %v4390 = vadd.f32 0.0, %v4389
        %4391 = vmatmul.bf16.gmra.mxu0 %v3719
        %v4392 = vpop.f32.mrf.mxu0
        %v4393 = vadd.f32 0.0, %v4392
        %v4394 = vpop.f32.mrf.mxu0
        %v4395 = vadd.f32 0.0, %v4394
        %4396 = vmatmul.bf16.gmra.mxu0 %v3728
        %v4397 = vpop.f32.mrf.mxu0
        %v4398 = vadd.f32 0.0, %v4397
        %v4399 = vpop.f32.mrf.mxu0
        %v4400 = vadd.f32 0.0, %v4399
        %4401 = vdwg.mxu0
        %4402 = vmatpush.bf16.msra.mxu0 %v4184
        %4403 = vmatpush.bf16.msra.mxu0 %v4183
        %4404 = vmatpush.bf16.msra.mxu0 %v4182
        %4405 = vmatpush.bf16.msra.mxu0 %v4181
        %4406 = vmatpush.bf16.msra.mxu0 %v4180
        %4407 = vmatpush.bf16.msra.mxu0 %v4179
        %4408 = vmatpush.bf16.msra.mxu0 %v4178
        %4409 = vmatpush.bf16.msra.mxu0 %v4177
        %4410 = vmatmul.bf16.gmra.mxu0 %v3594
        %v4411 = vpop.f32.mrf.mxu0
        %v4412 = vadd.f32 %v4323, %v4411
        %v4413 = vpop.f32.mrf.mxu0
        %v4414 = vadd.f32 %v4325, %v4413
        %4415 = vmatmul.bf16.gmra.mxu0 %v3603
        %v4416 = vpop.f32.mrf.mxu0
        %v4417 = vadd.f32 %v4328, %v4416
        %v4418 = vpop.f32.mrf.mxu0
        %v4419 = vadd.f32 %v4330, %v4418
        %4420 = vmatmul.bf16.gmra.mxu0 %v3612
        %v4421 = vpop.f32.mrf.mxu0
        %v4422 = vadd.f32 %v4333, %v4421
        %v4423 = vpop.f32.mrf.mxu0
        %v4424 = vadd.f32 %v4335, %v4423
        %4425 = vmatmul.bf16.gmra.mxu0 %v3621
        %v4426 = vpop.f32.mrf.mxu0
        %v4427 = vadd.f32 %v4338, %v4426
        %v4428 = vpop.f32.mrf.mxu0
        %v4429 = vadd.f32 %v4340, %v4428
        %4430 = vmatmul.bf16.gmra.mxu0 %v3630
        %v4431 = vpop.f32.mrf.mxu0
        %v4432 = vadd.f32 %v4343, %v4431
        %v4433 = vpop.f32.mrf.mxu0
        %v4434 = vadd.f32 %v4345, %v4433
        %4435 = vmatmul.bf16.gmra.mxu0 %v3639
        %v4436 = vpop.f32.mrf.mxu0
        %v4437 = vadd.f32 %v4348, %v4436
        %v4438 = vpop.f32.mrf.mxu0
        %v4439 = vadd.f32 %v4350, %v4438
        %4440 = vmatmul.bf16.gmra.mxu0 %v3648
        %v4441 = vpop.f32.mrf.mxu0
        %v4442 = vadd.f32 %v4353, %v4441
        %v4443 = vpop.f32.mrf.mxu0
        %v4444 = vadd.f32 %v4355, %v4443
        %4445 = vmatmul.bf16.gmra.mxu0 %v3657
        %v4446 = vpop.f32.mrf.mxu0
        %v4447 = vadd.f32 %v4358, %v4446
        %v4448 = vpop.f32.mrf.mxu0
        %v4449 = vadd.f32 %v4360, %v4448
        %4450 = vmatmul.bf16.gmra.mxu0 %v3666
        %v4451 = vpop.f32.mrf.mxu0
        %v4452 = vadd.f32 %v4363, %v4451
        %v4453 = vpop.f32.mrf.mxu0
        %v4454 = vadd.f32 %v4365, %v4453
        %4455 = vmatmul.bf16.gmra.mxu0 %v3675
        %v4456 = vpop.f32.mrf.mxu0
        %v4457 = vadd.f32 %v4368, %v4456
        %v4458 = vpop.f32.mrf.mxu0
        %v4459 = vadd.f32 %v4370, %v4458
        %4460 = vmatmul.bf16.gmra.mxu0 %v3684
        %v4461 = vpop.f32.mrf.mxu0
        %v4462 = vadd.f32 %v4373, %v4461
        %v4463 = vpop.f32.mrf.mxu0
        %v4464 = vadd.f32 %v4375, %v4463
        %4465 = vmatmul.bf16.gmra.mxu0 %v3693
        %v4466 = vpop.f32.mrf.mxu0
        %v4467 = vadd.f32 %v4378, %v4466
        %v4468 = vpop.f32.mrf.mxu0
        %v4469 = vadd.f32 %v4380, %v4468
        %4470 = vmatmul.bf16.gmra.mxu0 %v3702
        %v4471 = vpop.f32.mrf.mxu0
        %v4472 = vadd.f32 %v4383, %v4471
        %v4473 = vpop.f32.mrf.mxu0
        %v4474 = vadd.f32 %v4385, %v4473
        %4475 = vmatmul.bf16.gmra.mxu0 %v3711
        %v4476 = vpop.f32.mrf.mxu0
        %v4477 = vadd.f32 %v4388, %v4476
        %v4478 = vpop.f32.mrf.mxu0
        %v4479 = vadd.f32 %v4390, %v4478
        %4480 = vmatmul.bf16.gmra.mxu0 %v3720
        %v4481 = vpop.f32.mrf.mxu0
        %v4482 = vadd.f32 %v4393, %v4481
        %v4483 = vpop.f32.mrf.mxu0
        %v4484 = vadd.f32 %v4395, %v4483
        %4485 = vmatmul.bf16.gmra.mxu0 %v3729
        %v4486 = vpop.f32.mrf.mxu0
        %v4487 = vadd.f32 %v4398, %v4486
        %v4488 = vpop.f32.mrf.mxu0
        %v4489 = vadd.f32 %v4400, %v4488
        %4490 = vdwg.mxu0
        %4491 = vmatpush.bf16.msra.mxu0 %v4192
        %4492 = vmatpush.bf16.msra.mxu0 %v4191
        %4493 = vmatpush.bf16.msra.mxu0 %v4190
        %4494 = vmatpush.bf16.msra.mxu0 %v4189
        %4495 = vmatpush.bf16.msra.mxu0 %v4188
        %4496 = vmatpush.bf16.msra.mxu0 %v4187
        %4497 = vmatpush.bf16.msra.mxu0 %v4186
        %4498 = vmatpush.bf16.msra.mxu0 %v4185
        %4499 = vmatmul.bf16.gmra.mxu0 %v3595
        %v4500 = vpop.f32.mrf.mxu0
        %v4501 = vadd.f32 %v4412, %v4500
        %v4502 = vpop.f32.mrf.mxu0
        %v4503 = vadd.f32 %v4414, %v4502
        %4504 = vmatmul.bf16.gmra.mxu0 %v3604
        %v4505 = vpop.f32.mrf.mxu0
        %v4506 = vadd.f32 %v4417, %v4505
        %v4507 = vpop.f32.mrf.mxu0
        %v4508 = vadd.f32 %v4419, %v4507
        %4509 = vmatmul.bf16.gmra.mxu0 %v3613
        %v4510 = vpop.f32.mrf.mxu0
        %v4511 = vadd.f32 %v4422, %v4510
        %v4512 = vpop.f32.mrf.mxu0
        %v4513 = vadd.f32 %v4424, %v4512
        %4514 = vmatmul.bf16.gmra.mxu0 %v3622
        %v4515 = vpop.f32.mrf.mxu0
        %v4516 = vadd.f32 %v4427, %v4515
        %v4517 = vpop.f32.mrf.mxu0
        %v4518 = vadd.f32 %v4429, %v4517
        %4519 = vmatmul.bf16.gmra.mxu0 %v3631
        %v4520 = vpop.f32.mrf.mxu0
        %v4521 = vadd.f32 %v4432, %v4520
        %v4522 = vpop.f32.mrf.mxu0
        %v4523 = vadd.f32 %v4434, %v4522
        %4524 = vmatmul.bf16.gmra.mxu0 %v3640
        %v4525 = vpop.f32.mrf.mxu0
        %v4526 = vadd.f32 %v4437, %v4525
        %v4527 = vpop.f32.mrf.mxu0
        %v4528 = vadd.f32 %v4439, %v4527
        %4529 = vmatmul.bf16.gmra.mxu0 %v3649
        %v4530 = vpop.f32.mrf.mxu0
        %v4531 = vadd.f32 %v4442, %v4530
        %v4532 = vpop.f32.mrf.mxu0
        %v4533 = vadd.f32 %v4444, %v4532
        %4534 = vmatmul.bf16.gmra.mxu0 %v3658
        %v4535 = vpop.f32.mrf.mxu0
        %v4536 = vadd.f32 %v4447, %v4535
        %v4537 = vpop.f32.mrf.mxu0
        %v4538 = vadd.f32 %v4449, %v4537
        %4539 = vmatmul.bf16.gmra.mxu0 %v3667
        %v4540 = vpop.f32.mrf.mxu0
        %v4541 = vadd.f32 %v4452, %v4540
        %v4542 = vpop.f32.mrf.mxu0
        %v4543 = vadd.f32 %v4454, %v4542
        %4544 = vmatmul.bf16.gmra.mxu0 %v3676
        %v4545 = vpop.f32.mrf.mxu0
        %v4546 = vadd.f32 %v4457, %v4545
        %v4547 = vpop.f32.mrf.mxu0
        %v4548 = vadd.f32 %v4459, %v4547
        %4549 = vmatmul.bf16.gmra.mxu0 %v3685
        %v4550 = vpop.f32.mrf.mxu0
        %v4551 = vadd.f32 %v4462, %v4550
        %v4552 = vpop.f32.mrf.mxu0
        %v4553 = vadd.f32 %v4464, %v4552
        %4554 = vmatmul.bf16.gmra.mxu0 %v3694
        %v4555 = vpop.f32.mrf.mxu0
        %v4556 = vadd.f32 %v4467, %v4555
        %v4557 = vpop.f32.mrf.mxu0
        %v4558 = vadd.f32 %v4469, %v4557
        %4559 = vmatmul.bf16.gmra.mxu0 %v3703
        %v4560 = vpop.f32.mrf.mxu0
        %v4561 = vadd.f32 %v4472, %v4560
        %v4562 = vpop.f32.mrf.mxu0
        %v4563 = vadd.f32 %v4474, %v4562
        %4564 = vmatmul.bf16.gmra.mxu0 %v3712
        %v4565 = vpop.f32.mrf.mxu0
        %v4566 = vadd.f32 %v4477, %v4565
        %v4567 = vpop.f32.mrf.mxu0
        %v4568 = vadd.f32 %v4479, %v4567
        %4569 = vmatmul.bf16.gmra.mxu0 %v3721
        %v4570 = vpop.f32.mrf.mxu0
        %v4571 = vadd.f32 %v4482, %v4570
        %v4572 = vpop.f32.mrf.mxu0
        %v4573 = vadd.f32 %v4484, %v4572
        %4574 = vmatmul.bf16.gmra.mxu0 %v3730
        %v4575 = vpop.f32.mrf.mxu0
        %v4576 = vadd.f32 %v4487, %v4575
        %v4577 = vpop.f32.mrf.mxu0
        %v4578 = vadd.f32 %v4489, %v4577
        %4579 = vdwg.mxu0
        %4580 = vmatpush.bf16.msra.mxu0 %v4200
        %4581 = vmatpush.bf16.msra.mxu0 %v4199
        %4582 = vmatpush.bf16.msra.mxu0 %v4198
        %4583 = vmatpush.bf16.msra.mxu0 %v4197
        %4584 = vmatpush.bf16.msra.mxu0 %v4196
        %4585 = vmatpush.bf16.msra.mxu0 %v4195
        %4586 = vmatpush.bf16.msra.mxu0 %v4194
        %4587 = vmatpush.bf16.msra.mxu0 %v4193
        %4588 = vmatmul.bf16.gmra.mxu0 %v3596
        %v4589 = vpop.f32.mrf.mxu0
        %v4590 = vadd.f32 %v4501, %v4589
        %v4591 = vpop.f32.mrf.mxu0
        %v4592 = vadd.f32 %v4503, %v4591
        %4593 = vmatmul.bf16.gmra.mxu0 %v3605
        %v4594 = vpop.f32.mrf.mxu0
        %v4595 = vadd.f32 %v4506, %v4594
        %v4596 = vpop.f32.mrf.mxu0
        %v4597 = vadd.f32 %v4508, %v4596
        %4598 = vmatmul.bf16.gmra.mxu0 %v3614
        %v4599 = vpop.f32.mrf.mxu0
        %v4600 = vadd.f32 %v4511, %v4599
        %v4601 = vpop.f32.mrf.mxu0
        %v4602 = vadd.f32 %v4513, %v4601
        %4603 = vmatmul.bf16.gmra.mxu0 %v3623
        %v4604 = vpop.f32.mrf.mxu0
        %v4605 = vadd.f32 %v4516, %v4604
        %v4606 = vpop.f32.mrf.mxu0
        %v4607 = vadd.f32 %v4518, %v4606
        %4608 = vmatmul.bf16.gmra.mxu0 %v3632
        %v4609 = vpop.f32.mrf.mxu0
        %v4610 = vadd.f32 %v4521, %v4609
        %v4611 = vpop.f32.mrf.mxu0
        %v4612 = vadd.f32 %v4523, %v4611
        %4613 = vmatmul.bf16.gmra.mxu0 %v3641
        %v4614 = vpop.f32.mrf.mxu0
        %v4615 = vadd.f32 %v4526, %v4614
        %v4616 = vpop.f32.mrf.mxu0
        %v4617 = vadd.f32 %v4528, %v4616
        %4618 = vmatmul.bf16.gmra.mxu0 %v3650
        %v4619 = vpop.f32.mrf.mxu0
        %v4620 = vadd.f32 %v4531, %v4619
        %v4621 = vpop.f32.mrf.mxu0
        %v4622 = vadd.f32 %v4533, %v4621
        %4623 = vmatmul.bf16.gmra.mxu0 %v3659
        %v4624 = vpop.f32.mrf.mxu0
        %v4625 = vadd.f32 %v4536, %v4624
        %v4626 = vpop.f32.mrf.mxu0
        %v4627 = vadd.f32 %v4538, %v4626
        %4628 = vmatmul.bf16.gmra.mxu0 %v3668
        %v4629 = vpop.f32.mrf.mxu0
        %v4630 = vadd.f32 %v4541, %v4629
        %v4631 = vpop.f32.mrf.mxu0
        %v4632 = vadd.f32 %v4543, %v4631
        %4633 = vmatmul.bf16.gmra.mxu0 %v3677
        %v4634 = vpop.f32.mrf.mxu0
        %v4635 = vadd.f32 %v4546, %v4634
        %v4636 = vpop.f32.mrf.mxu0
        %v4637 = vadd.f32 %v4548, %v4636
        %4638 = vmatmul.bf16.gmra.mxu0 %v3686
        %v4639 = vpop.f32.mrf.mxu0
        %v4640 = vadd.f32 %v4551, %v4639
        %v4641 = vpop.f32.mrf.mxu0
        %v4642 = vadd.f32 %v4553, %v4641
        %4643 = vmatmul.bf16.gmra.mxu0 %v3695
        %v4644 = vpop.f32.mrf.mxu0
        %v4645 = vadd.f32 %v4556, %v4644
        %v4646 = vpop.f32.mrf.mxu0
        %v4647 = vadd.f32 %v4558, %v4646
        %4648 = vmatmul.bf16.gmra.mxu0 %v3704
        %v4649 = vpop.f32.mrf.mxu0
        %v4650 = vadd.f32 %v4561, %v4649
        %v4651 = vpop.f32.mrf.mxu0
        %v4652 = vadd.f32 %v4563, %v4651
        %4653 = vmatmul.bf16.gmra.mxu0 %v3713
        %v4654 = vpop.f32.mrf.mxu0
        %v4655 = vadd.f32 %v4566, %v4654
        %v4656 = vpop.f32.mrf.mxu0
        %v4657 = vadd.f32 %v4568, %v4656
        %4658 = vmatmul.bf16.gmra.mxu0 %v3722
        %v4659 = vpop.f32.mrf.mxu0
        %v4660 = vadd.f32 %v4571, %v4659
        %v4661 = vpop.f32.mrf.mxu0
        %v4662 = vadd.f32 %v4573, %v4661
        %4663 = vmatmul.bf16.gmra.mxu0 %v3731
        %v4664 = vpop.f32.mrf.mxu0
        %v4665 = vadd.f32 %v4576, %v4664
        %v4666 = vpop.f32.mrf.mxu0
        %v4667 = vadd.f32 %v4578, %v4666
        %4668 = vdwg.mxu0
        %4669 = vmatpush.bf16.msra.mxu0 %v4208
        %4670 = vmatpush.bf16.msra.mxu0 %v4207
        %4671 = vmatpush.bf16.msra.mxu0 %v4206
        %4672 = vmatpush.bf16.msra.mxu0 %v4205
        %4673 = vmatpush.bf16.msra.mxu0 %v4204
        %4674 = vmatpush.bf16.msra.mxu0 %v4203
        %4675 = vmatpush.bf16.msra.mxu0 %v4202
        %4676 = vmatpush.bf16.msra.mxu0 %v4201
        %4677 = vmatmul.bf16.gmra.mxu0 %v3597
        %v4678 = vpop.f32.mrf.mxu0
        %v4679 = vadd.f32 %v4590, %v4678
        %v4680 = vpop.f32.mrf.mxu0
        %v4681 = vadd.f32 %v4592, %v4680
        %4682 = vmatmul.bf16.gmra.mxu0 %v3606
        %v4683 = vpop.f32.mrf.mxu0
        %v4684 = vadd.f32 %v4595, %v4683
        %v4685 = vpop.f32.mrf.mxu0
        %v4686 = vadd.f32 %v4597, %v4685
        %4687 = vmatmul.bf16.gmra.mxu0 %v3615
        %v4688 = vpop.f32.mrf.mxu0
        %v4689 = vadd.f32 %v4600, %v4688
        %v4690 = vpop.f32.mrf.mxu0
        %v4691 = vadd.f32 %v4602, %v4690
        %4692 = vmatmul.bf16.gmra.mxu0 %v3624
        %v4693 = vpop.f32.mrf.mxu0
        %v4694 = vadd.f32 %v4605, %v4693
        %v4695 = vpop.f32.mrf.mxu0
        %v4696 = vadd.f32 %v4607, %v4695
        %4697 = vmatmul.bf16.gmra.mxu0 %v3633
        %v4698 = vpop.f32.mrf.mxu0
        %v4699 = vadd.f32 %v4610, %v4698
        %v4700 = vpop.f32.mrf.mxu0
        %v4701 = vadd.f32 %v4612, %v4700
        %4702 = vmatmul.bf16.gmra.mxu0 %v3642
        %v4703 = vpop.f32.mrf.mxu0
        %v4704 = vadd.f32 %v4615, %v4703
        %v4705 = vpop.f32.mrf.mxu0
        %v4706 = vadd.f32 %v4617, %v4705
        %4707 = vmatmul.bf16.gmra.mxu0 %v3651
        %v4708 = vpop.f32.mrf.mxu0
        %v4709 = vadd.f32 %v4620, %v4708
        %v4710 = vpop.f32.mrf.mxu0
        %v4711 = vadd.f32 %v4622, %v4710
        %4712 = vmatmul.bf16.gmra.mxu0 %v3660
        %v4713 = vpop.f32.mrf.mxu0
        %v4714 = vadd.f32 %v4625, %v4713
        %v4715 = vpop.f32.mrf.mxu0
        %v4716 = vadd.f32 %v4627, %v4715
        %4717 = vmatmul.bf16.gmra.mxu0 %v3669
        %v4718 = vpop.f32.mrf.mxu0
        %v4719 = vadd.f32 %v4630, %v4718
        %v4720 = vpop.f32.mrf.mxu0
        %v4721 = vadd.f32 %v4632, %v4720
        %4722 = vmatmul.bf16.gmra.mxu0 %v3678
        %v4723 = vpop.f32.mrf.mxu0
        %v4724 = vadd.f32 %v4635, %v4723
        %v4725 = vpop.f32.mrf.mxu0
        %v4726 = vadd.f32 %v4637, %v4725
        %4727 = vmatmul.bf16.gmra.mxu0 %v3687
        %v4728 = vpop.f32.mrf.mxu0
        %v4729 = vadd.f32 %v4640, %v4728
        %v4730 = vpop.f32.mrf.mxu0
        %v4731 = vadd.f32 %v4642, %v4730
        %4732 = vmatmul.bf16.gmra.mxu0 %v3696
        %v4733 = vpop.f32.mrf.mxu0
        %v4734 = vadd.f32 %v4645, %v4733
        %v4735 = vpop.f32.mrf.mxu0
        %v4736 = vadd.f32 %v4647, %v4735
        %4737 = vmatmul.bf16.gmra.mxu0 %v3705
        %v4738 = vpop.f32.mrf.mxu0
        %v4739 = vadd.f32 %v4650, %v4738
        %v4740 = vpop.f32.mrf.mxu0
        %v4741 = vadd.f32 %v4652, %v4740
        %4742 = vmatmul.bf16.gmra.mxu0 %v3714
        %v4743 = vpop.f32.mrf.mxu0
        %v4744 = vadd.f32 %v4655, %v4743
        %v4745 = vpop.f32.mrf.mxu0
        %v4746 = vadd.f32 %v4657, %v4745
        %4747 = vmatmul.bf16.gmra.mxu0 %v3723
        %v4748 = vpop.f32.mrf.mxu0
        %v4749 = vadd.f32 %v4660, %v4748
        %v4750 = vpop.f32.mrf.mxu0
        %v4751 = vadd.f32 %v4662, %v4750
        %4752 = vmatmul.bf16.gmra.mxu0 %v3732
        %v4753 = vpop.f32.mrf.mxu0
        %v4754 = vadd.f32 %v4665, %v4753
        %v4755 = vpop.f32.mrf.mxu0
        %v4756 = vadd.f32 %v4667, %v4755
        %4757 = vdwg.mxu0
        %4758 = vmatpush.bf16.msra.mxu0 %v4216
        %4759 = vmatpush.bf16.msra.mxu0 %v4215
        %4760 = vmatpush.bf16.msra.mxu0 %v4214
        %4761 = vmatpush.bf16.msra.mxu0 %v4213
        %4762 = vmatpush.bf16.msra.mxu0 %v4212
        %4763 = vmatpush.bf16.msra.mxu0 %v4211
        %4764 = vmatpush.bf16.msra.mxu0 %v4210
        %4765 = vmatpush.bf16.msra.mxu0 %v4209
        %4766 = vmatmul.bf16.gmra.mxu0 %v3598
        %v4767 = vpop.f32.mrf.mxu0
        %v4768 = vadd.f32 %v4679, %v4767
        %v4769 = vpop.f32.mrf.mxu0
        %v4770 = vadd.f32 %v4681, %v4769
        %4771 = vmatmul.bf16.gmra.mxu0 %v3607
        %v4772 = vpop.f32.mrf.mxu0
        %v4773 = vadd.f32 %v4684, %v4772
        %v4774 = vpop.f32.mrf.mxu0
        %v4775 = vadd.f32 %v4686, %v4774
        %4776 = vmatmul.bf16.gmra.mxu0 %v3616
        %v4777 = vpop.f32.mrf.mxu0
        %v4778 = vadd.f32 %v4689, %v4777
        %v4779 = vpop.f32.mrf.mxu0
        %v4780 = vadd.f32 %v4691, %v4779
        %4781 = vmatmul.bf16.gmra.mxu0 %v3625
        %v4782 = vpop.f32.mrf.mxu0
        %v4783 = vadd.f32 %v4694, %v4782
        %v4784 = vpop.f32.mrf.mxu0
        %v4785 = vadd.f32 %v4696, %v4784
        %4786 = vmatmul.bf16.gmra.mxu0 %v3634
        %v4787 = vpop.f32.mrf.mxu0
        %v4788 = vadd.f32 %v4699, %v4787
        %v4789 = vpop.f32.mrf.mxu0
        %v4790 = vadd.f32 %v4701, %v4789
        %4791 = vmatmul.bf16.gmra.mxu0 %v3643
        %v4792 = vpop.f32.mrf.mxu0
        %v4793 = vadd.f32 %v4704, %v4792
        %v4794 = vpop.f32.mrf.mxu0
        %v4795 = vadd.f32 %v4706, %v4794
        %4796 = vmatmul.bf16.gmra.mxu0 %v3652
        %v4797 = vpop.f32.mrf.mxu0
        %v4798 = vadd.f32 %v4709, %v4797
        %v4799 = vpop.f32.mrf.mxu0
        %v4800 = vadd.f32 %v4711, %v4799
        %4801 = vmatmul.bf16.gmra.mxu0 %v3661
        %v4802 = vpop.f32.mrf.mxu0
        %v4803 = vadd.f32 %v4714, %v4802
        %v4804 = vpop.f32.mrf.mxu0
        %v4805 = vadd.f32 %v4716, %v4804
        %4806 = vmatmul.bf16.gmra.mxu0 %v3670
        %v4807 = vpop.f32.mrf.mxu0
        %v4808 = vadd.f32 %v4719, %v4807
        %v4809 = vpop.f32.mrf.mxu0
        %v4810 = vadd.f32 %v4721, %v4809
        %4811 = vmatmul.bf16.gmra.mxu0 %v3679
        %v4812 = vpop.f32.mrf.mxu0
        %v4813 = vadd.f32 %v4724, %v4812
        %v4814 = vpop.f32.mrf.mxu0
        %v4815 = vadd.f32 %v4726, %v4814
        %4816 = vmatmul.bf16.gmra.mxu0 %v3688
        %v4817 = vpop.f32.mrf.mxu0
        %v4818 = vadd.f32 %v4729, %v4817
        %v4819 = vpop.f32.mrf.mxu0
        %v4820 = vadd.f32 %v4731, %v4819
        %4821 = vmatmul.bf16.gmra.mxu0 %v3697
        %v4822 = vpop.f32.mrf.mxu0
        %v4823 = vadd.f32 %v4734, %v4822
        %v4824 = vpop.f32.mrf.mxu0
        %v4825 = vadd.f32 %v4736, %v4824
        %4826 = vmatmul.bf16.gmra.mxu0 %v3706
        %v4827 = vpop.f32.mrf.mxu0
        %v4828 = vadd.f32 %v4739, %v4827
        %v4829 = vpop.f32.mrf.mxu0
        %v4830 = vadd.f32 %v4741, %v4829
        %4831 = vmatmul.bf16.gmra.mxu0 %v3715
        %v4832 = vpop.f32.mrf.mxu0
        %v4833 = vadd.f32 %v4744, %v4832
        %v4834 = vpop.f32.mrf.mxu0
        %v4835 = vadd.f32 %v4746, %v4834
        %4836 = vmatmul.bf16.gmra.mxu0 %v3724
        %v4837 = vpop.f32.mrf.mxu0
        %v4838 = vadd.f32 %v4749, %v4837
        %v4839 = vpop.f32.mrf.mxu0
        %v4840 = vadd.f32 %v4751, %v4839
        %4841 = vmatmul.bf16.gmra.mxu0 %v3733
        %v4842 = vpop.f32.mrf.mxu0
        %v4843 = vadd.f32 %v4754, %v4842
        %v4844 = vpop.f32.mrf.mxu0
        %v4845 = vadd.f32 %v4756, %v4844
        %4846 = vdwg.mxu0
        %4847 = vmatpush.bf16.msra.mxu0 %v4224
        %4848 = vmatpush.bf16.msra.mxu0 %v4223
        %4849 = vmatpush.bf16.msra.mxu0 %v4222
        %4850 = vmatpush.bf16.msra.mxu0 %v4221
        %4851 = vmatpush.bf16.msra.mxu0 %v4220
        %4852 = vmatpush.bf16.msra.mxu0 %v4219
        %4853 = vmatpush.bf16.msra.mxu0 %v4218
        %4854 = vmatpush.bf16.msra.mxu0 %v4217
        %4855 = vmatmul.bf16.gmra.mxu0 %v3599
        %v4856 = vpop.f32.mrf.mxu0
        %v4857 = vadd.f32 %v4768, %v4856
        %v4858 = vpop.f32.mrf.mxu0
        %v4859 = vadd.f32 %v4770, %v4858
        %4860 = vmatmul.bf16.gmra.mxu0 %v3608
        %v4861 = vpop.f32.mrf.mxu0
        %v4862 = vadd.f32 %v4773, %v4861
        %v4863 = vpop.f32.mrf.mxu0
        %v4864 = vadd.f32 %v4775, %v4863
        %4865 = vmatmul.bf16.gmra.mxu0 %v3617
        %v4866 = vpop.f32.mrf.mxu0
        %v4867 = vadd.f32 %v4778, %v4866
        %v4868 = vpop.f32.mrf.mxu0
        %v4869 = vadd.f32 %v4780, %v4868
        %4870 = vmatmul.bf16.gmra.mxu0 %v3626
        %v4871 = vpop.f32.mrf.mxu0
        %v4872 = vadd.f32 %v4783, %v4871
        %v4873 = vpop.f32.mrf.mxu0
        %v4874 = vadd.f32 %v4785, %v4873
        %4875 = vmatmul.bf16.gmra.mxu0 %v3635
        %v4876 = vpop.f32.mrf.mxu0
        %v4877 = vadd.f32 %v4788, %v4876
        %v4878 = vpop.f32.mrf.mxu0
        %v4879 = vadd.f32 %v4790, %v4878
        %4880 = vmatmul.bf16.gmra.mxu0 %v3644
        %v4881 = vpop.f32.mrf.mxu0
        %v4882 = vadd.f32 %v4793, %v4881
        %v4883 = vpop.f32.mrf.mxu0
        %v4884 = vadd.f32 %v4795, %v4883
        %4885 = vmatmul.bf16.gmra.mxu0 %v3653
        %v4886 = vpop.f32.mrf.mxu0
        %v4887 = vadd.f32 %v4798, %v4886
        %v4888 = vpop.f32.mrf.mxu0
        %v4889 = vadd.f32 %v4800, %v4888
        %4890 = vmatmul.bf16.gmra.mxu0 %v3662
        %v4891 = vpop.f32.mrf.mxu0
        %v4892 = vadd.f32 %v4803, %v4891
        %v4893 = vpop.f32.mrf.mxu0
        %v4894 = vadd.f32 %v4805, %v4893
        %4895 = vmatmul.bf16.gmra.mxu0 %v3671
        %v4896 = vpop.f32.mrf.mxu0
        %v4897 = vadd.f32 %v4808, %v4896
        %v4898 = vpop.f32.mrf.mxu0
        %v4899 = vadd.f32 %v4810, %v4898
        %4900 = vmatmul.bf16.gmra.mxu0 %v3680
        %v4901 = vpop.f32.mrf.mxu0
        %v4902 = vadd.f32 %v4813, %v4901
        %v4903 = vpop.f32.mrf.mxu0
        %v4904 = vadd.f32 %v4815, %v4903
        %4905 = vmatmul.bf16.gmra.mxu0 %v3689
        %v4906 = vpop.f32.mrf.mxu0
        %v4907 = vadd.f32 %v4818, %v4906
        %v4908 = vpop.f32.mrf.mxu0
        %v4909 = vadd.f32 %v4820, %v4908
        %4910 = vmatmul.bf16.gmra.mxu0 %v3698
        %v4911 = vpop.f32.mrf.mxu0
        %v4912 = vadd.f32 %v4823, %v4911
        %v4913 = vpop.f32.mrf.mxu0
        %v4914 = vadd.f32 %v4825, %v4913
        %4915 = vmatmul.bf16.gmra.mxu0 %v3707
        %v4916 = vpop.f32.mrf.mxu0
        %v4917 = vadd.f32 %v4828, %v4916
        %v4918 = vpop.f32.mrf.mxu0
        %v4919 = vadd.f32 %v4830, %v4918
        %4920 = vmatmul.bf16.gmra.mxu0 %v3716
        %v4921 = vpop.f32.mrf.mxu0
        %v4922 = vadd.f32 %v4833, %v4921
        %v4923 = vpop.f32.mrf.mxu0
        %v4924 = vadd.f32 %v4835, %v4923
        %4925 = vmatmul.bf16.gmra.mxu0 %v3725
        %v4926 = vpop.f32.mrf.mxu0
        %v4927 = vadd.f32 %v4838, %v4926
        %v4928 = vpop.f32.mrf.mxu0
        %v4929 = vadd.f32 %v4840, %v4928
        %4930 = vmatmul.bf16.gmra.mxu0 %v3734
        %v4931 = vpop.f32.mrf.mxu0
        %v4932 = vadd.f32 %v4843, %v4931
        %v4933 = vpop.f32.mrf.mxu0
        %v4934 = vadd.f32 %v4845, %v4933
        %4935 = vdwg.mxu0
        %4936 = vmatpush.bf16.msra.mxu0 %v4232
        %4937 = vmatpush.bf16.msra.mxu0 %v4231
        %4938 = vmatpush.bf16.msra.mxu0 %v4230
        %4939 = vmatpush.bf16.msra.mxu0 %v4229
        %4940 = vmatpush.bf16.msra.mxu0 %v4228
        %4941 = vmatpush.bf16.msra.mxu0 %v4227
        %4942 = vmatpush.bf16.msra.mxu0 %v4226
        %4943 = vmatpush.bf16.msra.mxu0 %v4225
        %4944 = vmatmul.bf16.gmra.mxu0 %v3600
        %v4945 = vpop.f32.mrf.mxu0
        %v4946 = vadd.f32 %v4857, %v4945
        %v4947 = vpop.f32.mrf.mxu0
        %v4948 = vadd.f32 %v4859, %v4947
        %4949 = vmatmul.bf16.gmra.mxu0 %v3609
        %v4950 = vpop.f32.mrf.mxu0
        %v4951 = vadd.f32 %v4862, %v4950
        %v4952 = vpop.f32.mrf.mxu0
        %v4953 = vadd.f32 %v4864, %v4952
        %4954 = vmatmul.bf16.gmra.mxu0 %v3618
        %v4955 = vpop.f32.mrf.mxu0
        %v4956 = vadd.f32 %v4867, %v4955
        %v4957 = vpop.f32.mrf.mxu0
        %v4958 = vadd.f32 %v4869, %v4957
        %4959 = vmatmul.bf16.gmra.mxu0 %v3627
        %v4960 = vpop.f32.mrf.mxu0
        %v4961 = vadd.f32 %v4872, %v4960
        %v4962 = vpop.f32.mrf.mxu0
        %v4963 = vadd.f32 %v4874, %v4962
        %4964 = vmatmul.bf16.gmra.mxu0 %v3636
        %v4965 = vpop.f32.mrf.mxu0
        %v4966 = vadd.f32 %v4877, %v4965
        %v4967 = vpop.f32.mrf.mxu0
        %v4968 = vadd.f32 %v4879, %v4967
        %4969 = vmatmul.bf16.gmra.mxu0 %v3645
        %v4970 = vpop.f32.mrf.mxu0
        %v4971 = vadd.f32 %v4882, %v4970
        %v4972 = vpop.f32.mrf.mxu0
        %v4973 = vadd.f32 %v4884, %v4972
        %4974 = vmatmul.bf16.gmra.mxu0 %v3654
        %v4975 = vpop.f32.mrf.mxu0
        %v4976 = vadd.f32 %v4887, %v4975
        %v4977 = vpop.f32.mrf.mxu0
        %v4978 = vadd.f32 %v4889, %v4977
        %4979 = vmatmul.bf16.gmra.mxu0 %v3663
        %v4980 = vpop.f32.mrf.mxu0
        %v4981 = vadd.f32 %v4892, %v4980
        %v4982 = vpop.f32.mrf.mxu0
        %v4983 = vadd.f32 %v4894, %v4982
        %4984 = vmatmul.bf16.gmra.mxu0 %v3672
        %v4985 = vpop.f32.mrf.mxu0
        %v4986 = vadd.f32 %v4897, %v4985
        %v4987 = vpop.f32.mrf.mxu0
        %v4988 = vadd.f32 %v4899, %v4987
        %4989 = vmatmul.bf16.gmra.mxu0 %v3681
        %v4990 = vpop.f32.mrf.mxu0
        %v4991 = vadd.f32 %v4902, %v4990
        %v4992 = vpop.f32.mrf.mxu0
        %v4993 = vadd.f32 %v4904, %v4992
        %4994 = vmatmul.bf16.gmra.mxu0 %v3690
        %v4995 = vpop.f32.mrf.mxu0
        %v4996 = vadd.f32 %v4907, %v4995
        %v4997 = vpop.f32.mrf.mxu0
        %v4998 = vadd.f32 %v4909, %v4997
        %4999 = vmatmul.bf16.gmra.mxu0 %v3699
        %v5000 = vpop.f32.mrf.mxu0
        %v5001 = vadd.f32 %v4912, %v5000
        %v5002 = vpop.f32.mrf.mxu0
        %v5003 = vadd.f32 %v4914, %v5002
        %5004 = vmatmul.bf16.gmra.mxu0 %v3708
        %v5005 = vpop.f32.mrf.mxu0
        %v5006 = vadd.f32 %v4917, %v5005
        %v5007 = vpop.f32.mrf.mxu0
        %v5008 = vadd.f32 %v4919, %v5007
        %5009 = vmatmul.bf16.gmra.mxu0 %v3717
        %v5010 = vpop.f32.mrf.mxu0
        %v5011 = vadd.f32 %v4922, %v5010
        %v5012 = vpop.f32.mrf.mxu0
        %v5013 = vadd.f32 %v4924, %v5012
        %5014 = vmatmul.bf16.gmra.mxu0 %v3726
        %v5015 = vpop.f32.mrf.mxu0
        %v5016 = vadd.f32 %v4927, %v5015
        %v5017 = vpop.f32.mrf.mxu0
        %v5018 = vadd.f32 %v4929, %v5017
        %5019 = vmatmul.bf16.gmra.mxu0 %v3735
        %v5020 = vpop.f32.mrf.mxu0
        %v5021 = vadd.f32 %v4932, %v5020
        %v5022 = vpop.f32.mrf.mxu0
        %v5023 = vadd.f32 %v4934, %v5022
        %5024 = vdwg.mxu0
        %5025 = vmatpush.bf16.msra.mxu0 %v4240
        %5026 = vmatpush.bf16.msra.mxu0 %v4239
        %5027 = vmatpush.bf16.msra.mxu0 %v4238
        %5028 = vmatpush.bf16.msra.mxu0 %v4237
        %5029 = vmatpush.bf16.msra.mxu0 %v4236
        %5030 = vmatpush.bf16.msra.mxu0 %v4235
        %5031 = vmatpush.bf16.msra.mxu0 %v4234
        %5032 = vmatpush.bf16.msra.mxu0 %v4233
        %5033 = vmatmul.bf16.gmra.mxu0 %v3601
        %v5034 = vpop.f32.mrf.mxu0
        %v5035 = vadd.f32 %v4946, %v5034
        %v5036 = vpop.f32.mrf.mxu0
        %v5037 = vadd.f32 %v4948, %v5036
        %5038 = vmatmul.bf16.gmra.mxu0 %v3610
        %v5039 = vpop.f32.mrf.mxu0
        %v5040 = vadd.f32 %v4951, %v5039
        %v5041 = vpop.f32.mrf.mxu0
        %v5042 = vadd.f32 %v4953, %v5041
        %5043 = vmatmul.bf16.gmra.mxu0 %v3619
        %v5044 = vpop.f32.mrf.mxu0
        %v5045 = vadd.f32 %v4956, %v5044
        %v5046 = vpop.f32.mrf.mxu0
        %v5047 = vadd.f32 %v4958, %v5046
        %5048 = vmatmul.bf16.gmra.mxu0 %v3628
        %v5049 = vpop.f32.mrf.mxu0
        %v5050 = vadd.f32 %v4961, %v5049
        %v5051 = vpop.f32.mrf.mxu0
        %v5052 = vadd.f32 %v4963, %v5051
        %5053 = vmatmul.bf16.gmra.mxu0 %v3637
        %v5054 = vpop.f32.mrf.mxu0
        %v5055 = vadd.f32 %v4966, %v5054
        %v5056 = vpop.f32.mrf.mxu0
        %v5057 = vadd.f32 %v4968, %v5056
        %5058 = vmatmul.bf16.gmra.mxu0 %v3646
        %v5059 = vpop.f32.mrf.mxu0
        %v5060 = vadd.f32 %v4971, %v5059
        %v5061 = vpop.f32.mrf.mxu0
        %v5062 = vadd.f32 %v4973, %v5061
        %5063 = vmatmul.bf16.gmra.mxu0 %v3655
        %v5064 = vpop.f32.mrf.mxu0
        %v5065 = vadd.f32 %v4976, %v5064
        %v5066 = vpop.f32.mrf.mxu0
        %v5067 = vadd.f32 %v4978, %v5066
        %5068 = vmatmul.bf16.gmra.mxu0 %v3664
        %v5069 = vpop.f32.mrf.mxu0
        %v5070 = vadd.f32 %v4981, %v5069
        %v5071 = vpop.f32.mrf.mxu0
        %v5072 = vadd.f32 %v4983, %v5071
        %5073 = vmatmul.bf16.gmra.mxu0 %v3673
        %v5074 = vpop.f32.mrf.mxu0
        %v5075 = vadd.f32 %v4986, %v5074
        %v5076 = vpop.f32.mrf.mxu0
        %v5077 = vadd.f32 %v4988, %v5076
        %5078 = vmatmul.bf16.gmra.mxu0 %v3682
        %v5079 = vpop.f32.mrf.mxu0
        %v5080 = vadd.f32 %v4991, %v5079
        %v5081 = vpop.f32.mrf.mxu0
        %v5082 = vadd.f32 %v4993, %v5081
        %5083 = vmatmul.bf16.gmra.mxu0 %v3691
        %v5084 = vpop.f32.mrf.mxu0
        %v5085 = vadd.f32 %v4996, %v5084
        %v5086 = vpop.f32.mrf.mxu0
        %v5087 = vadd.f32 %v4998, %v5086
        %5088 = vmatmul.bf16.gmra.mxu0 %v3700
        %v5089 = vpop.f32.mrf.mxu0
        %v5090 = vadd.f32 %v5001, %v5089
        %v5091 = vpop.f32.mrf.mxu0
        %v5092 = vadd.f32 %v5003, %v5091
        %5093 = vmatmul.bf16.gmra.mxu0 %v3709
        %v5094 = vpop.f32.mrf.mxu0
        %v5095 = vadd.f32 %v5006, %v5094
        %v5096 = vpop.f32.mrf.mxu0
        %v5097 = vadd.f32 %v5008, %v5096
        %5098 = vmatmul.bf16.gmra.mxu0 %v3718
        %v5099 = vpop.f32.mrf.mxu0
        %v5100 = vadd.f32 %v5011, %v5099
        %v5101 = vpop.f32.mrf.mxu0
        %v5102 = vadd.f32 %v5013, %v5101
        %5103 = vmatmul.bf16.gmra.mxu0 %v3727
        %v5104 = vpop.f32.mrf.mxu0
        %v5105 = vadd.f32 %v5016, %v5104
        %v5106 = vpop.f32.mrf.mxu0
        %v5107 = vadd.f32 %v5018, %v5106
        %5108 = vmatmul.bf16.gmra.mxu0 %v3736
        %v5109 = vpop.f32.mrf.mxu0
        %v5110 = vadd.f32 %v5021, %v5109
        %v5111 = vpop.f32.mrf.mxu0
        %v5112 = vadd.f32 %v5023, %v5111
        %5113 = vdwg.mxu0
        %v5115 = vperm.slane %v333, 0
        %v5117 = vmul.f32 %v5035, %v5115
        %v5118 = vmul.f32 %v5037, %v5115
        %v5119 = vmul.f32 %v5040, %v5115
        %v5120 = vmul.f32 %v5042, %v5115
        %v5121 = vmul.f32 %v5045, %v5115
        %v5122 = vmul.f32 %v5047, %v5115
        %v5123 = vmul.f32 %v5050, %v5115
        %v5124 = vmul.f32 %v5052, %v5115
        %v5125 = vmul.f32 %v5055, %v5115
        %v5126 = vmul.f32 %v5057, %v5115
        %v5127 = vmul.f32 %v5060, %v5115
        %v5128 = vmul.f32 %v5062, %v5115
        %v5129 = vmul.f32 %v5065, %v5115
        %v5130 = vmul.f32 %v5067, %v5115
        %v5131 = vmul.f32 %v5070, %v5115
        %v5132 = vmul.f32 %v5072, %v5115
        %v5133 = vmul.f32 %v5075, %v5115
        %v5134 = vmul.f32 %v5077, %v5115
        %v5135 = vmul.f32 %v5080, %v5115
        %v5136 = vmul.f32 %v5082, %v5115
        %v5137 = vmul.f32 %v5085, %v5115
        %v5138 = vmul.f32 %v5087, %v5115
        %v5139 = vmul.f32 %v5090, %v5115
        %v5140 = vmul.f32 %v5092, %v5115
        %v5141 = vmul.f32 %v5095, %v5115
        %v5142 = vmul.f32 %v5097, %v5115
        %v5143 = vmul.f32 %v5100, %v5115
        %v5144 = vmul.f32 %v5102, %v5115
        %v5145 = vmul.f32 %v5105, %v5115
        %v5146 = vmul.f32 %v5107, %v5115
        %v5147 = vmul.f32 %v5110, %v5115
        %v5148 = vmul.f32 %v5112, %v5115
        %v5150 = vperm.slane %v334, 0
        %v5152 = vadd.f32 %v5117, %v5150
        %v5153 = vadd.f32 %v5118, %v5150
        %v5154 = vadd.f32 %v5119, %v5150
        %v5155 = vadd.f32 %v5120, %v5150
        %v5156 = vadd.f32 %v5121, %v5150
        %v5157 = vadd.f32 %v5122, %v5150
        %v5158 = vadd.f32 %v5123, %v5150
        %v5159 = vadd.f32 %v5124, %v5150
        %v5160 = vadd.f32 %v5125, %v5150
        %v5161 = vadd.f32 %v5126, %v5150
        %v5162 = vadd.f32 %v5127, %v5150
        %v5163 = vadd.f32 %v5128, %v5150
        %v5164 = vadd.f32 %v5129, %v5150
        %v5165 = vadd.f32 %v5130, %v5150
        %v5166 = vadd.f32 %v5131, %v5150
        %v5167 = vadd.f32 %v5132, %v5150
        %v5168 = vadd.f32 %v5133, %v5150
        %v5169 = vadd.f32 %v5134, %v5150
        %v5170 = vadd.f32 %v5135, %v5150
        %v5171 = vadd.f32 %v5136, %v5150
        %v5172 = vadd.f32 %v5137, %v5150
        %v5173 = vadd.f32 %v5138, %v5150
        %v5174 = vadd.f32 %v5139, %v5150
        %v5175 = vadd.f32 %v5140, %v5150
        %v5176 = vadd.f32 %v5141, %v5150
        %v5177 = vadd.f32 %v5142, %v5150
        %v5178 = vadd.f32 %v5143, %v5150
        %v5179 = vadd.f32 %v5144, %v5150
        %v5180 = vadd.f32 %v5145, %v5150
        %v5181 = vadd.f32 %v5146, %v5150
        %v5182 = vadd.f32 %v5147, %v5150
        %v5183 = vadd.f32 %v5148, %v5150
        %v5184 = vmax.f32 %v5152, 0.0
        %v5185 = vmax.f32 %v5153, 0.0
        %v5186 = vmax.f32 %v5154, 0.0
        %v5187 = vmax.f32 %v5155, 0.0
        %v5188 = vmax.f32 %v5156, 0.0
        %v5189 = vmax.f32 %v5157, 0.0
        %v5190 = vmax.f32 %v5158, 0.0
        %v5191 = vmax.f32 %v5159, 0.0
        %v5192 = vmax.f32 %v5160, 0.0
        %v5193 = vmax.f32 %v5161, 0.0
        %v5194 = vmax.f32 %v5162, 0.0
        %v5195 = vmax.f32 %v5163, 0.0
        %v5196 = vmax.f32 %v5164, 0.0
        %v5197 = vmax.f32 %v5165, 0.0
        %v5198 = vmax.f32 %v5166, 0.0
        %v5199 = vmax.f32 %v5167, 0.0
        %v5200 = vmax.f32 %v5168, 0.0
        %v5201 = vmax.f32 %v5169, 0.0
        %v5202 = vmax.f32 %v5170, 0.0
        %v5203 = vmax.f32 %v5171, 0.0
        %v5204 = vmax.f32 %v5172, 0.0
        %v5205 = vmax.f32 %v5173, 0.0
        %v5206 = vmax.f32 %v5174, 0.0
        %v5207 = vmax.f32 %v5175, 0.0
        %v5208 = vmax.f32 %v5176, 0.0
        %v5209 = vmax.f32 %v5177, 0.0
        %v5210 = vmax.f32 %v5178, 0.0
        %v5211 = vmax.f32 %v5179, 0.0
        %v5212 = vmax.f32 %v5180, 0.0
        %v5213 = vmax.f32 %v5181, 0.0
        %v5214 = vmax.f32 %v5182, 0.0
        %v5215 = vmax.f32 %v5183, 0.0
        %v5216 = vpack.c.bf16 %v5184, %v5184
        %v5217 = vpack.c.bf16 %v5185, %v5185
        %v5218 = vpack.c.bf16 %v5186, %v5186
        %v5219 = vpack.c.bf16 %v5187, %v5187
        %v5220 = vpack.c.bf16 %v5188, %v5188
        %v5221 = vpack.c.bf16 %v5189, %v5189
        %v5222 = vpack.c.bf16 %v5190, %v5190
        %v5223 = vpack.c.bf16 %v5191, %v5191
        %v5224 = vpack.c.bf16 %v5192, %v5192
        %v5225 = vpack.c.bf16 %v5193, %v5193
        %v5226 = vpack.c.bf16 %v5194, %v5194
        %v5227 = vpack.c.bf16 %v5195, %v5195
        %v5228 = vpack.c.bf16 %v5196, %v5196
        %v5229 = vpack.c.bf16 %v5197, %v5197
        %v5230 = vpack.c.bf16 %v5198, %v5198
        %v5231 = vpack.c.bf16 %v5199, %v5199
        %v5232 = vpack.c.bf16 %v5200, %v5200
        %v5233 = vpack.c.bf16 %v5201, %v5201
        %v5234 = vpack.c.bf16 %v5202, %v5202
        %v5235 = vpack.c.bf16 %v5203, %v5203
        %v5236 = vpack.c.bf16 %v5204, %v5204
        %v5237 = vpack.c.bf16 %v5205, %v5205
        %v5238 = vpack.c.bf16 %v5206, %v5206
        %v5239 = vpack.c.bf16 %v5207, %v5207
        %v5240 = vpack.c.bf16 %v5208, %v5208
        %v5241 = vpack.c.bf16 %v5209, %v5209
        %v5242 = vpack.c.bf16 %v5210, %v5210
        %v5243 = vpack.c.bf16 %v5211, %v5211
        %v5244 = vpack.c.bf16 %v5212, %v5212
        %v5245 = vpack.c.bf16 %v5213, %v5213
        %v5246 = vpack.c.bf16 %v5214, %v5214
        %v5247 = vpack.c.bf16 %v5215, %v5215
        %5248 = vst [vmem:[#allocation3] sm:$0xf] 0
        %5249 = vst [vmem:[#allocation3 + $0x4] sm:$0xf] 0
        %5250 = vst [vmem:[#allocation3 + $0x8] sm:$0xf] 0
        %s5251 = scalar_lea.vmem [#allocation3], 204
        %5252 = vst [vmem:[%s5251] sm:$0xf] 0
        %5253 = vst [vmem:[%s5251 + $0x4] sm:$0xf] 0
        %5254 = vst [vmem:[%s5251 + $0x8] sm:$0xf] 0
        %vm5255 = vcmask 1040384
        %vm5256 = vsmask.f32 256
        %vm5257 = vmand %vm5255, %vm5256
        %v5258 = vld [vmem:[#allocation3] sm:$0x1]
        %v5259 = vsel %vm5257, 0, %v5258
        %5260 = vst [vmem:[#allocation3] sm:$0x1] %v5259
        %v5261 = vld [vmem:[#allocation3 + $0xc] sm:$0x1]
        %v5262 = vsel %vm5257, 0, %v5261
        %5263 = vst [vmem:[#allocation3 + $0xc] sm:$0x1] %v5262
        %v5264 = vld [vmem:[#allocation3 + $0x18] sm:$0x1]
        %v5265 = vsel %vm5257, 0, %v5264
        %5266 = vst [vmem:[#allocation3 + $0x18] sm:$0x1] %v5265
        %v5267 = vld [vmem:[#allocation3 + $0x24] sm:$0x1]
        %v5268 = vsel %vm5257, 0, %v5267
        %5269 = vst [vmem:[#allocation3 + $0x24] sm:$0x1] %v5268
        %v5270 = vld [vmem:[#allocation3 + $0x30] sm:$0x1]
        %v5271 = vsel %vm5257, 0, %v5270
        %5272 = vst [vmem:[#allocation3 + $0x30] sm:$0x1] %v5271
        %v5273 = vld [vmem:[#allocation3 + $0x3c] sm:$0x1]
        %v5274 = vsel %vm5257, 0, %v5273
        %5275 = vst [vmem:[#allocation3 + $0x3c] sm:$0x1] %v5274
        %v5276 = vld [vmem:[#allocation3 + $0x48] sm:$0x1]
        %v5277 = vsel %vm5257, 0, %v5276
        %5278 = vst [vmem:[#allocation3 + $0x48] sm:$0x1] %v5277
        %v5279 = vld [vmem:[#allocation3 + $0x54] sm:$0x1]
        %v5280 = vsel %vm5257, 0, %v5279
        %5281 = vst [vmem:[#allocation3 + $0x54] sm:$0x1] %v5280
        %v5282 = vld [vmem:[#allocation3 + $0x60] sm:$0x1]
        %v5283 = vsel %vm5257, 0, %v5282
        %5284 = vst [vmem:[#allocation3 + $0x60] sm:$0x1] %v5283
        %v5285 = vld [vmem:[#allocation3 + $0x6c] sm:$0x1]
        %v5286 = vsel %vm5257, 0, %v5285
        %5287 = vst [vmem:[#allocation3 + $0x6c] sm:$0x1] %v5286
        %v5288 = vld [vmem:[#allocation3 + $0x78] sm:$0x1]
        %v5289 = vsel %vm5257, 0, %v5288
        %5290 = vst [vmem:[#allocation3 + $0x78] sm:$0x1] %v5289
        %v5291 = vld [vmem:[#allocation3 + $0x84] sm:$0x1]
        %v5292 = vsel %vm5257, 0, %v5291
        %5293 = vst [vmem:[#allocation3 + $0x84] sm:$0x1] %v5292
        %v5294 = vld [vmem:[#allocation3 + $0x90] sm:$0x1]
        %v5295 = vsel %vm5257, 0, %v5294
        %5296 = vst [vmem:[#allocation3 + $0x90] sm:$0x1] %v5295
        %v5297 = vld [vmem:[#allocation3 + $0x9c] sm:$0x1]
        %v5298 = vsel %vm5257, 0, %v5297
        %5299 = vst [vmem:[#allocation3 + $0x9c] sm:$0x1] %v5298
        %v5300 = vld [vmem:[#allocation3 + $0xa8] sm:$0x1]
        %v5301 = vsel %vm5257, 0, %v5300
        %5302 = vst [vmem:[#allocation3 + $0xa8] sm:$0x1] %v5301
        %v5303 = vld [vmem:[#allocation3 + $0xb4] sm:$0x1]
        %v5304 = vsel %vm5257, 0, %v5303
        %5305 = vst [vmem:[#allocation3 + $0xb4] sm:$0x1] %v5304
        %v5306 = vld [vmem:[#allocation3 + $0xc0] sm:$0x1]
        %v5307 = vsel %vm5257, 0, %v5306
        %5308 = vst [vmem:[#allocation3 + $0xc0] sm:$0x1] %v5307
        %v5309 = vld [vmem:[#allocation3 + $0xcc] sm:$0x1]
        %v5310 = vsel %vm5257, 0, %v5309
        %5311 = vst [vmem:[#allocation3 + $0xcc] sm:$0x1] %v5310
        %vm5312 = vsmask.f32 7938
        %vm5313 = vmand %vm5255, %vm5312
        %v5314 = vld [vmem:[#allocation3 + $0x8] sm:$0x1]
        %v5315 = vsel %vm5313, 0, %v5314
        %5316 = vst [vmem:[#allocation3 + $0x8] sm:$0x1] %v5315
        %v5317 = vld [vmem:[#allocation3 + $0x14] sm:$0x1]
        %v5318 = vsel %vm5313, 0, %v5317
        %5319 = vst [vmem:[#allocation3 + $0x14] sm:$0x1] %v5318
        %v5320 = vld [vmem:[#allocation3 + $0x20] sm:$0x1]
        %v5321 = vsel %vm5313, 0, %v5320
        %5322 = vst [vmem:[#allocation3 + $0x20] sm:$0x1] %v5321
        %v5323 = vld [vmem:[#allocation3 + $0x2c] sm:$0x1]
        %v5324 = vsel %vm5313, 0, %v5323
        %5325 = vst [vmem:[#allocation3 + $0x2c] sm:$0x1] %v5324
        %v5326 = vld [vmem:[#allocation3 + $0x38] sm:$0x1]
        %v5327 = vsel %vm5313, 0, %v5326
        %5328 = vst [vmem:[#allocation3 + $0x38] sm:$0x1] %v5327
        %v5329 = vld [vmem:[#allocation3 + $0x44] sm:$0x1]
        %v5330 = vsel %vm5313, 0, %v5329
        %5331 = vst [vmem:[#allocation3 + $0x44] sm:$0x1] %v5330
        %v5332 = vld [vmem:[#allocation3 + $0x50] sm:$0x1]
        %v5333 = vsel %vm5313, 0, %v5332
        %5334 = vst [vmem:[#allocation3 + $0x50] sm:$0x1] %v5333
        %v5335 = vld [vmem:[#allocation3 + $0x5c] sm:$0x1]
        %v5336 = vsel %vm5313, 0, %v5335
        %5337 = vst [vmem:[#allocation3 + $0x5c] sm:$0x1] %v5336
        %v5338 = vld [vmem:[#allocation3 + $0x68] sm:$0x1]
        %v5339 = vsel %vm5313, 0, %v5338
        %5340 = vst [vmem:[#allocation3 + $0x68] sm:$0x1] %v5339
        %v5341 = vld [vmem:[#allocation3 + $0x74] sm:$0x1]
        %v5342 = vsel %vm5313, 0, %v5341
        %5343 = vst [vmem:[#allocation3 + $0x74] sm:$0x1] %v5342
        %v5344 = vld [vmem:[#allocation3 + $0x80] sm:$0x1]
        %v5345 = vsel %vm5313, 0, %v5344
        %5346 = vst [vmem:[#allocation3 + $0x80] sm:$0x1] %v5345
        %v5347 = vld [vmem:[#allocation3 + $0x8c] sm:$0x1]
        %v5348 = vsel %vm5313, 0, %v5347
        %5349 = vst [vmem:[#allocation3 + $0x8c] sm:$0x1] %v5348
        %v5350 = vld [vmem:[#allocation3 + $0x98] sm:$0x1]
        %v5351 = vsel %vm5313, 0, %v5350
        %5352 = vst [vmem:[#allocation3 + $0x98] sm:$0x1] %v5351
        %v5353 = vld [vmem:[#allocation3 + $0xa4] sm:$0x1]
        %v5354 = vsel %vm5313, 0, %v5353
        %5355 = vst [vmem:[#allocation3 + $0xa4] sm:$0x1] %v5354
        %v5356 = vld [vmem:[#allocation3 + $0xb0] sm:$0x1]
        %v5357 = vsel %vm5313, 0, %v5356
        %5358 = vst [vmem:[#allocation3 + $0xb0] sm:$0x1] %v5357
        %v5359 = vld [vmem:[#allocation3 + $0xbc] sm:$0x1]
        %v5360 = vsel %vm5313, 0, %v5359
        %5361 = vst [vmem:[#allocation3 + $0xbc] sm:$0x1] %v5360
        %v5362 = vld [vmem:[#allocation3 + $0xc8] sm:$0x1]
        %v5363 = vsel %vm5313, 0, %v5362
        %5364 = vst [vmem:[#allocation3 + $0xc8] sm:$0x1] %v5363
        %v5365 = vld [vmem:[#allocation3 + $0xd4] sm:$0x1]
        %v5366 = vsel %vm5313, 0, %v5365
        %5367 = vst [vmem:[#allocation3 + $0xd4] sm:$0x1] %v5366
        %vm5368 = vsmask.f32 4368
        %vm5369 = vmor %vm5256, %vm5368
        %v5371 = vshrl.u32 %v5216, 16
        %v5373 = vrot.slane %v5371, 7
        %v5374 = vshll.u32 %v5216, 16
        %v5376 = vor.u32 %v5373, %v5374
        %v5377 = vrot.slane %v5373, 4
        %v5379 = vshrl.u32 %v5217, 16
        %v5381 = vrot.slane %v5379, 7
        %v5382 = vshll.u32 %v5217, 16
        %v5384 = vor.u32 %v5381, %v5382
        %v5385 = vsel %vm5369, %v5377, %v5384
        %v5386 = vrot.slane %v5381, 4
        %v5388 = vshrl.u32 %v5218, 16
        %v5390 = vrot.slane %v5388, 7
        %v5391 = vshll.u32 %v5218, 16
        %v5393 = vor.u32 %v5390, %v5391
        %v5394 = vrot.slane %v5390, 4
        %v5396 = vshrl.u32 %v5219, 16
        %v5398 = vrot.slane %v5396, 7
        %v5399 = vshll.u32 %v5219, 16
        %v5401 = vor.u32 %v5398, %v5399
        %v5402 = vsel %vm5369, %v5394, %v5401
        %v5403 = vrot.slane %v5398, 4
        %v5405 = vshrl.u32 %v5220, 16
        %v5407 = vrot.slane %v5405, 7
        %v5408 = vshll.u32 %v5220, 16
        %v5410 = vor.u32 %v5407, %v5408
        %v5411 = vrot.slane %v5407, 4
        %v5413 = vshrl.u32 %v5221, 16
        %v5415 = vrot.slane %v5413, 7
        %v5416 = vshll.u32 %v5221, 16
        %v5418 = vor.u32 %v5415, %v5416
        %v5419 = vsel %vm5369, %v5411, %v5418
        %v5420 = vrot.slane %v5415, 4
        %v5422 = vshrl.u32 %v5222, 16
        %v5424 = vrot.slane %v5422, 7
        %v5425 = vshll.u32 %v5222, 16
        %v5427 = vor.u32 %v5424, %v5425
        %v5428 = vrot.slane %v5424, 4
        %v5430 = vshrl.u32 %v5223, 16
        %v5432 = vrot.slane %v5430, 7
        %v5433 = vshll.u32 %v5223, 16
        %v5435 = vor.u32 %v5432, %v5433
        %v5436 = vsel %vm5369, %v5428, %v5435
        %v5437 = vrot.slane %v5432, 4
        %v5439 = vshrl.u32 %v5224, 16
        %v5441 = vrot.slane %v5439, 7
        %v5442 = vshll.u32 %v5224, 16
        %v5444 = vor.u32 %v5441, %v5442
        %v5445 = vrot.slane %v5441, 4
        %v5447 = vshrl.u32 %v5225, 16
        %v5449 = vrot.slane %v5447, 7
        %v5450 = vshll.u32 %v5225, 16
        %v5452 = vor.u32 %v5449, %v5450
        %v5453 = vsel %vm5369, %v5445, %v5452
        %v5454 = vrot.slane %v5449, 4
        %v5456 = vshrl.u32 %v5226, 16
        %v5458 = vrot.slane %v5456, 7
        %v5459 = vshll.u32 %v5226, 16
        %v5461 = vor.u32 %v5458, %v5459
        %v5462 = vrot.slane %v5458, 4
        %v5464 = vshrl.u32 %v5227, 16
        %v5466 = vrot.slane %v5464, 7
        %v5467 = vshll.u32 %v5227, 16
        %v5469 = vor.u32 %v5466, %v5467
        %v5470 = vsel %vm5369, %v5462, %v5469
        %v5471 = vrot.slane %v5466, 4
        %v5473 = vshrl.u32 %v5228, 16
        %v5475 = vrot.slane %v5473, 7
        %v5476 = vshll.u32 %v5228, 16
        %v5478 = vor.u32 %v5475, %v5476
        %v5479 = vrot.slane %v5475, 4
        %v5481 = vshrl.u32 %v5229, 16
        %v5483 = vrot.slane %v5481, 7
        %v5484 = vshll.u32 %v5229, 16
        %v5486 = vor.u32 %v5483, %v5484
        %v5487 = vsel %vm5369, %v5479, %v5486
        %v5488 = vrot.slane %v5483, 4
        %v5490 = vshrl.u32 %v5230, 16
        %v5492 = vrot.slane %v5490, 7
        %v5493 = vshll.u32 %v5230, 16
        %v5495 = vor.u32 %v5492, %v5493
        %v5496 = vrot.slane %v5492, 4
        %v5498 = vshrl.u32 %v5231, 16
        %v5500 = vrot.slane %v5498, 7
        %v5501 = vshll.u32 %v5231, 16
        %v5503 = vor.u32 %v5500, %v5501
        %v5504 = vsel %vm5369, %v5496, %v5503
        %v5505 = vrot.slane %v5500, 4
        %v5507 = vshrl.u32 %v5232, 16
        %v5509 = vrot.slane %v5507, 7
        %v5510 = vshll.u32 %v5232, 16
        %v5512 = vor.u32 %v5509, %v5510
        %v5513 = vrot.slane %v5509, 4
        %v5515 = vshrl.u32 %v5233, 16
        %v5517 = vrot.slane %v5515, 7
        %v5518 = vshll.u32 %v5233, 16
        %v5520 = vor.u32 %v5517, %v5518
        %v5521 = vsel %vm5369, %v5513, %v5520
        %v5522 = vrot.slane %v5517, 4
        %v5524 = vshrl.u32 %v5234, 16
        %v5526 = vrot.slane %v5524, 7
        %v5527 = vshll.u32 %v5234, 16
        %v5529 = vor.u32 %v5526, %v5527
        %v5530 = vrot.slane %v5526, 4
        %v5532 = vshrl.u32 %v5235, 16
        %v5534 = vrot.slane %v5532, 7
        %v5535 = vshll.u32 %v5235, 16
        %v5537 = vor.u32 %v5534, %v5535
        %v5538 = vsel %vm5369, %v5530, %v5537
        %v5539 = vrot.slane %v5534, 4
        %v5541 = vshrl.u32 %v5236, 16
        %v5543 = vrot.slane %v5541, 7
        %v5544 = vshll.u32 %v5236, 16
        %v5546 = vor.u32 %v5543, %v5544
        %v5547 = vrot.slane %v5543, 4
        %v5549 = vshrl.u32 %v5237, 16
        %v5551 = vrot.slane %v5549, 7
        %v5552 = vshll.u32 %v5237, 16
        %v5554 = vor.u32 %v5551, %v5552
        %v5555 = vsel %vm5369, %v5547, %v5554
        %v5556 = vrot.slane %v5551, 4
        %v5558 = vshrl.u32 %v5238, 16
        %v5560 = vrot.slane %v5558, 7
        %v5561 = vshll.u32 %v5238, 16
        %v5563 = vor.u32 %v5560, %v5561
        %v5564 = vrot.slane %v5560, 4
        %v5566 = vshrl.u32 %v5239, 16
        %v5568 = vrot.slane %v5566, 7
        %v5569 = vshll.u32 %v5239, 16
        %v5571 = vor.u32 %v5568, %v5569
        %v5572 = vsel %vm5369, %v5564, %v5571
        %v5573 = vrot.slane %v5568, 4
        %v5575 = vshrl.u32 %v5240, 16
        %v5577 = vrot.slane %v5575, 7
        %v5578 = vshll.u32 %v5240, 16
        %v5580 = vor.u32 %v5577, %v5578
        %v5581 = vrot.slane %v5577, 4
        %v5583 = vshrl.u32 %v5241, 16
        %v5585 = vrot.slane %v5583, 7
        %v5586 = vshll.u32 %v5241, 16
        %v5588 = vor.u32 %v5585, %v5586
        %v5589 = vsel %vm5369, %v5581, %v5588
        %v5590 = vrot.slane %v5585, 4
        %v5592 = vshrl.u32 %v5242, 16
        %v5594 = vrot.slane %v5592, 7
        %v5595 = vshll.u32 %v5242, 16
        %v5597 = vor.u32 %v5594, %v5595
        %v5598 = vrot.slane %v5594, 4
        %v5600 = vshrl.u32 %v5243, 16
        %v5602 = vrot.slane %v5600, 7
        %v5603 = vshll.u32 %v5243, 16
        %v5605 = vor.u32 %v5602, %v5603
        %v5606 = vsel %vm5369, %v5598, %v5605
        %v5607 = vrot.slane %v5602, 4
        %v5609 = vshrl.u32 %v5244, 16
        %v5611 = vrot.slane %v5609, 7
        %v5612 = vshll.u32 %v5244, 16
        %v5614 = vor.u32 %v5611, %v5612
        %v5615 = vrot.slane %v5611, 4
        %v5617 = vshrl.u32 %v5245, 16
        %v5619 = vrot.slane %v5617, 7
        %v5620 = vshll.u32 %v5245, 16
        %v5622 = vor.u32 %v5619, %v5620
        %v5623 = vsel %vm5369, %v5615, %v5622
        %v5624 = vrot.slane %v5619, 4
        %v5626 = vshrl.u32 %v5246, 16
        %v5628 = vrot.slane %v5626, 7
        %v5629 = vshll.u32 %v5246, 16
        %v5631 = vor.u32 %v5628, %v5629
        %v5632 = vrot.slane %v5628, 4
        %v5634 = vshrl.u32 %v5247, 16
        %v5636 = vrot.slane %v5634, 7
        %v5637 = vshll.u32 %v5247, 16
        %v5639 = vor.u32 %v5636, %v5637
        %v5640 = vsel %vm5369, %v5632, %v5639
        %v5641 = vrot.slane %v5636, 4
        %s5690 = scalar_lea.vmem [#allocation3], 12
        %vm5691 = vcmask 1043456
        %vm5692 = vmand %vm5691, %vm5312
        %v5693 = vld [vmem:[%s5690] sm:$0xf]
        %v5694 = vsel %vm5692, %v5376, %v5693
        %5695 = vst [vmem:[%s5690] sm:$0xf] %v5694
        %5696 = vst [vmem:[%s5690 + $0x4] sm:$0xf] %v5385
        %v5697 = vld [vmem:[%s5690 + $0x8] sm:$0x1]
        %v5698 = vsel %vm5257, %v5386, %v5697
        %5699 = vst [vmem:[%s5690 + $0x8] sm:$0x1] %v5698
        %v5700 = vld [vmem:[%s5690 + $0xc] sm:$0xf]
        %v5701 = vsel %vm5692, %v5393, %v5700
        %5702 = vst [vmem:[%s5690 + $0xc] sm:$0xf] %v5701
        %5703 = vst [vmem:[%s5690 + $0x10] sm:$0xf] %v5402
        %v5704 = vld [vmem:[%s5690 + $0x14] sm:$0x1]
        %v5705 = vsel %vm5257, %v5403, %v5704
        %5706 = vst [vmem:[%s5690 + $0x14] sm:$0x1] %v5705
        %v5707 = vld [vmem:[%s5690 + $0x18] sm:$0xf]
        %v5708 = vsel %vm5692, %v5410, %v5707
        %5709 = vst [vmem:[%s5690 + $0x18] sm:$0xf] %v5708
        %5710 = vst [vmem:[%s5690 + $0x1c] sm:$0xf] %v5419
        %v5711 = vld [vmem:[%s5690 + $0x20] sm:$0x1]
        %v5712 = vsel %vm5257, %v5420, %v5711
        %5713 = vst [vmem:[%s5690 + $0x20] sm:$0x1] %v5712
        %v5714 = vld [vmem:[%s5690 + $0x24] sm:$0xf]
        %v5715 = vsel %vm5692, %v5427, %v5714
        %5716 = vst [vmem:[%s5690 + $0x24] sm:$0xf] %v5715
        %5717 = vst [vmem:[%s5690 + $0x28] sm:$0xf] %v5436
        %v5718 = vld [vmem:[%s5690 + $0x2c] sm:$0x1]
        %v5719 = vsel %vm5257, %v5437, %v5718
        %5720 = vst [vmem:[%s5690 + $0x2c] sm:$0x1] %v5719
        %v5721 = vld [vmem:[%s5690 + $0x30] sm:$0xf]
        %v5722 = vsel %vm5692, %v5444, %v5721
        %5723 = vst [vmem:[%s5690 + $0x30] sm:$0xf] %v5722
        %5724 = vst [vmem:[%s5690 + $0x34] sm:$0xf] %v5453
        %v5725 = vld [vmem:[%s5690 + $0x38] sm:$0x1]
        %v5726 = vsel %vm5257, %v5454, %v5725
        %5727 = vst [vmem:[%s5690 + $0x38] sm:$0x1] %v5726
        %v5728 = vld [vmem:[%s5690 + $0x3c] sm:$0xf]
        %v5729 = vsel %vm5692, %v5461, %v5728
        %5730 = vst [vmem:[%s5690 + $0x3c] sm:$0xf] %v5729
        %5731 = vst [vmem:[%s5690 + $0x40] sm:$0xf] %v5470
        %v5732 = vld [vmem:[%s5690 + $0x44] sm:$0x1]
        %v5733 = vsel %vm5257, %v5471, %v5732
        %5734 = vst [vmem:[%s5690 + $0x44] sm:$0x1] %v5733
        %v5735 = vld [vmem:[%s5690 + $0x48] sm:$0xf]
        %v5736 = vsel %vm5692, %v5478, %v5735
        %5737 = vst [vmem:[%s5690 + $0x48] sm:$0xf] %v5736
        %5738 = vst [vmem:[%s5690 + $0x4c] sm:$0xf] %v5487
        %v5739 = vld [vmem:[%s5690 + $0x50] sm:$0x1]
        %v5740 = vsel %vm5257, %v5488, %v5739
        %5741 = vst [vmem:[%s5690 + $0x50] sm:$0x1] %v5740
        %v5742 = vld [vmem:[%s5690 + $0x54] sm:$0xf]
        %v5743 = vsel %vm5692, %v5495, %v5742
        %5744 = vst [vmem:[%s5690 + $0x54] sm:$0xf] %v5743
        %5745 = vst [vmem:[%s5690 + $0x58] sm:$0xf] %v5504
        %v5746 = vld [vmem:[%s5690 + $0x5c] sm:$0x1]
        %v5747 = vsel %vm5257, %v5505, %v5746
        %5748 = vst [vmem:[%s5690 + $0x5c] sm:$0x1] %v5747
        %v5749 = vld [vmem:[%s5690 + $0x60] sm:$0xf]
        %v5750 = vsel %vm5692, %v5512, %v5749
        %5751 = vst [vmem:[%s5690 + $0x60] sm:$0xf] %v5750
        %5752 = vst [vmem:[%s5690 + $0x64] sm:$0xf] %v5521
        %v5753 = vld [vmem:[%s5690 + $0x68] sm:$0x1]
        %v5754 = vsel %vm5257, %v5522, %v5753
        %5755 = vst [vmem:[%s5690 + $0x68] sm:$0x1] %v5754
        %v5756 = vld [vmem:[%s5690 + $0x6c] sm:$0xf]
        %v5757 = vsel %vm5692, %v5529, %v5756
        %5758 = vst [vmem:[%s5690 + $0x6c] sm:$0xf] %v5757
        %5759 = vst [vmem:[%s5690 + $0x70] sm:$0xf] %v5538
        %v5760 = vld [vmem:[%s5690 + $0x74] sm:$0x1]
        %v5761 = vsel %vm5257, %v5539, %v5760
        %5762 = vst [vmem:[%s5690 + $0x74] sm:$0x1] %v5761
        %v5763 = vld [vmem:[%s5690 + $0x78] sm:$0xf]
        %v5764 = vsel %vm5692, %v5546, %v5763
        %5765 = vst [vmem:[%s5690 + $0x78] sm:$0xf] %v5764
        %5766 = vst [vmem:[%s5690 + $0x7c] sm:$0xf] %v5555
        %v5767 = vld [vmem:[%s5690 + $0x80] sm:$0x1]
        %v5768 = vsel %vm5257, %v5556, %v5767
        %5769 = vst [vmem:[%s5690 + $0x80] sm:$0x1] %v5768
        %v5770 = vld [vmem:[%s5690 + $0x84] sm:$0xf]
        %v5771 = vsel %vm5692, %v5563, %v5770
        %5772 = vst [vmem:[%s5690 + $0x84] sm:$0xf] %v5771
        %5773 = vst [vmem:[%s5690 + $0x88] sm:$0xf] %v5572
        %v5774 = vld [vmem:[%s5690 + $0x8c] sm:$0x1]
        %v5775 = vsel %vm5257, %v5573, %v5774
        %5776 = vst [vmem:[%s5690 + $0x8c] sm:$0x1] %v5775
        %v5777 = vld [vmem:[%s5690 + $0x90] sm:$0xf]
        %v5778 = vsel %vm5692, %v5580, %v5777
        %5779 = vst [vmem:[%s5690 + $0x90] sm:$0xf] %v5778
        %5780 = vst [vmem:[%s5690 + $0x94] sm:$0xf] %v5589
        %v5781 = vld [vmem:[%s5690 + $0x98] sm:$0x1]
        %v5782 = vsel %vm5257, %v5590, %v5781
        %5783 = vst [vmem:[%s5690 + $0x98] sm:$0x1] %v5782
        %v5784 = vld [vmem:[%s5690 + $0x9c] sm:$0xf]
        %v5785 = vsel %vm5692, %v5597, %v5784
        %5786 = vst [vmem:[%s5690 + $0x9c] sm:$0xf] %v5785
        %5787 = vst [vmem:[%s5690 + $0xa0] sm:$0xf] %v5606
        %v5788 = vld [vmem:[%s5690 + $0xa4] sm:$0x1]
        %v5789 = vsel %vm5257, %v5607, %v5788
        %5790 = vst [vmem:[%s5690 + $0xa4] sm:$0x1] %v5789
        %v5791 = vld [vmem:[%s5690 + $0xa8] sm:$0xf]
        %v5792 = vsel %vm5692, %v5614, %v5791
        %5793 = vst [vmem:[%s5690 + $0xa8] sm:$0xf] %v5792
        %5794 = vst [vmem:[%s5690 + $0xac] sm:$0xf] %v5623
        %v5795 = vld [vmem:[%s5690 + $0xb0] sm:$0x1]
        %v5796 = vsel %vm5257, %v5624, %v5795
        %5797 = vst [vmem:[%s5690 + $0xb0] sm:$0x1] %v5796
        %v5798 = vld [vmem:[%s5690 + $0xb4] sm:$0xf]
        %v5799 = vsel %vm5692, %v5631, %v5798
        %5800 = vst [vmem:[%s5690 + $0xb4] sm:$0xf] %v5799
        %5801 = vst [vmem:[%s5690 + $0xb8] sm:$0xf] %v5640
        %v5802 = vld [vmem:[%s5690 + $0xbc] sm:$0x1]
        %v5803 = vsel %vm5257, %v5641, %v5802
        %5804 = vst [vmem:[%s5690 + $0xbc] sm:$0x1] %v5803
        %v5805 = vld [vmem:[#allocation3] sm:$0xf]
        %v5806 = vld [vmem:[#allocation3 + $0x4] sm:$0xf]
        %v5807 = vld [vmem:[#allocation3 + $0xc] sm:$0xf]
        %v5808 = vld [vmem:[#allocation3 + $0x10] sm:$0xf]
        %v5809 = vld [vmem:[#allocation3 + $0x18] sm:$0xf]
        %v5810 = vld [vmem:[#allocation3 + $0x1c] sm:$0xf]
        %v5811 = vld [vmem:[#allocation3 + $0x24] sm:$0xf]
        %v5812 = vld [vmem:[#allocation3 + $0x28] sm:$0xf]
        %v5813 = vld [vmem:[#allocation3 + $0x30] sm:$0xf]
        %v5814 = vld [vmem:[#allocation3 + $0x34] sm:$0xf]
        %v5815 = vld [vmem:[#allocation3 + $0x3c] sm:$0xf]
        %v5816 = vld [vmem:[#allocation3 + $0x40] sm:$0xf]
        %v5817 = vld [vmem:[#allocation3 + $0x48] sm:$0xf]
        %v5818 = vld [vmem:[#allocation3 + $0x4c] sm:$0xf]
        %v5819 = vld [vmem:[#allocation3 + $0x54] sm:$0xf]
        %v5820 = vld [vmem:[#allocation3 + $0x58] sm:$0xf]
        %v5821 = vld [vmem:[#allocation3 + $0x60] sm:$0xf]
        %v5822 = vld [vmem:[#allocation3 + $0x64] sm:$0xf]
        %v5823 = vld [vmem:[#allocation3 + $0x6c] sm:$0xf]
        %v5824 = vld [vmem:[#allocation3 + $0x70] sm:$0xf]
        %v5825 = vld [vmem:[#allocation3 + $0x78] sm:$0xf]
        %v5826 = vld [vmem:[#allocation3 + $0x7c] sm:$0xf]
        %v5827 = vld [vmem:[#allocation3 + $0x84] sm:$0xf]
        %v5828 = vld [vmem:[#allocation3 + $0x88] sm:$0xf]
        %v5829 = vld [vmem:[#allocation3 + $0x90] sm:$0xf]
        %v5830 = vld [vmem:[#allocation3 + $0x94] sm:$0xf]
        %v5831 = vld [vmem:[#allocation3 + $0x9c] sm:$0xf]
        %v5832 = vld [vmem:[#allocation3 + $0xa0] sm:$0xf]
        %v5833 = vld [vmem:[#allocation3 + $0xa8] sm:$0xf]
        %v5834 = vld [vmem:[#allocation3 + $0xac] sm:$0xf]
        %v5835 = vld [vmem:[#allocation3 + $0xb4] sm:$0xf]
        %v5836 = vld [vmem:[#allocation3 + $0xb8] sm:$0xf]
        %5837 = vst [vmem:[#allocation2] sm:$0xf] %v5805
        %5838 = vst [vmem:[#allocation2 + $0x24] sm:$0xf] %v5806
        %5839 = vst [vmem:[#allocation2 + $0x48] sm:$0xf] %v5807
        %5840 = vst [vmem:[#allocation2 + $0x6c] sm:$0xf] %v5808
        %5841 = vst [vmem:[#allocation2 + $0x90] sm:$0xf] %v5809
        %5842 = vst [vmem:[#allocation2 + $0xb4] sm:$0xf] %v5810
        %5843 = vst [vmem:[#allocation2 + $0xd8] sm:$0xf] %v5811
        %5844 = vst [vmem:[#allocation2 + $0xfc] sm:$0xf] %v5812
        %5845 = vst [vmem:[#allocation2 + $0x120] sm:$0xf] %v5813
        %5846 = vst [vmem:[#allocation2 + $0x144] sm:$0xf] %v5814
        %5847 = vst [vmem:[#allocation2 + $0x168] sm:$0xf] %v5815
        %5848 = vst [vmem:[#allocation2 + $0x18c] sm:$0xf] %v5816
        %5849 = vst [vmem:[#allocation2 + $0x1b0] sm:$0xf] %v5817
        %5850 = vst [vmem:[#allocation2 + $0x1d4] sm:$0xf] %v5818
        %5851 = vst [vmem:[#allocation2 + $0x1f8] sm:$0xf] %v5819
        %5852 = vst [vmem:[#allocation2 + $0x21c] sm:$0xf] %v5820
        %5853 = vst [vmem:[#allocation2 + $0x240] sm:$0xf] %v5821
        %5854 = vst [vmem:[#allocation2 + $0x264] sm:$0xf] %v5822
        %5855 = vst [vmem:[#allocation2 + $0x288] sm:$0xf] %v5823
        %5856 = vst [vmem:[#allocation2 + $0x2ac] sm:$0xf] %v5824
        %5857 = vst [vmem:[#allocation2 + $0x2d0] sm:$0xf] %v5825
        %5858 = vst [vmem:[#allocation2 + $0x2f4] sm:$0xf] %v5826
        %5859 = vst [vmem:[#allocation2 + $0x318] sm:$0xf] %v5827
        %5860 = vst [vmem:[#allocation2 + $0x33c] sm:$0xf] %v5828
        %5861 = vst [vmem:[#allocation2 + $0x360] sm:$0xf] %v5829
        %5862 = vst [vmem:[#allocation2 + $0x384] sm:$0xf] %v5830
        %5863 = vst [vmem:[#allocation2 + $0x3a8] sm:$0xf] %v5831
        %5864 = vst [vmem:[#allocation2 + $0x3cc] sm:$0xf] %v5832
        %5865 = vst [vmem:[#allocation2 + $0x3f0] sm:$0xf] %v5833
        %5866 = vst [vmem:[#allocation2 + $0x414] sm:$0xf] %v5834
        %5867 = vst [vmem:[#allocation2 + $0x438] sm:$0xf] %v5835
        %5868 = vst [vmem:[#allocation2 + $0x45c] sm:$0xf] %v5836
        %v5869 = vld [vmem:[#allocation3] sm:$0xf]
        %v5870 = vld [vmem:[#allocation3 + $0x4] sm:$0xf]
        %v5871 = vld [vmem:[#allocation3 + $0x8] sm:$0x1]
        %v5872 = vld [vmem:[#allocation3 + $0xc] sm:$0xf]
        %v5873 = vld [vmem:[#allocation3 + $0x10] sm:$0xf]
        %v5874 = vld [vmem:[#allocation3 + $0x14] sm:$0x1]
        %v5875 = vld [vmem:[#allocation3 + $0x18] sm:$0xf]
        %v5876 = vld [vmem:[#allocation3 + $0x1c] sm:$0xf]
        %v5877 = vld [vmem:[#allocation3 + $0x20] sm:$0x1]
        %v5878 = vld [vmem:[#allocation3 + $0x24] sm:$0xf]
        %v5879 = vld [vmem:[#allocation3 + $0x28] sm:$0xf]
        %v5880 = vld [vmem:[#allocation3 + $0x2c] sm:$0x1]
        %v5881 = vld [vmem:[#allocation3 + $0x30] sm:$0xf]
        %v5882 = vld [vmem:[#allocation3 + $0x34] sm:$0xf]
        %v5883 = vld [vmem:[#allocation3 + $0x38] sm:$0x1]
        %v5884 = vld [vmem:[#allocation3 + $0x3c] sm:$0xf]
        %v5885 = vld [vmem:[#allocation3 + $0x40] sm:$0xf]
        %v5886 = vld [vmem:[#allocation3 + $0x44] sm:$0x1]
        %v5887 = vld [vmem:[#allocation3 + $0x48] sm:$0xf]
        %v5888 = vld [vmem:[#allocation3 + $0x4c] sm:$0xf]
        %v5889 = vld [vmem:[#allocation3 + $0x50] sm:$0x1]
        %v5890 = vld [vmem:[#allocation3 + $0x54] sm:$0xf]
        %v5891 = vld [vmem:[#allocation3 + $0x58] sm:$0xf]
        %v5892 = vld [vmem:[#allocation3 + $0x5c] sm:$0x1]
        %v5893 = vld [vmem:[#allocation3 + $0x60] sm:$0xf]
        %v5894 = vld [vmem:[#allocation3 + $0x64] sm:$0xf]
        %v5895 = vld [vmem:[#allocation3 + $0x68] sm:$0x1]
        %v5896 = vld [vmem:[#allocation3 + $0x6c] sm:$0xf]
        %v5897 = vld [vmem:[#allocation3 + $0x70] sm:$0xf]
        %v5898 = vld [vmem:[#allocation3 + $0x74] sm:$0x1]
        %v5899 = vld [vmem:[#allocation3 + $0x78] sm:$0xf]
        %v5900 = vld [vmem:[#allocation3 + $0x7c] sm:$0xf]
        %v5901 = vld [vmem:[#allocation3 + $0x80] sm:$0x1]
        %v5902 = vld [vmem:[#allocation3 + $0x84] sm:$0xf]
        %v5903 = vld [vmem:[#allocation3 + $0x88] sm:$0xf]
        %v5904 = vld [vmem:[#allocation3 + $0x8c] sm:$0x1]
        %v5905 = vld [vmem:[#allocation3 + $0x90] sm:$0xf]
        %v5906 = vld [vmem:[#allocation3 + $0x94] sm:$0xf]
        %v5907 = vld [vmem:[#allocation3 + $0x98] sm:$0x1]
        %v5908 = vld [vmem:[#allocation3 + $0x9c] sm:$0xf]
        %v5909 = vld [vmem:[#allocation3 + $0xa0] sm:$0xf]
        %v5910 = vld [vmem:[#allocation3 + $0xa4] sm:$0x1]
        %v5911 = vld [vmem:[#allocation3 + $0xa8] sm:$0xf]
        %v5912 = vld [vmem:[#allocation3 + $0xac] sm:$0xf]
        %v5913 = vld [vmem:[#allocation3 + $0xb0] sm:$0x1]
        %v5914 = vld [vmem:[#allocation3 + $0xb4] sm:$0xf]
        %v5915 = vld [vmem:[#allocation3 + $0xb8] sm:$0xf]
        %v5916 = vld [vmem:[#allocation3 + $0xbc] sm:$0x1]
        %v5918 = vshrl.u32 %v5869, 16
        %v5920 = vrot.slane %v5918, 4
        %v5921 = vshll.u32 %v5869, 16
        %v5923 = vrot.slane %v5921, 5
        %v5924 = vor.u32 %v5920, %v5923
        %v5925 = vrot.slane %v5924, 4
        %v5927 = vshll.u32 %v5870, 16
        %v5929 = vrot.slane %v5927, 5
        %v5930 = vsel %vm451, %v5925, %v5929
        %v5931 = vshrl.u32 %v5870, 16
        %v5933 = vrot.slane %v5931, 4
        %v5934 = vor.u32 %v5933, %v5929
        %v5935 = vrot.slane %v5934, 4
        %v5937 = vshll.u32 %v5871, 16
        %v5939 = vrot.slane %v5937, 5
        %v5940 = vsel %vm451, %v5935, %v5939
        %v5942 = vshrl.u32 %v5872, 16
        %v5944 = vrot.slane %v5942, 4
        %v5945 = vshll.u32 %v5872, 16
        %v5947 = vrot.slane %v5945, 5
        %v5948 = vor.u32 %v5944, %v5947
        %v5949 = vrot.slane %v5948, 4
        %v5951 = vshll.u32 %v5873, 16
        %v5953 = vrot.slane %v5951, 5
        %v5954 = vsel %vm451, %v5949, %v5953
        %v5955 = vshrl.u32 %v5873, 16
        %v5957 = vrot.slane %v5955, 4
        %v5958 = vor.u32 %v5957, %v5953
        %v5959 = vrot.slane %v5958, 4
        %v5961 = vshll.u32 %v5874, 16
        %v5963 = vrot.slane %v5961, 5
        %v5964 = vsel %vm451, %v5959, %v5963
        %v5966 = vshrl.u32 %v5875, 16
        %v5968 = vrot.slane %v5966, 4
        %v5969 = vshll.u32 %v5875, 16
        %v5971 = vrot.slane %v5969, 5
        %v5972 = vor.u32 %v5968, %v5971
        %v5973 = vrot.slane %v5972, 4
        %v5975 = vshll.u32 %v5876, 16
        %v5977 = vrot.slane %v5975, 5
        %v5978 = vsel %vm451, %v5973, %v5977
        %v5979 = vshrl.u32 %v5876, 16
        %v5981 = vrot.slane %v5979, 4
        %v5982 = vor.u32 %v5981, %v5977
        %v5983 = vrot.slane %v5982, 4
        %v5985 = vshll.u32 %v5877, 16
        %v5987 = vrot.slane %v5985, 5
        %v5988 = vsel %vm451, %v5983, %v5987
        %v5990 = vshrl.u32 %v5878, 16
        %v5992 = vrot.slane %v5990, 4
        %v5993 = vshll.u32 %v5878, 16
        %v5995 = vrot.slane %v5993, 5
        %v5996 = vor.u32 %v5992, %v5995
        %v5997 = vrot.slane %v5996, 4
        %v5999 = vshll.u32 %v5879, 16
        %v6001 = vrot.slane %v5999, 5
        %v6002 = vsel %vm451, %v5997, %v6001
        %v6003 = vshrl.u32 %v5879, 16
        %v6005 = vrot.slane %v6003, 4
        %v6006 = vor.u32 %v6005, %v6001
        %v6007 = vrot.slane %v6006, 4
        %v6009 = vshll.u32 %v5880, 16
        %v6011 = vrot.slane %v6009, 5
        %v6012 = vsel %vm451, %v6007, %v6011
        %v6014 = vshrl.u32 %v5881, 16
        %v6016 = vrot.slane %v6014, 4
        %v6017 = vshll.u32 %v5881, 16
        %v6019 = vrot.slane %v6017, 5
        %v6020 = vor.u32 %v6016, %v6019
        %v6021 = vrot.slane %v6020, 4
        %v6023 = vshll.u32 %v5882, 16
        %v6025 = vrot.slane %v6023, 5
        %v6026 = vsel %vm451, %v6021, %v6025
        %v6027 = vshrl.u32 %v5882, 16
        %v6029 = vrot.slane %v6027, 4
        %v6030 = vor.u32 %v6029, %v6025
        %v6031 = vrot.slane %v6030, 4
        %v6033 = vshll.u32 %v5883, 16
        %v6035 = vrot.slane %v6033, 5
        %v6036 = vsel %vm451, %v6031, %v6035
        %v6038 = vshrl.u32 %v5884, 16
        %v6040 = vrot.slane %v6038, 4
        %v6041 = vshll.u32 %v5884, 16
        %v6043 = vrot.slane %v6041, 5
        %v6044 = vor.u32 %v6040, %v6043
        %v6045 = vrot.slane %v6044, 4
        %v6047 = vshll.u32 %v5885, 16
        %v6049 = vrot.slane %v6047, 5
        %v6050 = vsel %vm451, %v6045, %v6049
        %v6051 = vshrl.u32 %v5885, 16
        %v6053 = vrot.slane %v6051, 4
        %v6054 = vor.u32 %v6053, %v6049
        %v6055 = vrot.slane %v6054, 4
        %v6057 = vshll.u32 %v5886, 16
        %v6059 = vrot.slane %v6057, 5
        %v6060 = vsel %vm451, %v6055, %v6059
        %v6062 = vshrl.u32 %v5887, 16
        %v6064 = vrot.slane %v6062, 4
        %v6065 = vshll.u32 %v5887, 16
        %v6067 = vrot.slane %v6065, 5
        %v6068 = vor.u32 %v6064, %v6067
        %v6069 = vrot.slane %v6068, 4
        %v6071 = vshll.u32 %v5888, 16
        %v6073 = vrot.slane %v6071, 5
        %v6074 = vsel %vm451, %v6069, %v6073
        %v6075 = vshrl.u32 %v5888, 16
        %v6077 = vrot.slane %v6075, 4
        %v6078 = vor.u32 %v6077, %v6073
        %v6079 = vrot.slane %v6078, 4
        %v6081 = vshll.u32 %v5889, 16
        %v6083 = vrot.slane %v6081, 5
        %v6084 = vsel %vm451, %v6079, %v6083
        %v6086 = vshrl.u32 %v5890, 16
        %v6088 = vrot.slane %v6086, 4
        %v6089 = vshll.u32 %v5890, 16
        %v6091 = vrot.slane %v6089, 5
        %v6092 = vor.u32 %v6088, %v6091
        %v6093 = vrot.slane %v6092, 4
        %v6095 = vshll.u32 %v5891, 16
        %v6097 = vrot.slane %v6095, 5
        %v6098 = vsel %vm451, %v6093, %v6097
        %v6099 = vshrl.u32 %v5891, 16
        %v6101 = vrot.slane %v6099, 4
        %v6102 = vor.u32 %v6101, %v6097
        %v6103 = vrot.slane %v6102, 4
        %v6105 = vshll.u32 %v5892, 16
        %v6107 = vrot.slane %v6105, 5
        %v6108 = vsel %vm451, %v6103, %v6107
        %v6110 = vshrl.u32 %v5893, 16
        %v6112 = vrot.slane %v6110, 4
        %v6113 = vshll.u32 %v5893, 16
        %v6115 = vrot.slane %v6113, 5
        %v6116 = vor.u32 %v6112, %v6115
        %v6117 = vrot.slane %v6116, 4
        %v6119 = vshll.u32 %v5894, 16
        %v6121 = vrot.slane %v6119, 5
        %v6122 = vsel %vm451, %v6117, %v6121
        %v6123 = vshrl.u32 %v5894, 16
        %v6125 = vrot.slane %v6123, 4
        %v6126 = vor.u32 %v6125, %v6121
        %v6127 = vrot.slane %v6126, 4
        %v6129 = vshll.u32 %v5895, 16
        %v6131 = vrot.slane %v6129, 5
        %v6132 = vsel %vm451, %v6127, %v6131
        %v6134 = vshrl.u32 %v5896, 16
        %v6136 = vrot.slane %v6134, 4
        %v6137 = vshll.u32 %v5896, 16
        %v6139 = vrot.slane %v6137, 5
        %v6140 = vor.u32 %v6136, %v6139
        %v6141 = vrot.slane %v6140, 4
        %v6143 = vshll.u32 %v5897, 16
        %v6145 = vrot.slane %v6143, 5
        %v6146 = vsel %vm451, %v6141, %v6145
        %v6147 = vshrl.u32 %v5897, 16
        %v6149 = vrot.slane %v6147, 4
        %v6150 = vor.u32 %v6149, %v6145
        %v6151 = vrot.slane %v6150, 4
        %v6153 = vshll.u32 %v5898, 16
        %v6155 = vrot.slane %v6153, 5
        %v6156 = vsel %vm451, %v6151, %v6155
        %v6158 = vshrl.u32 %v5899, 16
        %v6160 = vrot.slane %v6158, 4
        %v6161 = vshll.u32 %v5899, 16
        %v6163 = vrot.slane %v6161, 5
        %v6164 = vor.u32 %v6160, %v6163
        %v6165 = vrot.slane %v6164, 4
        %v6167 = vshll.u32 %v5900, 16
        %v6169 = vrot.slane %v6167, 5
        %v6170 = vsel %vm451, %v6165, %v6169
        %v6171 = vshrl.u32 %v5900, 16
        %v6173 = vrot.slane %v6171, 4
        %v6174 = vor.u32 %v6173, %v6169
        %v6175 = vrot.slane %v6174, 4
        %v6177 = vshll.u32 %v5901, 16
        %v6179 = vrot.slane %v6177, 5
        %v6180 = vsel %vm451, %v6175, %v6179
        %v6182 = vshrl.u32 %v5902, 16
        %v6184 = vrot.slane %v6182, 4
        %v6185 = vshll.u32 %v5902, 16
        %v6187 = vrot.slane %v6185, 5
        %v6188 = vor.u32 %v6184, %v6187
        %v6189 = vrot.slane %v6188, 4
        %v6191 = vshll.u32 %v5903, 16
        %v6193 = vrot.slane %v6191, 5
        %v6194 = vsel %vm451, %v6189, %v6193
        %v6195 = vshrl.u32 %v5903, 16
        %v6197 = vrot.slane %v6195, 4
        %v6198 = vor.u32 %v6197, %v6193
        %v6199 = vrot.slane %v6198, 4
        %v6201 = vshll.u32 %v5904, 16
        %v6203 = vrot.slane %v6201, 5
        %v6204 = vsel %vm451, %v6199, %v6203
        %v6206 = vshrl.u32 %v5905, 16
        %v6208 = vrot.slane %v6206, 4
        %v6209 = vshll.u32 %v5905, 16
        %v6211 = vrot.slane %v6209, 5
        %v6212 = vor.u32 %v6208, %v6211
        %v6213 = vrot.slane %v6212, 4
        %v6215 = vshll.u32 %v5906, 16
        %v6217 = vrot.slane %v6215, 5
        %v6218 = vsel %vm451, %v6213, %v6217
        %v6219 = vshrl.u32 %v5906, 16
        %v6221 = vrot.slane %v6219, 4
        %v6222 = vor.u32 %v6221, %v6217
        %v6223 = vrot.slane %v6222, 4
        %v6225 = vshll.u32 %v5907, 16
        %v6227 = vrot.slane %v6225, 5
        %v6228 = vsel %vm451, %v6223, %v6227
        %v6230 = vshrl.u32 %v5908, 16
        %v6232 = vrot.slane %v6230, 4
        %v6233 = vshll.u32 %v5908, 16
        %v6235 = vrot.slane %v6233, 5
        %v6236 = vor.u32 %v6232, %v6235
        %v6237 = vrot.slane %v6236, 4
        %v6239 = vshll.u32 %v5909, 16
        %v6241 = vrot.slane %v6239, 5
        %v6242 = vsel %vm451, %v6237, %v6241
        %v6243 = vshrl.u32 %v5909, 16
        %v6245 = vrot.slane %v6243, 4
        %v6246 = vor.u32 %v6245, %v6241
        %v6247 = vrot.slane %v6246, 4
        %v6249 = vshll.u32 %v5910, 16
        %v6251 = vrot.slane %v6249, 5
        %v6252 = vsel %vm451, %v6247, %v6251
        %v6254 = vshrl.u32 %v5911, 16
        %v6256 = vrot.slane %v6254, 4
        %v6257 = vshll.u32 %v5911, 16
        %v6259 = vrot.slane %v6257, 5
        %v6260 = vor.u32 %v6256, %v6259
        %v6261 = vrot.slane %v6260, 4
        %v6263 = vshll.u32 %v5912, 16
        %v6265 = vrot.slane %v6263, 5
        %v6266 = vsel %vm451, %v6261, %v6265
        %v6267 = vshrl.u32 %v5912, 16
        %v6269 = vrot.slane %v6267, 4
        %v6270 = vor.u32 %v6269, %v6265
        %v6271 = vrot.slane %v6270, 4
        %v6273 = vshll.u32 %v5913, 16
        %v6275 = vrot.slane %v6273, 5
        %v6276 = vsel %vm451, %v6271, %v6275
        %v6278 = vshrl.u32 %v5914, 16
        %v6280 = vrot.slane %v6278, 4
        %v6281 = vshll.u32 %v5914, 16
        %v6283 = vrot.slane %v6281, 5
        %v6284 = vor.u32 %v6280, %v6283
        %v6285 = vrot.slane %v6284, 4
        %v6287 = vshll.u32 %v5915, 16
        %v6289 = vrot.slane %v6287, 5
        %v6290 = vsel %vm451, %v6285, %v6289
        %v6291 = vshrl.u32 %v5915, 16
        %v6293 = vrot.slane %v6291, 4
        %v6294 = vor.u32 %v6293, %v6289
        %v6295 = vrot.slane %v6294, 4
        %v6297 = vshll.u32 %v5916, 16
        %v6299 = vrot.slane %v6297, 5
        %v6300 = vsel %vm451, %v6295, %v6299
        %6333 = vst [vmem:[#allocation2 + $0x4] sm:$0xf] %v5930
        %6334 = vst [vmem:[#allocation2 + $0x28] sm:$0xf] %v5940
        %6335 = vst [vmem:[#allocation2 + $0x4c] sm:$0xf] %v5954
        %6336 = vst [vmem:[#allocation2 + $0x70] sm:$0xf] %v5964
        %6337 = vst [vmem:[#allocation2 + $0x94] sm:$0xf] %v5978
        %6338 = vst [vmem:[#allocation2 + $0xb8] sm:$0xf] %v5988
        %6339 = vst [vmem:[#allocation2 + $0xdc] sm:$0xf] %v6002
        %6340 = vst [vmem:[#allocation2 + $0x100] sm:$0xf] %v6012
        %6341 = vst [vmem:[#allocation2 + $0x124] sm:$0xf] %v6026
        %6342 = vst [vmem:[#allocation2 + $0x148] sm:$0xf] %v6036
        %6343 = vst [vmem:[#allocation2 + $0x16c] sm:$0xf] %v6050
        %6344 = vst [vmem:[#allocation2 + $0x190] sm:$0xf] %v6060
        %6345 = vst [vmem:[#allocation2 + $0x1b4] sm:$0xf] %v6074
        %6346 = vst [vmem:[#allocation2 + $0x1d8] sm:$0xf] %v6084
        %6347 = vst [vmem:[#allocation2 + $0x1fc] sm:$0xf] %v6098
        %6348 = vst [vmem:[#allocation2 + $0x220] sm:$0xf] %v6108
        %6349 = vst [vmem:[#allocation2 + $0x244] sm:$0xf] %v6122
        %6350 = vst [vmem:[#allocation2 + $0x268] sm:$0xf] %v6132
        %6351 = vst [vmem:[#allocation2 + $0x28c] sm:$0xf] %v6146
        %6352 = vst [vmem:[#allocation2 + $0x2b0] sm:$0xf] %v6156
        %6353 = vst [vmem:[#allocation2 + $0x2d4] sm:$0xf] %v6170
        %6354 = vst [vmem:[#allocation2 + $0x2f8] sm:$0xf] %v6180
        %6355 = vst [vmem:[#allocation2 + $0x31c] sm:$0xf] %v6194
        %6356 = vst [vmem:[#allocation2 + $0x340] sm:$0xf] %v6204
        %6357 = vst [vmem:[#allocation2 + $0x364] sm:$0xf] %v6218
        %6358 = vst [vmem:[#allocation2 + $0x388] sm:$0xf] %v6228
        %6359 = vst [vmem:[#allocation2 + $0x3ac] sm:$0xf] %v6242
        %6360 = vst [vmem:[#allocation2 + $0x3d0] sm:$0xf] %v6252
        %6361 = vst [vmem:[#allocation2 + $0x3f4] sm:$0xf] %v6266
        %6362 = vst [vmem:[#allocation2 + $0x418] sm:$0xf] %v6276
        %6363 = vst [vmem:[#allocation2 + $0x43c] sm:$0xf] %v6290
        %6364 = vst [vmem:[#allocation2 + $0x460] sm:$0xf] %v6300
        %v6365 = vld [vmem:[#allocation3] sm:$0xe]
        %v6366 = vld [vmem:[#allocation3 + $0x4] sm:$0xf]
        %v6367 = vld [vmem:[#allocation3 + $0x8] sm:$0x1]
        %v6368 = vld [vmem:[#allocation3 + $0xc] sm:$0xe]
        %v6369 = vld [vmem:[#allocation3 + $0x10] sm:$0xf]
        %v6370 = vld [vmem:[#allocation3 + $0x14] sm:$0x1]
        %v6371 = vld [vmem:[#allocation3 + $0x18] sm:$0xe]
        %v6372 = vld [vmem:[#allocation3 + $0x1c] sm:$0xf]
        %v6373 = vld [vmem:[#allocation3 + $0x20] sm:$0x1]
        %v6374 = vld [vmem:[#allocation3 + $0x24] sm:$0xe]
        %v6375 = vld [vmem:[#allocation3 + $0x28] sm:$0xf]
        %v6376 = vld [vmem:[#allocation3 + $0x2c] sm:$0x1]
        %v6377 = vld [vmem:[#allocation3 + $0x30] sm:$0xe]
        %v6378 = vld [vmem:[#allocation3 + $0x34] sm:$0xf]
        %v6379 = vld [vmem:[#allocation3 + $0x38] sm:$0x1]
        %v6380 = vld [vmem:[#allocation3 + $0x3c] sm:$0xe]
        %v6381 = vld [vmem:[#allocation3 + $0x40] sm:$0xf]
        %v6382 = vld [vmem:[#allocation3 + $0x44] sm:$0x1]
        %v6383 = vld [vmem:[#allocation3 + $0x48] sm:$0xe]
        %v6384 = vld [vmem:[#allocation3 + $0x4c] sm:$0xf]
        %v6385 = vld [vmem:[#allocation3 + $0x50] sm:$0x1]
        %v6386 = vld [vmem:[#allocation3 + $0x54] sm:$0xe]
        %v6387 = vld [vmem:[#allocation3 + $0x58] sm:$0xf]
        %v6388 = vld [vmem:[#allocation3 + $0x5c] sm:$0x1]
        %v6389 = vld [vmem:[#allocation3 + $0x60] sm:$0xe]
        %v6390 = vld [vmem:[#allocation3 + $0x64] sm:$0xf]
        %v6391 = vld [vmem:[#allocation3 + $0x68] sm:$0x1]
        %v6392 = vld [vmem:[#allocation3 + $0x6c] sm:$0xe]
        %v6393 = vld [vmem:[#allocation3 + $0x70] sm:$0xf]
        %v6394 = vld [vmem:[#allocation3 + $0x74] sm:$0x1]
        %v6395 = vld [vmem:[#allocation3 + $0x78] sm:$0xe]
        %v6396 = vld [vmem:[#allocation3 + $0x7c] sm:$0xf]
        %v6397 = vld [vmem:[#allocation3 + $0x80] sm:$0x1]
        %v6398 = vld [vmem:[#allocation3 + $0x84] sm:$0xe]
        %v6399 = vld [vmem:[#allocation3 + $0x88] sm:$0xf]
        %v6400 = vld [vmem:[#allocation3 + $0x8c] sm:$0x1]
        %v6401 = vld [vmem:[#allocation3 + $0x90] sm:$0xe]
        %v6402 = vld [vmem:[#allocation3 + $0x94] sm:$0xf]
        %v6403 = vld [vmem:[#allocation3 + $0x98] sm:$0x1]
        %v6404 = vld [vmem:[#allocation3 + $0x9c] sm:$0xe]
        %v6405 = vld [vmem:[#allocation3 + $0xa0] sm:$0xf]
        %v6406 = vld [vmem:[#allocation3 + $0xa4] sm:$0x1]
        %v6407 = vld [vmem:[#allocation3 + $0xa8] sm:$0xe]
        %v6408 = vld [vmem:[#allocation3 + $0xac] sm:$0xf]
        %v6409 = vld [vmem:[#allocation3 + $0xb0] sm:$0x1]
        %v6410 = vld [vmem:[#allocation3 + $0xb4] sm:$0xe]
        %v6411 = vld [vmem:[#allocation3 + $0xb8] sm:$0xf]
        %v6412 = vld [vmem:[#allocation3 + $0xbc] sm:$0x1]
        %v6461 = vrot.slane %v6365, 5
        %v6462 = vrot.slane %v6461, 4
        %v6463 = vrot.slane %v6366, 5
        %v6464 = vsel %vm998, %v6462, %v6463
        %v6465 = vrot.slane %v6463, 4
        %v6466 = vrot.slane %v6367, 5
        %v6467 = vsel %vm998, %v6465, %v6466
        %v6468 = vrot.slane %v6368, 5
        %v6469 = vrot.slane %v6468, 4
        %v6470 = vrot.slane %v6369, 5
        %v6471 = vsel %vm998, %v6469, %v6470
        %v6472 = vrot.slane %v6470, 4
        %v6473 = vrot.slane %v6370, 5
        %v6474 = vsel %vm998, %v6472, %v6473
        %v6475 = vrot.slane %v6371, 5
        %v6476 = vrot.slane %v6475, 4
        %v6477 = vrot.slane %v6372, 5
        %v6478 = vsel %vm998, %v6476, %v6477
        %v6479 = vrot.slane %v6477, 4
        %v6480 = vrot.slane %v6373, 5
        %v6481 = vsel %vm998, %v6479, %v6480
        %v6482 = vrot.slane %v6374, 5
        %v6483 = vrot.slane %v6482, 4
        %v6484 = vrot.slane %v6375, 5
        %v6485 = vsel %vm998, %v6483, %v6484
        %v6486 = vrot.slane %v6484, 4
        %v6487 = vrot.slane %v6376, 5
        %v6488 = vsel %vm998, %v6486, %v6487
        %v6489 = vrot.slane %v6377, 5
        %v6490 = vrot.slane %v6489, 4
        %v6491 = vrot.slane %v6378, 5
        %v6492 = vsel %vm998, %v6490, %v6491
        %v6493 = vrot.slane %v6491, 4
        %v6494 = vrot.slane %v6379, 5
        %v6495 = vsel %vm998, %v6493, %v6494
        %v6496 = vrot.slane %v6380, 5
        %v6497 = vrot.slane %v6496, 4
        %v6498 = vrot.slane %v6381, 5
        %v6499 = vsel %vm998, %v6497, %v6498
        %v6500 = vrot.slane %v6498, 4
        %v6501 = vrot.slane %v6382, 5
        %v6502 = vsel %vm998, %v6500, %v6501
        %v6503 = vrot.slane %v6383, 5
        %v6504 = vrot.slane %v6503, 4
        %v6505 = vrot.slane %v6384, 5
        %v6506 = vsel %vm998, %v6504, %v6505
        %v6507 = vrot.slane %v6505, 4
        %v6508 = vrot.slane %v6385, 5
        %v6509 = vsel %vm998, %v6507, %v6508
        %v6510 = vrot.slane %v6386, 5
        %v6511 = vrot.slane %v6510, 4
        %v6512 = vrot.slane %v6387, 5
        %v6513 = vsel %vm998, %v6511, %v6512
        %v6514 = vrot.slane %v6512, 4
        %v6515 = vrot.slane %v6388, 5
        %v6516 = vsel %vm998, %v6514, %v6515
        %v6517 = vrot.slane %v6389, 5
        %v6518 = vrot.slane %v6517, 4
        %v6519 = vrot.slane %v6390, 5
        %v6520 = vsel %vm998, %v6518, %v6519
        %v6521 = vrot.slane %v6519, 4
        %v6522 = vrot.slane %v6391, 5
        %v6523 = vsel %vm998, %v6521, %v6522
        %v6524 = vrot.slane %v6392, 5
        %v6525 = vrot.slane %v6524, 4
        %v6526 = vrot.slane %v6393, 5
        %v6527 = vsel %vm998, %v6525, %v6526
        %v6528 = vrot.slane %v6526, 4
        %v6529 = vrot.slane %v6394, 5
        %v6530 = vsel %vm998, %v6528, %v6529
        %v6531 = vrot.slane %v6395, 5
        %v6532 = vrot.slane %v6531, 4
        %v6533 = vrot.slane %v6396, 5
        %v6534 = vsel %vm998, %v6532, %v6533
        %v6535 = vrot.slane %v6533, 4
        %v6536 = vrot.slane %v6397, 5
        %v6537 = vsel %vm998, %v6535, %v6536
        %v6538 = vrot.slane %v6398, 5
        %v6539 = vrot.slane %v6538, 4
        %v6540 = vrot.slane %v6399, 5
        %v6541 = vsel %vm998, %v6539, %v6540
        %v6542 = vrot.slane %v6540, 4
        %v6543 = vrot.slane %v6400, 5
        %v6544 = vsel %vm998, %v6542, %v6543
        %v6545 = vrot.slane %v6401, 5
        %v6546 = vrot.slane %v6545, 4
        %v6547 = vrot.slane %v6402, 5
        %v6548 = vsel %vm998, %v6546, %v6547
        %v6549 = vrot.slane %v6547, 4
        %v6550 = vrot.slane %v6403, 5
        %v6551 = vsel %vm998, %v6549, %v6550
        %v6552 = vrot.slane %v6404, 5
        %v6553 = vrot.slane %v6552, 4
        %v6554 = vrot.slane %v6405, 5
        %v6555 = vsel %vm998, %v6553, %v6554
        %v6556 = vrot.slane %v6554, 4
        %v6557 = vrot.slane %v6406, 5
        %v6558 = vsel %vm998, %v6556, %v6557
        %v6559 = vrot.slane %v6407, 5
        %v6560 = vrot.slane %v6559, 4
        %v6561 = vrot.slane %v6408, 5
        %v6562 = vsel %vm998, %v6560, %v6561
        %v6563 = vrot.slane %v6561, 4
        %v6564 = vrot.slane %v6409, 5
        %v6565 = vsel %vm998, %v6563, %v6564
        %v6566 = vrot.slane %v6410, 5
        %v6567 = vrot.slane %v6566, 4
        %v6568 = vrot.slane %v6411, 5
        %v6569 = vsel %vm998, %v6567, %v6568
        %v6570 = vrot.slane %v6568, 4
        %v6571 = vrot.slane %v6412, 5
        %v6572 = vsel %vm998, %v6570, %v6571
        %6605 = vst [vmem:[#allocation2 + $0x8] sm:$0xf] %v6464
        %6606 = vst [vmem:[#allocation2 + $0x2c] sm:$0xf] %v6467
        %6607 = vst [vmem:[#allocation2 + $0x50] sm:$0xf] %v6471
        %6608 = vst [vmem:[#allocation2 + $0x74] sm:$0xf] %v6474
        %6609 = vst [vmem:[#allocation2 + $0x98] sm:$0xf] %v6478
        %6610 = vst [vmem:[#allocation2 + $0xbc] sm:$0xf] %v6481
        %6611 = vst [vmem:[#allocation2 + $0xe0] sm:$0xf] %v6485
        %6612 = vst [vmem:[#allocation2 + $0x104] sm:$0xf] %v6488
        %6613 = vst [vmem:[#allocation2 + $0x128] sm:$0xf] %v6492
        %6614 = vst [vmem:[#allocation2 + $0x14c] sm:$0xf] %v6495
        %6615 = vst [vmem:[#allocation2 + $0x170] sm:$0xf] %v6499
        %6616 = vst [vmem:[#allocation2 + $0x194] sm:$0xf] %v6502
        %6617 = vst [vmem:[#allocation2 + $0x1b8] sm:$0xf] %v6506
        %6618 = vst [vmem:[#allocation2 + $0x1dc] sm:$0xf] %v6509
        %6619 = vst [vmem:[#allocation2 + $0x200] sm:$0xf] %v6513
        %6620 = vst [vmem:[#allocation2 + $0x224] sm:$0xf] %v6516
        %6621 = vst [vmem:[#allocation2 + $0x248] sm:$0xf] %v6520
        %6622 = vst [vmem:[#allocation2 + $0x26c] sm:$0xf] %v6523
        %6623 = vst [vmem:[#allocation2 + $0x290] sm:$0xf] %v6527
        %6624 = vst [vmem:[#allocation2 + $0x2b4] sm:$0xf] %v6530
        %6625 = vst [vmem:[#allocation2 + $0x2d8] sm:$0xf] %v6534
        %6626 = vst [vmem:[#allocation2 + $0x2fc] sm:$0xf] %v6537
        %6627 = vst [vmem:[#allocation2 + $0x320] sm:$0xf] %v6541
        %6628 = vst [vmem:[#allocation2 + $0x344] sm:$0xf] %v6544
        %6629 = vst [vmem:[#allocation2 + $0x368] sm:$0xf] %v6548
        %6630 = vst [vmem:[#allocation2 + $0x38c] sm:$0xf] %v6551
        %6631 = vst [vmem:[#allocation2 + $0x3b0] sm:$0xf] %v6555
        %6632 = vst [vmem:[#allocation2 + $0x3d4] sm:$0xf] %v6558
        %6633 = vst [vmem:[#allocation2 + $0x3f8] sm:$0xf] %v6562
        %6634 = vst [vmem:[#allocation2 + $0x41c] sm:$0xf] %v6565
        %6635 = vst [vmem:[#allocation2 + $0x440] sm:$0xf] %v6569
        %6636 = vst [vmem:[#allocation2 + $0x464] sm:$0xf] %v6572
        %v6637 = vld [vmem:[%s5690] sm:$0xf]
        %v6638 = vld [vmem:[%s5690 + $0x4] sm:$0xf]
        %v6639 = vld [vmem:[%s5690 + $0xc] sm:$0xf]
        %v6640 = vld [vmem:[%s5690 + $0x10] sm:$0xf]
        %v6641 = vld [vmem:[%s5690 + $0x18] sm:$0xf]
        %v6642 = vld [vmem:[%s5690 + $0x1c] sm:$0xf]
        %v6643 = vld [vmem:[%s5690 + $0x24] sm:$0xf]
        %v6644 = vld [vmem:[%s5690 + $0x28] sm:$0xf]
        %v6645 = vld [vmem:[%s5690 + $0x30] sm:$0xf]
        %v6646 = vld [vmem:[%s5690 + $0x34] sm:$0xf]
        %v6647 = vld [vmem:[%s5690 + $0x3c] sm:$0xf]
        %v6648 = vld [vmem:[%s5690 + $0x40] sm:$0xf]
        %v6649 = vld [vmem:[%s5690 + $0x48] sm:$0xf]
        %v6650 = vld [vmem:[%s5690 + $0x4c] sm:$0xf]
        %v6651 = vld [vmem:[%s5690 + $0x54] sm:$0xf]
        %v6652 = vld [vmem:[%s5690 + $0x58] sm:$0xf]
        %v6653 = vld [vmem:[%s5690 + $0x60] sm:$0xf]
        %v6654 = vld [vmem:[%s5690 + $0x64] sm:$0xf]
        %v6655 = vld [vmem:[%s5690 + $0x6c] sm:$0xf]
        %v6656 = vld [vmem:[%s5690 + $0x70] sm:$0xf]
        %v6657 = vld [vmem:[%s5690 + $0x78] sm:$0xf]
        %v6658 = vld [vmem:[%s5690 + $0x7c] sm:$0xf]
        %v6659 = vld [vmem:[%s5690 + $0x84] sm:$0xf]
        %v6660 = vld [vmem:[%s5690 + $0x88] sm:$0xf]
        %v6661 = vld [vmem:[%s5690 + $0x90] sm:$0xf]
        %v6662 = vld [vmem:[%s5690 + $0x94] sm:$0xf]
        %v6663 = vld [vmem:[%s5690 + $0x9c] sm:$0xf]
        %v6664 = vld [vmem:[%s5690 + $0xa0] sm:$0xf]
        %v6665 = vld [vmem:[%s5690 + $0xa8] sm:$0xf]
        %v6666 = vld [vmem:[%s5690 + $0xac] sm:$0xf]
        %v6667 = vld [vmem:[%s5690 + $0xb4] sm:$0xf]
        %v6668 = vld [vmem:[%s5690 + $0xb8] sm:$0xf]
        %6669 = vst [vmem:[#allocation2 + $0xc] sm:$0xf] %v6637
        %6670 = vst [vmem:[#allocation2 + $0x30] sm:$0xf] %v6638
        %6671 = vst [vmem:[#allocation2 + $0x54] sm:$0xf] %v6639
        %6672 = vst [vmem:[#allocation2 + $0x78] sm:$0xf] %v6640
        %6673 = vst [vmem:[#allocation2 + $0x9c] sm:$0xf] %v6641
        %6674 = vst [vmem:[#allocation2 + $0xc0] sm:$0xf] %v6642
        %6675 = vst [vmem:[#allocation2 + $0xe4] sm:$0xf] %v6643
        %6676 = vst [vmem:[#allocation2 + $0x108] sm:$0xf] %v6644
        %6677 = vst [vmem:[#allocation2 + $0x12c] sm:$0xf] %v6645
        %6678 = vst [vmem:[#allocation2 + $0x150] sm:$0xf] %v6646
        %6679 = vst [vmem:[#allocation2 + $0x174] sm:$0xf] %v6647
        %6680 = vst [vmem:[#allocation2 + $0x198] sm:$0xf] %v6648
        %6681 = vst [vmem:[#allocation2 + $0x1bc] sm:$0xf] %v6649
        %6682 = vst [vmem:[#allocation2 + $0x1e0] sm:$0xf] %v6650
        %6683 = vst [vmem:[#allocation2 + $0x204] sm:$0xf] %v6651
        %6684 = vst [vmem:[#allocation2 + $0x228] sm:$0xf] %v6652
        %6685 = vst [vmem:[#allocation2 + $0x24c] sm:$0xf] %v6653
        %6686 = vst [vmem:[#allocation2 + $0x270] sm:$0xf] %v6654
        %6687 = vst [vmem:[#allocation2 + $0x294] sm:$0xf] %v6655
        %6688 = vst [vmem:[#allocation2 + $0x2b8] sm:$0xf] %v6656
        %6689 = vst [vmem:[#allocation2 + $0x2dc] sm:$0xf] %v6657
        %6690 = vst [vmem:[#allocation2 + $0x300] sm:$0xf] %v6658
        %6691 = vst [vmem:[#allocation2 + $0x324] sm:$0xf] %v6659
        %6692 = vst [vmem:[#allocation2 + $0x348] sm:$0xf] %v6660
        %6693 = vst [vmem:[#allocation2 + $0x36c] sm:$0xf] %v6661
        %6694 = vst [vmem:[#allocation2 + $0x390] sm:$0xf] %v6662
        %6695 = vst [vmem:[#allocation2 + $0x3b4] sm:$0xf] %v6663
        %6696 = vst [vmem:[#allocation2 + $0x3d8] sm:$0xf] %v6664
        %6697 = vst [vmem:[#allocation2 + $0x3fc] sm:$0xf] %v6665
        %6698 = vst [vmem:[#allocation2 + $0x420] sm:$0xf] %v6666
        %6699 = vst [vmem:[#allocation2 + $0x444] sm:$0xf] %v6667
        %6700 = vst [vmem:[#allocation2 + $0x468] sm:$0xf] %v6668
        %v6701 = vld [vmem:[%s5690] sm:$0xf]
        %v6702 = vld [vmem:[%s5690 + $0x4] sm:$0xf]
        %v6703 = vld [vmem:[%s5690 + $0x8] sm:$0x1]
        %v6704 = vld [vmem:[%s5690 + $0xc] sm:$0xf]
        %v6705 = vld [vmem:[%s5690 + $0x10] sm:$0xf]
        %v6706 = vld [vmem:[%s5690 + $0x14] sm:$0x1]
        %v6707 = vld [vmem:[%s5690 + $0x18] sm:$0xf]
        %v6708 = vld [vmem:[%s5690 + $0x1c] sm:$0xf]
        %v6709 = vld [vmem:[%s5690 + $0x20] sm:$0x1]
        %v6710 = vld [vmem:[%s5690 + $0x24] sm:$0xf]
        %v6711 = vld [vmem:[%s5690 + $0x28] sm:$0xf]
        %v6712 = vld [vmem:[%s5690 + $0x2c] sm:$0x1]
        %v6713 = vld [vmem:[%s5690 + $0x30] sm:$0xf]
        %v6714 = vld [vmem:[%s5690 + $0x34] sm:$0xf]
        %v6715 = vld [vmem:[%s5690 + $0x38] sm:$0x1]
        %v6716 = vld [vmem:[%s5690 + $0x3c] sm:$0xf]
        %v6717 = vld [vmem:[%s5690 + $0x40] sm:$0xf]
        %v6718 = vld [vmem:[%s5690 + $0x44] sm:$0x1]
        %v6719 = vld [vmem:[%s5690 + $0x48] sm:$0xf]
        %v6720 = vld [vmem:[%s5690 + $0x4c] sm:$0xf]
        %v6721 = vld [vmem:[%s5690 + $0x50] sm:$0x1]
        %v6722 = vld [vmem:[%s5690 + $0x54] sm:$0xf]
        %v6723 = vld [vmem:[%s5690 + $0x58] sm:$0xf]
        %v6724 = vld [vmem:[%s5690 + $0x5c] sm:$0x1]
        %v6725 = vld [vmem:[%s5690 + $0x60] sm:$0xf]
        %v6726 = vld [vmem:[%s5690 + $0x64] sm:$0xf]
        %v6727 = vld [vmem:[%s5690 + $0x68] sm:$0x1]
        %v6728 = vld [vmem:[%s5690 + $0x6c] sm:$0xf]
        %v6729 = vld [vmem:[%s5690 + $0x70] sm:$0xf]
        %v6730 = vld [vmem:[%s5690 + $0x74] sm:$0x1]
        %v6731 = vld [vmem:[%s5690 + $0x78] sm:$0xf]
        %v6732 = vld [vmem:[%s5690 + $0x7c] sm:$0xf]
        %v6733 = vld [vmem:[%s5690 + $0x80] sm:$0x1]
        %v6734 = vld [vmem:[%s5690 + $0x84] sm:$0xf]
        %v6735 = vld [vmem:[%s5690 + $0x88] sm:$0xf]
        %v6736 = vld [vmem:[%s5690 + $0x8c] sm:$0x1]
        %v6737 = vld [vmem:[%s5690 + $0x90] sm:$0xf]
        %v6738 = vld [vmem:[%s5690 + $0x94] sm:$0xf]
        %v6739 = vld [vmem:[%s5690 + $0x98] sm:$0x1]
        %v6740 = vld [vmem:[%s5690 + $0x9c] sm:$0xf]
        %v6741 = vld [vmem:[%s5690 + $0xa0] sm:$0xf]
        %v6742 = vld [vmem:[%s5690 + $0xa4] sm:$0x1]
        %v6743 = vld [vmem:[%s5690 + $0xa8] sm:$0xf]
        %v6744 = vld [vmem:[%s5690 + $0xac] sm:$0xf]
        %v6745 = vld [vmem:[%s5690 + $0xb0] sm:$0x1]
        %v6746 = vld [vmem:[%s5690 + $0xb4] sm:$0xf]
        %v6747 = vld [vmem:[%s5690 + $0xb8] sm:$0xf]
        %v6748 = vld [vmem:[%s5690 + $0xbc] sm:$0x1]
        %v6750 = vshrl.u32 %v6701, 16
        %v6752 = vrot.slane %v6750, 4
        %v6753 = vshll.u32 %v6701, 16
        %v6755 = vrot.slane %v6753, 5
        %v6756 = vor.u32 %v6752, %v6755
        %v6757 = vrot.slane %v6756, 4
        %v6759 = vshll.u32 %v6702, 16
        %v6761 = vrot.slane %v6759, 5
        %v6762 = vsel %vm451, %v6757, %v6761
        %v6763 = vshrl.u32 %v6702, 16
        %v6765 = vrot.slane %v6763, 4
        %v6766 = vor.u32 %v6765, %v6761
        %v6767 = vrot.slane %v6766, 4
        %v6769 = vshll.u32 %v6703, 16
        %v6771 = vrot.slane %v6769, 5
        %v6772 = vsel %vm451, %v6767, %v6771
        %v6774 = vshrl.u32 %v6704, 16
        %v6776 = vrot.slane %v6774, 4
        %v6777 = vshll.u32 %v6704, 16
        %v6779 = vrot.slane %v6777, 5
        %v6780 = vor.u32 %v6776, %v6779
        %v6781 = vrot.slane %v6780, 4
        %v6783 = vshll.u32 %v6705, 16
        %v6785 = vrot.slane %v6783, 5
        %v6786 = vsel %vm451, %v6781, %v6785
        %v6787 = vshrl.u32 %v6705, 16
        %v6789 = vrot.slane %v6787, 4
        %v6790 = vor.u32 %v6789, %v6785
        %v6791 = vrot.slane %v6790, 4
        %v6793 = vshll.u32 %v6706, 16
        %v6795 = vrot.slane %v6793, 5
        %v6796 = vsel %vm451, %v6791, %v6795
        %v6798 = vshrl.u32 %v6707, 16
        %v6800 = vrot.slane %v6798, 4
        %v6801 = vshll.u32 %v6707, 16
        %v6803 = vrot.slane %v6801, 5
        %v6804 = vor.u32 %v6800, %v6803
        %v6805 = vrot.slane %v6804, 4
        %v6807 = vshll.u32 %v6708, 16
        %v6809 = vrot.slane %v6807, 5
        %v6810 = vsel %vm451, %v6805, %v6809
        %v6811 = vshrl.u32 %v6708, 16
        %v6813 = vrot.slane %v6811, 4
        %v6814 = vor.u32 %v6813, %v6809
        %v6815 = vrot.slane %v6814, 4
        %v6817 = vshll.u32 %v6709, 16
        %v6819 = vrot.slane %v6817, 5
        %v6820 = vsel %vm451, %v6815, %v6819
        %v6822 = vshrl.u32 %v6710, 16
        %v6824 = vrot.slane %v6822, 4
        %v6825 = vshll.u32 %v6710, 16
        %v6827 = vrot.slane %v6825, 5
        %v6828 = vor.u32 %v6824, %v6827
        %v6829 = vrot.slane %v6828, 4
        %v6831 = vshll.u32 %v6711, 16
        %v6833 = vrot.slane %v6831, 5
        %v6834 = vsel %vm451, %v6829, %v6833
        %v6835 = vshrl.u32 %v6711, 16
        %v6837 = vrot.slane %v6835, 4
        %v6838 = vor.u32 %v6837, %v6833
        %v6839 = vrot.slane %v6838, 4
        %v6841 = vshll.u32 %v6712, 16
        %v6843 = vrot.slane %v6841, 5
        %v6844 = vsel %vm451, %v6839, %v6843
        %v6846 = vshrl.u32 %v6713, 16
        %v6848 = vrot.slane %v6846, 4
        %v6849 = vshll.u32 %v6713, 16
        %v6851 = vrot.slane %v6849, 5
        %v6852 = vor.u32 %v6848, %v6851
        %v6853 = vrot.slane %v6852, 4
        %v6855 = vshll.u32 %v6714, 16
        %v6857 = vrot.slane %v6855, 5
        %v6858 = vsel %vm451, %v6853, %v6857
        %v6859 = vshrl.u32 %v6714, 16
        %v6861 = vrot.slane %v6859, 4
        %v6862 = vor.u32 %v6861, %v6857
        %v6863 = vrot.slane %v6862, 4
        %v6865 = vshll.u32 %v6715, 16
        %v6867 = vrot.slane %v6865, 5
        %v6868 = vsel %vm451, %v6863, %v6867
        %v6870 = vshrl.u32 %v6716, 16
        %v6872 = vrot.slane %v6870, 4
        %v6873 = vshll.u32 %v6716, 16
        %v6875 = vrot.slane %v6873, 5
        %v6876 = vor.u32 %v6872, %v6875
        %v6877 = vrot.slane %v6876, 4
        %v6879 = vshll.u32 %v6717, 16
        %v6881 = vrot.slane %v6879, 5
        %v6882 = vsel %vm451, %v6877, %v6881
        %v6883 = vshrl.u32 %v6717, 16
        %v6885 = vrot.slane %v6883, 4
        %v6886 = vor.u32 %v6885, %v6881
        %v6887 = vrot.slane %v6886, 4
        %v6889 = vshll.u32 %v6718, 16
        %v6891 = vrot.slane %v6889, 5
        %v6892 = vsel %vm451, %v6887, %v6891
        %v6894 = vshrl.u32 %v6719, 16
        %v6896 = vrot.slane %v6894, 4
        %v6897 = vshll.u32 %v6719, 16
        %v6899 = vrot.slane %v6897, 5
        %v6900 = vor.u32 %v6896, %v6899
        %v6901 = vrot.slane %v6900, 4
        %v6903 = vshll.u32 %v6720, 16
        %v6905 = vrot.slane %v6903, 5
        %v6906 = vsel %vm451, %v6901, %v6905
        %v6907 = vshrl.u32 %v6720, 16
        %v6909 = vrot.slane %v6907, 4
        %v6910 = vor.u32 %v6909, %v6905
        %v6911 = vrot.slane %v6910, 4
        %v6913 = vshll.u32 %v6721, 16
        %v6915 = vrot.slane %v6913, 5
        %v6916 = vsel %vm451, %v6911, %v6915
        %v6918 = vshrl.u32 %v6722, 16
        %v6920 = vrot.slane %v6918, 4
        %v6921 = vshll.u32 %v6722, 16
        %v6923 = vrot.slane %v6921, 5
        %v6924 = vor.u32 %v6920, %v6923
        %v6925 = vrot.slane %v6924, 4
        %v6927 = vshll.u32 %v6723, 16
        %v6929 = vrot.slane %v6927, 5
        %v6930 = vsel %vm451, %v6925, %v6929
        %v6931 = vshrl.u32 %v6723, 16
        %v6933 = vrot.slane %v6931, 4
        %v6934 = vor.u32 %v6933, %v6929
        %v6935 = vrot.slane %v6934, 4
        %v6937 = vshll.u32 %v6724, 16
        %v6939 = vrot.slane %v6937, 5
        %v6940 = vsel %vm451, %v6935, %v6939
        %v6942 = vshrl.u32 %v6725, 16
        %v6944 = vrot.slane %v6942, 4
        %v6945 = vshll.u32 %v6725, 16
        %v6947 = vrot.slane %v6945, 5
        %v6948 = vor.u32 %v6944, %v6947
        %v6949 = vrot.slane %v6948, 4
        %v6951 = vshll.u32 %v6726, 16
        %v6953 = vrot.slane %v6951, 5
        %v6954 = vsel %vm451, %v6949, %v6953
        %v6955 = vshrl.u32 %v6726, 16
        %v6957 = vrot.slane %v6955, 4
        %v6958 = vor.u32 %v6957, %v6953
        %v6959 = vrot.slane %v6958, 4
        %v6961 = vshll.u32 %v6727, 16
        %v6963 = vrot.slane %v6961, 5
        %v6964 = vsel %vm451, %v6959, %v6963
        %v6966 = vshrl.u32 %v6728, 16
        %v6968 = vrot.slane %v6966, 4
        %v6969 = vshll.u32 %v6728, 16
        %v6971 = vrot.slane %v6969, 5
        %v6972 = vor.u32 %v6968, %v6971
        %v6973 = vrot.slane %v6972, 4
        %v6975 = vshll.u32 %v6729, 16
        %v6977 = vrot.slane %v6975, 5
        %v6978 = vsel %vm451, %v6973, %v6977
        %v6979 = vshrl.u32 %v6729, 16
        %v6981 = vrot.slane %v6979, 4
        %v6982 = vor.u32 %v6981, %v6977
        %v6983 = vrot.slane %v6982, 4
        %v6985 = vshll.u32 %v6730, 16
        %v6987 = vrot.slane %v6985, 5
        %v6988 = vsel %vm451, %v6983, %v6987
        %v6990 = vshrl.u32 %v6731, 16
        %v6992 = vrot.slane %v6990, 4
        %v6993 = vshll.u32 %v6731, 16
        %v6995 = vrot.slane %v6993, 5
        %v6996 = vor.u32 %v6992, %v6995
        %v6997 = vrot.slane %v6996, 4
        %v6999 = vshll.u32 %v6732, 16
        %v7001 = vrot.slane %v6999, 5
        %v7002 = vsel %vm451, %v6997, %v7001
        %v7003 = vshrl.u32 %v6732, 16
        %v7005 = vrot.slane %v7003, 4
        %v7006 = vor.u32 %v7005, %v7001
        %v7007 = vrot.slane %v7006, 4
        %v7009 = vshll.u32 %v6733, 16
        %v7011 = vrot.slane %v7009, 5
        %v7012 = vsel %vm451, %v7007, %v7011
        %v7014 = vshrl.u32 %v6734, 16
        %v7016 = vrot.slane %v7014, 4
        %v7017 = vshll.u32 %v6734, 16
        %v7019 = vrot.slane %v7017, 5
        %v7020 = vor.u32 %v7016, %v7019
        %v7021 = vrot.slane %v7020, 4
        %v7023 = vshll.u32 %v6735, 16
        %v7025 = vrot.slane %v7023, 5
        %v7026 = vsel %vm451, %v7021, %v7025
        %v7027 = vshrl.u32 %v6735, 16
        %v7029 = vrot.slane %v7027, 4
        %v7030 = vor.u32 %v7029, %v7025
        %v7031 = vrot.slane %v7030, 4
        %v7033 = vshll.u32 %v6736, 16
        %v7035 = vrot.slane %v7033, 5
        %v7036 = vsel %vm451, %v7031, %v7035
        %v7038 = vshrl.u32 %v6737, 16
        %v7040 = vrot.slane %v7038, 4
        %v7041 = vshll.u32 %v6737, 16
        %v7043 = vrot.slane %v7041, 5
        %v7044 = vor.u32 %v7040, %v7043
        %v7045 = vrot.slane %v7044, 4
        %v7047 = vshll.u32 %v6738, 16
        %v7049 = vrot.slane %v7047, 5
        %v7050 = vsel %vm451, %v7045, %v7049
        %v7051 = vshrl.u32 %v6738, 16
        %v7053 = vrot.slane %v7051, 4
        %v7054 = vor.u32 %v7053, %v7049
        %v7055 = vrot.slane %v7054, 4
        %v7057 = vshll.u32 %v6739, 16
        %v7059 = vrot.slane %v7057, 5
        %v7060 = vsel %vm451, %v7055, %v7059
        %v7062 = vshrl.u32 %v6740, 16
        %v7064 = vrot.slane %v7062, 4
        %v7065 = vshll.u32 %v6740, 16
        %v7067 = vrot.slane %v7065, 5
        %v7068 = vor.u32 %v7064, %v7067
        %v7069 = vrot.slane %v7068, 4
        %v7071 = vshll.u32 %v6741, 16
        %v7073 = vrot.slane %v7071, 5
        %v7074 = vsel %vm451, %v7069, %v7073
        %v7075 = vshrl.u32 %v6741, 16
        %v7077 = vrot.slane %v7075, 4
        %v7078 = vor.u32 %v7077, %v7073
        %v7079 = vrot.slane %v7078, 4
        %v7081 = vshll.u32 %v6742, 16
        %v7083 = vrot.slane %v7081, 5
        %v7084 = vsel %vm451, %v7079, %v7083
        %v7086 = vshrl.u32 %v6743, 16
        %v7088 = vrot.slane %v7086, 4
        %v7089 = vshll.u32 %v6743, 16
        %v7091 = vrot.slane %v7089, 5
        %v7092 = vor.u32 %v7088, %v7091
        %v7093 = vrot.slane %v7092, 4
        %v7095 = vshll.u32 %v6744, 16
        %v7097 = vrot.slane %v7095, 5
        %v7098 = vsel %vm451, %v7093, %v7097
        %v7099 = vshrl.u32 %v6744, 16
        %v7101 = vrot.slane %v7099, 4
        %v7102 = vor.u32 %v7101, %v7097
        %v7103 = vrot.slane %v7102, 4
        %v7105 = vshll.u32 %v6745, 16
        %v7107 = vrot.slane %v7105, 5
        %v7108 = vsel %vm451, %v7103, %v7107
        %v7110 = vshrl.u32 %v6746, 16
        %v7112 = vrot.slane %v7110, 4
        %v7113 = vshll.u32 %v6746, 16
        %v7115 = vrot.slane %v7113, 5
        %v7116 = vor.u32 %v7112, %v7115
        %v7117 = vrot.slane %v7116, 4
        %v7119 = vshll.u32 %v6747, 16
        %v7121 = vrot.slane %v7119, 5
        %v7122 = vsel %vm451, %v7117, %v7121
        %v7123 = vshrl.u32 %v6747, 16
        %v7125 = vrot.slane %v7123, 4
        %v7126 = vor.u32 %v7125, %v7121
        %v7127 = vrot.slane %v7126, 4
        %v7129 = vshll.u32 %v6748, 16
        %v7131 = vrot.slane %v7129, 5
        %v7132 = vsel %vm451, %v7127, %v7131
        %7165 = vst [vmem:[#allocation2 + $0x10] sm:$0xf] %v6762
        %7166 = vst [vmem:[#allocation2 + $0x34] sm:$0xf] %v6772
        %7167 = vst [vmem:[#allocation2 + $0x58] sm:$0xf] %v6786
        %7168 = vst [vmem:[#allocation2 + $0x7c] sm:$0xf] %v6796
        %7169 = vst [vmem:[#allocation2 + $0xa0] sm:$0xf] %v6810
        %7170 = vst [vmem:[#allocation2 + $0xc4] sm:$0xf] %v6820
        %7171 = vst [vmem:[#allocation2 + $0xe8] sm:$0xf] %v6834
        %7172 = vst [vmem:[#allocation2 + $0x10c] sm:$0xf] %v6844
        %7173 = vst [vmem:[#allocation2 + $0x130] sm:$0xf] %v6858
        %7174 = vst [vmem:[#allocation2 + $0x154] sm:$0xf] %v6868
        %7175 = vst [vmem:[#allocation2 + $0x178] sm:$0xf] %v6882
        %7176 = vst [vmem:[#allocation2 + $0x19c] sm:$0xf] %v6892
        %7177 = vst [vmem:[#allocation2 + $0x1c0] sm:$0xf] %v6906
        %7178 = vst [vmem:[#allocation2 + $0x1e4] sm:$0xf] %v6916
        %7179 = vst [vmem:[#allocation2 + $0x208] sm:$0xf] %v6930
        %7180 = vst [vmem:[#allocation2 + $0x22c] sm:$0xf] %v6940
        %7181 = vst [vmem:[#allocation2 + $0x250] sm:$0xf] %v6954
        %7182 = vst [vmem:[#allocation2 + $0x274] sm:$0xf] %v6964
        %7183 = vst [vmem:[#allocation2 + $0x298] sm:$0xf] %v6978
        %7184 = vst [vmem:[#allocation2 + $0x2bc] sm:$0xf] %v6988
        %7185 = vst [vmem:[#allocation2 + $0x2e0] sm:$0xf] %v7002
        %7186 = vst [vmem:[#allocation2 + $0x304] sm:$0xf] %v7012
        %7187 = vst [vmem:[#allocation2 + $0x328] sm:$0xf] %v7026
        %7188 = vst [vmem:[#allocation2 + $0x34c] sm:$0xf] %v7036
        %7189 = vst [vmem:[#allocation2 + $0x370] sm:$0xf] %v7050
        %7190 = vst [vmem:[#allocation2 + $0x394] sm:$0xf] %v7060
        %7191 = vst [vmem:[#allocation2 + $0x3b8] sm:$0xf] %v7074
        %7192 = vst [vmem:[#allocation2 + $0x3dc] sm:$0xf] %v7084
        %7193 = vst [vmem:[#allocation2 + $0x400] sm:$0xf] %v7098
        %7194 = vst [vmem:[#allocation2 + $0x424] sm:$0xf] %v7108
        %7195 = vst [vmem:[#allocation2 + $0x448] sm:$0xf] %v7122
        %7196 = vst [vmem:[#allocation2 + $0x46c] sm:$0xf] %v7132
        %v7197 = vld [vmem:[%s5690] sm:$0xe]
        %v7198 = vld [vmem:[%s5690 + $0x4] sm:$0xf]
        %v7199 = vld [vmem:[%s5690 + $0x8] sm:$0x1]
        %v7200 = vld [vmem:[%s5690 + $0xc] sm:$0xe]
        %v7201 = vld [vmem:[%s5690 + $0x10] sm:$0xf]
        %v7202 = vld [vmem:[%s5690 + $0x14] sm:$0x1]
        %v7203 = vld [vmem:[%s5690 + $0x18] sm:$0xe]
        %v7204 = vld [vmem:[%s5690 + $0x1c] sm:$0xf]
        %v7205 = vld [vmem:[%s5690 + $0x20] sm:$0x1]
        %v7206 = vld [vmem:[%s5690 + $0x24] sm:$0xe]
        %v7207 = vld [vmem:[%s5690 + $0x28] sm:$0xf]
        %v7208 = vld [vmem:[%s5690 + $0x2c] sm:$0x1]
        %v7209 = vld [vmem:[%s5690 + $0x30] sm:$0xe]
        %v7210 = vld [vmem:[%s5690 + $0x34] sm:$0xf]
        %v7211 = vld [vmem:[%s5690 + $0x38] sm:$0x1]
        %v7212 = vld [vmem:[%s5690 + $0x3c] sm:$0xe]
        %v7213 = vld [vmem:[%s5690 + $0x40] sm:$0xf]
        %v7214 = vld [vmem:[%s5690 + $0x44] sm:$0x1]
        %v7215 = vld [vmem:[%s5690 + $0x48] sm:$0xe]
        %v7216 = vld [vmem:[%s5690 + $0x4c] sm:$0xf]
        %v7217 = vld [vmem:[%s5690 + $0x50] sm:$0x1]
        %v7218 = vld [vmem:[%s5690 + $0x54] sm:$0xe]
        %v7219 = vld [vmem:[%s5690 + $0x58] sm:$0xf]
        %v7220 = vld [vmem:[%s5690 + $0x5c] sm:$0x1]
        %v7221 = vld [vmem:[%s5690 + $0x60] sm:$0xe]
        %v7222 = vld [vmem:[%s5690 + $0x64] sm:$0xf]
        %v7223 = vld [vmem:[%s5690 + $0x68] sm:$0x1]
        %v7224 = vld [vmem:[%s5690 + $0x6c] sm:$0xe]
        %v7225 = vld [vmem:[%s5690 + $0x70] sm:$0xf]
        %v7226 = vld [vmem:[%s5690 + $0x74] sm:$0x1]
        %v7227 = vld [vmem:[%s5690 + $0x78] sm:$0xe]
        %v7228 = vld [vmem:[%s5690 + $0x7c] sm:$0xf]
        %v7229 = vld [vmem:[%s5690 + $0x80] sm:$0x1]
        %v7230 = vld [vmem:[%s5690 + $0x84] sm:$0xe]
        %v7231 = vld [vmem:[%s5690 + $0x88] sm:$0xf]
        %v7232 = vld [vmem:[%s5690 + $0x8c] sm:$0x1]
        %v7233 = vld [vmem:[%s5690 + $0x90] sm:$0xe]
        %v7234 = vld [vmem:[%s5690 + $0x94] sm:$0xf]
        %v7235 = vld [vmem:[%s5690 + $0x98] sm:$0x1]
        %v7236 = vld [vmem:[%s5690 + $0x9c] sm:$0xe]
        %v7237 = vld [vmem:[%s5690 + $0xa0] sm:$0xf]
        %v7238 = vld [vmem:[%s5690 + $0xa4] sm:$0x1]
        %v7239 = vld [vmem:[%s5690 + $0xa8] sm:$0xe]
        %v7240 = vld [vmem:[%s5690 + $0xac] sm:$0xf]
        %v7241 = vld [vmem:[%s5690 + $0xb0] sm:$0x1]
        %v7242 = vld [vmem:[%s5690 + $0xb4] sm:$0xe]
        %v7243 = vld [vmem:[%s5690 + $0xb8] sm:$0xf]
        %v7244 = vld [vmem:[%s5690 + $0xbc] sm:$0x1]
        %v7293 = vrot.slane %v7197, 5
        %v7294 = vrot.slane %v7293, 4
        %v7295 = vrot.slane %v7198, 5
        %v7296 = vsel %vm998, %v7294, %v7295
        %v7297 = vrot.slane %v7295, 4
        %v7298 = vrot.slane %v7199, 5
        %v7299 = vsel %vm998, %v7297, %v7298
        %v7300 = vrot.slane %v7200, 5
        %v7301 = vrot.slane %v7300, 4
        %v7302 = vrot.slane %v7201, 5
        %v7303 = vsel %vm998, %v7301, %v7302
        %v7304 = vrot.slane %v7302, 4
        %v7305 = vrot.slane %v7202, 5
        %v7306 = vsel %vm998, %v7304, %v7305
        %v7307 = vrot.slane %v7203, 5
        %v7308 = vrot.slane %v7307, 4
        %v7309 = vrot.slane %v7204, 5
        %v7310 = vsel %vm998, %v7308, %v7309
        %v7311 = vrot.slane %v7309, 4
        %v7312 = vrot.slane %v7205, 5
        %v7313 = vsel %vm998, %v7311, %v7312
        %v7314 = vrot.slane %v7206, 5
        %v7315 = vrot.slane %v7314, 4
        %v7316 = vrot.slane %v7207, 5
        %v7317 = vsel %vm998, %v7315, %v7316
        %v7318 = vrot.slane %v7316, 4
        %v7319 = vrot.slane %v7208, 5
        %v7320 = vsel %vm998, %v7318, %v7319
        %v7321 = vrot.slane %v7209, 5
        %v7322 = vrot.slane %v7321, 4
        %v7323 = vrot.slane %v7210, 5
        %v7324 = vsel %vm998, %v7322, %v7323
        %v7325 = vrot.slane %v7323, 4
        %v7326 = vrot.slane %v7211, 5
        %v7327 = vsel %vm998, %v7325, %v7326
        %v7328 = vrot.slane %v7212, 5
        %v7329 = vrot.slane %v7328, 4
        %v7330 = vrot.slane %v7213, 5
        %v7331 = vsel %vm998, %v7329, %v7330
        %v7332 = vrot.slane %v7330, 4
        %v7333 = vrot.slane %v7214, 5
        %v7334 = vsel %vm998, %v7332, %v7333
        %v7335 = vrot.slane %v7215, 5
        %v7336 = vrot.slane %v7335, 4
        %v7337 = vrot.slane %v7216, 5
        %v7338 = vsel %vm998, %v7336, %v7337
        %v7339 = vrot.slane %v7337, 4
        %v7340 = vrot.slane %v7217, 5
        %v7341 = vsel %vm998, %v7339, %v7340
        %v7342 = vrot.slane %v7218, 5
        %v7343 = vrot.slane %v7342, 4
        %v7344 = vrot.slane %v7219, 5
        %v7345 = vsel %vm998, %v7343, %v7344
        %v7346 = vrot.slane %v7344, 4
        %v7347 = vrot.slane %v7220, 5
        %v7348 = vsel %vm998, %v7346, %v7347
        %v7349 = vrot.slane %v7221, 5
        %v7350 = vrot.slane %v7349, 4
        %v7351 = vrot.slane %v7222, 5
        %v7352 = vsel %vm998, %v7350, %v7351
        %v7353 = vrot.slane %v7351, 4
        %v7354 = vrot.slane %v7223, 5
        %v7355 = vsel %vm998, %v7353, %v7354
        %v7356 = vrot.slane %v7224, 5
        %v7357 = vrot.slane %v7356, 4
        %v7358 = vrot.slane %v7225, 5
        %v7359 = vsel %vm998, %v7357, %v7358
        %v7360 = vrot.slane %v7358, 4
        %v7361 = vrot.slane %v7226, 5
        %v7362 = vsel %vm998, %v7360, %v7361
        %v7363 = vrot.slane %v7227, 5
        %v7364 = vrot.slane %v7363, 4
        %v7365 = vrot.slane %v7228, 5
        %v7366 = vsel %vm998, %v7364, %v7365
        %v7367 = vrot.slane %v7365, 4
        %v7368 = vrot.slane %v7229, 5
        %v7369 = vsel %vm998, %v7367, %v7368
        %v7370 = vrot.slane %v7230, 5
        %v7371 = vrot.slane %v7370, 4
        %v7372 = vrot.slane %v7231, 5
        %v7373 = vsel %vm998, %v7371, %v7372
        %v7374 = vrot.slane %v7372, 4
        %v7375 = vrot.slane %v7232, 5
        %v7376 = vsel %vm998, %v7374, %v7375
        %v7377 = vrot.slane %v7233, 5
        %v7378 = vrot.slane %v7377, 4
        %v7379 = vrot.slane %v7234, 5
        %v7380 = vsel %vm998, %v7378, %v7379
        %v7381 = vrot.slane %v7379, 4
        %v7382 = vrot.slane %v7235, 5
        %v7383 = vsel %vm998, %v7381, %v7382
        %v7384 = vrot.slane %v7236, 5
        %v7385 = vrot.slane %v7384, 4
        %v7386 = vrot.slane %v7237, 5
        %v7387 = vsel %vm998, %v7385, %v7386
        %v7388 = vrot.slane %v7386, 4
        %v7389 = vrot.slane %v7238, 5
        %v7390 = vsel %vm998, %v7388, %v7389
        %v7391 = vrot.slane %v7239, 5
        %v7392 = vrot.slane %v7391, 4
        %v7393 = vrot.slane %v7240, 5
        %v7394 = vsel %vm998, %v7392, %v7393
        %v7395 = vrot.slane %v7393, 4
        %v7396 = vrot.slane %v7241, 5
        %v7397 = vsel %vm998, %v7395, %v7396
        %v7398 = vrot.slane %v7242, 5
        %v7399 = vrot.slane %v7398, 4
        %v7400 = vrot.slane %v7243, 5
        %v7401 = vsel %vm998, %v7399, %v7400
        %v7402 = vrot.slane %v7400, 4
        %v7403 = vrot.slane %v7244, 5
        %v7404 = vsel %vm998, %v7402, %v7403
        %7437 = vst [vmem:[#allocation2 + $0x14] sm:$0xf] %v7296
        %7438 = vst [vmem:[#allocation2 + $0x38] sm:$0xf] %v7299
        %7439 = vst [vmem:[#allocation2 + $0x5c] sm:$0xf] %v7303
        %7440 = vst [vmem:[#allocation2 + $0x80] sm:$0xf] %v7306
        %7441 = vst [vmem:[#allocation2 + $0xa4] sm:$0xf] %v7310
        %7442 = vst [vmem:[#allocation2 + $0xc8] sm:$0xf] %v7313
        %7443 = vst [vmem:[#allocation2 + $0xec] sm:$0xf] %v7317
        %7444 = vst [vmem:[#allocation2 + $0x110] sm:$0xf] %v7320
        %7445 = vst [vmem:[#allocation2 + $0x134] sm:$0xf] %v7324
        %7446 = vst [vmem:[#allocation2 + $0x158] sm:$0xf] %v7327
        %7447 = vst [vmem:[#allocation2 + $0x17c] sm:$0xf] %v7331
        %7448 = vst [vmem:[#allocation2 + $0x1a0] sm:$0xf] %v7334
        %7449 = vst [vmem:[#allocation2 + $0x1c4] sm:$0xf] %v7338
        %7450 = vst [vmem:[#allocation2 + $0x1e8] sm:$0xf] %v7341
        %7451 = vst [vmem:[#allocation2 + $0x20c] sm:$0xf] %v7345
        %7452 = vst [vmem:[#allocation2 + $0x230] sm:$0xf] %v7348
        %7453 = vst [vmem:[#allocation2 + $0x254] sm:$0xf] %v7352
        %7454 = vst [vmem:[#allocation2 + $0x278] sm:$0xf] %v7355
        %7455 = vst [vmem:[#allocation2 + $0x29c] sm:$0xf] %v7359
        %7456 = vst [vmem:[#allocation2 + $0x2c0] sm:$0xf] %v7362
        %7457 = vst [vmem:[#allocation2 + $0x2e4] sm:$0xf] %v7366
        %7458 = vst [vmem:[#allocation2 + $0x308] sm:$0xf] %v7369
        %7459 = vst [vmem:[#allocation2 + $0x32c] sm:$0xf] %v7373
        %7460 = vst [vmem:[#allocation2 + $0x350] sm:$0xf] %v7376
        %7461 = vst [vmem:[#allocation2 + $0x374] sm:$0xf] %v7380
        %7462 = vst [vmem:[#allocation2 + $0x398] sm:$0xf] %v7383
        %7463 = vst [vmem:[#allocation2 + $0x3bc] sm:$0xf] %v7387
        %7464 = vst [vmem:[#allocation2 + $0x3e0] sm:$0xf] %v7390
        %7465 = vst [vmem:[#allocation2 + $0x404] sm:$0xf] %v7394
        %7466 = vst [vmem:[#allocation2 + $0x428] sm:$0xf] %v7397
        %7467 = vst [vmem:[#allocation2 + $0x44c] sm:$0xf] %v7401
        %7468 = vst [vmem:[#allocation2 + $0x470] sm:$0xf] %v7404
        %s7469 = scalar_lea.vmem [#allocation3], 24
        %v7470 = vld [vmem:[%s7469] sm:$0xf]
        %v7471 = vld [vmem:[%s7469 + $0x4] sm:$0xf]
        %v7472 = vld [vmem:[%s7469 + $0xc] sm:$0xf]
        %v7473 = vld [vmem:[%s7469 + $0x10] sm:$0xf]
        %v7474 = vld [vmem:[%s7469 + $0x18] sm:$0xf]
        %v7475 = vld [vmem:[%s7469 + $0x1c] sm:$0xf]
        %v7476 = vld [vmem:[%s7469 + $0x24] sm:$0xf]
        %v7477 = vld [vmem:[%s7469 + $0x28] sm:$0xf]
        %v7478 = vld [vmem:[%s7469 + $0x30] sm:$0xf]
        %v7479 = vld [vmem:[%s7469 + $0x34] sm:$0xf]
        %v7480 = vld [vmem:[%s7469 + $0x3c] sm:$0xf]
        %v7481 = vld [vmem:[%s7469 + $0x40] sm:$0xf]
        %v7482 = vld [vmem:[%s7469 + $0x48] sm:$0xf]
        %v7483 = vld [vmem:[%s7469 + $0x4c] sm:$0xf]
        %v7484 = vld [vmem:[%s7469 + $0x54] sm:$0xf]
        %v7485 = vld [vmem:[%s7469 + $0x58] sm:$0xf]
        %v7486 = vld [vmem:[%s7469 + $0x60] sm:$0xf]
        %v7487 = vld [vmem:[%s7469 + $0x64] sm:$0xf]
        %v7488 = vld [vmem:[%s7469 + $0x6c] sm:$0xf]
        %v7489 = vld [vmem:[%s7469 + $0x70] sm:$0xf]
        %v7490 = vld [vmem:[%s7469 + $0x78] sm:$0xf]
        %v7491 = vld [vmem:[%s7469 + $0x7c] sm:$0xf]
        %v7492 = vld [vmem:[%s7469 + $0x84] sm:$0xf]
        %v7493 = vld [vmem:[%s7469 + $0x88] sm:$0xf]
        %v7494 = vld [vmem:[%s7469 + $0x90] sm:$0xf]
        %v7495 = vld [vmem:[%s7469 + $0x94] sm:$0xf]
        %v7496 = vld [vmem:[%s7469 + $0x9c] sm:$0xf]
        %v7497 = vld [vmem:[%s7469 + $0xa0] sm:$0xf]
        %v7498 = vld [vmem:[%s7469 + $0xa8] sm:$0xf]
        %v7499 = vld [vmem:[%s7469 + $0xac] sm:$0xf]
        %v7500 = vld [vmem:[%s7469 + $0xb4] sm:$0xf]
        %v7501 = vld [vmem:[%s7469 + $0xb8] sm:$0xf]
        %7502 = vst [vmem:[#allocation2 + $0x18] sm:$0xf] %v7470
        %7503 = vst [vmem:[#allocation2 + $0x3c] sm:$0xf] %v7471
        %7504 = vst [vmem:[#allocation2 + $0x60] sm:$0xf] %v7472
        %7505 = vst [vmem:[#allocation2 + $0x84] sm:$0xf] %v7473
        %7506 = vst [vmem:[#allocation2 + $0xa8] sm:$0xf] %v7474
        %7507 = vst [vmem:[#allocation2 + $0xcc] sm:$0xf] %v7475
        %7508 = vst [vmem:[#allocation2 + $0xf0] sm:$0xf] %v7476
        %7509 = vst [vmem:[#allocation2 + $0x114] sm:$0xf] %v7477
        %7510 = vst [vmem:[#allocation2 + $0x138] sm:$0xf] %v7478
        %7511 = vst [vmem:[#allocation2 + $0x15c] sm:$0xf] %v7479
        %7512 = vst [vmem:[#allocation2 + $0x180] sm:$0xf] %v7480
        %7513 = vst [vmem:[#allocation2 + $0x1a4] sm:$0xf] %v7481
        %7514 = vst [vmem:[#allocation2 + $0x1c8] sm:$0xf] %v7482
        %7515 = vst [vmem:[#allocation2 + $0x1ec] sm:$0xf] %v7483
        %7516 = vst [vmem:[#allocation2 + $0x210] sm:$0xf] %v7484
        %7517 = vst [vmem:[#allocation2 + $0x234] sm:$0xf] %v7485
        %7518 = vst [vmem:[#allocation2 + $0x258] sm:$0xf] %v7486
        %7519 = vst [vmem:[#allocation2 + $0x27c] sm:$0xf] %v7487
        %7520 = vst [vmem:[#allocation2 + $0x2a0] sm:$0xf] %v7488
        %7521 = vst [vmem:[#allocation2 + $0x2c4] sm:$0xf] %v7489
        %7522 = vst [vmem:[#allocation2 + $0x2e8] sm:$0xf] %v7490
        %7523 = vst [vmem:[#allocation2 + $0x30c] sm:$0xf] %v7491
        %7524 = vst [vmem:[#allocation2 + $0x330] sm:$0xf] %v7492
        %7525 = vst [vmem:[#allocation2 + $0x354] sm:$0xf] %v7493
        %7526 = vst [vmem:[#allocation2 + $0x378] sm:$0xf] %v7494
        %7527 = vst [vmem:[#allocation2 + $0x39c] sm:$0xf] %v7495
        %7528 = vst [vmem:[#allocation2 + $0x3c0] sm:$0xf] %v7496
        %7529 = vst [vmem:[#allocation2 + $0x3e4] sm:$0xf] %v7497
        %7530 = vst [vmem:[#allocation2 + $0x408] sm:$0xf] %v7498
        %7531 = vst [vmem:[#allocation2 + $0x42c] sm:$0xf] %v7499
        %7532 = vst [vmem:[#allocation2 + $0x450] sm:$0xf] %v7500
        %7533 = vst [vmem:[#allocation2 + $0x474] sm:$0xf] %v7501
        %v7534 = vld [vmem:[%s7469] sm:$0xf]
        %v7535 = vld [vmem:[%s7469 + $0x4] sm:$0xf]
        %v7536 = vld [vmem:[%s7469 + $0x8] sm:$0x1]
        %v7537 = vld [vmem:[%s7469 + $0xc] sm:$0xf]
        %v7538 = vld [vmem:[%s7469 + $0x10] sm:$0xf]
        %v7539 = vld [vmem:[%s7469 + $0x14] sm:$0x1]
        %v7540 = vld [vmem:[%s7469 + $0x18] sm:$0xf]
        %v7541 = vld [vmem:[%s7469 + $0x1c] sm:$0xf]
        %v7542 = vld [vmem:[%s7469 + $0x20] sm:$0x1]
        %v7543 = vld [vmem:[%s7469 + $0x24] sm:$0xf]
        %v7544 = vld [vmem:[%s7469 + $0x28] sm:$0xf]
        %v7545 = vld [vmem:[%s7469 + $0x2c] sm:$0x1]
        %v7546 = vld [vmem:[%s7469 + $0x30] sm:$0xf]
        %v7547 = vld [vmem:[%s7469 + $0x34] sm:$0xf]
        %v7548 = vld [vmem:[%s7469 + $0x38] sm:$0x1]
        %v7549 = vld [vmem:[%s7469 + $0x3c] sm:$0xf]
        %v7550 = vld [vmem:[%s7469 + $0x40] sm:$0xf]
        %v7551 = vld [vmem:[%s7469 + $0x44] sm:$0x1]
        %v7552 = vld [vmem:[%s7469 + $0x48] sm:$0xf]
        %v7553 = vld [vmem:[%s7469 + $0x4c] sm:$0xf]
        %v7554 = vld [vmem:[%s7469 + $0x50] sm:$0x1]
        %v7555 = vld [vmem:[%s7469 + $0x54] sm:$0xf]
        %v7556 = vld [vmem:[%s7469 + $0x58] sm:$0xf]
        %v7557 = vld [vmem:[%s7469 + $0x5c] sm:$0x1]
        %v7558 = vld [vmem:[%s7469 + $0x60] sm:$0xf]
        %v7559 = vld [vmem:[%s7469 + $0x64] sm:$0xf]
        %v7560 = vld [vmem:[%s7469 + $0x68] sm:$0x1]
        %v7561 = vld [vmem:[%s7469 + $0x6c] sm:$0xf]
        %v7562 = vld [vmem:[%s7469 + $0x70] sm:$0xf]
        %v7563 = vld [vmem:[%s7469 + $0x74] sm:$0x1]
        %v7564 = vld [vmem:[%s7469 + $0x78] sm:$0xf]
        %v7565 = vld [vmem:[%s7469 + $0x7c] sm:$0xf]
        %v7566 = vld [vmem:[%s7469 + $0x80] sm:$0x1]
        %v7567 = vld [vmem:[%s7469 + $0x84] sm:$0xf]
        %v7568 = vld [vmem:[%s7469 + $0x88] sm:$0xf]
        %v7569 = vld [vmem:[%s7469 + $0x8c] sm:$0x1]
        %v7570 = vld [vmem:[%s7469 + $0x90] sm:$0xf]
        %v7571 = vld [vmem:[%s7469 + $0x94] sm:$0xf]
        %v7572 = vld [vmem:[%s7469 + $0x98] sm:$0x1]
        %v7573 = vld [vmem:[%s7469 + $0x9c] sm:$0xf]
        %v7574 = vld [vmem:[%s7469 + $0xa0] sm:$0xf]
        %v7575 = vld [vmem:[%s7469 + $0xa4] sm:$0x1]
        %v7576 = vld [vmem:[%s7469 + $0xa8] sm:$0xf]
        %v7577 = vld [vmem:[%s7469 + $0xac] sm:$0xf]
        %v7578 = vld [vmem:[%s7469 + $0xb0] sm:$0x1]
        %v7579 = vld [vmem:[%s7469 + $0xb4] sm:$0xf]
        %v7580 = vld [vmem:[%s7469 + $0xb8] sm:$0xf]
        %v7581 = vld [vmem:[%s7469 + $0xbc] sm:$0x1]
        %v7583 = vshrl.u32 %v7534, 16
        %v7585 = vrot.slane %v7583, 4
        %v7586 = vshll.u32 %v7534, 16
        %v7588 = vrot.slane %v7586, 5
        %v7589 = vor.u32 %v7585, %v7588
        %v7590 = vrot.slane %v7589, 4
        %v7592 = vshll.u32 %v7535, 16
        %v7594 = vrot.slane %v7592, 5
        %v7595 = vsel %vm451, %v7590, %v7594
        %v7596 = vshrl.u32 %v7535, 16
        %v7598 = vrot.slane %v7596, 4
        %v7599 = vor.u32 %v7598, %v7594
        %v7600 = vrot.slane %v7599, 4
        %v7602 = vshll.u32 %v7536, 16
        %v7604 = vrot.slane %v7602, 5
        %v7605 = vsel %vm451, %v7600, %v7604
        %v7607 = vshrl.u32 %v7537, 16
        %v7609 = vrot.slane %v7607, 4
        %v7610 = vshll.u32 %v7537, 16
        %v7612 = vrot.slane %v7610, 5
        %v7613 = vor.u32 %v7609, %v7612
        %v7614 = vrot.slane %v7613, 4
        %v7616 = vshll.u32 %v7538, 16
        %v7618 = vrot.slane %v7616, 5
        %v7619 = vsel %vm451, %v7614, %v7618
        %v7620 = vshrl.u32 %v7538, 16
        %v7622 = vrot.slane %v7620, 4
        %v7623 = vor.u32 %v7622, %v7618
        %v7624 = vrot.slane %v7623, 4
        %v7626 = vshll.u32 %v7539, 16
        %v7628 = vrot.slane %v7626, 5
        %v7629 = vsel %vm451, %v7624, %v7628
        %v7631 = vshrl.u32 %v7540, 16
        %v7633 = vrot.slane %v7631, 4
        %v7634 = vshll.u32 %v7540, 16
        %v7636 = vrot.slane %v7634, 5
        %v7637 = vor.u32 %v7633, %v7636
        %v7638 = vrot.slane %v7637, 4
        %v7640 = vshll.u32 %v7541, 16
        %v7642 = vrot.slane %v7640, 5
        %v7643 = vsel %vm451, %v7638, %v7642
        %v7644 = vshrl.u32 %v7541, 16
        %v7646 = vrot.slane %v7644, 4
        %v7647 = vor.u32 %v7646, %v7642
        %v7648 = vrot.slane %v7647, 4
        %v7650 = vshll.u32 %v7542, 16
        %v7652 = vrot.slane %v7650, 5
        %v7653 = vsel %vm451, %v7648, %v7652
        %v7655 = vshrl.u32 %v7543, 16
        %v7657 = vrot.slane %v7655, 4
        %v7658 = vshll.u32 %v7543, 16
        %v7660 = vrot.slane %v7658, 5
        %v7661 = vor.u32 %v7657, %v7660
        %v7662 = vrot.slane %v7661, 4
        %v7664 = vshll.u32 %v7544, 16
        %v7666 = vrot.slane %v7664, 5
        %v7667 = vsel %vm451, %v7662, %v7666
        %v7668 = vshrl.u32 %v7544, 16
        %v7670 = vrot.slane %v7668, 4
        %v7671 = vor.u32 %v7670, %v7666
        %v7672 = vrot.slane %v7671, 4
        %v7674 = vshll.u32 %v7545, 16
        %v7676 = vrot.slane %v7674, 5
        %v7677 = vsel %vm451, %v7672, %v7676
        %v7679 = vshrl.u32 %v7546, 16
        %v7681 = vrot.slane %v7679, 4
        %v7682 = vshll.u32 %v7546, 16
        %v7684 = vrot.slane %v7682, 5
        %v7685 = vor.u32 %v7681, %v7684
        %v7686 = vrot.slane %v7685, 4
        %v7688 = vshll.u32 %v7547, 16
        %v7690 = vrot.slane %v7688, 5
        %v7691 = vsel %vm451, %v7686, %v7690
        %v7692 = vshrl.u32 %v7547, 16
        %v7694 = vrot.slane %v7692, 4
        %v7695 = vor.u32 %v7694, %v7690
        %v7696 = vrot.slane %v7695, 4
        %v7698 = vshll.u32 %v7548, 16
        %v7700 = vrot.slane %v7698, 5
        %v7701 = vsel %vm451, %v7696, %v7700
        %v7703 = vshrl.u32 %v7549, 16
        %v7705 = vrot.slane %v7703, 4
        %v7706 = vshll.u32 %v7549, 16
        %v7708 = vrot.slane %v7706, 5
        %v7709 = vor.u32 %v7705, %v7708
        %v7710 = vrot.slane %v7709, 4
        %v7712 = vshll.u32 %v7550, 16
        %v7714 = vrot.slane %v7712, 5
        %v7715 = vsel %vm451, %v7710, %v7714
        %v7716 = vshrl.u32 %v7550, 16
        %v7718 = vrot.slane %v7716, 4
        %v7719 = vor.u32 %v7718, %v7714
        %v7720 = vrot.slane %v7719, 4
        %v7722 = vshll.u32 %v7551, 16
        %v7724 = vrot.slane %v7722, 5
        %v7725 = vsel %vm451, %v7720, %v7724
        %v7727 = vshrl.u32 %v7552, 16
        %v7729 = vrot.slane %v7727, 4
        %v7730 = vshll.u32 %v7552, 16
        %v7732 = vrot.slane %v7730, 5
        %v7733 = vor.u32 %v7729, %v7732
        %v7734 = vrot.slane %v7733, 4
        %v7736 = vshll.u32 %v7553, 16
        %v7738 = vrot.slane %v7736, 5
        %v7739 = vsel %vm451, %v7734, %v7738
        %v7740 = vshrl.u32 %v7553, 16
        %v7742 = vrot.slane %v7740, 4
        %v7743 = vor.u32 %v7742, %v7738
        %v7744 = vrot.slane %v7743, 4
        %v7746 = vshll.u32 %v7554, 16
        %v7748 = vrot.slane %v7746, 5
        %v7749 = vsel %vm451, %v7744, %v7748
        %v7751 = vshrl.u32 %v7555, 16
        %v7753 = vrot.slane %v7751, 4
        %v7754 = vshll.u32 %v7555, 16
        %v7756 = vrot.slane %v7754, 5
        %v7757 = vor.u32 %v7753, %v7756
        %v7758 = vrot.slane %v7757, 4
        %v7760 = vshll.u32 %v7556, 16
        %v7762 = vrot.slane %v7760, 5
        %v7763 = vsel %vm451, %v7758, %v7762
        %v7764 = vshrl.u32 %v7556, 16
        %v7766 = vrot.slane %v7764, 4
        %v7767 = vor.u32 %v7766, %v7762
        %v7768 = vrot.slane %v7767, 4
        %v7770 = vshll.u32 %v7557, 16
        %v7772 = vrot.slane %v7770, 5
        %v7773 = vsel %vm451, %v7768, %v7772
        %v7775 = vshrl.u32 %v7558, 16
        %v7777 = vrot.slane %v7775, 4
        %v7778 = vshll.u32 %v7558, 16
        %v7780 = vrot.slane %v7778, 5
        %v7781 = vor.u32 %v7777, %v7780
        %v7782 = vrot.slane %v7781, 4
        %v7784 = vshll.u32 %v7559, 16
        %v7786 = vrot.slane %v7784, 5
        %v7787 = vsel %vm451, %v7782, %v7786
        %v7788 = vshrl.u32 %v7559, 16
        %v7790 = vrot.slane %v7788, 4
        %v7791 = vor.u32 %v7790, %v7786
        %v7792 = vrot.slane %v7791, 4
        %v7794 = vshll.u32 %v7560, 16
        %v7796 = vrot.slane %v7794, 5
        %v7797 = vsel %vm451, %v7792, %v7796
        %v7799 = vshrl.u32 %v7561, 16
        %v7801 = vrot.slane %v7799, 4
        %v7802 = vshll.u32 %v7561, 16
        %v7804 = vrot.slane %v7802, 5
        %v7805 = vor.u32 %v7801, %v7804
        %v7806 = vrot.slane %v7805, 4
        %v7808 = vshll.u32 %v7562, 16
        %v7810 = vrot.slane %v7808, 5
        %v7811 = vsel %vm451, %v7806, %v7810
        %v7812 = vshrl.u32 %v7562, 16
        %v7814 = vrot.slane %v7812, 4
        %v7815 = vor.u32 %v7814, %v7810
        %v7816 = vrot.slane %v7815, 4
        %v7818 = vshll.u32 %v7563, 16
        %v7820 = vrot.slane %v7818, 5
        %v7821 = vsel %vm451, %v7816, %v7820
        %v7823 = vshrl.u32 %v7564, 16
        %v7825 = vrot.slane %v7823, 4
        %v7826 = vshll.u32 %v7564, 16
        %v7828 = vrot.slane %v7826, 5
        %v7829 = vor.u32 %v7825, %v7828
        %v7830 = vrot.slane %v7829, 4
        %v7832 = vshll.u32 %v7565, 16
        %v7834 = vrot.slane %v7832, 5
        %v7835 = vsel %vm451, %v7830, %v7834
        %v7836 = vshrl.u32 %v7565, 16
        %v7838 = vrot.slane %v7836, 4
        %v7839 = vor.u32 %v7838, %v7834
        %v7840 = vrot.slane %v7839, 4
        %v7842 = vshll.u32 %v7566, 16
        %v7844 = vrot.slane %v7842, 5
        %v7845 = vsel %vm451, %v7840, %v7844
        %v7847 = vshrl.u32 %v7567, 16
        %v7849 = vrot.slane %v7847, 4
        %v7850 = vshll.u32 %v7567, 16
        %v7852 = vrot.slane %v7850, 5
        %v7853 = vor.u32 %v7849, %v7852
        %v7854 = vrot.slane %v7853, 4
        %v7856 = vshll.u32 %v7568, 16
        %v7858 = vrot.slane %v7856, 5
        %v7859 = vsel %vm451, %v7854, %v7858
        %v7860 = vshrl.u32 %v7568, 16
        %v7862 = vrot.slane %v7860, 4
        %v7863 = vor.u32 %v7862, %v7858
        %v7864 = vrot.slane %v7863, 4
        %v7866 = vshll.u32 %v7569, 16
        %v7868 = vrot.slane %v7866, 5
        %v7869 = vsel %vm451, %v7864, %v7868
        %v7871 = vshrl.u32 %v7570, 16
        %v7873 = vrot.slane %v7871, 4
        %v7874 = vshll.u32 %v7570, 16
        %v7876 = vrot.slane %v7874, 5
        %v7877 = vor.u32 %v7873, %v7876
        %v7878 = vrot.slane %v7877, 4
        %v7880 = vshll.u32 %v7571, 16
        %v7882 = vrot.slane %v7880, 5
        %v7883 = vsel %vm451, %v7878, %v7882
        %v7884 = vshrl.u32 %v7571, 16
        %v7886 = vrot.slane %v7884, 4
        %v7887 = vor.u32 %v7886, %v7882
        %v7888 = vrot.slane %v7887, 4
        %v7890 = vshll.u32 %v7572, 16
        %v7892 = vrot.slane %v7890, 5
        %v7893 = vsel %vm451, %v7888, %v7892
        %v7895 = vshrl.u32 %v7573, 16
        %v7897 = vrot.slane %v7895, 4
        %v7898 = vshll.u32 %v7573, 16
        %v7900 = vrot.slane %v7898, 5
        %v7901 = vor.u32 %v7897, %v7900
        %v7902 = vrot.slane %v7901, 4
        %v7904 = vshll.u32 %v7574, 16
        %v7906 = vrot.slane %v7904, 5
        %v7907 = vsel %vm451, %v7902, %v7906
        %v7908 = vshrl.u32 %v7574, 16
        %v7910 = vrot.slane %v7908, 4
        %v7911 = vor.u32 %v7910, %v7906
        %v7912 = vrot.slane %v7911, 4
        %v7914 = vshll.u32 %v7575, 16
        %v7916 = vrot.slane %v7914, 5
        %v7917 = vsel %vm451, %v7912, %v7916
        %v7919 = vshrl.u32 %v7576, 16
        %v7921 = vrot.slane %v7919, 4
        %v7922 = vshll.u32 %v7576, 16
        %v7924 = vrot.slane %v7922, 5
        %v7925 = vor.u32 %v7921, %v7924
        %v7926 = vrot.slane %v7925, 4
        %v7928 = vshll.u32 %v7577, 16
        %v7930 = vrot.slane %v7928, 5
        %v7931 = vsel %vm451, %v7926, %v7930
        %v7932 = vshrl.u32 %v7577, 16
        %v7934 = vrot.slane %v7932, 4
        %v7935 = vor.u32 %v7934, %v7930
        %v7936 = vrot.slane %v7935, 4
        %v7938 = vshll.u32 %v7578, 16
        %v7940 = vrot.slane %v7938, 5
        %v7941 = vsel %vm451, %v7936, %v7940
        %v7943 = vshrl.u32 %v7579, 16
        %v7945 = vrot.slane %v7943, 4
        %v7946 = vshll.u32 %v7579, 16
        %v7948 = vrot.slane %v7946, 5
        %v7949 = vor.u32 %v7945, %v7948
        %v7950 = vrot.slane %v7949, 4
        %v7952 = vshll.u32 %v7580, 16
        %v7954 = vrot.slane %v7952, 5
        %v7955 = vsel %vm451, %v7950, %v7954
        %v7956 = vshrl.u32 %v7580, 16
        %v7958 = vrot.slane %v7956, 4
        %v7959 = vor.u32 %v7958, %v7954
        %v7960 = vrot.slane %v7959, 4
        %v7962 = vshll.u32 %v7581, 16
        %v7964 = vrot.slane %v7962, 5
        %v7965 = vsel %vm451, %v7960, %v7964
        %7998 = vst [vmem:[#allocation2 + $0x1c] sm:$0xf] %v7595
        %7999 = vst [vmem:[#allocation2 + $0x40] sm:$0xf] %v7605
        %8000 = vst [vmem:[#allocation2 + $0x64] sm:$0xf] %v7619
        %8001 = vst [vmem:[#allocation2 + $0x88] sm:$0xf] %v7629
        %8002 = vst [vmem:[#allocation2 + $0xac] sm:$0xf] %v7643
        %8003 = vst [vmem:[#allocation2 + $0xd0] sm:$0xf] %v7653
        %8004 = vst [vmem:[#allocation2 + $0xf4] sm:$0xf] %v7667
        %8005 = vst [vmem:[#allocation2 + $0x118] sm:$0xf] %v7677
        %8006 = vst [vmem:[#allocation2 + $0x13c] sm:$0xf] %v7691
        %8007 = vst [vmem:[#allocation2 + $0x160] sm:$0xf] %v7701
        %8008 = vst [vmem:[#allocation2 + $0x184] sm:$0xf] %v7715
        %8009 = vst [vmem:[#allocation2 + $0x1a8] sm:$0xf] %v7725
        %8010 = vst [vmem:[#allocation2 + $0x1cc] sm:$0xf] %v7739
        %8011 = vst [vmem:[#allocation2 + $0x1f0] sm:$0xf] %v7749
        %8012 = vst [vmem:[#allocation2 + $0x214] sm:$0xf] %v7763
        %8013 = vst [vmem:[#allocation2 + $0x238] sm:$0xf] %v7773
        %8014 = vst [vmem:[#allocation2 + $0x25c] sm:$0xf] %v7787
        %8015 = vst [vmem:[#allocation2 + $0x280] sm:$0xf] %v7797
        %8016 = vst [vmem:[#allocation2 + $0x2a4] sm:$0xf] %v7811
        %8017 = vst [vmem:[#allocation2 + $0x2c8] sm:$0xf] %v7821
        %8018 = vst [vmem:[#allocation2 + $0x2ec] sm:$0xf] %v7835
        %8019 = vst [vmem:[#allocation2 + $0x310] sm:$0xf] %v7845
        %8020 = vst [vmem:[#allocation2 + $0x334] sm:$0xf] %v7859
        %8021 = vst [vmem:[#allocation2 + $0x358] sm:$0xf] %v7869
        %8022 = vst [vmem:[#allocation2 + $0x37c] sm:$0xf] %v7883
        %8023 = vst [vmem:[#allocation2 + $0x3a0] sm:$0xf] %v7893
        %8024 = vst [vmem:[#allocation2 + $0x3c4] sm:$0xf] %v7907
        %8025 = vst [vmem:[#allocation2 + $0x3e8] sm:$0xf] %v7917
        %8026 = vst [vmem:[#allocation2 + $0x40c] sm:$0xf] %v7931
        %8027 = vst [vmem:[#allocation2 + $0x430] sm:$0xf] %v7941
        %8028 = vst [vmem:[#allocation2 + $0x454] sm:$0xf] %v7955
        %8029 = vst [vmem:[#allocation2 + $0x478] sm:$0xf] %v7965
        %v8030 = vld [vmem:[%s7469] sm:$0xe]
        %v8031 = vld [vmem:[%s7469 + $0x4] sm:$0xf]
        %v8032 = vld [vmem:[%s7469 + $0x8] sm:$0x1]
        %v8033 = vld [vmem:[%s7469 + $0xc] sm:$0xe]
        %v8034 = vld [vmem:[%s7469 + $0x10] sm:$0xf]
        %v8035 = vld [vmem:[%s7469 + $0x14] sm:$0x1]
        %v8036 = vld [vmem:[%s7469 + $0x18] sm:$0xe]
        %v8037 = vld [vmem:[%s7469 + $0x1c] sm:$0xf]
        %v8038 = vld [vmem:[%s7469 + $0x20] sm:$0x1]
        %v8039 = vld [vmem:[%s7469 + $0x24] sm:$0xe]
        %v8040 = vld [vmem:[%s7469 + $0x28] sm:$0xf]
        %v8041 = vld [vmem:[%s7469 + $0x2c] sm:$0x1]
        %v8042 = vld [vmem:[%s7469 + $0x30] sm:$0xe]
        %v8043 = vld [vmem:[%s7469 + $0x34] sm:$0xf]
        %v8044 = vld [vmem:[%s7469 + $0x38] sm:$0x1]
        %v8045 = vld [vmem:[%s7469 + $0x3c] sm:$0xe]
        %v8046 = vld [vmem:[%s7469 + $0x40] sm:$0xf]
        %v8047 = vld [vmem:[%s7469 + $0x44] sm:$0x1]
        %v8048 = vld [vmem:[%s7469 + $0x48] sm:$0xe]
        %v8049 = vld [vmem:[%s7469 + $0x4c] sm:$0xf]
        %v8050 = vld [vmem:[%s7469 + $0x50] sm:$0x1]
        %v8051 = vld [vmem:[%s7469 + $0x54] sm:$0xe]
        %v8052 = vld [vmem:[%s7469 + $0x58] sm:$0xf]
        %v8053 = vld [vmem:[%s7469 + $0x5c] sm:$0x1]
        %v8054 = vld [vmem:[%s7469 + $0x60] sm:$0xe]
        %v8055 = vld [vmem:[%s7469 + $0x64] sm:$0xf]
        %v8056 = vld [vmem:[%s7469 + $0x68] sm:$0x1]
        %v8057 = vld [vmem:[%s7469 + $0x6c] sm:$0xe]
        %v8058 = vld [vmem:[%s7469 + $0x70] sm:$0xf]
        %v8059 = vld [vmem:[%s7469 + $0x74] sm:$0x1]
        %v8060 = vld [vmem:[%s7469 + $0x78] sm:$0xe]
        %v8061 = vld [vmem:[%s7469 + $0x7c] sm:$0xf]
        %v8062 = vld [vmem:[%s7469 + $0x80] sm:$0x1]
        %v8063 = vld [vmem:[%s7469 + $0x84] sm:$0xe]
        %v8064 = vld [vmem:[%s7469 + $0x88] sm:$0xf]
        %v8065 = vld [vmem:[%s7469 + $0x8c] sm:$0x1]
        %v8066 = vld [vmem:[%s7469 + $0x90] sm:$0xe]
        %v8067 = vld [vmem:[%s7469 + $0x94] sm:$0xf]
        %v8068 = vld [vmem:[%s7469 + $0x98] sm:$0x1]
        %v8069 = vld [vmem:[%s7469 + $0x9c] sm:$0xe]
        %v8070 = vld [vmem:[%s7469 + $0xa0] sm:$0xf]
        %v8071 = vld [vmem:[%s7469 + $0xa4] sm:$0x1]
        %v8072 = vld [vmem:[%s7469 + $0xa8] sm:$0xe]
        %v8073 = vld [vmem:[%s7469 + $0xac] sm:$0xf]
        %v8074 = vld [vmem:[%s7469 + $0xb0] sm:$0x1]
        %v8075 = vld [vmem:[%s7469 + $0xb4] sm:$0xe]
        %v8076 = vld [vmem:[%s7469 + $0xb8] sm:$0xf]
        %v8077 = vld [vmem:[%s7469 + $0xbc] sm:$0x1]
        %v8126 = vrot.slane %v8030, 5
        %v8127 = vrot.slane %v8126, 4
        %v8128 = vrot.slane %v8031, 5
        %v8129 = vsel %vm998, %v8127, %v8128
        %v8130 = vrot.slane %v8128, 4
        %v8131 = vrot.slane %v8032, 5
        %v8132 = vsel %vm998, %v8130, %v8131
        %v8133 = vrot.slane %v8033, 5
        %v8134 = vrot.slane %v8133, 4
        %v8135 = vrot.slane %v8034, 5
        %v8136 = vsel %vm998, %v8134, %v8135
        %v8137 = vrot.slane %v8135, 4
        %v8138 = vrot.slane %v8035, 5
        %v8139 = vsel %vm998, %v8137, %v8138
        %v8140 = vrot.slane %v8036, 5
        %v8141 = vrot.slane %v8140, 4
        %v8142 = vrot.slane %v8037, 5
        %v8143 = vsel %vm998, %v8141, %v8142
        %v8144 = vrot.slane %v8142, 4
        %v8145 = vrot.slane %v8038, 5
        %v8146 = vsel %vm998, %v8144, %v8145
        %v8147 = vrot.slane %v8039, 5
        %v8148 = vrot.slane %v8147, 4
        %v8149 = vrot.slane %v8040, 5
        %v8150 = vsel %vm998, %v8148, %v8149
        %v8151 = vrot.slane %v8149, 4
        %v8152 = vrot.slane %v8041, 5
        %v8153 = vsel %vm998, %v8151, %v8152
        %v8154 = vrot.slane %v8042, 5
        %v8155 = vrot.slane %v8154, 4
        %v8156 = vrot.slane %v8043, 5
        %v8157 = vsel %vm998, %v8155, %v8156
        %v8158 = vrot.slane %v8156, 4
        %v8159 = vrot.slane %v8044, 5
        %v8160 = vsel %vm998, %v8158, %v8159
        %v8161 = vrot.slane %v8045, 5
        %v8162 = vrot.slane %v8161, 4
        %v8163 = vrot.slane %v8046, 5
        %v8164 = vsel %vm998, %v8162, %v8163
        %v8165 = vrot.slane %v8163, 4
        %v8166 = vrot.slane %v8047, 5
        %v8167 = vsel %vm998, %v8165, %v8166
        %v8168 = vrot.slane %v8048, 5
        %v8169 = vrot.slane %v8168, 4
        %v8170 = vrot.slane %v8049, 5
        %v8171 = vsel %vm998, %v8169, %v8170
        %v8172 = vrot.slane %v8170, 4
        %v8173 = vrot.slane %v8050, 5
        %v8174 = vsel %vm998, %v8172, %v8173
        %v8175 = vrot.slane %v8051, 5
        %v8176 = vrot.slane %v8175, 4
        %v8177 = vrot.slane %v8052, 5
        %v8178 = vsel %vm998, %v8176, %v8177
        %v8179 = vrot.slane %v8177, 4
        %v8180 = vrot.slane %v8053, 5
        %v8181 = vsel %vm998, %v8179, %v8180
        %v8182 = vrot.slane %v8054, 5
        %v8183 = vrot.slane %v8182, 4
        %v8184 = vrot.slane %v8055, 5
        %v8185 = vsel %vm998, %v8183, %v8184
        %v8186 = vrot.slane %v8184, 4
        %v8187 = vrot.slane %v8056, 5
        %v8188 = vsel %vm998, %v8186, %v8187
        %v8189 = vrot.slane %v8057, 5
        %v8190 = vrot.slane %v8189, 4
        %v8191 = vrot.slane %v8058, 5
        %v8192 = vsel %vm998, %v8190, %v8191
        %v8193 = vrot.slane %v8191, 4
        %v8194 = vrot.slane %v8059, 5
        %v8195 = vsel %vm998, %v8193, %v8194
        %v8196 = vrot.slane %v8060, 5
        %v8197 = vrot.slane %v8196, 4
        %v8198 = vrot.slane %v8061, 5
        %v8199 = vsel %vm998, %v8197, %v8198
        %v8200 = vrot.slane %v8198, 4
        %v8201 = vrot.slane %v8062, 5
        %v8202 = vsel %vm998, %v8200, %v8201
        %v8203 = vrot.slane %v8063, 5
        %v8204 = vrot.slane %v8203, 4
        %v8205 = vrot.slane %v8064, 5
        %v8206 = vsel %vm998, %v8204, %v8205
        %v8207 = vrot.slane %v8205, 4
        %v8208 = vrot.slane %v8065, 5
        %v8209 = vsel %vm998, %v8207, %v8208
        %v8210 = vrot.slane %v8066, 5
        %v8211 = vrot.slane %v8210, 4
        %v8212 = vrot.slane %v8067, 5
        %v8213 = vsel %vm998, %v8211, %v8212
        %v8214 = vrot.slane %v8212, 4
        %v8215 = vrot.slane %v8068, 5
        %v8216 = vsel %vm998, %v8214, %v8215
        %v8217 = vrot.slane %v8069, 5
        %v8218 = vrot.slane %v8217, 4
        %v8219 = vrot.slane %v8070, 5
        %v8220 = vsel %vm998, %v8218, %v8219
        %v8221 = vrot.slane %v8219, 4
        %v8222 = vrot.slane %v8071, 5
        %v8223 = vsel %vm998, %v8221, %v8222
        %v8224 = vrot.slane %v8072, 5
        %v8225 = vrot.slane %v8224, 4
        %v8226 = vrot.slane %v8073, 5
        %v8227 = vsel %vm998, %v8225, %v8226
        %v8228 = vrot.slane %v8226, 4
        %v8229 = vrot.slane %v8074, 5
        %v8230 = vsel %vm998, %v8228, %v8229
        %v8231 = vrot.slane %v8075, 5
        %v8232 = vrot.slane %v8231, 4
        %v8233 = vrot.slane %v8076, 5
        %v8234 = vsel %vm998, %v8232, %v8233
        %v8235 = vrot.slane %v8233, 4
        %v8236 = vrot.slane %v8077, 5
        %v8237 = vsel %vm998, %v8235, %v8236
        %8270 = vst [vmem:[#allocation2 + $0x20] sm:$0xf] %v8129
        %8271 = vst [vmem:[#allocation2 + $0x44] sm:$0xf] %v8132
        %8272 = vst [vmem:[#allocation2 + $0x68] sm:$0xf] %v8136
        %8273 = vst [vmem:[#allocation2 + $0x8c] sm:$0xf] %v8139
        %8274 = vst [vmem:[#allocation2 + $0xb0] sm:$0xf] %v8143
        %8275 = vst [vmem:[#allocation2 + $0xd4] sm:$0xf] %v8146
        %8276 = vst [vmem:[#allocation2 + $0xf8] sm:$0xf] %v8150
        %8277 = vst [vmem:[#allocation2 + $0x11c] sm:$0xf] %v8153
        %8278 = vst [vmem:[#allocation2 + $0x140] sm:$0xf] %v8157
        %8279 = vst [vmem:[#allocation2 + $0x164] sm:$0xf] %v8160
        %8280 = vst [vmem:[#allocation2 + $0x188] sm:$0xf] %v8164
        %8281 = vst [vmem:[#allocation2 + $0x1ac] sm:$0xf] %v8167
        %8282 = vst [vmem:[#allocation2 + $0x1d0] sm:$0xf] %v8171
        %8283 = vst [vmem:[#allocation2 + $0x1f4] sm:$0xf] %v8174
        %8284 = vst [vmem:[#allocation2 + $0x218] sm:$0xf] %v8178
        %8285 = vst [vmem:[#allocation2 + $0x23c] sm:$0xf] %v8181
        %8286 = vst [vmem:[#allocation2 + $0x260] sm:$0xf] %v8185
        %8287 = vst [vmem:[#allocation2 + $0x284] sm:$0xf] %v8188
        %8288 = vst [vmem:[#allocation2 + $0x2a8] sm:$0xf] %v8192
        %8289 = vst [vmem:[#allocation2 + $0x2cc] sm:$0xf] %v8195
        %8290 = vst [vmem:[#allocation2 + $0x2f0] sm:$0xf] %v8199
        %8291 = vst [vmem:[#allocation2 + $0x314] sm:$0xf] %v8202
        %8292 = vst [vmem:[#allocation2 + $0x338] sm:$0xf] %v8206
        %8293 = vst [vmem:[#allocation2 + $0x35c] sm:$0xf] %v8209
        %8294 = vst [vmem:[#allocation2 + $0x380] sm:$0xf] %v8213
        %8295 = vst [vmem:[#allocation2 + $0x3a4] sm:$0xf] %v8216
        %8296 = vst [vmem:[#allocation2 + $0x3c8] sm:$0xf] %v8220
        %8297 = vst [vmem:[#allocation2 + $0x3ec] sm:$0xf] %v8223
        %8298 = vst [vmem:[#allocation2 + $0x410] sm:$0xf] %v8227
        %8299 = vst [vmem:[#allocation2 + $0x434] sm:$0xf] %v8230
        %8300 = vst [vmem:[#allocation2 + $0x458] sm:$0xf] %v8234
        %8301 = vst [vmem:[#allocation2 + $0x47c] sm:$0xf] %v8237
        %v8302 = vld [vmem:[#allocation2] sm:$0xff]
        %v8303 = vld [vmem:[#allocation2 + $0x8] sm:$0xff]
        %v8304 = vld [vmem:[#allocation2 + $0x10] sm:$0xff]
        %v8305 = vld [vmem:[#allocation2 + $0x18] sm:$0xff]
        %v8306 = vld [vmem:[#allocation2 + $0x20] sm:$0xf]
        %v8307 = vld [vmem:[#allocation2 + $0x24] sm:$0xff]
        %v8308 = vld [vmem:[#allocation2 + $0x2c] sm:$0xff]
        %v8309 = vld [vmem:[#allocation2 + $0x34] sm:$0xff]
        %v8310 = vld [vmem:[#allocation2 + $0x3c] sm:$0xff]
        %v8311 = vld [vmem:[#allocation2 + $0x44] sm:$0xf]
        %v8312 = vld [vmem:[#allocation2 + $0x48] sm:$0xff]
        %v8313 = vld [vmem:[#allocation2 + $0x50] sm:$0xff]
        %v8314 = vld [vmem:[#allocation2 + $0x58] sm:$0xff]
        %v8315 = vld [vmem:[#allocation2 + $0x60] sm:$0xff]
        %v8316 = vld [vmem:[#allocation2 + $0x68] sm:$0xf]
        %v8317 = vld [vmem:[#allocation2 + $0x6c] sm:$0xff]
        %v8318 = vld [vmem:[#allocation2 + $0x74] sm:$0xff]
        %v8319 = vld [vmem:[#allocation2 + $0x7c] sm:$0xff]
        %v8320 = vld [vmem:[#allocation2 + $0x84] sm:$0xff]
        %v8321 = vld [vmem:[#allocation2 + $0x8c] sm:$0xf]
        %v8322 = vld [vmem:[#allocation2 + $0x90] sm:$0xff]
        %v8323 = vld [vmem:[#allocation2 + $0x98] sm:$0xff]
        %v8324 = vld [vmem:[#allocation2 + $0xa0] sm:$0xff]
        %v8325 = vld [vmem:[#allocation2 + $0xa8] sm:$0xff]
        %v8326 = vld [vmem:[#allocation2 + $0xb0] sm:$0xf]
        %v8327 = vld [vmem:[#allocation2 + $0xb4] sm:$0xff]
        %v8328 = vld [vmem:[#allocation2 + $0xbc] sm:$0xff]
        %v8329 = vld [vmem:[#allocation2 + $0xc4] sm:$0xff]
        %v8330 = vld [vmem:[#allocation2 + $0xcc] sm:$0xff]
        %v8331 = vld [vmem:[#allocation2 + $0xd4] sm:$0xf]
        %v8332 = vld [vmem:[#allocation2 + $0xd8] sm:$0xff]
        %v8333 = vld [vmem:[#allocation2 + $0xe0] sm:$0xff]
        %v8334 = vld [vmem:[#allocation2 + $0xe8] sm:$0xff]
        %v8335 = vld [vmem:[#allocation2 + $0xf0] sm:$0xff]
        %v8336 = vld [vmem:[#allocation2 + $0xf8] sm:$0xf]
        %v8337 = vld [vmem:[#allocation2 + $0xfc] sm:$0xff]
        %v8338 = vld [vmem:[#allocation2 + $0x104] sm:$0xff]
        %v8339 = vld [vmem:[#allocation2 + $0x10c] sm:$0xff]
        %v8340 = vld [vmem:[#allocation2 + $0x114] sm:$0xff]
        %v8341 = vld [vmem:[#allocation2 + $0x11c] sm:$0xf]
        %v8342 = vld [vmem:[#allocation2 + $0x120] sm:$0xff]
        %v8343 = vld [vmem:[#allocation2 + $0x128] sm:$0xff]
        %v8344 = vld [vmem:[#allocation2 + $0x130] sm:$0xff]
        %v8345 = vld [vmem:[#allocation2 + $0x138] sm:$0xff]
        %v8346 = vld [vmem:[#allocation2 + $0x140] sm:$0xf]
        %v8347 = vld [vmem:[#allocation2 + $0x144] sm:$0xff]
        %v8348 = vld [vmem:[#allocation2 + $0x14c] sm:$0xff]
        %v8349 = vld [vmem:[#allocation2 + $0x154] sm:$0xff]
        %v8350 = vld [vmem:[#allocation2 + $0x15c] sm:$0xff]
        %v8351 = vld [vmem:[#allocation2 + $0x164] sm:$0xf]
        %v8352 = vld [vmem:[#allocation2 + $0x168] sm:$0xff]
        %v8353 = vld [vmem:[#allocation2 + $0x170] sm:$0xff]
        %v8354 = vld [vmem:[#allocation2 + $0x178] sm:$0xff]
        %v8355 = vld [vmem:[#allocation2 + $0x180] sm:$0xff]
        %v8356 = vld [vmem:[#allocation2 + $0x188] sm:$0xf]
        %v8357 = vld [vmem:[#allocation2 + $0x18c] sm:$0xff]
        %v8358 = vld [vmem:[#allocation2 + $0x194] sm:$0xff]
        %v8359 = vld [vmem:[#allocation2 + $0x19c] sm:$0xff]
        %v8360 = vld [vmem:[#allocation2 + $0x1a4] sm:$0xff]
        %v8361 = vld [vmem:[#allocation2 + $0x1ac] sm:$0xf]
        %v8362 = vld [vmem:[#allocation2 + $0x1b0] sm:$0xff]
        %v8363 = vld [vmem:[#allocation2 + $0x1b8] sm:$0xff]
        %v8364 = vld [vmem:[#allocation2 + $0x1c0] sm:$0xff]
        %v8365 = vld [vmem:[#allocation2 + $0x1c8] sm:$0xff]
        %v8366 = vld [vmem:[#allocation2 + $0x1d0] sm:$0xf]
        %v8367 = vld [vmem:[#allocation2 + $0x1d4] sm:$0xff]
        %v8368 = vld [vmem:[#allocation2 + $0x1dc] sm:$0xff]
        %v8369 = vld [vmem:[#allocation2 + $0x1e4] sm:$0xff]
        %v8370 = vld [vmem:[#allocation2 + $0x1ec] sm:$0xff]
        %v8371 = vld [vmem:[#allocation2 + $0x1f4] sm:$0xf]
        %v8372 = vld [vmem:[#allocation2 + $0x1f8] sm:$0xff]
        %v8373 = vld [vmem:[#allocation2 + $0x200] sm:$0xff]
        %v8374 = vld [vmem:[#allocation2 + $0x208] sm:$0xff]
        %v8375 = vld [vmem:[#allocation2 + $0x210] sm:$0xff]
        %v8376 = vld [vmem:[#allocation2 + $0x218] sm:$0xf]
        %v8377 = vld [vmem:[#allocation2 + $0x21c] sm:$0xff]
        %v8378 = vld [vmem:[#allocation2 + $0x224] sm:$0xff]
        %v8379 = vld [vmem:[#allocation2 + $0x22c] sm:$0xff]
        %v8380 = vld [vmem:[#allocation2 + $0x234] sm:$0xff]
        %v8381 = vld [vmem:[#allocation2 + $0x23c] sm:$0xf]
        %v8382 = vld [vmem:[#allocation2 + $0x240] sm:$0xff]
        %v8383 = vld [vmem:[#allocation2 + $0x248] sm:$0xff]
        %v8384 = vld [vmem:[#allocation2 + $0x250] sm:$0xff]
        %v8385 = vld [vmem:[#allocation2 + $0x258] sm:$0xff]
        %v8386 = vld [vmem:[#allocation2 + $0x260] sm:$0xf]
        %v8387 = vld [vmem:[#allocation2 + $0x264] sm:$0xff]
        %v8388 = vld [vmem:[#allocation2 + $0x26c] sm:$0xff]
        %v8389 = vld [vmem:[#allocation2 + $0x274] sm:$0xff]
        %v8390 = vld [vmem:[#allocation2 + $0x27c] sm:$0xff]
        %v8391 = vld [vmem:[#allocation2 + $0x284] sm:$0xf]
        %v8392 = vld [vmem:[#allocation2 + $0x288] sm:$0xff]
        %v8393 = vld [vmem:[#allocation2 + $0x290] sm:$0xff]
        %v8394 = vld [vmem:[#allocation2 + $0x298] sm:$0xff]
        %v8395 = vld [vmem:[#allocation2 + $0x2a0] sm:$0xff]
        %v8396 = vld [vmem:[#allocation2 + $0x2a8] sm:$0xf]
        %v8397 = vld [vmem:[#allocation2 + $0x2ac] sm:$0xff]
        %v8398 = vld [vmem:[#allocation2 + $0x2b4] sm:$0xff]
        %v8399 = vld [vmem:[#allocation2 + $0x2bc] sm:$0xff]
        %v8400 = vld [vmem:[#allocation2 + $0x2c4] sm:$0xff]
        %v8401 = vld [vmem:[#allocation2 + $0x2cc] sm:$0xf]
        %v8402 = vld [vmem:[#allocation2 + $0x2d0] sm:$0xff]
        %v8403 = vld [vmem:[#allocation2 + $0x2d8] sm:$0xff]
        %v8404 = vld [vmem:[#allocation2 + $0x2e0] sm:$0xff]
        %v8405 = vld [vmem:[#allocation2 + $0x2e8] sm:$0xff]
        %v8406 = vld [vmem:[#allocation2 + $0x2f0] sm:$0xf]
        %v8407 = vld [vmem:[#allocation2 + $0x2f4] sm:$0xff]
        %v8408 = vld [vmem:[#allocation2 + $0x2fc] sm:$0xff]
        %v8409 = vld [vmem:[#allocation2 + $0x304] sm:$0xff]
        %v8410 = vld [vmem:[#allocation2 + $0x30c] sm:$0xff]
        %v8411 = vld [vmem:[#allocation2 + $0x314] sm:$0xf]
        %v8412 = vld [vmem:[#allocation2 + $0x318] sm:$0xff]
        %v8413 = vld [vmem:[#allocation2 + $0x320] sm:$0xff]
        %v8414 = vld [vmem:[#allocation2 + $0x328] sm:$0xff]
        %v8415 = vld [vmem:[#allocation2 + $0x330] sm:$0xff]
        %v8416 = vld [vmem:[#allocation2 + $0x338] sm:$0xf]
        %v8417 = vld [vmem:[#allocation2 + $0x33c] sm:$0xff]
        %v8418 = vld [vmem:[#allocation2 + $0x344] sm:$0xff]
        %v8419 = vld [vmem:[#allocation2 + $0x34c] sm:$0xff]
        %v8420 = vld [vmem:[#allocation2 + $0x354] sm:$0xff]
        %v8421 = vld [vmem:[#allocation2 + $0x35c] sm:$0xf]
        %v8422 = vld [vmem:[#allocation2 + $0x360] sm:$0xff]
        %v8423 = vld [vmem:[#allocation2 + $0x368] sm:$0xff]
        %v8424 = vld [vmem:[#allocation2 + $0x370] sm:$0xff]
        %v8425 = vld [vmem:[#allocation2 + $0x378] sm:$0xff]
        %v8426 = vld [vmem:[#allocation2 + $0x380] sm:$0xf]
        %v8427 = vld [vmem:[#allocation2 + $0x384] sm:$0xff]
        %v8428 = vld [vmem:[#allocation2 + $0x38c] sm:$0xff]
        %v8429 = vld [vmem:[#allocation2 + $0x394] sm:$0xff]
        %v8430 = vld [vmem:[#allocation2 + $0x39c] sm:$0xff]
        %v8431 = vld [vmem:[#allocation2 + $0x3a4] sm:$0xf]
        %v8432 = vld [vmem:[#allocation2 + $0x3a8] sm:$0xff]
        %v8433 = vld [vmem:[#allocation2 + $0x3b0] sm:$0xff]
        %v8434 = vld [vmem:[#allocation2 + $0x3b8] sm:$0xff]
        %v8435 = vld [vmem:[#allocation2 + $0x3c0] sm:$0xff]
        %v8436 = vld [vmem:[#allocation2 + $0x3c8] sm:$0xf]
        %v8437 = vld [vmem:[#allocation2 + $0x3cc] sm:$0xff]
        %v8438 = vld [vmem:[#allocation2 + $0x3d4] sm:$0xff]
        %v8439 = vld [vmem:[#allocation2 + $0x3dc] sm:$0xff]
        %v8440 = vld [vmem:[#allocation2 + $0x3e4] sm:$0xff]
        %v8441 = vld [vmem:[#allocation2 + $0x3ec] sm:$0xf]
        %v8442 = vld [vmem:[#allocation2 + $0x3f0] sm:$0xff]
        %v8443 = vld [vmem:[#allocation2 + $0x3f8] sm:$0xff]
        %v8444 = vld [vmem:[#allocation2 + $0x400] sm:$0xff]
        %v8445 = vld [vmem:[#allocation2 + $0x408] sm:$0xff]
        %v8446 = vld [vmem:[#allocation2 + $0x410] sm:$0xf]
        %v8447 = vld [vmem:[#allocation2 + $0x414] sm:$0xff]
        %v8448 = vld [vmem:[#allocation2 + $0x41c] sm:$0xff]
        %v8449 = vld [vmem:[#allocation2 + $0x424] sm:$0xff]
        %v8450 = vld [vmem:[#allocation2 + $0x42c] sm:$0xff]
        %v8451 = vld [vmem:[#allocation2 + $0x434] sm:$0xf]
        %v8452 = vld [vmem:[#allocation2 + $0x438] sm:$0xff]
        %v8453 = vld [vmem:[#allocation2 + $0x440] sm:$0xff]
        %v8454 = vld [vmem:[#allocation2 + $0x448] sm:$0xff]
        %v8455 = vld [vmem:[#allocation2 + $0x450] sm:$0xff]
        %v8456 = vld [vmem:[#allocation2 + $0x458] sm:$0xf]
        %v8457 = vld [vmem:[#allocation2 + $0x45c] sm:$0xff]
        %v8458 = vld [vmem:[#allocation2 + $0x464] sm:$0xff]
        %v8459 = vld [vmem:[#allocation2 + $0x46c] sm:$0xff]
        %v8460 = vld [vmem:[#allocation2 + $0x474] sm:$0xff]
        %v8461 = vld [vmem:[#allocation2 + $0x47c] sm:$0xf]
        %v8462 = vld [vmem:[#allocation9] sm:$0xf]
        %v8463 = vld [vmem:[#allocation9 + $0x4] sm:$0xf]
        %v8464 = vld [vmem:[#allocation9 + $0x8] sm:$0xf]
        %v8465 = vld [vmem:[#allocation9 + $0xc] sm:$0xf]
        %v8466 = vld [vmem:[#allocation9 + $0x10] sm:$0xf]
        %v8467 = vld [vmem:[#allocation9 + $0x14] sm:$0xf]
        %v8468 = vld [vmem:[#allocation9 + $0x18] sm:$0xf]
        %v8469 = vld [vmem:[#allocation9 + $0x1c] sm:$0xf]
        %v8470 = vld [vmem:[#allocation9 + $0x20] sm:$0xf]
        %v8471 = vld [vmem:[#allocation9 + $0x24] sm:$0xf]
        %v8472 = vld [vmem:[#allocation9 + $0x28] sm:$0xf]
        %v8473 = vld [vmem:[#allocation9 + $0x2c] sm:$0xf]
        %v8474 = vld [vmem:[#allocation9 + $0x30] sm:$0xf]
        %v8475 = vld [vmem:[#allocation9 + $0x34] sm:$0xf]
        %v8476 = vld [vmem:[#allocation9 + $0x38] sm:$0xf]
        %v8477 = vld [vmem:[#allocation9 + $0x3c] sm:$0xf]
        %v8478 = vld [vmem:[#allocation9 + $0x40] sm:$0xf]
        %v8479 = vld [vmem:[#allocation9 + $0x44] sm:$0xf]
        %v8480 = vld [vmem:[#allocation9 + $0x48] sm:$0xf]
        %v8481 = vld [vmem:[#allocation9 + $0x4c] sm:$0xf]
        %v8482 = vld [vmem:[#allocation9 + $0x50] sm:$0xf]
        %v8483 = vld [vmem:[#allocation9 + $0x54] sm:$0xf]
        %v8484 = vld [vmem:[#allocation9 + $0x58] sm:$0xf]
        %v8485 = vld [vmem:[#allocation9 + $0x5c] sm:$0xf]
        %v8486 = vld [vmem:[#allocation9 + $0x60] sm:$0xf]
        %v8487 = vld [vmem:[#allocation9 + $0x64] sm:$0xf]
        %v8488 = vld [vmem:[#allocation9 + $0x68] sm:$0xf]
        %v8489 = vld [vmem:[#allocation9 + $0x6c] sm:$0xf]
        %v8490 = vld [vmem:[#allocation9 + $0x70] sm:$0xf]
        %v8491 = vld [vmem:[#allocation9 + $0x74] sm:$0xf]
        %v8492 = vld [vmem:[#allocation9 + $0x78] sm:$0xf]
        %v8493 = vld [vmem:[#allocation9 + $0x7c] sm:$0xf]
        %v8494 = vld [vmem:[#allocation9 + $0x80] sm:$0xf]
        %v8495 = vld [vmem:[#allocation9 + $0x84] sm:$0xf]
        %v8496 = vld [vmem:[#allocation9 + $0x88] sm:$0xf]
        %v8497 = vld [vmem:[#allocation9 + $0x8c] sm:$0xf]
        %v8498 = vld [vmem:[#allocation9 + $0x90] sm:$0xf]
        %v8499 = vld [vmem:[#allocation9 + $0x94] sm:$0xf]
        %v8500 = vld [vmem:[#allocation9 + $0x98] sm:$0xf]
        %v8501 = vld [vmem:[#allocation9 + $0x9c] sm:$0xf]
        %v8502 = vld [vmem:[#allocation9 + $0xa0] sm:$0xf]
        %v8503 = vld [vmem:[#allocation9 + $0xa4] sm:$0xf]
        %v8504 = vld [vmem:[#allocation9 + $0xa8] sm:$0xf]
        %v8505 = vld [vmem:[#allocation9 + $0xac] sm:$0xf]
        %v8506 = vld [vmem:[#allocation9 + $0xb0] sm:$0xf]
        %v8507 = vld [vmem:[#allocation9 + $0xb4] sm:$0xf]
        %v8508 = vld [vmem:[#allocation9 + $0xb8] sm:$0xf]
        %v8509 = vld [vmem:[#allocation9 + $0xbc] sm:$0xf]
        %v8510 = vld [vmem:[#allocation9 + $0xc0] sm:$0xf]
        %v8511 = vld [vmem:[#allocation9 + $0xc4] sm:$0xf]
        %v8512 = vld [vmem:[#allocation9 + $0xc8] sm:$0xf]
        %v8513 = vld [vmem:[#allocation9 + $0xcc] sm:$0xf]
        %v8514 = vld [vmem:[#allocation9 + $0xd0] sm:$0xf]
        %v8515 = vld [vmem:[#allocation9 + $0xd4] sm:$0xf]
        %v8516 = vld [vmem:[#allocation9 + $0xd8] sm:$0xf]
        %v8517 = vld [vmem:[#allocation9 + $0xdc] sm:$0xf]
        %v8518 = vld [vmem:[#allocation9 + $0xe0] sm:$0xf]
        %v8519 = vld [vmem:[#allocation9 + $0xe4] sm:$0xf]
        %v8520 = vld [vmem:[#allocation9 + $0xe8] sm:$0xf]
        %v8521 = vld [vmem:[#allocation9 + $0xec] sm:$0xf]
        %v8522 = vld [vmem:[#allocation9 + $0xf0] sm:$0xf]
        %v8523 = vld [vmem:[#allocation9 + $0xf4] sm:$0xf]
        %v8524 = vld [vmem:[#allocation9 + $0xf8] sm:$0xf]
        %v8525 = vld [vmem:[#allocation9 + $0xfc] sm:$0xf]
        %v8526 = vld [vmem:[#allocation9 + $0x100] sm:$0xf]
        %v8527 = vld [vmem:[#allocation9 + $0x104] sm:$0xf]
        %v8528 = vld [vmem:[#allocation9 + $0x108] sm:$0xf]
        %v8529 = vld [vmem:[#allocation9 + $0x10c] sm:$0xf]
        %v8530 = vld [vmem:[#allocation9 + $0x110] sm:$0xf]
        %v8531 = vld [vmem:[#allocation9 + $0x114] sm:$0xf]
        %v8532 = vld [vmem:[#allocation9 + $0x118] sm:$0xf]
        %v8533 = vld [vmem:[#allocation9 + $0x11c] sm:$0xf]
        %v8534 = vld [vmem:[#allocation9 + $0x120] sm:$0xf]
        %v8535 = vld [vmem:[#allocation9 + $0x124] sm:$0xf]
        %v8536 = vld [vmem:[#allocation9 + $0x128] sm:$0xf]
        %v8537 = vld [vmem:[#allocation9 + $0x12c] sm:$0xf]
        %v8538 = vld [vmem:[#allocation9 + $0x130] sm:$0xf]
        %v8539 = vld [vmem:[#allocation9 + $0x134] sm:$0xf]
        %v8540 = vld [vmem:[#allocation9 + $0x138] sm:$0xf]
        %v8541 = vld [vmem:[#allocation9 + $0x13c] sm:$0xf]
        %v8542 = vld [vmem:[#allocation9 + $0x140] sm:$0xf]
        %v8543 = vld [vmem:[#allocation9 + $0x144] sm:$0xf]
        %v8544 = vld [vmem:[#allocation9 + $0x148] sm:$0xf]
        %v8545 = vld [vmem:[#allocation9 + $0x14c] sm:$0xf]
        %v8546 = vld [vmem:[#allocation9 + $0x150] sm:$0xf]
        %v8547 = vld [vmem:[#allocation9 + $0x154] sm:$0xf]
        %v8548 = vld [vmem:[#allocation9 + $0x158] sm:$0xf]
        %v8549 = vld [vmem:[#allocation9 + $0x15c] sm:$0xf]
        %v8550 = vld [vmem:[#allocation9 + $0x160] sm:$0xf]
        %v8551 = vld [vmem:[#allocation9 + $0x164] sm:$0xf]
        %v8552 = vld [vmem:[#allocation9 + $0x168] sm:$0xf]
        %v8553 = vld [vmem:[#allocation9 + $0x16c] sm:$0xf]
        %v8554 = vld [vmem:[#allocation9 + $0x170] sm:$0xf]
        %v8555 = vld [vmem:[#allocation9 + $0x174] sm:$0xf]
        %v8556 = vld [vmem:[#allocation9 + $0x178] sm:$0xf]
        %v8557 = vld [vmem:[#allocation9 + $0x17c] sm:$0xf]
        %v8558 = vld [vmem:[#allocation9 + $0x180] sm:$0xf]
        %v8559 = vld [vmem:[#allocation9 + $0x184] sm:$0xf]
        %v8560 = vld [vmem:[#allocation9 + $0x188] sm:$0xf]
        %v8561 = vld [vmem:[#allocation9 + $0x18c] sm:$0xf]
        %v8562 = vld [vmem:[#allocation9 + $0x190] sm:$0xf]
        %v8563 = vld [vmem:[#allocation9 + $0x194] sm:$0xf]
        %v8564 = vld [vmem:[#allocation9 + $0x198] sm:$0xf]
        %v8565 = vld [vmem:[#allocation9 + $0x19c] sm:$0xf]
        %v8566 = vld [vmem:[#allocation9 + $0x1a0] sm:$0xf]
        %v8567 = vld [vmem:[#allocation9 + $0x1a4] sm:$0xf]
        %v8568 = vld [vmem:[#allocation9 + $0x1a8] sm:$0xf]
        %v8569 = vld [vmem:[#allocation9 + $0x1ac] sm:$0xf]
        %v8570 = vld [vmem:[#allocation9 + $0x1b0] sm:$0xf]
        %v8571 = vld [vmem:[#allocation9 + $0x1b4] sm:$0xf]
        %v8572 = vld [vmem:[#allocation9 + $0x1b8] sm:$0xf]
        %v8573 = vld [vmem:[#allocation9 + $0x1bc] sm:$0xf]
        %v8574 = vld [vmem:[#allocation9 + $0x1c0] sm:$0xf]
        %v8575 = vld [vmem:[#allocation9 + $0x1c4] sm:$0xf]
        %v8576 = vld [vmem:[#allocation9 + $0x1c8] sm:$0xf]
        %v8577 = vld [vmem:[#allocation9 + $0x1cc] sm:$0xf]
        %v8578 = vld [vmem:[#allocation9 + $0x1d0] sm:$0xf]
        %v8579 = vld [vmem:[#allocation9 + $0x1d4] sm:$0xf]
        %v8580 = vld [vmem:[#allocation9 + $0x1d8] sm:$0xf]
        %v8581 = vld [vmem:[#allocation9 + $0x1dc] sm:$0xf]
        %v8582 = vld [vmem:[#allocation9 + $0x1e0] sm:$0xf]
        %v8583 = vld [vmem:[#allocation9 + $0x1e4] sm:$0xf]
        %v8584 = vld [vmem:[#allocation9 + $0x1e8] sm:$0xf]
        %v8585 = vld [vmem:[#allocation9 + $0x1ec] sm:$0xf]
        %v8586 = vld [vmem:[#allocation9 + $0x1f0] sm:$0xf]
        %v8587 = vld [vmem:[#allocation9 + $0x1f4] sm:$0xf]
        %v8588 = vld [vmem:[#allocation9 + $0x1f8] sm:$0xf]
        %v8589 = vld [vmem:[#allocation9 + $0x1fc] sm:$0xf]
        %v8590 = vld [vmem:[#allocation9 + $0x200] sm:$0xf]
        %v8591 = vld [vmem:[#allocation9 + $0x204] sm:$0xf]
        %v8592 = vld [vmem:[#allocation9 + $0x208] sm:$0xf]
        %v8593 = vld [vmem:[#allocation9 + $0x20c] sm:$0xf]
        %v8594 = vld [vmem:[#allocation9 + $0x210] sm:$0xf]
        %v8595 = vld [vmem:[#allocation9 + $0x214] sm:$0xf]
        %v8596 = vld [vmem:[#allocation9 + $0x218] sm:$0xf]
        %v8597 = vld [vmem:[#allocation9 + $0x21c] sm:$0xf]
        %v8598 = vld [vmem:[#allocation9 + $0x220] sm:$0xf]
        %v8599 = vld [vmem:[#allocation9 + $0x224] sm:$0xf]
        %v8600 = vld [vmem:[#allocation9 + $0x228] sm:$0xf]
        %v8601 = vld [vmem:[#allocation9 + $0x22c] sm:$0xf]
        %v8602 = vld [vmem:[#allocation9 + $0x230] sm:$0xf]
        %v8603 = vld [vmem:[#allocation9 + $0x234] sm:$0xf]
        %v8604 = vld [vmem:[#allocation9 + $0x238] sm:$0xf]
        %v8605 = vld [vmem:[#allocation9 + $0x23c] sm:$0xf]
        %v8766 = vunpack.c.l.b16 %v8302
        %v8767 = vunpack.c.h.b16 %v8302
        %v8768 = vunpack.c.l.b16 %v8303
        %v8769 = vunpack.c.h.b16 %v8303
        %v8770 = vunpack.c.l.b16 %v8304
        %v8771 = vunpack.c.h.b16 %v8304
        %v8772 = vunpack.c.l.b16 %v8305
        %v8773 = vunpack.c.h.b16 %v8305
        %v8774 = vunpack.c.l.b16 %v8306
        %v8775 = vunpack.c.l.b16 %v8307
        %v8776 = vunpack.c.h.b16 %v8307
        %v8777 = vunpack.c.l.b16 %v8308
        %v8778 = vunpack.c.h.b16 %v8308
        %v8779 = vunpack.c.l.b16 %v8309
        %v8780 = vunpack.c.h.b16 %v8309
        %v8781 = vunpack.c.l.b16 %v8310
        %v8782 = vunpack.c.h.b16 %v8310
        %v8783 = vunpack.c.l.b16 %v8311
        %v8784 = vunpack.c.l.b16 %v8312
        %v8785 = vunpack.c.h.b16 %v8312
        %v8786 = vunpack.c.l.b16 %v8313
        %v8787 = vunpack.c.h.b16 %v8313
        %v8788 = vunpack.c.l.b16 %v8314
        %v8789 = vunpack.c.h.b16 %v8314
        %v8790 = vunpack.c.l.b16 %v8315
        %v8791 = vunpack.c.h.b16 %v8315
        %v8792 = vunpack.c.l.b16 %v8316
        %v8793 = vunpack.c.l.b16 %v8317
        %v8794 = vunpack.c.h.b16 %v8317
        %v8795 = vunpack.c.l.b16 %v8318
        %v8796 = vunpack.c.h.b16 %v8318
        %v8797 = vunpack.c.l.b16 %v8319
        %v8798 = vunpack.c.h.b16 %v8319
        %v8799 = vunpack.c.l.b16 %v8320
        %v8800 = vunpack.c.h.b16 %v8320
        %v8801 = vunpack.c.l.b16 %v8321
        %v8802 = vunpack.c.l.b16 %v8322
        %v8803 = vunpack.c.h.b16 %v8322
        %v8804 = vunpack.c.l.b16 %v8323
        %v8805 = vunpack.c.h.b16 %v8323
        %v8806 = vunpack.c.l.b16 %v8324
        %v8807 = vunpack.c.h.b16 %v8324
        %v8808 = vunpack.c.l.b16 %v8325
        %v8809 = vunpack.c.h.b16 %v8325
        %v8810 = vunpack.c.l.b16 %v8326
        %v8811 = vunpack.c.l.b16 %v8327
        %v8812 = vunpack.c.h.b16 %v8327
        %v8813 = vunpack.c.l.b16 %v8328
        %v8814 = vunpack.c.h.b16 %v8328
        %v8815 = vunpack.c.l.b16 %v8329
        %v8816 = vunpack.c.h.b16 %v8329
        %v8817 = vunpack.c.l.b16 %v8330
        %v8818 = vunpack.c.h.b16 %v8330
        %v8819 = vunpack.c.l.b16 %v8331
        %v8820 = vunpack.c.l.b16 %v8332
        %v8821 = vunpack.c.h.b16 %v8332
        %v8822 = vunpack.c.l.b16 %v8333
        %v8823 = vunpack.c.h.b16 %v8333
        %v8824 = vunpack.c.l.b16 %v8334
        %v8825 = vunpack.c.h.b16 %v8334
        %v8826 = vunpack.c.l.b16 %v8335
        %v8827 = vunpack.c.h.b16 %v8335
        %v8828 = vunpack.c.l.b16 %v8336
        %v8829 = vunpack.c.l.b16 %v8337
        %v8830 = vunpack.c.h.b16 %v8337
        %v8831 = vunpack.c.l.b16 %v8338
        %v8832 = vunpack.c.h.b16 %v8338
        %v8833 = vunpack.c.l.b16 %v8339
        %v8834 = vunpack.c.h.b16 %v8339
        %v8835 = vunpack.c.l.b16 %v8340
        %v8836 = vunpack.c.h.b16 %v8340
        %v8837 = vunpack.c.l.b16 %v8341
        %v8838 = vunpack.c.l.b16 %v8342
        %v8839 = vunpack.c.h.b16 %v8342
        %v8840 = vunpack.c.l.b16 %v8343
        %v8841 = vunpack.c.h.b16 %v8343
        %v8842 = vunpack.c.l.b16 %v8344
        %v8843 = vunpack.c.h.b16 %v8344
        %v8844 = vunpack.c.l.b16 %v8345
        %v8845 = vunpack.c.h.b16 %v8345
        %v8846 = vunpack.c.l.b16 %v8346
        %v8847 = vunpack.c.l.b16 %v8347
        %v8848 = vunpack.c.h.b16 %v8347
        %v8849 = vunpack.c.l.b16 %v8348
        %v8850 = vunpack.c.h.b16 %v8348
        %v8851 = vunpack.c.l.b16 %v8349
        %v8852 = vunpack.c.h.b16 %v8349
        %v8853 = vunpack.c.l.b16 %v8350
        %v8854 = vunpack.c.h.b16 %v8350
        %v8855 = vunpack.c.l.b16 %v8351
        %v8856 = vunpack.c.l.b16 %v8352
        %v8857 = vunpack.c.h.b16 %v8352
        %v8858 = vunpack.c.l.b16 %v8353
        %v8859 = vunpack.c.h.b16 %v8353
        %v8860 = vunpack.c.l.b16 %v8354
        %v8861 = vunpack.c.h.b16 %v8354
        %v8862 = vunpack.c.l.b16 %v8355
        %v8863 = vunpack.c.h.b16 %v8355
        %v8864 = vunpack.c.l.b16 %v8356
        %v8865 = vunpack.c.l.b16 %v8357
        %v8866 = vunpack.c.h.b16 %v8357
        %v8867 = vunpack.c.l.b16 %v8358
        %v8868 = vunpack.c.h.b16 %v8358
        %v8869 = vunpack.c.l.b16 %v8359
        %v8870 = vunpack.c.h.b16 %v8359
        %v8871 = vunpack.c.l.b16 %v8360
        %v8872 = vunpack.c.h.b16 %v8360
        %v8873 = vunpack.c.l.b16 %v8361
        %v8874 = vunpack.c.l.b16 %v8362
        %v8875 = vunpack.c.h.b16 %v8362
        %v8876 = vunpack.c.l.b16 %v8363
        %v8877 = vunpack.c.h.b16 %v8363
        %v8878 = vunpack.c.l.b16 %v8364
        %v8879 = vunpack.c.h.b16 %v8364
        %v8880 = vunpack.c.l.b16 %v8365
        %v8881 = vunpack.c.h.b16 %v8365
        %v8882 = vunpack.c.l.b16 %v8366
        %v8883 = vunpack.c.l.b16 %v8367
        %v8884 = vunpack.c.h.b16 %v8367
        %v8885 = vunpack.c.l.b16 %v8368
        %v8886 = vunpack.c.h.b16 %v8368
        %v8887 = vunpack.c.l.b16 %v8369
        %v8888 = vunpack.c.h.b16 %v8369
        %v8889 = vunpack.c.l.b16 %v8370
        %v8890 = vunpack.c.h.b16 %v8370
        %v8891 = vunpack.c.l.b16 %v8371
        %v8892 = vunpack.c.l.b16 %v8372
        %v8893 = vunpack.c.h.b16 %v8372
        %v8894 = vunpack.c.l.b16 %v8373
        %v8895 = vunpack.c.h.b16 %v8373
        %v8896 = vunpack.c.l.b16 %v8374
        %v8897 = vunpack.c.h.b16 %v8374
        %v8898 = vunpack.c.l.b16 %v8375
        %v8899 = vunpack.c.h.b16 %v8375
        %v8900 = vunpack.c.l.b16 %v8376
        %v8901 = vunpack.c.l.b16 %v8377
        %v8902 = vunpack.c.h.b16 %v8377
        %v8903 = vunpack.c.l.b16 %v8378
        %v8904 = vunpack.c.h.b16 %v8378
        %v8905 = vunpack.c.l.b16 %v8379
        %v8906 = vunpack.c.h.b16 %v8379
        %v8907 = vunpack.c.l.b16 %v8380
        %v8908 = vunpack.c.h.b16 %v8380
        %v8909 = vunpack.c.l.b16 %v8381
        %v8910 = vunpack.c.l.b16 %v8382
        %v8911 = vunpack.c.h.b16 %v8382
        %v8912 = vunpack.c.l.b16 %v8383
        %v8913 = vunpack.c.h.b16 %v8383
        %v8914 = vunpack.c.l.b16 %v8384
        %v8915 = vunpack.c.h.b16 %v8384
        %v8916 = vunpack.c.l.b16 %v8385
        %v8917 = vunpack.c.h.b16 %v8385
        %v8918 = vunpack.c.l.b16 %v8386
        %v8919 = vunpack.c.l.b16 %v8387
        %v8920 = vunpack.c.h.b16 %v8387
        %v8921 = vunpack.c.l.b16 %v8388
        %v8922 = vunpack.c.h.b16 %v8388
        %v8923 = vunpack.c.l.b16 %v8389
        %v8924 = vunpack.c.h.b16 %v8389
        %v8925 = vunpack.c.l.b16 %v8390
        %v8926 = vunpack.c.h.b16 %v8390
        %v8927 = vunpack.c.l.b16 %v8391
        %v8928 = vunpack.c.l.b16 %v8392
        %v8929 = vunpack.c.h.b16 %v8392
        %v8930 = vunpack.c.l.b16 %v8393
        %v8931 = vunpack.c.h.b16 %v8393
        %v8932 = vunpack.c.l.b16 %v8394
        %v8933 = vunpack.c.h.b16 %v8394
        %v8934 = vunpack.c.l.b16 %v8395
        %v8935 = vunpack.c.h.b16 %v8395
        %v8936 = vunpack.c.l.b16 %v8396
        %v8937 = vunpack.c.l.b16 %v8397
        %v8938 = vunpack.c.h.b16 %v8397
        %v8939 = vunpack.c.l.b16 %v8398
        %v8940 = vunpack.c.h.b16 %v8398
        %v8941 = vunpack.c.l.b16 %v8399
        %v8942 = vunpack.c.h.b16 %v8399
        %v8943 = vunpack.c.l.b16 %v8400
        %v8944 = vunpack.c.h.b16 %v8400
        %v8945 = vunpack.c.l.b16 %v8401
        %v8946 = vunpack.c.l.b16 %v8402
        %v8947 = vunpack.c.h.b16 %v8402
        %v8948 = vunpack.c.l.b16 %v8403
        %v8949 = vunpack.c.h.b16 %v8403
        %v8950 = vunpack.c.l.b16 %v8404
        %v8951 = vunpack.c.h.b16 %v8404
        %v8952 = vunpack.c.l.b16 %v8405
        %v8953 = vunpack.c.h.b16 %v8405
        %v8954 = vunpack.c.l.b16 %v8406
        %v8955 = vunpack.c.l.b16 %v8407
        %v8956 = vunpack.c.h.b16 %v8407
        %v8957 = vunpack.c.l.b16 %v8408
        %v8958 = vunpack.c.h.b16 %v8408
        %v8959 = vunpack.c.l.b16 %v8409
        %v8960 = vunpack.c.h.b16 %v8409
        %v8961 = vunpack.c.l.b16 %v8410
        %v8962 = vunpack.c.h.b16 %v8410
        %v8963 = vunpack.c.l.b16 %v8411
        %v8964 = vunpack.c.l.b16 %v8412
        %v8965 = vunpack.c.h.b16 %v8412
        %v8966 = vunpack.c.l.b16 %v8413
        %v8967 = vunpack.c.h.b16 %v8413
        %v8968 = vunpack.c.l.b16 %v8414
        %v8969 = vunpack.c.h.b16 %v8414
        %v8970 = vunpack.c.l.b16 %v8415
        %v8971 = vunpack.c.h.b16 %v8415
        %v8972 = vunpack.c.l.b16 %v8416
        %v8973 = vunpack.c.l.b16 %v8417
        %v8974 = vunpack.c.h.b16 %v8417
        %v8975 = vunpack.c.l.b16 %v8418
        %v8976 = vunpack.c.h.b16 %v8418
        %v8977 = vunpack.c.l.b16 %v8419
        %v8978 = vunpack.c.h.b16 %v8419
        %v8979 = vunpack.c.l.b16 %v8420
        %v8980 = vunpack.c.h.b16 %v8420
        %v8981 = vunpack.c.l.b16 %v8421
        %v8982 = vunpack.c.l.b16 %v8422
        %v8983 = vunpack.c.h.b16 %v8422
        %v8984 = vunpack.c.l.b16 %v8423
        %v8985 = vunpack.c.h.b16 %v8423
        %v8986 = vunpack.c.l.b16 %v8424
        %v8987 = vunpack.c.h.b16 %v8424
        %v8988 = vunpack.c.l.b16 %v8425
        %v8989 = vunpack.c.h.b16 %v8425
        %v8990 = vunpack.c.l.b16 %v8426
        %v8991 = vunpack.c.l.b16 %v8427
        %v8992 = vunpack.c.h.b16 %v8427
        %v8993 = vunpack.c.l.b16 %v8428
        %v8994 = vunpack.c.h.b16 %v8428
        %v8995 = vunpack.c.l.b16 %v8429
        %v8996 = vunpack.c.h.b16 %v8429
        %v8997 = vunpack.c.l.b16 %v8430
        %v8998 = vunpack.c.h.b16 %v8430
        %v8999 = vunpack.c.l.b16 %v8431
        %v9000 = vunpack.c.l.b16 %v8432
        %v9001 = vunpack.c.h.b16 %v8432
        %v9002 = vunpack.c.l.b16 %v8433
        %v9003 = vunpack.c.h.b16 %v8433
        %v9004 = vunpack.c.l.b16 %v8434
        %v9005 = vunpack.c.h.b16 %v8434
        %v9006 = vunpack.c.l.b16 %v8435
        %v9007 = vunpack.c.h.b16 %v8435
        %v9008 = vunpack.c.l.b16 %v8436
        %v9009 = vunpack.c.l.b16 %v8437
        %v9010 = vunpack.c.h.b16 %v8437
        %v9011 = vunpack.c.l.b16 %v8438
        %v9012 = vunpack.c.h.b16 %v8438
        %v9013 = vunpack.c.l.b16 %v8439
        %v9014 = vunpack.c.h.b16 %v8439
        %v9015 = vunpack.c.l.b16 %v8440
        %v9016 = vunpack.c.h.b16 %v8440
        %v9017 = vunpack.c.l.b16 %v8441
        %v9018 = vunpack.c.l.b16 %v8442
        %v9019 = vunpack.c.h.b16 %v8442
        %v9020 = vunpack.c.l.b16 %v8443
        %v9021 = vunpack.c.h.b16 %v8443
        %v9022 = vunpack.c.l.b16 %v8444
        %v9023 = vunpack.c.h.b16 %v8444
        %v9024 = vunpack.c.l.b16 %v8445
        %v9025 = vunpack.c.h.b16 %v8445
        %v9026 = vunpack.c.l.b16 %v8446
        %v9027 = vunpack.c.l.b16 %v8447
        %v9028 = vunpack.c.h.b16 %v8447
        %v9029 = vunpack.c.l.b16 %v8448
        %v9030 = vunpack.c.h.b16 %v8448
        %v9031 = vunpack.c.l.b16 %v8449
        %v9032 = vunpack.c.h.b16 %v8449
        %v9033 = vunpack.c.l.b16 %v8450
        %v9034 = vunpack.c.h.b16 %v8450
        %v9035 = vunpack.c.l.b16 %v8451
        %v9036 = vunpack.c.l.b16 %v8452
        %v9037 = vunpack.c.h.b16 %v8452
        %v9038 = vunpack.c.l.b16 %v8453
        %v9039 = vunpack.c.h.b16 %v8453
        %v9040 = vunpack.c.l.b16 %v8454
        %v9041 = vunpack.c.h.b16 %v8454
        %v9042 = vunpack.c.l.b16 %v8455
        %v9043 = vunpack.c.h.b16 %v8455
        %v9044 = vunpack.c.l.b16 %v8456
        %v9045 = vunpack.c.l.b16 %v8457
        %v9046 = vunpack.c.h.b16 %v8457
        %v9047 = vunpack.c.l.b16 %v8458
        %v9048 = vunpack.c.h.b16 %v8458
        %v9049 = vunpack.c.l.b16 %v8459
        %v9050 = vunpack.c.h.b16 %v8459
        %v9051 = vunpack.c.l.b16 %v8460
        %v9052 = vunpack.c.h.b16 %v8460
        %v9053 = vunpack.c.l.b16 %v8461
        %v9054 = vpack.c.b16 %v8775, %v8766
        %v9055 = vpack.c.b16 %v8776, %v8767
        %v9056 = vpack.c.b16 %v8777, %v8768
        %v9057 = vpack.c.b16 %v8778, %v8769
        %v9058 = vpack.c.b16 %v8779, %v8770
        %v9059 = vpack.c.b16 %v8780, %v8771
        %v9060 = vpack.c.b16 %v8781, %v8772
        %v9061 = vpack.c.b16 %v8782, %v8773
        %v9062 = vpack.c.b16 %v8783, %v8774
        %v9063 = vpack.c.b16 %v8793, %v8784
        %v9064 = vpack.c.b16 %v8794, %v8785
        %v9065 = vpack.c.b16 %v8795, %v8786
        %v9066 = vpack.c.b16 %v8796, %v8787
        %v9067 = vpack.c.b16 %v8797, %v8788
        %v9068 = vpack.c.b16 %v8798, %v8789
        %v9069 = vpack.c.b16 %v8799, %v8790
        %v9070 = vpack.c.b16 %v8800, %v8791
        %v9071 = vpack.c.b16 %v8801, %v8792
        %v9072 = vpack.c.b16 %v8811, %v8802
        %v9073 = vpack.c.b16 %v8812, %v8803
        %v9074 = vpack.c.b16 %v8813, %v8804
        %v9075 = vpack.c.b16 %v8814, %v8805
        %v9076 = vpack.c.b16 %v8815, %v8806
        %v9077 = vpack.c.b16 %v8816, %v8807
        %v9078 = vpack.c.b16 %v8817, %v8808
        %v9079 = vpack.c.b16 %v8818, %v8809
        %v9080 = vpack.c.b16 %v8819, %v8810
        %v9081 = vpack.c.b16 %v8829, %v8820
        %v9082 = vpack.c.b16 %v8830, %v8821
        %v9083 = vpack.c.b16 %v8831, %v8822
        %v9084 = vpack.c.b16 %v8832, %v8823
        %v9085 = vpack.c.b16 %v8833, %v8824
        %v9086 = vpack.c.b16 %v8834, %v8825
        %v9087 = vpack.c.b16 %v8835, %v8826
        %v9088 = vpack.c.b16 %v8836, %v8827
        %v9089 = vpack.c.b16 %v8837, %v8828
        %v9090 = vpack.c.b16 %v8847, %v8838
        %v9091 = vpack.c.b16 %v8848, %v8839
        %v9092 = vpack.c.b16 %v8849, %v8840
        %v9093 = vpack.c.b16 %v8850, %v8841
        %v9094 = vpack.c.b16 %v8851, %v8842
        %v9095 = vpack.c.b16 %v8852, %v8843
        %v9096 = vpack.c.b16 %v8853, %v8844
        %v9097 = vpack.c.b16 %v8854, %v8845
        %v9098 = vpack.c.b16 %v8855, %v8846
        %v9099 = vpack.c.b16 %v8865, %v8856
        %v9100 = vpack.c.b16 %v8866, %v8857
        %v9101 = vpack.c.b16 %v8867, %v8858
        %v9102 = vpack.c.b16 %v8868, %v8859
        %v9103 = vpack.c.b16 %v8869, %v8860
        %v9104 = vpack.c.b16 %v8870, %v8861
        %v9105 = vpack.c.b16 %v8871, %v8862
        %v9106 = vpack.c.b16 %v8872, %v8863
        %v9107 = vpack.c.b16 %v8873, %v8864
        %v9108 = vpack.c.b16 %v8883, %v8874
        %v9109 = vpack.c.b16 %v8884, %v8875
        %v9110 = vpack.c.b16 %v8885, %v8876
        %v9111 = vpack.c.b16 %v8886, %v8877
        %v9112 = vpack.c.b16 %v8887, %v8878
        %v9113 = vpack.c.b16 %v8888, %v8879
        %v9114 = vpack.c.b16 %v8889, %v8880
        %v9115 = vpack.c.b16 %v8890, %v8881
        %v9116 = vpack.c.b16 %v8891, %v8882
        %v9117 = vpack.c.b16 %v8901, %v8892
        %v9118 = vpack.c.b16 %v8902, %v8893
        %v9119 = vpack.c.b16 %v8903, %v8894
        %v9120 = vpack.c.b16 %v8904, %v8895
        %v9121 = vpack.c.b16 %v8905, %v8896
        %v9122 = vpack.c.b16 %v8906, %v8897
        %v9123 = vpack.c.b16 %v8907, %v8898
        %v9124 = vpack.c.b16 %v8908, %v8899
        %v9125 = vpack.c.b16 %v8909, %v8900
        %v9126 = vpack.c.b16 %v8919, %v8910
        %v9127 = vpack.c.b16 %v8920, %v8911
        %v9128 = vpack.c.b16 %v8921, %v8912
        %v9129 = vpack.c.b16 %v8922, %v8913
        %v9130 = vpack.c.b16 %v8923, %v8914
        %v9131 = vpack.c.b16 %v8924, %v8915
        %v9132 = vpack.c.b16 %v8925, %v8916
        %v9133 = vpack.c.b16 %v8926, %v8917
        %v9134 = vpack.c.b16 %v8927, %v8918
        %v9135 = vpack.c.b16 %v8937, %v8928
        %v9136 = vpack.c.b16 %v8938, %v8929
        %v9137 = vpack.c.b16 %v8939, %v8930
        %v9138 = vpack.c.b16 %v8940, %v8931
        %v9139 = vpack.c.b16 %v8941, %v8932
        %v9140 = vpack.c.b16 %v8942, %v8933
        %v9141 = vpack.c.b16 %v8943, %v8934
        %v9142 = vpack.c.b16 %v8944, %v8935
        %v9143 = vpack.c.b16 %v8945, %v8936
        %v9144 = vpack.c.b16 %v8955, %v8946
        %v9145 = vpack.c.b16 %v8956, %v8947
        %v9146 = vpack.c.b16 %v8957, %v8948
        %v9147 = vpack.c.b16 %v8958, %v8949
        %v9148 = vpack.c.b16 %v8959, %v8950
        %v9149 = vpack.c.b16 %v8960, %v8951
        %v9150 = vpack.c.b16 %v8961, %v8952
        %v9151 = vpack.c.b16 %v8962, %v8953
        %v9152 = vpack.c.b16 %v8963, %v8954
        %v9153 = vpack.c.b16 %v8973, %v8964
        %v9154 = vpack.c.b16 %v8974, %v8965
        %v9155 = vpack.c.b16 %v8975, %v8966
        %v9156 = vpack.c.b16 %v8976, %v8967
        %v9157 = vpack.c.b16 %v8977, %v8968
        %v9158 = vpack.c.b16 %v8978, %v8969
        %v9159 = vpack.c.b16 %v8979, %v8970
        %v9160 = vpack.c.b16 %v8980, %v8971
        %v9161 = vpack.c.b16 %v8981, %v8972
        %v9162 = vpack.c.b16 %v8991, %v8982
        %v9163 = vpack.c.b16 %v8992, %v8983
        %v9164 = vpack.c.b16 %v8993, %v8984
        %v9165 = vpack.c.b16 %v8994, %v8985
        %v9166 = vpack.c.b16 %v8995, %v8986
        %v9167 = vpack.c.b16 %v8996, %v8987
        %v9168 = vpack.c.b16 %v8997, %v8988
        %v9169 = vpack.c.b16 %v8998, %v8989
        %v9170 = vpack.c.b16 %v8999, %v8990
        %v9171 = vpack.c.b16 %v9009, %v9000
        %v9172 = vpack.c.b16 %v9010, %v9001
        %v9173 = vpack.c.b16 %v9011, %v9002
        %v9174 = vpack.c.b16 %v9012, %v9003
        %v9175 = vpack.c.b16 %v9013, %v9004
        %v9176 = vpack.c.b16 %v9014, %v9005
        %v9177 = vpack.c.b16 %v9015, %v9006
        %v9178 = vpack.c.b16 %v9016, %v9007
        %v9179 = vpack.c.b16 %v9017, %v9008
        %v9180 = vpack.c.b16 %v9027, %v9018
        %v9181 = vpack.c.b16 %v9028, %v9019
        %v9182 = vpack.c.b16 %v9029, %v9020
        %v9183 = vpack.c.b16 %v9030, %v9021
        %v9184 = vpack.c.b16 %v9031, %v9022
        %v9185 = vpack.c.b16 %v9032, %v9023
        %v9186 = vpack.c.b16 %v9033, %v9024
        %v9187 = vpack.c.b16 %v9034, %v9025
        %v9188 = vpack.c.b16 %v9035, %v9026
        %v9189 = vpack.c.b16 %v9045, %v9036
        %v9190 = vpack.c.b16 %v9046, %v9037
        %v9191 = vpack.c.b16 %v9047, %v9038
        %v9192 = vpack.c.b16 %v9048, %v9039
        %v9193 = vpack.c.b16 %v9049, %v9040
        %v9194 = vpack.c.b16 %v9050, %v9041
        %v9195 = vpack.c.b16 %v9051, %v9042
        %v9196 = vpack.c.b16 %v9052, %v9043
        %v9197 = vpack.c.b16 %v9053, %v9044
        %v9486 = vunpack.c.l.b16 %v8462
        %v9487 = vunpack.c.l.b16 %v8463
        %v9488 = vunpack.c.l.b16 %v8464
        %v9489 = vunpack.c.l.b16 %v8465
        %v9490 = vunpack.c.l.b16 %v8466
        %v9491 = vunpack.c.l.b16 %v8467
        %v9492 = vunpack.c.l.b16 %v8468
        %v9493 = vunpack.c.l.b16 %v8469
        %v9494 = vunpack.c.l.b16 %v8470
        %v9495 = vunpack.c.l.b16 %v8471
        %v9496 = vunpack.c.l.b16 %v8472
        %v9497 = vunpack.c.l.b16 %v8473
        %v9498 = vunpack.c.l.b16 %v8474
        %v9499 = vunpack.c.l.b16 %v8475
        %v9500 = vunpack.c.l.b16 %v8476
        %v9501 = vunpack.c.l.b16 %v8477
        %v9502 = vunpack.c.l.b16 %v8478
        %v9503 = vunpack.c.l.b16 %v8479
        %v9504 = vunpack.c.l.b16 %v8480
        %v9505 = vunpack.c.l.b16 %v8481
        %v9506 = vunpack.c.l.b16 %v8482
        %v9507 = vunpack.c.l.b16 %v8483
        %v9508 = vunpack.c.l.b16 %v8484
        %v9509 = vunpack.c.l.b16 %v8485
        %v9510 = vunpack.c.l.b16 %v8486
        %v9511 = vunpack.c.l.b16 %v8487
        %v9512 = vunpack.c.l.b16 %v8488
        %v9513 = vunpack.c.l.b16 %v8489
        %v9514 = vunpack.c.l.b16 %v8490
        %v9515 = vunpack.c.l.b16 %v8491
        %v9516 = vunpack.c.l.b16 %v8492
        %v9517 = vunpack.c.l.b16 %v8493
        %v9518 = vunpack.c.l.b16 %v8494
        %v9519 = vunpack.c.l.b16 %v8495
        %v9520 = vunpack.c.l.b16 %v8496
        %v9521 = vunpack.c.l.b16 %v8497
        %v9522 = vunpack.c.l.b16 %v8498
        %v9523 = vunpack.c.l.b16 %v8499
        %v9524 = vunpack.c.l.b16 %v8500
        %v9525 = vunpack.c.l.b16 %v8501
        %v9526 = vunpack.c.l.b16 %v8502
        %v9527 = vunpack.c.l.b16 %v8503
        %v9528 = vunpack.c.l.b16 %v8504
        %v9529 = vunpack.c.l.b16 %v8505
        %v9530 = vunpack.c.l.b16 %v8506
        %v9531 = vunpack.c.l.b16 %v8507
        %v9532 = vunpack.c.l.b16 %v8508
        %v9533 = vunpack.c.l.b16 %v8509
        %v9534 = vunpack.c.l.b16 %v8510
        %v9535 = vunpack.c.l.b16 %v8511
        %v9536 = vunpack.c.l.b16 %v8512
        %v9537 = vunpack.c.l.b16 %v8513
        %v9538 = vunpack.c.l.b16 %v8514
        %v9539 = vunpack.c.l.b16 %v8515
        %v9540 = vunpack.c.l.b16 %v8516
        %v9541 = vunpack.c.l.b16 %v8517
        %v9542 = vunpack.c.l.b16 %v8518
        %v9543 = vunpack.c.l.b16 %v8519
        %v9544 = vunpack.c.l.b16 %v8520
        %v9545 = vunpack.c.l.b16 %v8521
        %v9546 = vunpack.c.l.b16 %v8522
        %v9547 = vunpack.c.l.b16 %v8523
        %v9548 = vunpack.c.l.b16 %v8524
        %v9549 = vunpack.c.l.b16 %v8525
        %v9550 = vunpack.c.l.b16 %v8526
        %v9551 = vunpack.c.l.b16 %v8527
        %v9552 = vunpack.c.l.b16 %v8528
        %v9553 = vunpack.c.l.b16 %v8529
        %v9554 = vunpack.c.l.b16 %v8530
        %v9555 = vunpack.c.l.b16 %v8531
        %v9556 = vunpack.c.l.b16 %v8532
        %v9557 = vunpack.c.l.b16 %v8533
        %v9558 = vunpack.c.l.b16 %v8534
        %v9559 = vunpack.c.l.b16 %v8535
        %v9560 = vunpack.c.l.b16 %v8536
        %v9561 = vunpack.c.l.b16 %v8537
        %v9562 = vunpack.c.l.b16 %v8538
        %v9563 = vunpack.c.l.b16 %v8539
        %v9564 = vunpack.c.l.b16 %v8540
        %v9565 = vunpack.c.l.b16 %v8541
        %v9566 = vunpack.c.l.b16 %v8542
        %v9567 = vunpack.c.l.b16 %v8543
        %v9568 = vunpack.c.l.b16 %v8544
        %v9569 = vunpack.c.l.b16 %v8545
        %v9570 = vunpack.c.l.b16 %v8546
        %v9571 = vunpack.c.l.b16 %v8547
        %v9572 = vunpack.c.l.b16 %v8548
        %v9573 = vunpack.c.l.b16 %v8549
        %v9574 = vunpack.c.l.b16 %v8550
        %v9575 = vunpack.c.l.b16 %v8551
        %v9576 = vunpack.c.l.b16 %v8552
        %v9577 = vunpack.c.l.b16 %v8553
        %v9578 = vunpack.c.l.b16 %v8554
        %v9579 = vunpack.c.l.b16 %v8555
        %v9580 = vunpack.c.l.b16 %v8556
        %v9581 = vunpack.c.l.b16 %v8557
        %v9582 = vunpack.c.l.b16 %v8558
        %v9583 = vunpack.c.l.b16 %v8559
        %v9584 = vunpack.c.l.b16 %v8560
        %v9585 = vunpack.c.l.b16 %v8561
        %v9586 = vunpack.c.l.b16 %v8562
        %v9587 = vunpack.c.l.b16 %v8563
        %v9588 = vunpack.c.l.b16 %v8564
        %v9589 = vunpack.c.l.b16 %v8565
        %v9590 = vunpack.c.l.b16 %v8566
        %v9591 = vunpack.c.l.b16 %v8567
        %v9592 = vunpack.c.l.b16 %v8568
        %v9593 = vunpack.c.l.b16 %v8569
        %v9594 = vunpack.c.l.b16 %v8570
        %v9595 = vunpack.c.l.b16 %v8571
        %v9596 = vunpack.c.l.b16 %v8572
        %v9597 = vunpack.c.l.b16 %v8573
        %v9598 = vunpack.c.l.b16 %v8574
        %v9599 = vunpack.c.l.b16 %v8575
        %v9600 = vunpack.c.l.b16 %v8576
        %v9601 = vunpack.c.l.b16 %v8577
        %v9602 = vunpack.c.l.b16 %v8578
        %v9603 = vunpack.c.l.b16 %v8579
        %v9604 = vunpack.c.l.b16 %v8580
        %v9605 = vunpack.c.l.b16 %v8581
        %v9606 = vunpack.c.l.b16 %v8582
        %v9607 = vunpack.c.l.b16 %v8583
        %v9608 = vunpack.c.l.b16 %v8584
        %v9609 = vunpack.c.l.b16 %v8585
        %v9610 = vunpack.c.l.b16 %v8586
        %v9611 = vunpack.c.l.b16 %v8587
        %v9612 = vunpack.c.l.b16 %v8588
        %v9613 = vunpack.c.l.b16 %v8589
        %v9614 = vunpack.c.l.b16 %v8590
        %v9615 = vunpack.c.l.b16 %v8591
        %v9616 = vunpack.c.l.b16 %v8592
        %v9617 = vunpack.c.l.b16 %v8593
        %v9618 = vunpack.c.l.b16 %v8594
        %v9619 = vunpack.c.l.b16 %v8595
        %v9620 = vunpack.c.l.b16 %v8596
        %v9621 = vunpack.c.l.b16 %v8597
        %v9622 = vunpack.c.l.b16 %v8598
        %v9623 = vunpack.c.l.b16 %v8599
        %v9624 = vunpack.c.l.b16 %v8600
        %v9625 = vunpack.c.l.b16 %v8601
        %v9626 = vunpack.c.l.b16 %v8602
        %v9627 = vunpack.c.l.b16 %v8603
        %v9628 = vunpack.c.l.b16 %v8604
        %v9629 = vunpack.c.l.b16 %v8605
        %v9630 = vpack.c.b16 %v9487, %v9486
        %v9631 = vpack.c.b16 %v9489, %v9488
        %v9632 = vpack.c.b16 %v9491, %v9490
        %v9633 = vpack.c.b16 %v9493, %v9492
        %v9634 = vpack.c.b16 %v9495, %v9494
        %v9635 = vpack.c.b16 %v9497, %v9496
        %v9636 = vpack.c.b16 %v9499, %v9498
        %v9637 = vpack.c.b16 %v9501, %v9500
        %v9638 = vpack.c.b16 %v9503, %v9502
        %v9639 = vpack.c.b16 %v9505, %v9504
        %v9640 = vpack.c.b16 %v9507, %v9506
        %v9641 = vpack.c.b16 %v9509, %v9508
        %v9642 = vpack.c.b16 %v9511, %v9510
        %v9643 = vpack.c.b16 %v9513, %v9512
        %v9644 = vpack.c.b16 %v9515, %v9514
        %v9645 = vpack.c.b16 %v9517, %v9516
        %v9646 = vpack.c.b16 %v9519, %v9518
        %v9647 = vpack.c.b16 %v9521, %v9520
        %v9648 = vpack.c.b16 %v9523, %v9522
        %v9649 = vpack.c.b16 %v9525, %v9524
        %v9650 = vpack.c.b16 %v9527, %v9526
        %v9651 = vpack.c.b16 %v9529, %v9528
        %v9652 = vpack.c.b16 %v9531, %v9530
        %v9653 = vpack.c.b16 %v9533, %v9532
        %v9654 = vpack.c.b16 %v9535, %v9534
        %v9655 = vpack.c.b16 %v9537, %v9536
        %v9656 = vpack.c.b16 %v9539, %v9538
        %v9657 = vpack.c.b16 %v9541, %v9540
        %v9658 = vpack.c.b16 %v9543, %v9542
        %v9659 = vpack.c.b16 %v9545, %v9544
        %v9660 = vpack.c.b16 %v9547, %v9546
        %v9661 = vpack.c.b16 %v9549, %v9548
        %v9662 = vpack.c.b16 %v9551, %v9550
        %v9663 = vpack.c.b16 %v9553, %v9552
        %v9664 = vpack.c.b16 %v9555, %v9554
        %v9665 = vpack.c.b16 %v9557, %v9556
        %v9666 = vpack.c.b16 %v9559, %v9558
        %v9667 = vpack.c.b16 %v9561, %v9560
        %v9668 = vpack.c.b16 %v9563, %v9562
        %v9669 = vpack.c.b16 %v9565, %v9564
        %v9670 = vpack.c.b16 %v9567, %v9566
        %v9671 = vpack.c.b16 %v9569, %v9568
        %v9672 = vpack.c.b16 %v9571, %v9570
        %v9673 = vpack.c.b16 %v9573, %v9572
        %v9674 = vpack.c.b16 %v9575, %v9574
        %v9675 = vpack.c.b16 %v9577, %v9576
        %v9676 = vpack.c.b16 %v9579, %v9578
        %v9677 = vpack.c.b16 %v9581, %v9580
        %v9678 = vpack.c.b16 %v9583, %v9582
        %v9679 = vpack.c.b16 %v9585, %v9584
        %v9680 = vpack.c.b16 %v9587, %v9586
        %v9681 = vpack.c.b16 %v9589, %v9588
        %v9682 = vpack.c.b16 %v9591, %v9590
        %v9683 = vpack.c.b16 %v9593, %v9592
        %v9684 = vpack.c.b16 %v9595, %v9594
        %v9685 = vpack.c.b16 %v9597, %v9596
        %v9686 = vpack.c.b16 %v9599, %v9598
        %v9687 = vpack.c.b16 %v9601, %v9600
        %v9688 = vpack.c.b16 %v9603, %v9602
        %v9689 = vpack.c.b16 %v9605, %v9604
        %v9690 = vpack.c.b16 %v9607, %v9606
        %v9691 = vpack.c.b16 %v9609, %v9608
        %v9692 = vpack.c.b16 %v9611, %v9610
        %v9693 = vpack.c.b16 %v9613, %v9612
        %v9694 = vpack.c.b16 %v9615, %v9614
        %v9695 = vpack.c.b16 %v9617, %v9616
        %v9696 = vpack.c.b16 %v9619, %v9618
        %v9697 = vpack.c.b16 %v9621, %v9620
        %v9698 = vpack.c.b16 %v9623, %v9622
        %v9699 = vpack.c.b16 %v9625, %v9624
        %v9700 = vpack.c.b16 %v9627, %v9626
        %v9701 = vpack.c.b16 %v9629, %v9628
        %9774 = vmatpush.bf16.msra.mxu0 %v9637
        %9775 = vmatpush.bf16.msra.mxu0 %v9636
        %9776 = vmatpush.bf16.msra.mxu0 %v9635
        %9777 = vmatpush.bf16.msra.mxu0 %v9634
        %9778 = vmatpush.bf16.msra.mxu0 %v9633
        %9779 = vmatpush.bf16.msra.mxu0 %v9632
        %9780 = vmatpush.bf16.msra.mxu0 %v9631
        %9781 = vmatpush.bf16.msra.mxu0 %v9630
        %9782 = vmatmul.bf16.gmra.mxu0 %v9054
        %v9783 = vpop.f32.mrf.mxu0
        %v9784 = vadd.f32 0.0, %v9783
        %v9785 = vpop.f32.mrf.mxu0
        %v9786 = vadd.f32 0.0, %v9785
        %9787 = vmatmul.bf16.gmra.mxu0 %v9063
        %v9788 = vpop.f32.mrf.mxu0
        %v9789 = vadd.f32 0.0, %v9788
        %v9790 = vpop.f32.mrf.mxu0
        %v9791 = vadd.f32 0.0, %v9790
        %9792 = vmatmul.bf16.gmra.mxu0 %v9072
        %v9793 = vpop.f32.mrf.mxu0
        %v9794 = vadd.f32 0.0, %v9793
        %v9795 = vpop.f32.mrf.mxu0
        %v9796 = vadd.f32 0.0, %v9795
        %9797 = vmatmul.bf16.gmra.mxu0 %v9081
        %v9798 = vpop.f32.mrf.mxu0
        %v9799 = vadd.f32 0.0, %v9798
        %v9800 = vpop.f32.mrf.mxu0
        %v9801 = vadd.f32 0.0, %v9800
        %9802 = vmatmul.bf16.gmra.mxu0 %v9090
        %v9803 = vpop.f32.mrf.mxu0
        %v9804 = vadd.f32 0.0, %v9803
        %v9805 = vpop.f32.mrf.mxu0
        %v9806 = vadd.f32 0.0, %v9805
        %9807 = vmatmul.bf16.gmra.mxu0 %v9099
        %v9808 = vpop.f32.mrf.mxu0
        %v9809 = vadd.f32 0.0, %v9808
        %v9810 = vpop.f32.mrf.mxu0
        %v9811 = vadd.f32 0.0, %v9810
        %9812 = vmatmul.bf16.gmra.mxu0 %v9108
        %v9813 = vpop.f32.mrf.mxu0
        %v9814 = vadd.f32 0.0, %v9813
        %v9815 = vpop.f32.mrf.mxu0
        %v9816 = vadd.f32 0.0, %v9815
        %9817 = vmatmul.bf16.gmra.mxu0 %v9117
        %v9818 = vpop.f32.mrf.mxu0
        %v9819 = vadd.f32 0.0, %v9818
        %v9820 = vpop.f32.mrf.mxu0
        %v9821 = vadd.f32 0.0, %v9820
        %9822 = vmatmul.bf16.gmra.mxu0 %v9126
        %v9823 = vpop.f32.mrf.mxu0
        %v9824 = vadd.f32 0.0, %v9823
        %v9825 = vpop.f32.mrf.mxu0
        %v9826 = vadd.f32 0.0, %v9825
        %9827 = vmatmul.bf16.gmra.mxu0 %v9135
        %v9828 = vpop.f32.mrf.mxu0
        %v9829 = vadd.f32 0.0, %v9828
        %v9830 = vpop.f32.mrf.mxu0
        %v9831 = vadd.f32 0.0, %v9830
        %9832 = vmatmul.bf16.gmra.mxu0 %v9144
        %v9833 = vpop.f32.mrf.mxu0
        %v9834 = vadd.f32 0.0, %v9833
        %v9835 = vpop.f32.mrf.mxu0
        %v9836 = vadd.f32 0.0, %v9835
        %9837 = vmatmul.bf16.gmra.mxu0 %v9153
        %v9838 = vpop.f32.mrf.mxu0
        %v9839 = vadd.f32 0.0, %v9838
        %v9840 = vpop.f32.mrf.mxu0
        %v9841 = vadd.f32 0.0, %v9840
        %9842 = vmatmul.bf16.gmra.mxu0 %v9162
        %v9843 = vpop.f32.mrf.mxu0
        %v9844 = vadd.f32 0.0, %v9843
        %v9845 = vpop.f32.mrf.mxu0
        %v9846 = vadd.f32 0.0, %v9845
        %9847 = vmatmul.bf16.gmra.mxu0 %v9171
        %v9848 = vpop.f32.mrf.mxu0
        %v9849 = vadd.f32 0.0, %v9848
        %v9850 = vpop.f32.mrf.mxu0
        %v9851 = vadd.f32 0.0, %v9850
        %9852 = vmatmul.bf16.gmra.mxu0 %v9180
        %v9853 = vpop.f32.mrf.mxu0
        %v9854 = vadd.f32 0.0, %v9853
        %v9855 = vpop.f32.mrf.mxu0
        %v9856 = vadd.f32 0.0, %v9855
        %9857 = vmatmul.bf16.gmra.mxu0 %v9189
        %v9858 = vpop.f32.mrf.mxu0
        %v9859 = vadd.f32 0.0, %v9858
        %v9860 = vpop.f32.mrf.mxu0
        %v9861 = vadd.f32 0.0, %v9860
        %9862 = vdwg.mxu0
        %9863 = vmatpush.bf16.msra.mxu0 %v9645
        %9864 = vmatpush.bf16.msra.mxu0 %v9644
        %9865 = vmatpush.bf16.msra.mxu0 %v9643
        %9866 = vmatpush.bf16.msra.mxu0 %v9642
        %9867 = vmatpush.bf16.msra.mxu0 %v9641
        %9868 = vmatpush.bf16.msra.mxu0 %v9640
        %9869 = vmatpush.bf16.msra.mxu0 %v9639
        %9870 = vmatpush.bf16.msra.mxu0 %v9638
        %9871 = vmatmul.bf16.gmra.mxu0 %v9055
        %v9872 = vpop.f32.mrf.mxu0
        %v9873 = vadd.f32 %v9784, %v9872
        %v9874 = vpop.f32.mrf.mxu0
        %v9875 = vadd.f32 %v9786, %v9874
        %9876 = vmatmul.bf16.gmra.mxu0 %v9064
        %v9877 = vpop.f32.mrf.mxu0
        %v9878 = vadd.f32 %v9789, %v9877
        %v9879 = vpop.f32.mrf.mxu0
        %v9880 = vadd.f32 %v9791, %v9879
        %9881 = vmatmul.bf16.gmra.mxu0 %v9073
        %v9882 = vpop.f32.mrf.mxu0
        %v9883 = vadd.f32 %v9794, %v9882
        %v9884 = vpop.f32.mrf.mxu0
        %v9885 = vadd.f32 %v9796, %v9884
        %9886 = vmatmul.bf16.gmra.mxu0 %v9082
        %v9887 = vpop.f32.mrf.mxu0
        %v9888 = vadd.f32 %v9799, %v9887
        %v9889 = vpop.f32.mrf.mxu0
        %v9890 = vadd.f32 %v9801, %v9889
        %9891 = vmatmul.bf16.gmra.mxu0 %v9091
        %v9892 = vpop.f32.mrf.mxu0
        %v9893 = vadd.f32 %v9804, %v9892
        %v9894 = vpop.f32.mrf.mxu0
        %v9895 = vadd.f32 %v9806, %v9894
        %9896 = vmatmul.bf16.gmra.mxu0 %v9100
        %v9897 = vpop.f32.mrf.mxu0
        %v9898 = vadd.f32 %v9809, %v9897
        %v9899 = vpop.f32.mrf.mxu0
        %v9900 = vadd.f32 %v9811, %v9899
        %9901 = vmatmul.bf16.gmra.mxu0 %v9109
        %v9902 = vpop.f32.mrf.mxu0
        %v9903 = vadd.f32 %v9814, %v9902
        %v9904 = vpop.f32.mrf.mxu0
        %v9905 = vadd.f32 %v9816, %v9904
        %9906 = vmatmul.bf16.gmra.mxu0 %v9118
        %v9907 = vpop.f32.mrf.mxu0
        %v9908 = vadd.f32 %v9819, %v9907
        %v9909 = vpop.f32.mrf.mxu0
        %v9910 = vadd.f32 %v9821, %v9909
        %9911 = vmatmul.bf16.gmra.mxu0 %v9127
        %v9912 = vpop.f32.mrf.mxu0
        %v9913 = vadd.f32 %v9824, %v9912
        %v9914 = vpop.f32.mrf.mxu0
        %v9915 = vadd.f32 %v9826, %v9914
        %9916 = vmatmul.bf16.gmra.mxu0 %v9136
        %v9917 = vpop.f32.mrf.mxu0
        %v9918 = vadd.f32 %v9829, %v9917
        %v9919 = vpop.f32.mrf.mxu0
        %v9920 = vadd.f32 %v9831, %v9919
        %9921 = vmatmul.bf16.gmra.mxu0 %v9145
        %v9922 = vpop.f32.mrf.mxu0
        %v9923 = vadd.f32 %v9834, %v9922
        %v9924 = vpop.f32.mrf.mxu0
        %v9925 = vadd.f32 %v9836, %v9924
        %9926 = vmatmul.bf16.gmra.mxu0 %v9154
        %v9927 = vpop.f32.mrf.mxu0
        %v9928 = vadd.f32 %v9839, %v9927
        %v9929 = vpop.f32.mrf.mxu0
        %v9930 = vadd.f32 %v9841, %v9929
        %9931 = vmatmul.bf16.gmra.mxu0 %v9163
        %v9932 = vpop.f32.mrf.mxu0
        %v9933 = vadd.f32 %v9844, %v9932
        %v9934 = vpop.f32.mrf.mxu0
        %v9935 = vadd.f32 %v9846, %v9934
        %9936 = vmatmul.bf16.gmra.mxu0 %v9172
        %v9937 = vpop.f32.mrf.mxu0
        %v9938 = vadd.f32 %v9849, %v9937
        %v9939 = vpop.f32.mrf.mxu0
        %v9940 = vadd.f32 %v9851, %v9939
        %9941 = vmatmul.bf16.gmra.mxu0 %v9181
        %v9942 = vpop.f32.mrf.mxu0
        %v9943 = vadd.f32 %v9854, %v9942
        %v9944 = vpop.f32.mrf.mxu0
        %v9945 = vadd.f32 %v9856, %v9944
        %9946 = vmatmul.bf16.gmra.mxu0 %v9190
        %v9947 = vpop.f32.mrf.mxu0
        %v9948 = vadd.f32 %v9859, %v9947
        %v9949 = vpop.f32.mrf.mxu0
        %v9950 = vadd.f32 %v9861, %v9949
        %9951 = vdwg.mxu0
        %9952 = vmatpush.bf16.msra.mxu0 %v9653
        %9953 = vmatpush.bf16.msra.mxu0 %v9652
        %9954 = vmatpush.bf16.msra.mxu0 %v9651
        %9955 = vmatpush.bf16.msra.mxu0 %v9650
        %9956 = vmatpush.bf16.msra.mxu0 %v9649
        %9957 = vmatpush.bf16.msra.mxu0 %v9648
        %9958 = vmatpush.bf16.msra.mxu0 %v9647
        %9959 = vmatpush.bf16.msra.mxu0 %v9646
        %9960 = vmatmul.bf16.gmra.mxu0 %v9056
        %v9961 = vpop.f32.mrf.mxu0
        %v9962 = vadd.f32 %v9873, %v9961
        %v9963 = vpop.f32.mrf.mxu0
        %v9964 = vadd.f32 %v9875, %v9963
        %9965 = vmatmul.bf16.gmra.mxu0 %v9065
        %v9966 = vpop.f32.mrf.mxu0
        %v9967 = vadd.f32 %v9878, %v9966
        %v9968 = vpop.f32.mrf.mxu0
        %v9969 = vadd.f32 %v9880, %v9968
        %9970 = vmatmul.bf16.gmra.mxu0 %v9074
        %v9971 = vpop.f32.mrf.mxu0
        %v9972 = vadd.f32 %v9883, %v9971
        %v9973 = vpop.f32.mrf.mxu0
        %v9974 = vadd.f32 %v9885, %v9973
        %9975 = vmatmul.bf16.gmra.mxu0 %v9083
        %v9976 = vpop.f32.mrf.mxu0
        %v9977 = vadd.f32 %v9888, %v9976
        %v9978 = vpop.f32.mrf.mxu0
        %v9979 = vadd.f32 %v9890, %v9978
        %9980 = vmatmul.bf16.gmra.mxu0 %v9092
        %v9981 = vpop.f32.mrf.mxu0
        %v9982 = vadd.f32 %v9893, %v9981
        %v9983 = vpop.f32.mrf.mxu0
        %v9984 = vadd.f32 %v9895, %v9983
        %9985 = vmatmul.bf16.gmra.mxu0 %v9101
        %v9986 = vpop.f32.mrf.mxu0
        %v9987 = vadd.f32 %v9898, %v9986
        %v9988 = vpop.f32.mrf.mxu0
        %v9989 = vadd.f32 %v9900, %v9988
        %9990 = vmatmul.bf16.gmra.mxu0 %v9110
        %v9991 = vpop.f32.mrf.mxu0
        %v9992 = vadd.f32 %v9903, %v9991
        %v9993 = vpop.f32.mrf.mxu0
        %v9994 = vadd.f32 %v9905, %v9993
        %9995 = vmatmul.bf16.gmra.mxu0 %v9119
        %v9996 = vpop.f32.mrf.mxu0
        %v9997 = vadd.f32 %v9908, %v9996
        %v9998 = vpop.f32.mrf.mxu0
        %v9999 = vadd.f32 %v9910, %v9998
        %10000 = vmatmul.bf16.gmra.mxu0 %v9128
        %v10001 = vpop.f32.mrf.mxu0
        %v10002 = vadd.f32 %v9913, %v10001
        %v10003 = vpop.f32.mrf.mxu0
        %v10004 = vadd.f32 %v9915, %v10003
        %10005 = vmatmul.bf16.gmra.mxu0 %v9137
        %v10006 = vpop.f32.mrf.mxu0
        %v10007 = vadd.f32 %v9918, %v10006
        %v10008 = vpop.f32.mrf.mxu0
        %v10009 = vadd.f32 %v9920, %v10008
        %10010 = vmatmul.bf16.gmra.mxu0 %v9146
        %v10011 = vpop.f32.mrf.mxu0
        %v10012 = vadd.f32 %v9923, %v10011
        %v10013 = vpop.f32.mrf.mxu0
        %v10014 = vadd.f32 %v9925, %v10013
        %10015 = vmatmul.bf16.gmra.mxu0 %v9155
        %v10016 = vpop.f32.mrf.mxu0
        %v10017 = vadd.f32 %v9928, %v10016
        %v10018 = vpop.f32.mrf.mxu0
        %v10019 = vadd.f32 %v9930, %v10018
        %10020 = vmatmul.bf16.gmra.mxu0 %v9164
        %v10021 = vpop.f32.mrf.mxu0
        %v10022 = vadd.f32 %v9933, %v10021
        %v10023 = vpop.f32.mrf.mxu0
        %v10024 = vadd.f32 %v9935, %v10023
        %10025 = vmatmul.bf16.gmra.mxu0 %v9173
        %v10026 = vpop.f32.mrf.mxu0
        %v10027 = vadd.f32 %v9938, %v10026
        %v10028 = vpop.f32.mrf.mxu0
        %v10029 = vadd.f32 %v9940, %v10028
        %10030 = vmatmul.bf16.gmra.mxu0 %v9182
        %v10031 = vpop.f32.mrf.mxu0
        %v10032 = vadd.f32 %v9943, %v10031
        %v10033 = vpop.f32.mrf.mxu0
        %v10034 = vadd.f32 %v9945, %v10033
        %10035 = vmatmul.bf16.gmra.mxu0 %v9191
        %v10036 = vpop.f32.mrf.mxu0
        %v10037 = vadd.f32 %v9948, %v10036
        %v10038 = vpop.f32.mrf.mxu0
        %v10039 = vadd.f32 %v9950, %v10038
        %10040 = vdwg.mxu0
        %10041 = vmatpush.bf16.msra.mxu0 %v9661
        %10042 = vmatpush.bf16.msra.mxu0 %v9660
        %10043 = vmatpush.bf16.msra.mxu0 %v9659
        %10044 = vmatpush.bf16.msra.mxu0 %v9658
        %10045 = vmatpush.bf16.msra.mxu0 %v9657
        %10046 = vmatpush.bf16.msra.mxu0 %v9656
        %10047 = vmatpush.bf16.msra.mxu0 %v9655
        %10048 = vmatpush.bf16.msra.mxu0 %v9654
        %10049 = vmatmul.bf16.gmra.mxu0 %v9057
        %v10050 = vpop.f32.mrf.mxu0
        %v10051 = vadd.f32 %v9962, %v10050
        %v10052 = vpop.f32.mrf.mxu0
        %v10053 = vadd.f32 %v9964, %v10052
        %10054 = vmatmul.bf16.gmra.mxu0 %v9066
        %v10055 = vpop.f32.mrf.mxu0
        %v10056 = vadd.f32 %v9967, %v10055
        %v10057 = vpop.f32.mrf.mxu0
        %v10058 = vadd.f32 %v9969, %v10057
        %10059 = vmatmul.bf16.gmra.mxu0 %v9075
        %v10060 = vpop.f32.mrf.mxu0
        %v10061 = vadd.f32 %v9972, %v10060
        %v10062 = vpop.f32.mrf.mxu0
        %v10063 = vadd.f32 %v9974, %v10062
        %10064 = vmatmul.bf16.gmra.mxu0 %v9084
        %v10065 = vpop.f32.mrf.mxu0
        %v10066 = vadd.f32 %v9977, %v10065
        %v10067 = vpop.f32.mrf.mxu0
        %v10068 = vadd.f32 %v9979, %v10067
        %10069 = vmatmul.bf16.gmra.mxu0 %v9093
        %v10070 = vpop.f32.mrf.mxu0
        %v10071 = vadd.f32 %v9982, %v10070
        %v10072 = vpop.f32.mrf.mxu0
        %v10073 = vadd.f32 %v9984, %v10072
        %10074 = vmatmul.bf16.gmra.mxu0 %v9102
        %v10075 = vpop.f32.mrf.mxu0
        %v10076 = vadd.f32 %v9987, %v10075
        %v10077 = vpop.f32.mrf.mxu0
        %v10078 = vadd.f32 %v9989, %v10077
        %10079 = vmatmul.bf16.gmra.mxu0 %v9111
        %v10080 = vpop.f32.mrf.mxu0
        %v10081 = vadd.f32 %v9992, %v10080
        %v10082 = vpop.f32.mrf.mxu0
        %v10083 = vadd.f32 %v9994, %v10082
        %10084 = vmatmul.bf16.gmra.mxu0 %v9120
        %v10085 = vpop.f32.mrf.mxu0
        %v10086 = vadd.f32 %v9997, %v10085
        %v10087 = vpop.f32.mrf.mxu0
        %v10088 = vadd.f32 %v9999, %v10087
        %10089 = vmatmul.bf16.gmra.mxu0 %v9129
        %v10090 = vpop.f32.mrf.mxu0
        %v10091 = vadd.f32 %v10002, %v10090
        %v10092 = vpop.f32.mrf.mxu0
        %v10093 = vadd.f32 %v10004, %v10092
        %10094 = vmatmul.bf16.gmra.mxu0 %v9138
        %v10095 = vpop.f32.mrf.mxu0
        %v10096 = vadd.f32 %v10007, %v10095
        %v10097 = vpop.f32.mrf.mxu0
        %v10098 = vadd.f32 %v10009, %v10097
        %10099 = vmatmul.bf16.gmra.mxu0 %v9147
        %v10100 = vpop.f32.mrf.mxu0
        %v10101 = vadd.f32 %v10012, %v10100
        %v10102 = vpop.f32.mrf.mxu0
        %v10103 = vadd.f32 %v10014, %v10102
        %10104 = vmatmul.bf16.gmra.mxu0 %v9156
        %v10105 = vpop.f32.mrf.mxu0
        %v10106 = vadd.f32 %v10017, %v10105
        %v10107 = vpop.f32.mrf.mxu0
        %v10108 = vadd.f32 %v10019, %v10107
        %10109 = vmatmul.bf16.gmra.mxu0 %v9165
        %v10110 = vpop.f32.mrf.mxu0
        %v10111 = vadd.f32 %v10022, %v10110
        %v10112 = vpop.f32.mrf.mxu0
        %v10113 = vadd.f32 %v10024, %v10112
        %10114 = vmatmul.bf16.gmra.mxu0 %v9174
        %v10115 = vpop.f32.mrf.mxu0
        %v10116 = vadd.f32 %v10027, %v10115
        %v10117 = vpop.f32.mrf.mxu0
        %v10118 = vadd.f32 %v10029, %v10117
        %10119 = vmatmul.bf16.gmra.mxu0 %v9183
        %v10120 = vpop.f32.mrf.mxu0
        %v10121 = vadd.f32 %v10032, %v10120
        %v10122 = vpop.f32.mrf.mxu0
        %v10123 = vadd.f32 %v10034, %v10122
        %10124 = vmatmul.bf16.gmra.mxu0 %v9192
        %v10125 = vpop.f32.mrf.mxu0
        %v10126 = vadd.f32 %v10037, %v10125
        %v10127 = vpop.f32.mrf.mxu0
        %v10128 = vadd.f32 %v10039, %v10127
        %10129 = vdwg.mxu0
        %10130 = vmatpush.bf16.msra.mxu0 %v9669
        %10131 = vmatpush.bf16.msra.mxu0 %v9668
        %10132 = vmatpush.bf16.msra.mxu0 %v9667
        %10133 = vmatpush.bf16.msra.mxu0 %v9666
        %10134 = vmatpush.bf16.msra.mxu0 %v9665
        %10135 = vmatpush.bf16.msra.mxu0 %v9664
        %10136 = vmatpush.bf16.msra.mxu0 %v9663
        %10137 = vmatpush.bf16.msra.mxu0 %v9662
        %10138 = vmatmul.bf16.gmra.mxu0 %v9058
        %v10139 = vpop.f32.mrf.mxu0
        %v10140 = vadd.f32 %v10051, %v10139
        %v10141 = vpop.f32.mrf.mxu0
        %v10142 = vadd.f32 %v10053, %v10141
        %10143 = vmatmul.bf16.gmra.mxu0 %v9067
        %v10144 = vpop.f32.mrf.mxu0
        %v10145 = vadd.f32 %v10056, %v10144
        %v10146 = vpop.f32.mrf.mxu0
        %v10147 = vadd.f32 %v10058, %v10146
        %10148 = vmatmul.bf16.gmra.mxu0 %v9076
        %v10149 = vpop.f32.mrf.mxu0
        %v10150 = vadd.f32 %v10061, %v10149
        %v10151 = vpop.f32.mrf.mxu0
        %v10152 = vadd.f32 %v10063, %v10151
        %10153 = vmatmul.bf16.gmra.mxu0 %v9085
        %v10154 = vpop.f32.mrf.mxu0
        %v10155 = vadd.f32 %v10066, %v10154
        %v10156 = vpop.f32.mrf.mxu0
        %v10157 = vadd.f32 %v10068, %v10156
        %10158 = vmatmul.bf16.gmra.mxu0 %v9094
        %v10159 = vpop.f32.mrf.mxu0
        %v10160 = vadd.f32 %v10071, %v10159
        %v10161 = vpop.f32.mrf.mxu0
        %v10162 = vadd.f32 %v10073, %v10161
        %10163 = vmatmul.bf16.gmra.mxu0 %v9103
        %v10164 = vpop.f32.mrf.mxu0
        %v10165 = vadd.f32 %v10076, %v10164
        %v10166 = vpop.f32.mrf.mxu0
        %v10167 = vadd.f32 %v10078, %v10166
        %10168 = vmatmul.bf16.gmra.mxu0 %v9112
        %v10169 = vpop.f32.mrf.mxu0
        %v10170 = vadd.f32 %v10081, %v10169
        %v10171 = vpop.f32.mrf.mxu0
        %v10172 = vadd.f32 %v10083, %v10171
        %10173 = vmatmul.bf16.gmra.mxu0 %v9121
        %v10174 = vpop.f32.mrf.mxu0
        %v10175 = vadd.f32 %v10086, %v10174
        %v10176 = vpop.f32.mrf.mxu0
        %v10177 = vadd.f32 %v10088, %v10176
        %10178 = vmatmul.bf16.gmra.mxu0 %v9130
        %v10179 = vpop.f32.mrf.mxu0
        %v10180 = vadd.f32 %v10091, %v10179
        %v10181 = vpop.f32.mrf.mxu0
        %v10182 = vadd.f32 %v10093, %v10181
        %10183 = vmatmul.bf16.gmra.mxu0 %v9139
        %v10184 = vpop.f32.mrf.mxu0
        %v10185 = vadd.f32 %v10096, %v10184
        %v10186 = vpop.f32.mrf.mxu0
        %v10187 = vadd.f32 %v10098, %v10186
        %10188 = vmatmul.bf16.gmra.mxu0 %v9148
        %v10189 = vpop.f32.mrf.mxu0
        %v10190 = vadd.f32 %v10101, %v10189
        %v10191 = vpop.f32.mrf.mxu0
        %v10192 = vadd.f32 %v10103, %v10191
        %10193 = vmatmul.bf16.gmra.mxu0 %v9157
        %v10194 = vpop.f32.mrf.mxu0
        %v10195 = vadd.f32 %v10106, %v10194
        %v10196 = vpop.f32.mrf.mxu0
        %v10197 = vadd.f32 %v10108, %v10196
        %10198 = vmatmul.bf16.gmra.mxu0 %v9166
        %v10199 = vpop.f32.mrf.mxu0
        %v10200 = vadd.f32 %v10111, %v10199
        %v10201 = vpop.f32.mrf.mxu0
        %v10202 = vadd.f32 %v10113, %v10201
        %10203 = vmatmul.bf16.gmra.mxu0 %v9175
        %v10204 = vpop.f32.mrf.mxu0
        %v10205 = vadd.f32 %v10116, %v10204
        %v10206 = vpop.f32.mrf.mxu0
        %v10207 = vadd.f32 %v10118, %v10206
        %10208 = vmatmul.bf16.gmra.mxu0 %v9184
        %v10209 = vpop.f32.mrf.mxu0
        %v10210 = vadd.f32 %v10121, %v10209
        %v10211 = vpop.f32.mrf.mxu0
        %v10212 = vadd.f32 %v10123, %v10211
        %10213 = vmatmul.bf16.gmra.mxu0 %v9193
        %v10214 = vpop.f32.mrf.mxu0
        %v10215 = vadd.f32 %v10126, %v10214
        %v10216 = vpop.f32.mrf.mxu0
        %v10217 = vadd.f32 %v10128, %v10216
        %10218 = vdwg.mxu0
        %10219 = vmatpush.bf16.msra.mxu0 %v9677
        %10220 = vmatpush.bf16.msra.mxu0 %v9676
        %10221 = vmatpush.bf16.msra.mxu0 %v9675
        %10222 = vmatpush.bf16.msra.mxu0 %v9674
        %10223 = vmatpush.bf16.msra.mxu0 %v9673
        %10224 = vmatpush.bf16.msra.mxu0 %v9672
        %10225 = vmatpush.bf16.msra.mxu0 %v9671
        %10226 = vmatpush.bf16.msra.mxu0 %v9670
        %10227 = vmatmul.bf16.gmra.mxu0 %v9059
        %v10228 = vpop.f32.mrf.mxu0
        %v10229 = vadd.f32 %v10140, %v10228
        %v10230 = vpop.f32.mrf.mxu0
        %v10231 = vadd.f32 %v10142, %v10230
        %10232 = vmatmul.bf16.gmra.mxu0 %v9068
        %v10233 = vpop.f32.mrf.mxu0
        %v10234 = vadd.f32 %v10145, %v10233
        %v10235 = vpop.f32.mrf.mxu0
        %v10236 = vadd.f32 %v10147, %v10235
        %10237 = vmatmul.bf16.gmra.mxu0 %v9077
        %v10238 = vpop.f32.mrf.mxu0
        %v10239 = vadd.f32 %v10150, %v10238
        %v10240 = vpop.f32.mrf.mxu0
        %v10241 = vadd.f32 %v10152, %v10240
        %10242 = vmatmul.bf16.gmra.mxu0 %v9086
        %v10243 = vpop.f32.mrf.mxu0
        %v10244 = vadd.f32 %v10155, %v10243
        %v10245 = vpop.f32.mrf.mxu0
        %v10246 = vadd.f32 %v10157, %v10245
        %10247 = vmatmul.bf16.gmra.mxu0 %v9095
        %v10248 = vpop.f32.mrf.mxu0
        %v10249 = vadd.f32 %v10160, %v10248
        %v10250 = vpop.f32.mrf.mxu0
        %v10251 = vadd.f32 %v10162, %v10250
        %10252 = vmatmul.bf16.gmra.mxu0 %v9104
        %v10253 = vpop.f32.mrf.mxu0
        %v10254 = vadd.f32 %v10165, %v10253
        %v10255 = vpop.f32.mrf.mxu0
        %v10256 = vadd.f32 %v10167, %v10255
        %10257 = vmatmul.bf16.gmra.mxu0 %v9113
        %v10258 = vpop.f32.mrf.mxu0
        %v10259 = vadd.f32 %v10170, %v10258
        %v10260 = vpop.f32.mrf.mxu0
        %v10261 = vadd.f32 %v10172, %v10260
        %10262 = vmatmul.bf16.gmra.mxu0 %v9122
        %v10263 = vpop.f32.mrf.mxu0
        %v10264 = vadd.f32 %v10175, %v10263
        %v10265 = vpop.f32.mrf.mxu0
        %v10266 = vadd.f32 %v10177, %v10265
        %10267 = vmatmul.bf16.gmra.mxu0 %v9131
        %v10268 = vpop.f32.mrf.mxu0
        %v10269 = vadd.f32 %v10180, %v10268
        %v10270 = vpop.f32.mrf.mxu0
        %v10271 = vadd.f32 %v10182, %v10270
        %10272 = vmatmul.bf16.gmra.mxu0 %v9140
        %v10273 = vpop.f32.mrf.mxu0
        %v10274 = vadd.f32 %v10185, %v10273
        %v10275 = vpop.f32.mrf.mxu0
        %v10276 = vadd.f32 %v10187, %v10275
        %10277 = vmatmul.bf16.gmra.mxu0 %v9149
        %v10278 = vpop.f32.mrf.mxu0
        %v10279 = vadd.f32 %v10190, %v10278
        %v10280 = vpop.f32.mrf.mxu0
        %v10281 = vadd.f32 %v10192, %v10280
        %10282 = vmatmul.bf16.gmra.mxu0 %v9158
        %v10283 = vpop.f32.mrf.mxu0
        %v10284 = vadd.f32 %v10195, %v10283
        %v10285 = vpop.f32.mrf.mxu0
        %v10286 = vadd.f32 %v10197, %v10285
        %10287 = vmatmul.bf16.gmra.mxu0 %v9167
        %v10288 = vpop.f32.mrf.mxu0
        %v10289 = vadd.f32 %v10200, %v10288
        %v10290 = vpop.f32.mrf.mxu0
        %v10291 = vadd.f32 %v10202, %v10290
        %10292 = vmatmul.bf16.gmra.mxu0 %v9176
        %v10293 = vpop.f32.mrf.mxu0
        %v10294 = vadd.f32 %v10205, %v10293
        %v10295 = vpop.f32.mrf.mxu0
        %v10296 = vadd.f32 %v10207, %v10295
        %10297 = vmatmul.bf16.gmra.mxu0 %v9185
        %v10298 = vpop.f32.mrf.mxu0
        %v10299 = vadd.f32 %v10210, %v10298
        %v10300 = vpop.f32.mrf.mxu0
        %v10301 = vadd.f32 %v10212, %v10300
        %10302 = vmatmul.bf16.gmra.mxu0 %v9194
        %v10303 = vpop.f32.mrf.mxu0
        %v10304 = vadd.f32 %v10215, %v10303
        %v10305 = vpop.f32.mrf.mxu0
        %v10306 = vadd.f32 %v10217, %v10305
        %10307 = vdwg.mxu0
        %10308 = vmatpush.bf16.msra.mxu0 %v9685
        %10309 = vmatpush.bf16.msra.mxu0 %v9684
        %10310 = vmatpush.bf16.msra.mxu0 %v9683
        %10311 = vmatpush.bf16.msra.mxu0 %v9682
        %10312 = vmatpush.bf16.msra.mxu0 %v9681
        %10313 = vmatpush.bf16.msra.mxu0 %v9680
        %10314 = vmatpush.bf16.msra.mxu0 %v9679
        %10315 = vmatpush.bf16.msra.mxu0 %v9678
        %10316 = vmatmul.bf16.gmra.mxu0 %v9060
        %v10317 = vpop.f32.mrf.mxu0
        %v10318 = vadd.f32 %v10229, %v10317
        %v10319 = vpop.f32.mrf.mxu0
        %v10320 = vadd.f32 %v10231, %v10319
        %10321 = vmatmul.bf16.gmra.mxu0 %v9069
        %v10322 = vpop.f32.mrf.mxu0
        %v10323 = vadd.f32 %v10234, %v10322
        %v10324 = vpop.f32.mrf.mxu0
        %v10325 = vadd.f32 %v10236, %v10324
        %10326 = vmatmul.bf16.gmra.mxu0 %v9078
        %v10327 = vpop.f32.mrf.mxu0
        %v10328 = vadd.f32 %v10239, %v10327
        %v10329 = vpop.f32.mrf.mxu0
        %v10330 = vadd.f32 %v10241, %v10329
        %10331 = vmatmul.bf16.gmra.mxu0 %v9087
        %v10332 = vpop.f32.mrf.mxu0
        %v10333 = vadd.f32 %v10244, %v10332
        %v10334 = vpop.f32.mrf.mxu0
        %v10335 = vadd.f32 %v10246, %v10334
        %10336 = vmatmul.bf16.gmra.mxu0 %v9096
        %v10337 = vpop.f32.mrf.mxu0
        %v10338 = vadd.f32 %v10249, %v10337
        %v10339 = vpop.f32.mrf.mxu0
        %v10340 = vadd.f32 %v10251, %v10339
        %10341 = vmatmul.bf16.gmra.mxu0 %v9105
        %v10342 = vpop.f32.mrf.mxu0
        %v10343 = vadd.f32 %v10254, %v10342
        %v10344 = vpop.f32.mrf.mxu0
        %v10345 = vadd.f32 %v10256, %v10344
        %10346 = vmatmul.bf16.gmra.mxu0 %v9114
        %v10347 = vpop.f32.mrf.mxu0
        %v10348 = vadd.f32 %v10259, %v10347
        %v10349 = vpop.f32.mrf.mxu0
        %v10350 = vadd.f32 %v10261, %v10349
        %10351 = vmatmul.bf16.gmra.mxu0 %v9123
        %v10352 = vpop.f32.mrf.mxu0
        %v10353 = vadd.f32 %v10264, %v10352
        %v10354 = vpop.f32.mrf.mxu0
        %v10355 = vadd.f32 %v10266, %v10354
        %10356 = vmatmul.bf16.gmra.mxu0 %v9132
        %v10357 = vpop.f32.mrf.mxu0
        %v10358 = vadd.f32 %v10269, %v10357
        %v10359 = vpop.f32.mrf.mxu0
        %v10360 = vadd.f32 %v10271, %v10359
        %10361 = vmatmul.bf16.gmra.mxu0 %v9141
        %v10362 = vpop.f32.mrf.mxu0
        %v10363 = vadd.f32 %v10274, %v10362
        %v10364 = vpop.f32.mrf.mxu0
        %v10365 = vadd.f32 %v10276, %v10364
        %10366 = vmatmul.bf16.gmra.mxu0 %v9150
        %v10367 = vpop.f32.mrf.mxu0
        %v10368 = vadd.f32 %v10279, %v10367
        %v10369 = vpop.f32.mrf.mxu0
        %v10370 = vadd.f32 %v10281, %v10369
        %10371 = vmatmul.bf16.gmra.mxu0 %v9159
        %v10372 = vpop.f32.mrf.mxu0
        %v10373 = vadd.f32 %v10284, %v10372
        %v10374 = vpop.f32.mrf.mxu0
        %v10375 = vadd.f32 %v10286, %v10374
        %10376 = vmatmul.bf16.gmra.mxu0 %v9168
        %v10377 = vpop.f32.mrf.mxu0
        %v10378 = vadd.f32 %v10289, %v10377
        %v10379 = vpop.f32.mrf.mxu0
        %v10380 = vadd.f32 %v10291, %v10379
        %10381 = vmatmul.bf16.gmra.mxu0 %v9177
        %v10382 = vpop.f32.mrf.mxu0
        %v10383 = vadd.f32 %v10294, %v10382
        %v10384 = vpop.f32.mrf.mxu0
        %v10385 = vadd.f32 %v10296, %v10384
        %10386 = vmatmul.bf16.gmra.mxu0 %v9186
        %v10387 = vpop.f32.mrf.mxu0
        %v10388 = vadd.f32 %v10299, %v10387
        %v10389 = vpop.f32.mrf.mxu0
        %v10390 = vadd.f32 %v10301, %v10389
        %10391 = vmatmul.bf16.gmra.mxu0 %v9195
        %v10392 = vpop.f32.mrf.mxu0
        %v10393 = vadd.f32 %v10304, %v10392
        %v10394 = vpop.f32.mrf.mxu0
        %v10395 = vadd.f32 %v10306, %v10394
        %10396 = vdwg.mxu0
        %10397 = vmatpush.bf16.msra.mxu0 %v9693
        %10398 = vmatpush.bf16.msra.mxu0 %v9692
        %10399 = vmatpush.bf16.msra.mxu0 %v9691
        %10400 = vmatpush.bf16.msra.mxu0 %v9690
        %10401 = vmatpush.bf16.msra.mxu0 %v9689
        %10402 = vmatpush.bf16.msra.mxu0 %v9688
        %10403 = vmatpush.bf16.msra.mxu0 %v9687
        %10404 = vmatpush.bf16.msra.mxu0 %v9686
        %10405 = vmatmul.bf16.gmra.mxu0 %v9061
        %v10406 = vpop.f32.mrf.mxu0
        %v10407 = vadd.f32 %v10318, %v10406
        %v10408 = vpop.f32.mrf.mxu0
        %v10409 = vadd.f32 %v10320, %v10408
        %10410 = vmatmul.bf16.gmra.mxu0 %v9070
        %v10411 = vpop.f32.mrf.mxu0
        %v10412 = vadd.f32 %v10323, %v10411
        %v10413 = vpop.f32.mrf.mxu0
        %v10414 = vadd.f32 %v10325, %v10413
        %10415 = vmatmul.bf16.gmra.mxu0 %v9079
        %v10416 = vpop.f32.mrf.mxu0
        %v10417 = vadd.f32 %v10328, %v10416
        %v10418 = vpop.f32.mrf.mxu0
        %v10419 = vadd.f32 %v10330, %v10418
        %10420 = vmatmul.bf16.gmra.mxu0 %v9088
        %v10421 = vpop.f32.mrf.mxu0
        %v10422 = vadd.f32 %v10333, %v10421
        %v10423 = vpop.f32.mrf.mxu0
        %v10424 = vadd.f32 %v10335, %v10423
        %10425 = vmatmul.bf16.gmra.mxu0 %v9097
        %v10426 = vpop.f32.mrf.mxu0
        %v10427 = vadd.f32 %v10338, %v10426
        %v10428 = vpop.f32.mrf.mxu0
        %v10429 = vadd.f32 %v10340, %v10428
        %10430 = vmatmul.bf16.gmra.mxu0 %v9106
        %v10431 = vpop.f32.mrf.mxu0
        %v10432 = vadd.f32 %v10343, %v10431
        %v10433 = vpop.f32.mrf.mxu0
        %v10434 = vadd.f32 %v10345, %v10433
        %10435 = vmatmul.bf16.gmra.mxu0 %v9115
        %v10436 = vpop.f32.mrf.mxu0
        %v10437 = vadd.f32 %v10348, %v10436
        %v10438 = vpop.f32.mrf.mxu0
        %v10439 = vadd.f32 %v10350, %v10438
        %10440 = vmatmul.bf16.gmra.mxu0 %v9124
        %v10441 = vpop.f32.mrf.mxu0
        %v10442 = vadd.f32 %v10353, %v10441
        %v10443 = vpop.f32.mrf.mxu0
        %v10444 = vadd.f32 %v10355, %v10443
        %10445 = vmatmul.bf16.gmra.mxu0 %v9133
        %v10446 = vpop.f32.mrf.mxu0
        %v10447 = vadd.f32 %v10358, %v10446
        %v10448 = vpop.f32.mrf.mxu0
        %v10449 = vadd.f32 %v10360, %v10448
        %10450 = vmatmul.bf16.gmra.mxu0 %v9142
        %v10451 = vpop.f32.mrf.mxu0
        %v10452 = vadd.f32 %v10363, %v10451
        %v10453 = vpop.f32.mrf.mxu0
        %v10454 = vadd.f32 %v10365, %v10453
        %10455 = vmatmul.bf16.gmra.mxu0 %v9151
        %v10456 = vpop.f32.mrf.mxu0
        %v10457 = vadd.f32 %v10368, %v10456
        %v10458 = vpop.f32.mrf.mxu0
        %v10459 = vadd.f32 %v10370, %v10458
        %10460 = vmatmul.bf16.gmra.mxu0 %v9160
        %v10461 = vpop.f32.mrf.mxu0
        %v10462 = vadd.f32 %v10373, %v10461
        %v10463 = vpop.f32.mrf.mxu0
        %v10464 = vadd.f32 %v10375, %v10463
        %10465 = vmatmul.bf16.gmra.mxu0 %v9169
        %v10466 = vpop.f32.mrf.mxu0
        %v10467 = vadd.f32 %v10378, %v10466
        %v10468 = vpop.f32.mrf.mxu0
        %v10469 = vadd.f32 %v10380, %v10468
        %10470 = vmatmul.bf16.gmra.mxu0 %v9178
        %v10471 = vpop.f32.mrf.mxu0
        %v10472 = vadd.f32 %v10383, %v10471
        %v10473 = vpop.f32.mrf.mxu0
        %v10474 = vadd.f32 %v10385, %v10473
        %10475 = vmatmul.bf16.gmra.mxu0 %v9187
        %v10476 = vpop.f32.mrf.mxu0
        %v10477 = vadd.f32 %v10388, %v10476
        %v10478 = vpop.f32.mrf.mxu0
        %v10479 = vadd.f32 %v10390, %v10478
        %10480 = vmatmul.bf16.gmra.mxu0 %v9196
        %v10481 = vpop.f32.mrf.mxu0
        %v10482 = vadd.f32 %v10393, %v10481
        %v10483 = vpop.f32.mrf.mxu0
        %v10484 = vadd.f32 %v10395, %v10483
        %10485 = vdwg.mxu0
        %10486 = vmatpush.bf16.msra.mxu0 %v9701
        %10487 = vmatpush.bf16.msra.mxu0 %v9700
        %10488 = vmatpush.bf16.msra.mxu0 %v9699
        %10489 = vmatpush.bf16.msra.mxu0 %v9698
        %10490 = vmatpush.bf16.msra.mxu0 %v9697
        %10491 = vmatpush.bf16.msra.mxu0 %v9696
        %10492 = vmatpush.bf16.msra.mxu0 %v9695
        %10493 = vmatpush.bf16.msra.mxu0 %v9694
        %10494 = vmatmul.bf16.gmra.mxu0 %v9062
        %v10495 = vpop.f32.mrf.mxu0
        %v10496 = vadd.f32 %v10407, %v10495
        %v10497 = vpop.f32.mrf.mxu0
        %v10498 = vadd.f32 %v10409, %v10497
        %10499 = vmatmul.bf16.gmra.mxu0 %v9071
        %v10500 = vpop.f32.mrf.mxu0
        %v10501 = vadd.f32 %v10412, %v10500
        %v10502 = vpop.f32.mrf.mxu0
        %v10503 = vadd.f32 %v10414, %v10502
        %10504 = vmatmul.bf16.gmra.mxu0 %v9080
        %v10505 = vpop.f32.mrf.mxu0
        %v10506 = vadd.f32 %v10417, %v10505
        %v10507 = vpop.f32.mrf.mxu0
        %v10508 = vadd.f32 %v10419, %v10507
        %10509 = vmatmul.bf16.gmra.mxu0 %v9089
        %v10510 = vpop.f32.mrf.mxu0
        %v10511 = vadd.f32 %v10422, %v10510
        %v10512 = vpop.f32.mrf.mxu0
        %v10513 = vadd.f32 %v10424, %v10512
        %10514 = vmatmul.bf16.gmra.mxu0 %v9098
        %v10515 = vpop.f32.mrf.mxu0
        %v10516 = vadd.f32 %v10427, %v10515
        %v10517 = vpop.f32.mrf.mxu0
        %v10518 = vadd.f32 %v10429, %v10517
        %10519 = vmatmul.bf16.gmra.mxu0 %v9107
        %v10520 = vpop.f32.mrf.mxu0
        %v10521 = vadd.f32 %v10432, %v10520
        %v10522 = vpop.f32.mrf.mxu0
        %v10523 = vadd.f32 %v10434, %v10522
        %10524 = vmatmul.bf16.gmra.mxu0 %v9116
        %v10525 = vpop.f32.mrf.mxu0
        %v10526 = vadd.f32 %v10437, %v10525
        %v10527 = vpop.f32.mrf.mxu0
        %v10528 = vadd.f32 %v10439, %v10527
        %10529 = vmatmul.bf16.gmra.mxu0 %v9125
        %v10530 = vpop.f32.mrf.mxu0
        %v10531 = vadd.f32 %v10442, %v10530
        %v10532 = vpop.f32.mrf.mxu0
        %v10533 = vadd.f32 %v10444, %v10532
        %10534 = vmatmul.bf16.gmra.mxu0 %v9134
        %v10535 = vpop.f32.mrf.mxu0
        %v10536 = vadd.f32 %v10447, %v10535
        %v10537 = vpop.f32.mrf.mxu0
        %v10538 = vadd.f32 %v10449, %v10537
        %10539 = vmatmul.bf16.gmra.mxu0 %v9143
        %v10540 = vpop.f32.mrf.mxu0
        %v10541 = vadd.f32 %v10452, %v10540
        %v10542 = vpop.f32.mrf.mxu0
        %v10543 = vadd.f32 %v10454, %v10542
        %10544 = vmatmul.bf16.gmra.mxu0 %v9152
        %v10545 = vpop.f32.mrf.mxu0
        %v10546 = vadd.f32 %v10457, %v10545
        %v10547 = vpop.f32.mrf.mxu0
        %v10548 = vadd.f32 %v10459, %v10547
        %10549 = vmatmul.bf16.gmra.mxu0 %v9161
        %v10550 = vpop.f32.mrf.mxu0
        %v10551 = vadd.f32 %v10462, %v10550
        %v10552 = vpop.f32.mrf.mxu0
        %v10553 = vadd.f32 %v10464, %v10552
        %10554 = vmatmul.bf16.gmra.mxu0 %v9170
        %v10555 = vpop.f32.mrf.mxu0
        %v10556 = vadd.f32 %v10467, %v10555
        %v10557 = vpop.f32.mrf.mxu0
        %v10558 = vadd.f32 %v10469, %v10557
        %10559 = vmatmul.bf16.gmra.mxu0 %v9179
        %v10560 = vpop.f32.mrf.mxu0
        %v10561 = vadd.f32 %v10472, %v10560
        %v10562 = vpop.f32.mrf.mxu0
        %v10563 = vadd.f32 %v10474, %v10562
        %10564 = vmatmul.bf16.gmra.mxu0 %v9188
        %v10565 = vpop.f32.mrf.mxu0
        %v10566 = vadd.f32 %v10477, %v10565
        %v10567 = vpop.f32.mrf.mxu0
        %v10568 = vadd.f32 %v10479, %v10567
        %10569 = vmatmul.bf16.gmra.mxu0 %v9197
        %v10570 = vpop.f32.mrf.mxu0
        %v10571 = vadd.f32 %v10482, %v10570
        %v10572 = vpop.f32.mrf.mxu0
        %v10573 = vadd.f32 %v10484, %v10572
        %10574 = vdwg.mxu0
        %v10576 = vperm.slane %v335, 0
        %v10578 = vmul.f32 %v10496, %v10576
        %v10579 = vmul.f32 %v10498, %v10576
        %v10580 = vmul.f32 %v10501, %v10576
        %v10581 = vmul.f32 %v10503, %v10576
        %v10582 = vmul.f32 %v10506, %v10576
        %v10583 = vmul.f32 %v10508, %v10576
        %v10584 = vmul.f32 %v10511, %v10576
        %v10585 = vmul.f32 %v10513, %v10576
        %v10586 = vmul.f32 %v10516, %v10576
        %v10587 = vmul.f32 %v10518, %v10576
        %v10588 = vmul.f32 %v10521, %v10576
        %v10589 = vmul.f32 %v10523, %v10576
        %v10590 = vmul.f32 %v10526, %v10576
        %v10591 = vmul.f32 %v10528, %v10576
        %v10592 = vmul.f32 %v10531, %v10576
        %v10593 = vmul.f32 %v10533, %v10576
        %v10594 = vmul.f32 %v10536, %v10576
        %v10595 = vmul.f32 %v10538, %v10576
        %v10596 = vmul.f32 %v10541, %v10576
        %v10597 = vmul.f32 %v10543, %v10576
        %v10598 = vmul.f32 %v10546, %v10576
        %v10599 = vmul.f32 %v10548, %v10576
        %v10600 = vmul.f32 %v10551, %v10576
        %v10601 = vmul.f32 %v10553, %v10576
        %v10602 = vmul.f32 %v10556, %v10576
        %v10603 = vmul.f32 %v10558, %v10576
        %v10604 = vmul.f32 %v10561, %v10576
        %v10605 = vmul.f32 %v10563, %v10576
        %v10606 = vmul.f32 %v10566, %v10576
        %v10607 = vmul.f32 %v10568, %v10576
        %v10608 = vmul.f32 %v10571, %v10576
        %v10609 = vmul.f32 %v10573, %v10576
        %v10611 = vperm.slane %v336, 0
        %v10613 = vadd.f32 %v10578, %v10611
        %v10614 = vadd.f32 %v10579, %v10611
        %v10615 = vadd.f32 %v10580, %v10611
        %v10616 = vadd.f32 %v10581, %v10611
        %v10617 = vadd.f32 %v10582, %v10611
        %v10618 = vadd.f32 %v10583, %v10611
        %v10619 = vadd.f32 %v10584, %v10611
        %v10620 = vadd.f32 %v10585, %v10611
        %v10621 = vadd.f32 %v10586, %v10611
        %v10622 = vadd.f32 %v10587, %v10611
        %v10623 = vadd.f32 %v10588, %v10611
        %v10624 = vadd.f32 %v10589, %v10611
        %v10625 = vadd.f32 %v10590, %v10611
        %v10626 = vadd.f32 %v10591, %v10611
        %v10627 = vadd.f32 %v10592, %v10611
        %v10628 = vadd.f32 %v10593, %v10611
        %v10629 = vadd.f32 %v10594, %v10611
        %v10630 = vadd.f32 %v10595, %v10611
        %v10631 = vadd.f32 %v10596, %v10611
        %v10632 = vadd.f32 %v10597, %v10611
        %v10633 = vadd.f32 %v10598, %v10611
        %v10634 = vadd.f32 %v10599, %v10611
        %v10635 = vadd.f32 %v10600, %v10611
        %v10636 = vadd.f32 %v10601, %v10611
        %v10637 = vadd.f32 %v10602, %v10611
        %v10638 = vadd.f32 %v10603, %v10611
        %v10639 = vadd.f32 %v10604, %v10611
        %v10640 = vadd.f32 %v10605, %v10611
        %v10641 = vadd.f32 %v10606, %v10611
        %v10642 = vadd.f32 %v10607, %v10611
        %v10643 = vadd.f32 %v10608, %v10611
        %v10644 = vadd.f32 %v10609, %v10611
        %v10645 = vld [vmem:[%s1175] sm:$0xf]
        %v10646 = vld [vmem:[%s1175 + $0x4] sm:$0xf]
        %v10647 = vld [vmem:[%s1175 + $0x8] sm:$0x1]
        %v10648 = vld [vmem:[%s1175 + $0xc] sm:$0xf]
        %v10649 = vld [vmem:[%s1175 + $0x10] sm:$0xf]
        %v10650 = vld [vmem:[%s1175 + $0x14] sm:$0x1]
        %v10651 = vld [vmem:[%s1175 + $0x18] sm:$0xf]
        %v10652 = vld [vmem:[%s1175 + $0x1c] sm:$0xf]
        %v10653 = vld [vmem:[%s1175 + $0x20] sm:$0x1]
        %v10654 = vld [vmem:[%s1175 + $0x24] sm:$0xf]
        %v10655 = vld [vmem:[%s1175 + $0x28] sm:$0xf]
        %v10656 = vld [vmem:[%s1175 + $0x2c] sm:$0x1]
        %v10657 = vld [vmem:[%s1175 + $0x30] sm:$0xf]
        %v10658 = vld [vmem:[%s1175 + $0x34] sm:$0xf]
        %v10659 = vld [vmem:[%s1175 + $0x38] sm:$0x1]
        %v10660 = vld [vmem:[%s1175 + $0x3c] sm:$0xf]
        %v10661 = vld [vmem:[%s1175 + $0x40] sm:$0xf]
        %v10662 = vld [vmem:[%s1175 + $0x44] sm:$0x1]
        %v10663 = vld [vmem:[%s1175 + $0x48] sm:$0xf]
        %v10664 = vld [vmem:[%s1175 + $0x4c] sm:$0xf]
        %v10665 = vld [vmem:[%s1175 + $0x50] sm:$0x1]
        %v10666 = vld [vmem:[%s1175 + $0x54] sm:$0xf]
        %v10667 = vld [vmem:[%s1175 + $0x58] sm:$0xf]
        %v10668 = vld [vmem:[%s1175 + $0x5c] sm:$0x1]
        %v10669 = vld [vmem:[%s1175 + $0x60] sm:$0xf]
        %v10670 = vld [vmem:[%s1175 + $0x64] sm:$0xf]
        %v10671 = vld [vmem:[%s1175 + $0x68] sm:$0x1]
        %v10672 = vld [vmem:[%s1175 + $0x6c] sm:$0xf]
        %v10673 = vld [vmem:[%s1175 + $0x70] sm:$0xf]
        %v10674 = vld [vmem:[%s1175 + $0x74] sm:$0x1]
        %v10675 = vld [vmem:[%s1175 + $0x78] sm:$0xf]
        %v10676 = vld [vmem:[%s1175 + $0x7c] sm:$0xf]
        %v10677 = vld [vmem:[%s1175 + $0x80] sm:$0x1]
        %v10678 = vld [vmem:[%s1175 + $0x84] sm:$0xf]
        %v10679 = vld [vmem:[%s1175 + $0x88] sm:$0xf]
        %v10680 = vld [vmem:[%s1175 + $0x8c] sm:$0x1]
        %v10681 = vld [vmem:[%s1175 + $0x90] sm:$0xf]
        %v10682 = vld [vmem:[%s1175 + $0x94] sm:$0xf]
        %v10683 = vld [vmem:[%s1175 + $0x98] sm:$0x1]
        %v10684 = vld [vmem:[%s1175 + $0x9c] sm:$0xf]
        %v10685 = vld [vmem:[%s1175 + $0xa0] sm:$0xf]
        %v10686 = vld [vmem:[%s1175 + $0xa4] sm:$0x1]
        %v10687 = vld [vmem:[%s1175 + $0xa8] sm:$0xf]
        %v10688 = vld [vmem:[%s1175 + $0xac] sm:$0xf]
        %v10689 = vld [vmem:[%s1175 + $0xb0] sm:$0x1]
        %v10690 = vld [vmem:[%s1175 + $0xb4] sm:$0xf]
        %v10691 = vld [vmem:[%s1175 + $0xb8] sm:$0xf]
        %v10692 = vld [vmem:[%s1175 + $0xbc] sm:$0x1]
        %v10694 = vshrl.u32 %v10645, 16
        %v10696 = vrot.slane %v10694, 4
        %v10697 = vshll.u32 %v10645, 16
        %v10699 = vrot.slane %v10697, 5
        %v10700 = vor.u32 %v10696, %v10699
        %v10701 = vrot.slane %v10700, 4
        %v10703 = vshll.u32 %v10646, 16
        %v10705 = vrot.slane %v10703, 5
        %v10706 = vsel %vm451, %v10701, %v10705
        %v10707 = vshrl.u32 %v10646, 16
        %v10709 = vrot.slane %v10707, 4
        %v10710 = vor.u32 %v10709, %v10705
        %v10711 = vrot.slane %v10710, 4
        %v10713 = vshll.u32 %v10647, 16
        %v10715 = vrot.slane %v10713, 5
        %v10716 = vsel %vm451, %v10711, %v10715
        %v10718 = vshrl.u32 %v10648, 16
        %v10720 = vrot.slane %v10718, 4
        %v10721 = vshll.u32 %v10648, 16
        %v10723 = vrot.slane %v10721, 5
        %v10724 = vor.u32 %v10720, %v10723
        %v10725 = vrot.slane %v10724, 4
        %v10727 = vshll.u32 %v10649, 16
        %v10729 = vrot.slane %v10727, 5
        %v10730 = vsel %vm451, %v10725, %v10729
        %v10731 = vshrl.u32 %v10649, 16
        %v10733 = vrot.slane %v10731, 4
        %v10734 = vor.u32 %v10733, %v10729
        %v10735 = vrot.slane %v10734, 4
        %v10737 = vshll.u32 %v10650, 16
        %v10739 = vrot.slane %v10737, 5
        %v10740 = vsel %vm451, %v10735, %v10739
        %v10742 = vshrl.u32 %v10651, 16
        %v10744 = vrot.slane %v10742, 4
        %v10745 = vshll.u32 %v10651, 16
        %v10747 = vrot.slane %v10745, 5
        %v10748 = vor.u32 %v10744, %v10747
        %v10749 = vrot.slane %v10748, 4
        %v10751 = vshll.u32 %v10652, 16
        %v10753 = vrot.slane %v10751, 5
        %v10754 = vsel %vm451, %v10749, %v10753
        %v10755 = vshrl.u32 %v10652, 16
        %v10757 = vrot.slane %v10755, 4
        %v10758 = vor.u32 %v10757, %v10753
        %v10759 = vrot.slane %v10758, 4
        %v10761 = vshll.u32 %v10653, 16
        %v10763 = vrot.slane %v10761, 5
        %v10764 = vsel %vm451, %v10759, %v10763
        %v10766 = vshrl.u32 %v10654, 16
        %v10768 = vrot.slane %v10766, 4
        %v10769 = vshll.u32 %v10654, 16
        %v10771 = vrot.slane %v10769, 5
        %v10772 = vor.u32 %v10768, %v10771
        %v10773 = vrot.slane %v10772, 4
        %v10775 = vshll.u32 %v10655, 16
        %v10777 = vrot.slane %v10775, 5
        %v10778 = vsel %vm451, %v10773, %v10777
        %v10779 = vshrl.u32 %v10655, 16
        %v10781 = vrot.slane %v10779, 4
        %v10782 = vor.u32 %v10781, %v10777
        %v10783 = vrot.slane %v10782, 4
        %v10785 = vshll.u32 %v10656, 16
        %v10787 = vrot.slane %v10785, 5
        %v10788 = vsel %vm451, %v10783, %v10787
        %v10790 = vshrl.u32 %v10657, 16
        %v10792 = vrot.slane %v10790, 4
        %v10793 = vshll.u32 %v10657, 16
        %v10795 = vrot.slane %v10793, 5
        %v10796 = vor.u32 %v10792, %v10795
        %v10797 = vrot.slane %v10796, 4
        %v10799 = vshll.u32 %v10658, 16
        %v10801 = vrot.slane %v10799, 5
        %v10802 = vsel %vm451, %v10797, %v10801
        %v10803 = vshrl.u32 %v10658, 16
        %v10805 = vrot.slane %v10803, 4
        %v10806 = vor.u32 %v10805, %v10801
        %v10807 = vrot.slane %v10806, 4
        %v10809 = vshll.u32 %v10659, 16
        %v10811 = vrot.slane %v10809, 5
        %v10812 = vsel %vm451, %v10807, %v10811
        %v10814 = vshrl.u32 %v10660, 16
        %v10816 = vrot.slane %v10814, 4
        %v10817 = vshll.u32 %v10660, 16
        %v10819 = vrot.slane %v10817, 5
        %v10820 = vor.u32 %v10816, %v10819
        %v10821 = vrot.slane %v10820, 4
        %v10823 = vshll.u32 %v10661, 16
        %v10825 = vrot.slane %v10823, 5
        %v10826 = vsel %vm451, %v10821, %v10825
        %v10827 = vshrl.u32 %v10661, 16
        %v10829 = vrot.slane %v10827, 4
        %v10830 = vor.u32 %v10829, %v10825
        %v10831 = vrot.slane %v10830, 4
        %v10833 = vshll.u32 %v10662, 16
        %v10835 = vrot.slane %v10833, 5
        %v10836 = vsel %vm451, %v10831, %v10835
        %v10838 = vshrl.u32 %v10663, 16
        %v10840 = vrot.slane %v10838, 4
        %v10841 = vshll.u32 %v10663, 16
        %v10843 = vrot.slane %v10841, 5
        %v10844 = vor.u32 %v10840, %v10843
        %v10845 = vrot.slane %v10844, 4
        %v10847 = vshll.u32 %v10664, 16
        %v10849 = vrot.slane %v10847, 5
        %v10850 = vsel %vm451, %v10845, %v10849
        %v10851 = vshrl.u32 %v10664, 16
        %v10853 = vrot.slane %v10851, 4
        %v10854 = vor.u32 %v10853, %v10849
        %v10855 = vrot.slane %v10854, 4
        %v10857 = vshll.u32 %v10665, 16
        %v10859 = vrot.slane %v10857, 5
        %v10860 = vsel %vm451, %v10855, %v10859
        %v10862 = vshrl.u32 %v10666, 16
        %v10864 = vrot.slane %v10862, 4
        %v10865 = vshll.u32 %v10666, 16
        %v10867 = vrot.slane %v10865, 5
        %v10868 = vor.u32 %v10864, %v10867
        %v10869 = vrot.slane %v10868, 4
        %v10871 = vshll.u32 %v10667, 16
        %v10873 = vrot.slane %v10871, 5
        %v10874 = vsel %vm451, %v10869, %v10873
        %v10875 = vshrl.u32 %v10667, 16
        %v10877 = vrot.slane %v10875, 4
        %v10878 = vor.u32 %v10877, %v10873
        %v10879 = vrot.slane %v10878, 4
        %v10881 = vshll.u32 %v10668, 16
        %v10883 = vrot.slane %v10881, 5
        %v10884 = vsel %vm451, %v10879, %v10883
        %v10886 = vshrl.u32 %v10669, 16
        %v10888 = vrot.slane %v10886, 4
        %v10889 = vshll.u32 %v10669, 16
        %v10891 = vrot.slane %v10889, 5
        %v10892 = vor.u32 %v10888, %v10891
        %v10893 = vrot.slane %v10892, 4
        %v10895 = vshll.u32 %v10670, 16
        %v10897 = vrot.slane %v10895, 5
        %v10898 = vsel %vm451, %v10893, %v10897
        %v10899 = vshrl.u32 %v10670, 16
        %v10901 = vrot.slane %v10899, 4
        %v10902 = vor.u32 %v10901, %v10897
        %v10903 = vrot.slane %v10902, 4
        %v10905 = vshll.u32 %v10671, 16
        %v10907 = vrot.slane %v10905, 5
        %v10908 = vsel %vm451, %v10903, %v10907
        %v10910 = vshrl.u32 %v10672, 16
        %v10912 = vrot.slane %v10910, 4
        %v10913 = vshll.u32 %v10672, 16
        %v10915 = vrot.slane %v10913, 5
        %v10916 = vor.u32 %v10912, %v10915
        %v10917 = vrot.slane %v10916, 4
        %v10919 = vshll.u32 %v10673, 16
        %v10921 = vrot.slane %v10919, 5
        %v10922 = vsel %vm451, %v10917, %v10921
        %v10923 = vshrl.u32 %v10673, 16
        %v10925 = vrot.slane %v10923, 4
        %v10926 = vor.u32 %v10925, %v10921
        %v10927 = vrot.slane %v10926, 4
        %v10929 = vshll.u32 %v10674, 16
        %v10931 = vrot.slane %v10929, 5
        %v10932 = vsel %vm451, %v10927, %v10931
        %v10934 = vshrl.u32 %v10675, 16
        %v10936 = vrot.slane %v10934, 4
        %v10937 = vshll.u32 %v10675, 16
        %v10939 = vrot.slane %v10937, 5
        %v10940 = vor.u32 %v10936, %v10939
        %v10941 = vrot.slane %v10940, 4
        %v10943 = vshll.u32 %v10676, 16
        %v10945 = vrot.slane %v10943, 5
        %v10946 = vsel %vm451, %v10941, %v10945
        %v10947 = vshrl.u32 %v10676, 16
        %v10949 = vrot.slane %v10947, 4
        %v10950 = vor.u32 %v10949, %v10945
        %v10951 = vrot.slane %v10950, 4
        %v10953 = vshll.u32 %v10677, 16
        %v10955 = vrot.slane %v10953, 5
        %v10956 = vsel %vm451, %v10951, %v10955
        %v10958 = vshrl.u32 %v10678, 16
        %v10960 = vrot.slane %v10958, 4
        %v10961 = vshll.u32 %v10678, 16
        %v10963 = vrot.slane %v10961, 5
        %v10964 = vor.u32 %v10960, %v10963
        %v10965 = vrot.slane %v10964, 4
        %v10967 = vshll.u32 %v10679, 16
        %v10969 = vrot.slane %v10967, 5
        %v10970 = vsel %vm451, %v10965, %v10969
        %v10971 = vshrl.u32 %v10679, 16
        %v10973 = vrot.slane %v10971, 4
        %v10974 = vor.u32 %v10973, %v10969
        %v10975 = vrot.slane %v10974, 4
        %v10977 = vshll.u32 %v10680, 16
        %v10979 = vrot.slane %v10977, 5
        %v10980 = vsel %vm451, %v10975, %v10979
        %v10982 = vshrl.u32 %v10681, 16
        %v10984 = vrot.slane %v10982, 4
        %v10985 = vshll.u32 %v10681, 16
        %v10987 = vrot.slane %v10985, 5
        %v10988 = vor.u32 %v10984, %v10987
        %v10989 = vrot.slane %v10988, 4
        %v10991 = vshll.u32 %v10682, 16
        %v10993 = vrot.slane %v10991, 5
        %v10994 = vsel %vm451, %v10989, %v10993
        %v10995 = vshrl.u32 %v10682, 16
        %v10997 = vrot.slane %v10995, 4
        %v10998 = vor.u32 %v10997, %v10993
        %v10999 = vrot.slane %v10998, 4
        %v11001 = vshll.u32 %v10683, 16
        %v11003 = vrot.slane %v11001, 5
        %v11004 = vsel %vm451, %v10999, %v11003
        %v11006 = vshrl.u32 %v10684, 16
        %v11008 = vrot.slane %v11006, 4
        %v11009 = vshll.u32 %v10684, 16
        %v11011 = vrot.slane %v11009, 5
        %v11012 = vor.u32 %v11008, %v11011
        %v11013 = vrot.slane %v11012, 4
        %v11015 = vshll.u32 %v10685, 16
        %v11017 = vrot.slane %v11015, 5
        %v11018 = vsel %vm451, %v11013, %v11017
        %v11019 = vshrl.u32 %v10685, 16
        %v11021 = vrot.slane %v11019, 4
        %v11022 = vor.u32 %v11021, %v11017
        %v11023 = vrot.slane %v11022, 4
        %v11025 = vshll.u32 %v10686, 16
        %v11027 = vrot.slane %v11025, 5
        %v11028 = vsel %vm451, %v11023, %v11027
        %v11030 = vshrl.u32 %v10687, 16
        %v11032 = vrot.slane %v11030, 4
        %v11033 = vshll.u32 %v10687, 16
        %v11035 = vrot.slane %v11033, 5
        %v11036 = vor.u32 %v11032, %v11035
        %v11037 = vrot.slane %v11036, 4
        %v11039 = vshll.u32 %v10688, 16
        %v11041 = vrot.slane %v11039, 5
        %v11042 = vsel %vm451, %v11037, %v11041
        %v11043 = vshrl.u32 %v10688, 16
        %v11045 = vrot.slane %v11043, 4
        %v11046 = vor.u32 %v11045, %v11041
        %v11047 = vrot.slane %v11046, 4
        %v11049 = vshll.u32 %v10689, 16
        %v11051 = vrot.slane %v11049, 5
        %v11052 = vsel %vm451, %v11047, %v11051
        %v11054 = vshrl.u32 %v10690, 16
        %v11056 = vrot.slane %v11054, 4
        %v11057 = vshll.u32 %v10690, 16
        %v11059 = vrot.slane %v11057, 5
        %v11060 = vor.u32 %v11056, %v11059
        %v11061 = vrot.slane %v11060, 4
        %v11063 = vshll.u32 %v10691, 16
        %v11065 = vrot.slane %v11063, 5
        %v11066 = vsel %vm451, %v11061, %v11065
        %v11067 = vshrl.u32 %v10691, 16
        %v11069 = vrot.slane %v11067, 4
        %v11070 = vor.u32 %v11069, %v11065
        %v11071 = vrot.slane %v11070, 4
        %v11073 = vshll.u32 %v10692, 16
        %v11075 = vrot.slane %v11073, 5
        %v11076 = vsel %vm451, %v11071, %v11075
        %v11109 = vunpack.c.l.bf16 %v10706
        %v11110 = vunpack.c.l.bf16 %v10716
        %v11111 = vunpack.c.l.bf16 %v10730
        %v11112 = vunpack.c.l.bf16 %v10740
        %v11113 = vunpack.c.l.bf16 %v10754
        %v11114 = vunpack.c.l.bf16 %v10764
        %v11115 = vunpack.c.l.bf16 %v10778
        %v11116 = vunpack.c.l.bf16 %v10788
        %v11117 = vunpack.c.l.bf16 %v10802
        %v11118 = vunpack.c.l.bf16 %v10812
        %v11119 = vunpack.c.l.bf16 %v10826
        %v11120 = vunpack.c.l.bf16 %v10836
        %v11121 = vunpack.c.l.bf16 %v10850
        %v11122 = vunpack.c.l.bf16 %v10860
        %v11123 = vunpack.c.l.bf16 %v10874
        %v11124 = vunpack.c.l.bf16 %v10884
        %v11125 = vunpack.c.l.bf16 %v10898
        %v11126 = vunpack.c.l.bf16 %v10908
        %v11127 = vunpack.c.l.bf16 %v10922
        %v11128 = vunpack.c.l.bf16 %v10932
        %v11129 = vunpack.c.l.bf16 %v10946
        %v11130 = vunpack.c.l.bf16 %v10956
        %v11131 = vunpack.c.l.bf16 %v10970
        %v11132 = vunpack.c.l.bf16 %v10980
        %v11133 = vunpack.c.l.bf16 %v10994
        %v11134 = vunpack.c.l.bf16 %v11004
        %v11135 = vunpack.c.l.bf16 %v11018
        %v11136 = vunpack.c.l.bf16 %v11028
        %v11137 = vunpack.c.l.bf16 %v11042
        %v11138 = vunpack.c.l.bf16 %v11052
        %v11139 = vunpack.c.l.bf16 %v11066
        %v11140 = vunpack.c.l.bf16 %v11076
        %v11141 = vadd.f32 %v10613, %v11109
        %v11142 = vadd.f32 %v10614, %v11110
        %v11143 = vadd.f32 %v10615, %v11111
        %v11144 = vadd.f32 %v10616, %v11112
        %v11145 = vadd.f32 %v10617, %v11113
        %v11146 = vadd.f32 %v10618, %v11114
        %v11147 = vadd.f32 %v10619, %v11115
        %v11148 = vadd.f32 %v10620, %v11116
        %v11149 = vadd.f32 %v10621, %v11117
        %v11150 = vadd.f32 %v10622, %v11118
        %v11151 = vadd.f32 %v10623, %v11119
        %v11152 = vadd.f32 %v10624, %v11120
        %v11153 = vadd.f32 %v10625, %v11121
        %v11154 = vadd.f32 %v10626, %v11122
        %v11155 = vadd.f32 %v10627, %v11123
        %v11156 = vadd.f32 %v10628, %v11124
        %v11157 = vadd.f32 %v10629, %v11125
        %v11158 = vadd.f32 %v10630, %v11126
        %v11159 = vadd.f32 %v10631, %v11127
        %v11160 = vadd.f32 %v10632, %v11128
        %v11161 = vadd.f32 %v10633, %v11129
        %v11162 = vadd.f32 %v10634, %v11130
        %v11163 = vadd.f32 %v10635, %v11131
        %v11164 = vadd.f32 %v10636, %v11132
        %v11165 = vadd.f32 %v10637, %v11133
        %v11166 = vadd.f32 %v10638, %v11134
        %v11167 = vadd.f32 %v10639, %v11135
        %v11168 = vadd.f32 %v10640, %v11136
        %v11169 = vadd.f32 %v10641, %v11137
        %v11170 = vadd.f32 %v10642, %v11138
        %v11171 = vadd.f32 %v10643, %v11139
        %v11172 = vadd.f32 %v10644, %v11140
        %v11173 = vmax.f32 %v11141, 0.0
        %v11174 = vmax.f32 %v11142, 0.0
        %v11175 = vmax.f32 %v11143, 0.0
        %v11176 = vmax.f32 %v11144, 0.0
        %v11177 = vmax.f32 %v11145, 0.0
        %v11178 = vmax.f32 %v11146, 0.0
        %v11179 = vmax.f32 %v11147, 0.0
        %v11180 = vmax.f32 %v11148, 0.0
        %v11181 = vmax.f32 %v11149, 0.0
        %v11182 = vmax.f32 %v11150, 0.0
        %v11183 = vmax.f32 %v11151, 0.0
        %v11184 = vmax.f32 %v11152, 0.0
        %v11185 = vmax.f32 %v11153, 0.0
        %v11186 = vmax.f32 %v11154, 0.0
        %v11187 = vmax.f32 %v11155, 0.0
        %v11188 = vmax.f32 %v11156, 0.0
        %v11189 = vmax.f32 %v11157, 0.0
        %v11190 = vmax.f32 %v11158, 0.0
        %v11191 = vmax.f32 %v11159, 0.0
        %v11192 = vmax.f32 %v11160, 0.0
        %v11193 = vmax.f32 %v11161, 0.0
        %v11194 = vmax.f32 %v11162, 0.0
        %v11195 = vmax.f32 %v11163, 0.0
        %v11196 = vmax.f32 %v11164, 0.0
        %v11197 = vmax.f32 %v11165, 0.0
        %v11198 = vmax.f32 %v11166, 0.0
        %v11199 = vmax.f32 %v11167, 0.0
        %v11200 = vmax.f32 %v11168, 0.0
        %v11201 = vmax.f32 %v11169, 0.0
        %v11202 = vmax.f32 %v11170, 0.0
        %v11203 = vmax.f32 %v11171, 0.0
        %v11204 = vmax.f32 %v11172, 0.0
        %11205 = vst [vmem:[%s331] sm:$0xff] %v11173
        %11206 = vst [vmem:[%s331 + $0x8] sm:$0xff] %v11174
        %11207 = vst [vmem:[%s331 + $0x10] sm:$0xff] %v11175
        %11208 = vst [vmem:[%s331 + $0x18] sm:$0xff] %v11176
        %11209 = vst [vmem:[%s331 + $0x20] sm:$0xff] %v11177
        %11210 = vst [vmem:[%s331 + $0x28] sm:$0xff] %v11178
        %11211 = vst [vmem:[%s331 + $0x30] sm:$0xff] %v11179
        %11212 = vst [vmem:[%s331 + $0x38] sm:$0xff] %v11180
        %11213 = vst [vmem:[%s331 + $0x40] sm:$0xff] %v11181
        %11214 = vst [vmem:[%s331 + $0x48] sm:$0xff] %v11182
        %11215 = vst [vmem:[%s331 + $0x50] sm:$0xff] %v11183
        %11216 = vst [vmem:[%s331 + $0x58] sm:$0xff] %v11184
        %11217 = vst [vmem:[%s331 + $0x60] sm:$0xff] %v11185
        %11218 = vst [vmem:[%s331 + $0x68] sm:$0xff] %v11186
        %11219 = vst [vmem:[%s331 + $0x70] sm:$0xff] %v11187
        %11220 = vst [vmem:[%s331 + $0x78] sm:$0xff] %v11188
        %11221 = vst [vmem:[%s331 + $0x80] sm:$0xff] %v11189
        %11222 = vst [vmem:[%s331 + $0x88] sm:$0xff] %v11190
        %11223 = vst [vmem:[%s331 + $0x90] sm:$0xff] %v11191
        %11224 = vst [vmem:[%s331 + $0x98] sm:$0xff] %v11192
        %11225 = vst [vmem:[%s331 + $0xa0] sm:$0xff] %v11193
        %11226 = vst [vmem:[%s331 + $0xa8] sm:$0xff] %v11194
        %11227 = vst [vmem:[%s331 + $0xb0] sm:$0xff] %v11195
        %11228 = vst [vmem:[%s331 + $0xb8] sm:$0xff] %v11196
        %11229 = vst [vmem:[%s331 + $0xc0] sm:$0xff] %v11197
        %11230 = vst [vmem:[%s331 + $0xc8] sm:$0xff] %v11198
        %11231 = vst [vmem:[%s331 + $0xd0] sm:$0xff] %v11199
        %11232 = vst [vmem:[%s331 + $0xd8] sm:$0xff] %v11200
        %11233 = vst [vmem:[%s331 + $0xe0] sm:$0xff] %v11201
        %11234 = vst [vmem:[%s331 + $0xe8] sm:$0xff] %v11202
        %11235 = vst [vmem:[%s331 + $0xf0] sm:$0xff] %v11203
        %11236 = vst [vmem:[%s331 + $0xf8] sm:$0xff] %v11204
        %s11237 = sand.u32 %s185, 1
        %s11238 = scalar_lea.sflag [#allocation6], %s11237
        %s11239 = sand.u32 %s185, 1
        %s11240 = smul.addr %s11239, 256
        %s11241 = scalar_lea.vmem [#allocation10], %s11240
        // Predicated region
        $region61: #{tpu_custom_call.1} parent=47 // pred_check
          %p11242 = pneg %p195
        $region62: #{tpu_custom_call.1} parent=47 // pred_check_branch
          %11244 = sbr.rel (%p11242) target = $region64
        $region63: #{tpu_custom_call.1} parent=47 // pred_region
          %11246 = vsyncadd %s11238, 0
          %s11247 = smul.addr %s25, 32
          %s11248 = smul.addr %s11247, 8
          %s11249 = scalar_lea.hbm %s7, %s11248
          %s11250 = sshll.u32 %s11241, 4
          %s11251 = int_to_ptr.vmem [resolvable:$true] %s11250
          %s11252 = sshll.u32 %s11249, 4
          %s11253 = int_to_ptr.hbm [resolvable:$true] %s11252
          %11258 = dma.vmem_to_hbm [thread:$0]  %s11251, 4096, %s11253, %s11238, 128, 128, 8
        $region64: #{tpu_custom_call.1} parent=47 // pred_fallthru
          _
      $region48: #{tpu_custom_call.1} parent=5 // pred_fallthru
        _
      %p11259 = scmp.le.s32.totalorder 2, %s20
      // Predicated region
      $region65: #{tpu_custom_call.1} parent=5 // pred_check
        %p11260 = pneg %p11259
      $region66: #{tpu_custom_call.1} parent=5 // pred_check_branch
        %11262 = sbr.rel (%p11260) target = $region68
      $region67: #{tpu_custom_call.1} parent=5 // pred_region
        %s11263 = ssub.s32 %s20, 2
        // Predicated region
        $region69: #{tpu_custom_call.1} parent=67 // pred_check
          %p11264 = pneg %p201
        $region70: #{tpu_custom_call.1} parent=67 // pred_check_branch
          %11266 = sbr.rel (%p11264) target = $region72
        $region71: #{tpu_custom_call.1} parent=67 // pred_region
          %s11267 = sand.u32 %s186, 1
          %s11268 = scalar_lea.sflag [#allocation6], %s11267
          %s11269 = sand.u32 %s186, 1
          %s11270 = smul.addr %s11269, 256
          %s11271 = scalar_lea.vmem [#allocation10], %s11270
          %11273 = dma.done %s11268, 4096
        $region72: #{tpu_custom_call.1} parent=67 // pred_fallthru
          _
      $region68: #{tpu_custom_call.1} parent=5 // pred_fallthru
        _
    $region6: #{tpu_custom_call.1} parent=1 // loop_footer
      %s24 = sadd.s32 1, %s20
    $region7: #{tpu_custom_call.1} parent=1 // loop_footer_branch
      %19 = sbr.rel target = $region3
    $region8: #{tpu_custom_call.1} parent=1 // loop_exit
      _
    %11274 = vsyncpa [#allocation5], 1
    %s11275 = scalar_lea.sflag [#allocation5], 1
    %11276 = vsyncpa %s11275, 1
    %11277 = vsyncpa [#allocation8], 1
    %11278 = vsyncpa [#allocation6], 1
    %s11279 = scalar_lea.sflag [#allocation6], 1
    %11280 = vsyncpa %s11279, 1

</llo_original>
